<compile_context>
chip_gen: v7x
topology: tpu7x:2x2x1
jax: 0.10.0
libtpu: 0.0.40
codegen_flags: <defaults>
</compile_context>

<pallas_src>
import functools

import jax
import jax.numpy as jnp
from jax import lax
from jax.experimental import pallas as pl
from jax.experimental.pallas import tpu as pltpu


def _conv_bn_kernel(x_ref, w_ref, gamma_ref, beta_ref, o_ref, *, m_valid, eps):
    # x_ref:     (Cin, Mp)   channel-major input, columns >= m_valid are zero
    # w_ref:     (Tn, Cin)   weight tile in native (Cout, Cin) layout
    # gamma_ref: (Tn, 1)     BN scale tile
    # beta_ref:  (Tn, 1)     BN shift tile
    # o_ref:     (Tn, Mp)    output tile (channel-major)
    x = x_ref[...]
    w = w_ref[...]

    # Canonical MXU matmul: contraction over Cin (LHS lanes x RHS sublanes).
    y = jnp.dot(w, x, preferred_element_type=jnp.float32)        # (Tn, Mp)

    # Per-output-channel batch statistics over the M (lane) axis. Zero-padded
    # columns of x produce exactly-zero columns of y, so sums are unaffected.
    inv_m = 1.0 / float(m_valid)
    mean = jnp.sum(y, axis=1, keepdims=True) * inv_m              # (Tn, 1)
    var = jnp.sum(y * y, axis=1, keepdims=True) * inv_m - mean * mean
    var = jnp.maximum(var, 0.0)                                   # guard cancellation

    inv_std = lax.rsqrt(var + eps)
    a = gamma_ref[...] * inv_std                                  # (Tn, 1)
    b = beta_ref[...] - mean * a                                  # (Tn, 1)
    o_ref[...] = (y * a + b).astype(o_ref.dtype)


@functools.partial(jax.jit, static_argnames=("eps", "n_tiles"))
def conv1x1_batchnorm(x_nchw, w_oihw, gamma, beta, *, eps=1e-3, n_tiles=1):
    """Conv2d(1x1, no bias) + BatchNorm2d (training mode, batch stats)."""
    N, Cin, H, W = x_nchw.shape
    Cout = w_oihw.shape[0]
    M = N * H * W
    Mp = ((M + 127) // 128) * 128            # lane multiple (49 -> 128)

    assert Cout % n_tiles == 0
    tn = Cout // n_tiles
    assert tn % 8 == 0                        # sublane multiple

    # Channel-major (Cin, M). For N=1 this is a pure reshape of NCHW.
    x_cm = jnp.transpose(x_nchw, (1, 0, 2, 3)).reshape(Cin, M).astype(jnp.float32)
    x_pad = jnp.pad(x_cm, ((0, 0), (0, Mp - M)))

    w_mat = w_oihw.reshape(Cout, Cin).astype(jnp.float32)         # native layout
    g_col = gamma.astype(jnp.float32).reshape(Cout, 1)
    b_col = beta.astype(jnp.float32).reshape(Cout, 1)

    kernel = functools.partial(_conv_bn_kernel, m_valid=M, eps=eps)

    out_pad = pl.pallas_call(
        kernel,
        out_shape=jax.ShapeDtypeStruct((Cout, Mp), jnp.float32),
        grid=(n_tiles,),
        in_specs=[
            pl.BlockSpec((Cin, Mp), lambda j: (0, 0)),   # x: same block every step
            pl.BlockSpec((tn, Cin), lambda j: (j, 0)),   # weight tile
            pl.BlockSpec((tn, 1), lambda j: (j, 0)),     # gamma tile
            pl.BlockSpec((tn, 1), lambda j: (j, 0)),     # beta tile
        ],
        out_specs=pl.BlockSpec((tn, Mp), lambda j: (j, 0)),
        compiler_params=pltpu.CompilerParams(
            dimension_semantics=("parallel",),
        ),
    )(x_pad, w_mat, g_col, b_col)

    # (Cout, Mp) -> NCHW (free reshape/transpose for N=1, fused under jit).
    out = out_pad[:, :M].reshape(Cout, N, H, W)
    return jnp.transpose(out, (1, 0, 2, 3))


def _pick_n_tiles(cout):
    """2 balanced tiles on dual-TC v7x, 1 tile on single-TC v5e/v6e."""
    try:
        kind = jax.devices()[0].device_kind.lower()
    except Exception:
        kind = ""
    n = 2 if "v7" in kind else 1
    if cout % n != 0 or (cout // n) % 8 != 0:
        n = 1
    return n


if __name__ == "__main__":
    key = jax.random.PRNGKey(0)
    k_x, k_w = jax.random.split(key)

    N, Cin, H, W = 1, 304, 7, 7
    Cout = 1824

    x = jax.random.normal(k_x, (N, Cin, H, W), dtype=jnp.float32)
    # Conv2d weight (Cout, Cin, 1, 1); Kaiming-uniform-ish scale.
    fan_in = Cin
    bound = 1.0 / (fan_in ** 0.5)
    w = jax.random.uniform(k_w, (Cout, Cin, 1, 1), dtype=jnp.float32,
                           minval=-bound, maxval=bound)
    # PyTorch BatchNorm2d default affine init.
    gamma = jnp.ones((Cout,), dtype=jnp.float32)
    beta = jnp.zeros((Cout,), dtype=jnp.float32)

    n_tiles = _pick_n_tiles(Cout)
    out = conv1x1_batchnorm(x, w, gamma, beta, eps=1e-3, n_tiles=n_tiles)
    jax.block_until_ready(out)

    # Sanity check against a pure-JAX reference.
    x_flat = jnp.transpose(x, (0, 2, 3, 1)).reshape(N * H * W, Cin)
    y_ref = x_flat @ w.reshape(Cout, Cin).T
    mean = y_ref.mean(axis=0)
    var = y_ref.var(axis=0)
    bn_ref = (y_ref - mean) / jnp.sqrt(var + 1e-3) * gamma + beta
    ref = jnp.transpose(bn_ref.reshape(N, H, W, Cout), (0, 3, 1, 2))
    assert out.shape == (N, Cout, H, W)
    assert jnp.allclose(out, ref, atol=1e-3, rtol=1e-3)

    print("KERNEL_OK")
</pallas_src>

<mosaic_0001>
module attributes {stable_mosaic.version = 11 : i64} {
  func.func @_conv_bn_kernel(%arg0: i32, %arg1: memref<304x128xf32, #tpu.memory_space<vmem>>, %arg2: memref<1824x304xf32, #tpu.memory_space<vmem>>, %arg3: memref<1824x1xf32, #tpu.memory_space<vmem>>, %arg4: memref<1824x1xf32, #tpu.memory_space<vmem>>, %arg5: memref<1824x128xf32, #tpu.memory_space<vmem>>) attributes {dimension_semantics = [#tpu.dimension_semantics<parallel>], iteration_bounds = array<i64: 1>, scalar_prefetch = 0 : i64, scratch_operands = 0 : i64, tpu.core_type = #tpu.core_type<tc>, window_params = [{pipeline_mode = #tpu.pipeline_mode<synchronous>, transform_indices = @transform_0, window_bounds = array<i64: 304, 128>}, {transform_indices = @transform_1, window_bounds = array<i64: 1824, 304>}, {transform_indices = @transform_2, window_bounds = array<i64: 1824, 1>}, {transform_indices = @transform_3, window_bounds = array<i64: 1824, 1>}, {transform_indices = @transform_4, window_bounds = array<i64: 1824, 128>}]} {
    %c0 = arith.constant 0 : index
    %c0_0 = arith.constant 0 : index
    %0 = vector.load %arg1[%c0, %c0_0] : memref<304x128xf32, #tpu.memory_space<vmem>>, vector<304x128xf32>
    %c0_1 = arith.constant 0 : index
    %c0_2 = arith.constant 0 : index
    %1 = vector.load %arg2[%c0_1, %c0_2] : memref<1824x304xf32, #tpu.memory_space<vmem>>, vector<1824x304xf32>
    %cst = arith.constant dense<0.000000e+00> : vector<1824x128xf32>
    %2 = tpu.matmul %1, %0, %cst {dimension_numbers = #tpu.dot_dimension_numbers<[1], [0], [0], [1], [0, 0, 1, 1], [], []>} : vector<1824x304xf32>, vector<304x128xf32>, vector<1824x128xf32> -> vector<1824x128xf32>
    %cst_3 = arith.constant dense<0.000000e+00> : vector<1824xf32>
    %3 = vector.multi_reduction <add>, %2, %cst_3 [1] : vector<1824x128xf32> to vector<1824xf32>
    %4 = vector.shape_cast %3 : vector<1824xf32> to vector<1824x1xf32>
    %cst_4 = arith.constant 0.0204081628 : f32
    %5 = vector.broadcast %cst_4 : f32 to vector<1824x1xf32>
    %6 = arith.mulf %4, %5 : vector<1824x1xf32>
    %7 = arith.mulf %2, %2 : vector<1824x128xf32>
    %cst_5 = arith.constant dense<0.000000e+00> : vector<1824xf32>
    %8 = vector.multi_reduction <add>, %7, %cst_5 [1] : vector<1824x128xf32> to vector<1824xf32>
    %9 = vector.shape_cast %8 : vector<1824xf32> to vector<1824x1xf32>
    %cst_6 = arith.constant 0.0204081628 : f32
    %10 = vector.broadcast %cst_6 : f32 to vector<1824x1xf32>
    %11 = arith.mulf %9, %10 : vector<1824x1xf32>
    %12 = arith.mulf %6, %6 : vector<1824x1xf32>
    %13 = arith.subf %11, %12 : vector<1824x1xf32>
    %cst_7 = arith.constant 0.000000e+00 : f32
    %14 = vector.broadcast %cst_7 : f32 to vector<1824x1xf32>
    %15 = arith.maximumf %13, %14 : vector<1824x1xf32>
    %cst_8 = arith.constant 1.000000e-03 : f32
    %16 = vector.broadcast %cst_8 : f32 to vector<1824x1xf32>
    %17 = arith.addf %15, %16 : vector<1824x1xf32>
    %18 = math.rsqrt %17 : vector<1824x1xf32>
    %c0_9 = arith.constant 0 : index
    %c0_10 = arith.constant 0 : index
    %19 = vector.load %arg3[%c0_9, %c0_10] : memref<1824x1xf32, #tpu.memory_space<vmem>>, vector<1824x1xf32>
    %20 = arith.mulf %19, %18 : vector<1824x1xf32>
    %c0_11 = arith.constant 0 : index
    %c0_12 = arith.constant 0 : index
    %21 = vector.load %arg4[%c0_11, %c0_12] : memref<1824x1xf32, #tpu.memory_space<vmem>>, vector<1824x1xf32>
    %22 = arith.mulf %6, %20 : vector<1824x1xf32>
    %23 = arith.subf %21, %22 : vector<1824x1xf32>
    %24 = vector.broadcast %20 : vector<1824x1xf32> to vector<1824x128xf32>
    %25 = arith.mulf %2, %24 : vector<1824x128xf32>
    %26 = vector.broadcast %23 : vector<1824x1xf32> to vector<1824x128xf32>
    %27 = arith.addf %25, %26 : vector<1824x128xf32>
    %c0_13 = arith.constant 0 : index
    %c0_14 = arith.constant 0 : index
    %28 = vector.load %arg5[%c0_13, %c0_14] : memref<1824x128xf32, #tpu.memory_space<vmem>>, vector<1824x128xf32>
    tpu.vector_store %arg5[%c0_13, %c0_14], %27 {strides = array<i32>} : memref<1824x128xf32, #tpu.memory_space<vmem>>, vector<1824x128xf32>,
    return
  }
  func.func @transform_0(%arg0: i32) -> (i32, i32) {
    %c0_i32 = arith.constant 0 : i32
    %c0_i32_0 = arith.constant 0 : i32
    %c0_i32_1 = arith.constant 0 : i32
    return %c0_i32, %c0_i32_0 : i32, i32
  }
  func.func @transform_1(%arg0: i32) -> (i32, i32) {
    %c0_i32 = arith.constant 0 : i32
    %c0_i32_0 = arith.constant 0 : i32
    return %arg0, %c0_i32 : i32, i32
  }
  func.func @transform_2(%arg0: i32) -> (i32, i32) {
    %c0_i32 = arith.constant 0 : i32
    %c0_i32_0 = arith.constant 0 : i32
    return %arg0, %c0_i32 : i32, i32
  }
  func.func @transform_3(%arg0: i32) -> (i32, i32) {
    %c0_i32 = arith.constant 0 : i32
    %c0_i32_0 = arith.constant 0 : i32
    return %arg0, %c0_i32 : i32, i32
  }
  func.func @transform_4(%arg0: i32) -> (i32, i32) {
    %c0_i32 = arith.constant 0 : i32
    %c0_i32_0 = arith.constant 0 : i32
    return %arg0, %c0_i32 : i32, i32
  }
}

</mosaic_0001>

<llo_original>
// kernel: conv1x1_batchnorm.1
$region0: #{conv1x1_batchnorm.1}
  #allocation0 [shape = 'u32[]', space=smem, size = 0x4, offset = 0x4, fixed_abs, tag = 'smem constant byte address 0x4 - core index']
  #allocation1 [shape = 'u32[144,128]{1,0:T(1,128)}', space=vmem, size = 0x12000, scoped, tag = 'internal scratch']
  %s0 = inlined_call_operand.vmem [shape: f32[304,128], index: 0, kind: input, shape index: {}]
  %s1 = inlined_call_operand.vmem [shape: f32[1824,304], index: 1, kind: input, shape index: {}]
  %s2 = inlined_call_operand.vmem [shape: f32[1824,1], index: 2, kind: input, shape index: {}]
  %s3 = inlined_call_operand.vmem [shape: f32[1824,1], index: 3, kind: input, shape index: {}]
  %s4 = inlined_call_operand.vmem [shape: f32[1824,128], index: 4, kind: output, shape index: {}]
  %s5 = sld [smem:[#allocation0]]
  $region26: #{conv1x1_batchnorm.1} parent=0
    _
  %s7 = ssub.s32 1, %s5
  %s8 = scalar_select 0, %s7, %s5
  // Predicated region
  $region2: #{conv1x1_batchnorm.1} parent=0 // pred_check
    _
  $region3: #{conv1x1_batchnorm.1} parent=0 // pred_check_branch
    %10 = sbr.rel (0) target = $region5
  $region4: #{conv1x1_batchnorm.1} parent=0 // pred_region
    _
  $region5: #{conv1x1_batchnorm.1} parent=0 // pred_fallthru
    _
  // Predicated region
  $region6: #{conv1x1_batchnorm.1} parent=0 // pred_check
    _
  $region7: #{conv1x1_batchnorm.1} parent=0 // pred_check_branch
    %12 = sbr.rel (0) target = $region9
  $region8: #{conv1x1_batchnorm.1} parent=0 // pred_region
    _
  $region9: #{conv1x1_batchnorm.1} parent=0 // pred_fallthru
    _
  // Predicated region
  $region10: #{conv1x1_batchnorm.1} parent=0 // pred_check
    _
  $region11: #{conv1x1_batchnorm.1} parent=0 // pred_check_branch
    %14 = sbr.rel (0) target = $region13
  $region12: #{conv1x1_batchnorm.1} parent=0 // pred_region
    _
  $region13: #{conv1x1_batchnorm.1} parent=0 // pred_fallthru
    _
  // Predicated region
  $region14: #{conv1x1_batchnorm.1} parent=0 // pred_check
    _
  $region15: #{conv1x1_batchnorm.1} parent=0 // pred_check_branch
    %16 = sbr.rel (0) target = $region17
  $region16: #{conv1x1_batchnorm.1} parent=0 // pred_region
    _
  $region17: #{conv1x1_batchnorm.1} parent=0 // pred_fallthru
    _
  %v17 = vld [vmem:[%s0] sm:$0xff]
  %v18 = vld [vmem:[%s0 + $0x8] sm:$0xff]
  %v19 = vld [vmem:[%s0 + $0x10] sm:$0xff]
  %v20 = vld [vmem:[%s0 + $0x18] sm:$0xff]
  %v21 = vld [vmem:[%s0 + $0x20] sm:$0xff]
  %v22 = vld [vmem:[%s0 + $0x28] sm:$0xff]
  %v23 = vld [vmem:[%s0 + $0x30] sm:$0xff]
  %v24 = vld [vmem:[%s0 + $0x38] sm:$0xff]
  %v25 = vld [vmem:[%s0 + $0x40] sm:$0xff]
  %v26 = vld [vmem:[%s0 + $0x48] sm:$0xff]
  %v27 = vld [vmem:[%s0 + $0x50] sm:$0xff]
  %v28 = vld [vmem:[%s0 + $0x58] sm:$0xff]
  %v29 = vld [vmem:[%s0 + $0x60] sm:$0xff]
  %v30 = vld [vmem:[%s0 + $0x68] sm:$0xff]
  %v31 = vld [vmem:[%s0 + $0x70] sm:$0xff]
  %v32 = vld [vmem:[%s0 + $0x78] sm:$0xff]
  %v33 = vld [vmem:[%s0 + $0x80] sm:$0xff]
  %v34 = vld [vmem:[%s0 + $0x88] sm:$0xff]
  %v35 = vld [vmem:[%s0 + $0x90] sm:$0xff]
  %v36 = vld [vmem:[%s0 + $0x98] sm:$0xff]
  %v37 = vld [vmem:[%s0 + $0xa0] sm:$0xff]
  %v38 = vld [vmem:[%s0 + $0xa8] sm:$0xff]
  %v39 = vld [vmem:[%s0 + $0xb0] sm:$0xff]
  %v40 = vld [vmem:[%s0 + $0xb8] sm:$0xff]
  %v41 = vld [vmem:[%s0 + $0xc0] sm:$0xff]
  %v42 = vld [vmem:[%s0 + $0xc8] sm:$0xff]
  %v43 = vld [vmem:[%s0 + $0xd0] sm:$0xff]
  %v44 = vld [vmem:[%s0 + $0xd8] sm:$0xff]
  %v45 = vld [vmem:[%s0 + $0xe0] sm:$0xff]
  %v46 = vld [vmem:[%s0 + $0xe8] sm:$0xff]
  %v47 = vld [vmem:[%s0 + $0xf0] sm:$0xff]
  %v48 = vld [vmem:[%s0 + $0xf8] sm:$0xff]
  %v49 = vld [vmem:[%s0 + $0x100] sm:$0xff]
  %v50 = vld [vmem:[%s0 + $0x108] sm:$0xff]
  %v51 = vld [vmem:[%s0 + $0x110] sm:$0xff]
  %v52 = vld [vmem:[%s0 + $0x118] sm:$0xff]
  %v53 = vld [vmem:[%s0 + $0x120] sm:$0xff]
  %v54 = vld [vmem:[%s0 + $0x128] sm:$0xff]
  %v55 = vld [vmem:[%s1] sm:$0xff]
  %v56 = vld [vmem:[%s1 + $0x8] sm:$0xff]
  %v57 = vld [vmem:[%s1 + $0x10] sm:$0xff]
  %v58 = vld [vmem:[%s1 + $0x18] sm:$0xff]
  %v59 = vld [vmem:[%s1 + $0x20] sm:$0xff]
  %v60 = vld [vmem:[%s1 + $0x28] sm:$0xff]
  %v61 = vld [vmem:[%s1 + $0x30] sm:$0xff]
  %v62 = vld [vmem:[%s1 + $0x38] sm:$0xff]
  %v63 = vld [vmem:[%s1 + $0x40] sm:$0xff]
  %v64 = vld [vmem:[%s1 + $0x48] sm:$0xff]
  %v65 = vld [vmem:[%s1 + $0x50] sm:$0xff]
  %v66 = vld [vmem:[%s1 + $0x58] sm:$0xff]
  %v67 = vld [vmem:[%s1 + $0x60] sm:$0xff]
  %v68 = vld [vmem:[%s1 + $0x68] sm:$0xff]
  %v69 = vld [vmem:[%s1 + $0x70] sm:$0xff]
  %v70 = vld [vmem:[%s1 + $0x78] sm:$0xff]
  %v71 = vld [vmem:[%s1 + $0x80] sm:$0xff]
  %v72 = vld [vmem:[%s1 + $0x88] sm:$0xff]
  %v73 = vld [vmem:[%s1 + $0x90] sm:$0xff]
  %v74 = vld [vmem:[%s1 + $0x98] sm:$0xff]
  %v75 = vld [vmem:[%s1 + $0xa0] sm:$0xff]
  %v76 = vld [vmem:[%s1 + $0xa8] sm:$0xff]
  %v77 = vld [vmem:[%s1 + $0xb0] sm:$0xff]
  %v78 = vld [vmem:[%s1 + $0xb8] sm:$0xff]
  %v79 = vld [vmem:[%s1 + $0xc0] sm:$0xff]
  %v80 = vld [vmem:[%s1 + $0xc8] sm:$0xff]
  %v81 = vld [vmem:[%s1 + $0xd0] sm:$0xff]
  %v82 = vld [vmem:[%s1 + $0xd8] sm:$0xff]
  %v83 = vld [vmem:[%s1 + $0xe0] sm:$0xff]
  %v84 = vld [vmem:[%s1 + $0xe8] sm:$0xff]
  %v85 = vld [vmem:[%s1 + $0xf0] sm:$0xff]
  %v86 = vld [vmem:[%s1 + $0xf8] sm:$0xff]
  %v87 = vld [vmem:[%s1 + $0x100] sm:$0xff]
  %v88 = vld [vmem:[%s1 + $0x108] sm:$0xff]
  %v89 = vld [vmem:[%s1 + $0x110] sm:$0xff]
  %v90 = vld [vmem:[%s1 + $0x118] sm:$0xff]
  %v91 = vld [vmem:[%s1 + $0x120] sm:$0xff]
  %v92 = vld [vmem:[%s1 + $0x128] sm:$0xff]
  %v93 = vld [vmem:[%s1 + $0x130] sm:$0xff]
  %v94 = vld [vmem:[%s1 + $0x138] sm:$0xff]
  %v95 = vld [vmem:[%s1 + $0x140] sm:$0xff]
  %v96 = vld [vmem:[%s1 + $0x148] sm:$0xff]
  %v97 = vld [vmem:[%s1 + $0x150] sm:$0xff]
  %v98 = vld [vmem:[%s1 + $0x158] sm:$0xff]
  %v99 = vld [vmem:[%s1 + $0x160] sm:$0xff]
  %v100 = vld [vmem:[%s1 + $0x168] sm:$0xff]
  %v101 = vld [vmem:[%s1 + $0x170] sm:$0xff]
  %v102 = vld [vmem:[%s1 + $0x178] sm:$0xff]
  %v103 = vld [vmem:[%s1 + $0x180] sm:$0xff]
  %v104 = vld [vmem:[%s1 + $0x188] sm:$0xff]
  %v105 = vld [vmem:[%s1 + $0x190] sm:$0xff]
  %v106 = vld [vmem:[%s1 + $0x198] sm:$0xff]
  %v107 = vld [vmem:[%s1 + $0x1a0] sm:$0xff]
  %v108 = vld [vmem:[%s1 + $0x1a8] sm:$0xff]
  %v109 = vld [vmem:[%s1 + $0x1b0] sm:$0xff]
  %v110 = vld [vmem:[%s1 + $0x1b8] sm:$0xff]
  %v111 = vld [vmem:[%s1 + $0x1c0] sm:$0xff]
  %v112 = vld [vmem:[%s1 + $0x1c8] sm:$0xff]
  %v113 = vld [vmem:[%s1 + $0x1d0] sm:$0xff]
  %v114 = vld [vmem:[%s1 + $0x1d8] sm:$0xff]
  %v115 = vld [vmem:[%s1 + $0x1e0] sm:$0xff]
  %v116 = vld [vmem:[%s1 + $0x1e8] sm:$0xff]
  %v117 = vld [vmem:[%s1 + $0x1f0] sm:$0xff]
  %v118 = vld [vmem:[%s1 + $0x1f8] sm:$0xff]
  %v119 = vld [vmem:[%s1 + $0x200] sm:$0xff]
  %v120 = vld [vmem:[%s1 + $0x208] sm:$0xff]
  %v121 = vld [vmem:[%s1 + $0x210] sm:$0xff]
  %v122 = vld [vmem:[%s1 + $0x218] sm:$0xff]
  %v123 = vld [vmem:[%s1 + $0x220] sm:$0xff]
  %v124 = vld [vmem:[%s1 + $0x228] sm:$0xff]
  %v125 = vld [vmem:[%s1 + $0x230] sm:$0xff]
  %v126 = vld [vmem:[%s1 + $0x238] sm:$0xff]
  %v127 = vld [vmem:[%s1 + $0x240] sm:$0xff]
  %v128 = vld [vmem:[%s1 + $0x248] sm:$0xff]
  %v129 = vld [vmem:[%s1 + $0x250] sm:$0xff]
  %v130 = vld [vmem:[%s1 + $0x258] sm:$0xff]
  %v131 = vld [vmem:[%s1 + $0x260] sm:$0xff]
  %v132 = vld [vmem:[%s1 + $0x268] sm:$0xff]
  %v133 = vld [vmem:[%s1 + $0x270] sm:$0xff]
  %v134 = vld [vmem:[%s1 + $0x278] sm:$0xff]
  %v135 = vld [vmem:[%s1 + $0x280] sm:$0xff]
  %v136 = vld [vmem:[%s1 + $0x288] sm:$0xff]
  %v137 = vld [vmem:[%s1 + $0x290] sm:$0xff]
  %v138 = vld [vmem:[%s1 + $0x298] sm:$0xff]
  %v139 = vld [vmem:[%s1 + $0x2a0] sm:$0xff]
  %v140 = vld [vmem:[%s1 + $0x2a8] sm:$0xff]
  %v141 = vld [vmem:[%s1 + $0x2b0] sm:$0xff]
  %v142 = vld [vmem:[%s1 + $0x2b8] sm:$0xff]
  %v143 = vld [vmem:[%s1 + $0x2c0] sm:$0xff]
  %v144 = vld [vmem:[%s1 + $0x2c8] sm:$0xff]
  %v145 = vld [vmem:[%s1 + $0x2d0] sm:$0xff]
  %v146 = vld [vmem:[%s1 + $0x2d8] sm:$0xff]
  %v147 = vld [vmem:[%s1 + $0x2e0] sm:$0xff]
  %v148 = vld [vmem:[%s1 + $0x2e8] sm:$0xff]
  %v149 = vld [vmem:[%s1 + $0x2f0] sm:$0xff]
  %v150 = vld [vmem:[%s1 + $0x2f8] sm:$0xff]
  %v151 = vld [vmem:[%s1 + $0x300] sm:$0xff]
  %v152 = vld [vmem:[%s1 + $0x308] sm:$0xff]
  %v153 = vld [vmem:[%s1 + $0x310] sm:$0xff]
  %v154 = vld [vmem:[%s1 + $0x318] sm:$0xff]
  %v155 = vld [vmem:[%s1 + $0x320] sm:$0xff]
  %v156 = vld [vmem:[%s1 + $0x328] sm:$0xff]
  %v157 = vld [vmem:[%s1 + $0x330] sm:$0xff]
  %v158 = vld [vmem:[%s1 + $0x338] sm:$0xff]
  %v159 = vld [vmem:[%s1 + $0x340] sm:$0xff]
  %v160 = vld [vmem:[%s1 + $0x348] sm:$0xff]
  %v161 = vld [vmem:[%s1 + $0x350] sm:$0xff]
  %v162 = vld [vmem:[%s1 + $0x358] sm:$0xff]
  %v163 = vld [vmem:[%s1 + $0x360] sm:$0xff]
  %v164 = vld [vmem:[%s1 + $0x368] sm:$0xff]
  %v165 = vld [vmem:[%s1 + $0x370] sm:$0xff]
  %v166 = vld [vmem:[%s1 + $0x378] sm:$0xff]
  %v167 = vld [vmem:[%s1 + $0x380] sm:$0xff]
  %v168 = vld [vmem:[%s1 + $0x388] sm:$0xff]
  %v169 = vld [vmem:[%s1 + $0x390] sm:$0xff]
  %v170 = vld [vmem:[%s1 + $0x398] sm:$0xff]
  %v171 = vld [vmem:[%s1 + $0x3a0] sm:$0xff]
  %v172 = vld [vmem:[%s1 + $0x3a8] sm:$0xff]
  %v173 = vld [vmem:[%s1 + $0x3b0] sm:$0xff]
  %v174 = vld [vmem:[%s1 + $0x3b8] sm:$0xff]
  %v175 = vld [vmem:[%s1 + $0x3c0] sm:$0xff]
  %v176 = vld [vmem:[%s1 + $0x3c8] sm:$0xff]
  %v177 = vld [vmem:[%s1 + $0x3d0] sm:$0xff]
  %v178 = vld [vmem:[%s1 + $0x3d8] sm:$0xff]
  %v179 = vld [vmem:[%s1 + $0x3e0] sm:$0xff]
  %v180 = vld [vmem:[%s1 + $0x3e8] sm:$0xff]
  %v181 = vld [vmem:[%s1 + $0x3f0] sm:$0xff]
  %v182 = vld [vmem:[%s1 + $0x3f8] sm:$0xff]
  %v183 = vld [vmem:[%s1 + $0x400] sm:$0xff]
  %v184 = vld [vmem:[%s1 + $0x408] sm:$0xff]
  %v185 = vld [vmem:[%s1 + $0x410] sm:$0xff]
  %v186 = vld [vmem:[%s1 + $0x418] sm:$0xff]
  %v187 = vld [vmem:[%s1 + $0x420] sm:$0xff]
  %v188 = vld [vmem:[%s1 + $0x428] sm:$0xff]
  %v189 = vld [vmem:[%s1 + $0x430] sm:$0xff]
  %v190 = vld [vmem:[%s1 + $0x438] sm:$0xff]
  %v191 = vld [vmem:[%s1 + $0x440] sm:$0xff]
  %v192 = vld [vmem:[%s1 + $0x448] sm:$0xff]
  %v193 = vld [vmem:[%s1 + $0x450] sm:$0xff]
  %v194 = vld [vmem:[%s1 + $0x458] sm:$0xff]
  %v195 = vld [vmem:[%s1 + $0x460] sm:$0xff]
  %v196 = vld [vmem:[%s1 + $0x468] sm:$0xff]
  %v197 = vld [vmem:[%s1 + $0x470] sm:$0xff]
  %v198 = vld [vmem:[%s1 + $0x478] sm:$0xff]
  %v199 = vld [vmem:[%s1 + $0x480] sm:$0xff]
  %v200 = vld [vmem:[%s1 + $0x488] sm:$0xff]
  %v201 = vld [vmem:[%s1 + $0x490] sm:$0xff]
  %v202 = vld [vmem:[%s1 + $0x498] sm:$0xff]
  %v203 = vld [vmem:[%s1 + $0x4a0] sm:$0xff]
  %v204 = vld [vmem:[%s1 + $0x4a8] sm:$0xff]
  %v205 = vld [vmem:[%s1 + $0x4b0] sm:$0xff]
  %v206 = vld [vmem:[%s1 + $0x4b8] sm:$0xff]
  %v207 = vld [vmem:[%s1 + $0x4c0] sm:$0xff]
  %v208 = vld [vmem:[%s1 + $0x4c8] sm:$0xff]
  %v209 = vld [vmem:[%s1 + $0x4d0] sm:$0xff]
  %v210 = vld [vmem:[%s1 + $0x4d8] sm:$0xff]
  %v211 = vld [vmem:[%s1 + $0x4e0] sm:$0xff]
  %v212 = vld [vmem:[%s1 + $0x4e8] sm:$0xff]
  %v213 = vld [vmem:[%s1 + $0x4f0] sm:$0xff]
  %v214 = vld [vmem:[%s1 + $0x4f8] sm:$0xff]
  %v215 = vld [vmem:[%s1 + $0x500] sm:$0xff]
  %v216 = vld [vmem:[%s1 + $0x508] sm:$0xff]
  %v217 = vld [vmem:[%s1 + $0x510] sm:$0xff]
  %v218 = vld [vmem:[%s1 + $0x518] sm:$0xff]
  %v219 = vld [vmem:[%s1 + $0x520] sm:$0xff]
  %v220 = vld [vmem:[%s1 + $0x528] sm:$0xff]
  %v221 = vld [vmem:[%s1 + $0x530] sm:$0xff]
  %v222 = vld [vmem:[%s1 + $0x538] sm:$0xff]
  %v223 = vld [vmem:[%s1 + $0x540] sm:$0xff]
  %v224 = vld [vmem:[%s1 + $0x548] sm:$0xff]
  %v225 = vld [vmem:[%s1 + $0x550] sm:$0xff]
  %v226 = vld [vmem:[%s1 + $0x558] sm:$0xff]
  %v227 = vld [vmem:[%s1 + $0x560] sm:$0xff]
  %v228 = vld [vmem:[%s1 + $0x568] sm:$0xff]
  %v229 = vld [vmem:[%s1 + $0x570] sm:$0xff]
  %v230 = vld [vmem:[%s1 + $0x578] sm:$0xff]
  %v231 = vld [vmem:[%s1 + $0x580] sm:$0xff]
  %v232 = vld [vmem:[%s1 + $0x588] sm:$0xff]
  %v233 = vld [vmem:[%s1 + $0x590] sm:$0xff]
  %v234 = vld [vmem:[%s1 + $0x598] sm:$0xff]
  %v235 = vld [vmem:[%s1 + $0x5a0] sm:$0xff]
  %v236 = vld [vmem:[%s1 + $0x5a8] sm:$0xff]
  %v237 = vld [vmem:[%s1 + $0x5b0] sm:$0xff]
  %v238 = vld [vmem:[%s1 + $0x5b8] sm:$0xff]
  %v239 = vld [vmem:[%s1 + $0x5c0] sm:$0xff]
  %v240 = vld [vmem:[%s1 + $0x5c8] sm:$0xff]
  %v241 = vld [vmem:[%s1 + $0x5d0] sm:$0xff]
  %v242 = vld [vmem:[%s1 + $0x5d8] sm:$0xff]
  %v243 = vld [vmem:[%s1 + $0x5e0] sm:$0xff]
  %v244 = vld [vmem:[%s1 + $0x5e8] sm:$0xff]
  %v245 = vld [vmem:[%s1 + $0x5f0] sm:$0xff]
  %v246 = vld [vmem:[%s1 + $0x5f8] sm:$0xff]
  %v247 = vld [vmem:[%s1 + $0x600] sm:$0xff]
  %v248 = vld [vmem:[%s1 + $0x608] sm:$0xff]
  %v249 = vld [vmem:[%s1 + $0x610] sm:$0xff]
  %v250 = vld [vmem:[%s1 + $0x618] sm:$0xff]
  %v251 = vld [vmem:[%s1 + $0x620] sm:$0xff]
  %v252 = vld [vmem:[%s1 + $0x628] sm:$0xff]
  %v253 = vld [vmem:[%s1 + $0x630] sm:$0xff]
  %v254 = vld [vmem:[%s1 + $0x638] sm:$0xff]
  %v255 = vld [vmem:[%s1 + $0x640] sm:$0xff]
  %v256 = vld [vmem:[%s1 + $0x648] sm:$0xff]
  %v257 = vld [vmem:[%s1 + $0x650] sm:$0xff]
  %v258 = vld [vmem:[%s1 + $0x658] sm:$0xff]
  %v259 = vld [vmem:[%s1 + $0x660] sm:$0xff]
  %v260 = vld [vmem:[%s1 + $0x668] sm:$0xff]
  %v261 = vld [vmem:[%s1 + $0x670] sm:$0xff]
  %v262 = vld [vmem:[%s1 + $0x678] sm:$0xff]
  %v263 = vld [vmem:[%s1 + $0x680] sm:$0xff]
  %v264 = vld [vmem:[%s1 + $0x688] sm:$0xff]
  %v265 = vld [vmem:[%s1 + $0x690] sm:$0xff]
  %v266 = vld [vmem:[%s1 + $0x698] sm:$0xff]
  %v267 = vld [vmem:[%s1 + $0x6a0] sm:$0xff]
  %v268 = vld [vmem:[%s1 + $0x6a8] sm:$0xff]
  %v269 = vld [vmem:[%s1 + $0x6b0] sm:$0xff]
  %v270 = vld [vmem:[%s1 + $0x6b8] sm:$0xff]
  %v271 = vld [vmem:[%s1 + $0x6c0] sm:$0xff]
  %v272 = vld [vmem:[%s1 + $0x6c8] sm:$0xff]
  %v273 = vld [vmem:[%s1 + $0x6d0] sm:$0xff]
  %v274 = vld [vmem:[%s1 + $0x6d8] sm:$0xff]
  %v275 = vld [vmem:[%s1 + $0x6e0] sm:$0xff]
  %v276 = vld [vmem:[%s1 + $0x6e8] sm:$0xff]
  %v277 = vld [vmem:[%s1 + $0x6f0] sm:$0xff]
  %v278 = vld [vmem:[%s1 + $0x6f8] sm:$0xff]
  %v279 = vld [vmem:[%s1 + $0x700] sm:$0xff]
  %v280 = vld [vmem:[%s1 + $0x708] sm:$0xff]
  %v281 = vld [vmem:[%s1 + $0x710] sm:$0xff]
  %v282 = vld [vmem:[%s1 + $0x718] sm:$0xff]
  %v283 = vld [vmem:[%s1 + $0x720] sm:$0xff]
  %v284 = vld [vmem:[%s1 + $0x728] sm:$0xff]
  %v285 = vld [vmem:[%s1 + $0x730] sm:$0xff]
  %v286 = vld [vmem:[%s1 + $0x738] sm:$0xff]
  %v287 = vld [vmem:[%s1 + $0x740] sm:$0xff]
  %v288 = vld [vmem:[%s1 + $0x748] sm:$0xff]
  %v289 = vld [vmem:[%s1 + $0x750] sm:$0xff]
  %v290 = vld [vmem:[%s1 + $0x758] sm:$0xff]
  %v291 = vld [vmem:[%s1 + $0x760] sm:$0xff]
  %v292 = vld [vmem:[%s1 + $0x768] sm:$0xff]
  %v293 = vld [vmem:[%s1 + $0x770] sm:$0xff]
  %v294 = vld [vmem:[%s1 + $0x778] sm:$0xff]
  %v295 = vld [vmem:[%s1 + $0x780] sm:$0xff]
  %v296 = vld [vmem:[%s1 + $0x788] sm:$0xff]
  %v297 = vld [vmem:[%s1 + $0x790] sm:$0xff]
  %v298 = vld [vmem:[%s1 + $0x798] sm:$0xff]
  %v299 = vld [vmem:[%s1 + $0x7a0] sm:$0xff]
  %v300 = vld [vmem:[%s1 + $0x7a8] sm:$0xff]
  %v301 = vld [vmem:[%s1 + $0x7b0] sm:$0xff]
  %v302 = vld [vmem:[%s1 + $0x7b8] sm:$0xff]
  %v303 = vld [vmem:[%s1 + $0x7c0] sm:$0xff]
  %v304 = vld [vmem:[%s1 + $0x7c8] sm:$0xff]
  %v305 = vld [vmem:[%s1 + $0x7d0] sm:$0xff]
  %v306 = vld [vmem:[%s1 + $0x7d8] sm:$0xff]
  %v307 = vld [vmem:[%s1 + $0x7e0] sm:$0xff]
  %v308 = vld [vmem:[%s1 + $0x7e8] sm:$0xff]
  %v309 = vld [vmem:[%s1 + $0x7f0] sm:$0xff]
  %v310 = vld [vmem:[%s1 + $0x7f8] sm:$0xff]
  %v311 = vld [vmem:[%s1 + $0x800] sm:$0xff]
  %v312 = vld [vmem:[%s1 + $0x808] sm:$0xff]
  %v313 = vld [vmem:[%s1 + $0x810] sm:$0xff]
  %v314 = vld [vmem:[%s1 + $0x818] sm:$0xff]
  %v315 = vld [vmem:[%s1 + $0x820] sm:$0xff]
  %v316 = vld [vmem:[%s1 + $0x828] sm:$0xff]
  %v317 = vld [vmem:[%s1 + $0x830] sm:$0xff]
  %v318 = vld [vmem:[%s1 + $0x838] sm:$0xff]
  %v319 = vld [vmem:[%s1 + $0x840] sm:$0xff]
  %v320 = vld [vmem:[%s1 + $0x848] sm:$0xff]
  %v321 = vld [vmem:[%s1 + $0x850] sm:$0xff]
  %v322 = vld [vmem:[%s1 + $0x858] sm:$0xff]
  %v323 = vld [vmem:[%s1 + $0x860] sm:$0xff]
  %v324 = vld [vmem:[%s1 + $0x868] sm:$0xff]
  %v325 = vld [vmem:[%s1 + $0x870] sm:$0xff]
  %v326 = vld [vmem:[%s1 + $0x878] sm:$0xff]
  %v327 = vld [vmem:[%s1 + $0x880] sm:$0xff]
  %v328 = vld [vmem:[%s1 + $0x888] sm:$0xff]
  %v329 = vld [vmem:[%s1 + $0x890] sm:$0xff]
  %v330 = vld [vmem:[%s1 + $0x898] sm:$0xff]
  %v331 = vld [vmem:[%s1 + $0x8a0] sm:$0xff]
  %v332 = vld [vmem:[%s1 + $0x8a8] sm:$0xff]
  %v333 = vld [vmem:[%s1 + $0x8b0] sm:$0xff]
  %v334 = vld [vmem:[%s1 + $0x8b8] sm:$0xff]
  %v335 = vld [vmem:[%s1 + $0x8c0] sm:$0xff]
  %v336 = vld [vmem:[%s1 + $0x8c8] sm:$0xff]
  %v337 = vld [vmem:[%s1 + $0x8d0] sm:$0xff]
  %v338 = vld [vmem:[%s1 + $0x8d8] sm:$0xff]
  %v339 = vld [vmem:[%s1 + $0x8e0] sm:$0xff]
  %v340 = vld [vmem:[%s1 + $0x8e8] sm:$0xff]
  %v341 = vld [vmem:[%s1 + $0x8f0] sm:$0xff]
  %v342 = vld [vmem:[%s1 + $0x8f8] sm:$0xff]
  %v343 = vld [vmem:[%s1 + $0x900] sm:$0xff]
  %v344 = vld [vmem:[%s1 + $0x908] sm:$0xff]
  %v345 = vld [vmem:[%s1 + $0x910] sm:$0xff]
  %v346 = vld [vmem:[%s1 + $0x918] sm:$0xff]
  %v347 = vld [vmem:[%s1 + $0x920] sm:$0xff]
  %v348 = vld [vmem:[%s1 + $0x928] sm:$0xff]
  %v349 = vld [vmem:[%s1 + $0x930] sm:$0xff]
  %v350 = vld [vmem:[%s1 + $0x938] sm:$0xff]
  %v351 = vld [vmem:[%s1 + $0x940] sm:$0xff]
  %v352 = vld [vmem:[%s1 + $0x948] sm:$0xff]
  %v353 = vld [vmem:[%s1 + $0x950] sm:$0xff]
  %v354 = vld [vmem:[%s1 + $0x958] sm:$0xff]
  %v355 = vld [vmem:[%s1 + $0x960] sm:$0xff]
  %v356 = vld [vmem:[%s1 + $0x968] sm:$0xff]
  %v357 = vld [vmem:[%s1 + $0x970] sm:$0xff]
  %v358 = vld [vmem:[%s1 + $0x978] sm:$0xff]
  %v359 = vld [vmem:[%s1 + $0x980] sm:$0xff]
  %v360 = vld [vmem:[%s1 + $0x988] sm:$0xff]
  %v361 = vld [vmem:[%s1 + $0x990] sm:$0xff]
  %v362 = vld [vmem:[%s1 + $0x998] sm:$0xff]
  %v363 = vld [vmem:[%s1 + $0x9a0] sm:$0xff]
  %v364 = vld [vmem:[%s1 + $0x9a8] sm:$0xff]
  %v365 = vld [vmem:[%s1 + $0x9b0] sm:$0xff]
  %v366 = vld [vmem:[%s1 + $0x9b8] sm:$0xff]
  %v367 = vld [vmem:[%s1 + $0x9c0] sm:$0xff]
  %v368 = vld [vmem:[%s1 + $0x9c8] sm:$0xff]
  %v369 = vld [vmem:[%s1 + $0x9d0] sm:$0xff]
  %v370 = vld [vmem:[%s1 + $0x9d8] sm:$0xff]
  %v371 = vld [vmem:[%s1 + $0x9e0] sm:$0xff]
  %v372 = vld [vmem:[%s1 + $0x9e8] sm:$0xff]
  %v373 = vld [vmem:[%s1 + $0x9f0] sm:$0xff]
  %v374 = vld [vmem:[%s1 + $0x9f8] sm:$0xff]
  %v375 = vld [vmem:[%s1 + $0xa00] sm:$0xff]
  %v376 = vld [vmem:[%s1 + $0xa08] sm:$0xff]
  %v377 = vld [vmem:[%s1 + $0xa10] sm:$0xff]
  %v378 = vld [vmem:[%s1 + $0xa18] sm:$0xff]
  %v379 = vld [vmem:[%s1 + $0xa20] sm:$0xff]
  %v380 = vld [vmem:[%s1 + $0xa28] sm:$0xff]
  %v381 = vld [vmem:[%s1 + $0xa30] sm:$0xff]
  %v382 = vld [vmem:[%s1 + $0xa38] sm:$0xff]
  %v383 = vld [vmem:[%s1 + $0xa40] sm:$0xff]
  %v384 = vld [vmem:[%s1 + $0xa48] sm:$0xff]
  %v385 = vld [vmem:[%s1 + $0xa50] sm:$0xff]
  %v386 = vld [vmem:[%s1 + $0xa58] sm:$0xff]
  %v387 = vld [vmem:[%s1 + $0xa60] sm:$0xff]
  %v388 = vld [vmem:[%s1 + $0xa68] sm:$0xff]
  %v389 = vld [vmem:[%s1 + $0xa70] sm:$0xff]
  %v390 = vld [vmem:[%s1 + $0xa78] sm:$0xff]
  %v391 = vld [vmem:[%s1 + $0xa80] sm:$0xff]
  %v392 = vld [vmem:[%s1 + $0xa88] sm:$0xff]
  %v393 = vld [vmem:[%s1 + $0xa90] sm:$0xff]
  %v394 = vld [vmem:[%s1 + $0xa98] sm:$0xff]
  %v395 = vld [vmem:[%s1 + $0xaa0] sm:$0xff]
  %v396 = vld [vmem:[%s1 + $0xaa8] sm:$0xff]
  %v397 = vld [vmem:[%s1 + $0xab0] sm:$0xff]
  %v398 = vld [vmem:[%s1 + $0xab8] sm:$0xff]
  %v399 = vld [vmem:[%s1 + $0xac0] sm:$0xff]
  %v400 = vld [vmem:[%s1 + $0xac8] sm:$0xff]
  %v401 = vld [vmem:[%s1 + $0xad0] sm:$0xff]
  %v402 = vld [vmem:[%s1 + $0xad8] sm:$0xff]
  %v403 = vld [vmem:[%s1 + $0xae0] sm:$0xff]
  %v404 = vld [vmem:[%s1 + $0xae8] sm:$0xff]
  %v405 = vld [vmem:[%s1 + $0xaf0] sm:$0xff]
  %v406 = vld [vmem:[%s1 + $0xaf8] sm:$0xff]
  %v407 = vld [vmem:[%s1 + $0xb00] sm:$0xff]
  %v408 = vld [vmem:[%s1 + $0xb08] sm:$0xff]
  %v409 = vld [vmem:[%s1 + $0xb10] sm:$0xff]
  %v410 = vld [vmem:[%s1 + $0xb18] sm:$0xff]
  %v411 = vld [vmem:[%s1 + $0xb20] sm:$0xff]
  %v412 = vld [vmem:[%s1 + $0xb28] sm:$0xff]
  %v413 = vld [vmem:[%s1 + $0xb30] sm:$0xff]
  %v414 = vld [vmem:[%s1 + $0xb38] sm:$0xff]
  %v415 = vld [vmem:[%s1 + $0xb40] sm:$0xff]
  %v416 = vld [vmem:[%s1 + $0xb48] sm:$0xff]
  %v417 = vld [vmem:[%s1 + $0xb50] sm:$0xff]
  %v418 = vld [vmem:[%s1 + $0xb58] sm:$0xff]
  %v419 = vld [vmem:[%s1 + $0xb60] sm:$0xff]
  %v420 = vld [vmem:[%s1 + $0xb68] sm:$0xff]
  %v421 = vld [vmem:[%s1 + $0xb70] sm:$0xff]
  %v422 = vld [vmem:[%s1 + $0xb78] sm:$0xff]
  %v423 = vld [vmem:[%s1 + $0xb80] sm:$0xff]
  %v424 = vld [vmem:[%s1 + $0xb88] sm:$0xff]
  %v425 = vld [vmem:[%s1 + $0xb90] sm:$0xff]
  %v426 = vld [vmem:[%s1 + $0xb98] sm:$0xff]
  %v427 = vld [vmem:[%s1 + $0xba0] sm:$0xff]
  %v428 = vld [vmem:[%s1 + $0xba8] sm:$0xff]
  %v429 = vld [vmem:[%s1 + $0xbb0] sm:$0xff]
  %v430 = vld [vmem:[%s1 + $0xbb8] sm:$0xff]
  %v431 = vld [vmem:[%s1 + $0xbc0] sm:$0xff]
  %v432 = vld [vmem:[%s1 + $0xbc8] sm:$0xff]
  %v433 = vld [vmem:[%s1 + $0xbd0] sm:$0xff]
  %v434 = vld [vmem:[%s1 + $0xbd8] sm:$0xff]
  %v435 = vld [vmem:[%s1 + $0xbe0] sm:$0xff]
  %v436 = vld [vmem:[%s1 + $0xbe8] sm:$0xff]
  %v437 = vld [vmem:[%s1 + $0xbf0] sm:$0xff]
  %v438 = vld [vmem:[%s1 + $0xbf8] sm:$0xff]
  %v439 = vld [vmem:[%s1 + $0xc00] sm:$0xff]
  %v440 = vld [vmem:[%s1 + $0xc08] sm:$0xff]
  %v441 = vld [vmem:[%s1 + $0xc10] sm:$0xff]
  %v442 = vld [vmem:[%s1 + $0xc18] sm:$0xff]
  %v443 = vld [vmem:[%s1 + $0xc20] sm:$0xff]
  %v444 = vld [vmem:[%s1 + $0xc28] sm:$0xff]
  %v445 = vld [vmem:[%s1 + $0xc30] sm:$0xff]
  %v446 = vld [vmem:[%s1 + $0xc38] sm:$0xff]
  %v447 = vld [vmem:[%s1 + $0xc40] sm:$0xff]
  %v448 = vld [vmem:[%s1 + $0xc48] sm:$0xff]
  %v449 = vld [vmem:[%s1 + $0xc50] sm:$0xff]
  %v450 = vld [vmem:[%s1 + $0xc58] sm:$0xff]
  %v451 = vld [vmem:[%s1 + $0xc60] sm:$0xff]
  %v452 = vld [vmem:[%s1 + $0xc68] sm:$0xff]
  %v453 = vld [vmem:[%s1 + $0xc70] sm:$0xff]
  %v454 = vld [vmem:[%s1 + $0xc78] sm:$0xff]
  %v455 = vld [vmem:[%s1 + $0xc80] sm:$0xff]
  %v456 = vld [vmem:[%s1 + $0xc88] sm:$0xff]
  %v457 = vld [vmem:[%s1 + $0xc90] sm:$0xff]
  %v458 = vld [vmem:[%s1 + $0xc98] sm:$0xff]
  %v459 = vld [vmem:[%s1 + $0xca0] sm:$0xff]
  %v460 = vld [vmem:[%s1 + $0xca8] sm:$0xff]
  %v461 = vld [vmem:[%s1 + $0xcb0] sm:$0xff]
  %v462 = vld [vmem:[%s1 + $0xcb8] sm:$0xff]
  %v463 = vld [vmem:[%s1 + $0xcc0] sm:$0xff]
  %v464 = vld [vmem:[%s1 + $0xcc8] sm:$0xff]
  %v465 = vld [vmem:[%s1 + $0xcd0] sm:$0xff]
  %v466 = vld [vmem:[%s1 + $0xcd8] sm:$0xff]
  %v467 = vld [vmem:[%s1 + $0xce0] sm:$0xff]
  %v468 = vld [vmem:[%s1 + $0xce8] sm:$0xff]
  %v469 = vld [vmem:[%s1 + $0xcf0] sm:$0xff]
  %v470 = vld [vmem:[%s1 + $0xcf8] sm:$0xff]
  %v471 = vld [vmem:[%s1 + $0xd00] sm:$0xff]
  %v472 = vld [vmem:[%s1 + $0xd08] sm:$0xff]
  %v473 = vld [vmem:[%s1 + $0xd10] sm:$0xff]
  %v474 = vld [vmem:[%s1 + $0xd18] sm:$0xff]
  %v475 = vld [vmem:[%s1 + $0xd20] sm:$0xff]
  %v476 = vld [vmem:[%s1 + $0xd28] sm:$0xff]
  %v477 = vld [vmem:[%s1 + $0xd30] sm:$0xff]
  %v478 = vld [vmem:[%s1 + $0xd38] sm:$0xff]
  %v479 = vld [vmem:[%s1 + $0xd40] sm:$0xff]
  %v480 = vld [vmem:[%s1 + $0xd48] sm:$0xff]
  %v481 = vld [vmem:[%s1 + $0xd50] sm:$0xff]
  %v482 = vld [vmem:[%s1 + $0xd58] sm:$0xff]
  %v483 = vld [vmem:[%s1 + $0xd60] sm:$0xff]
  %v484 = vld [vmem:[%s1 + $0xd68] sm:$0xff]
  %v485 = vld [vmem:[%s1 + $0xd70] sm:$0xff]
  %v486 = vld [vmem:[%s1 + $0xd78] sm:$0xff]
  %v487 = vld [vmem:[%s1 + $0xd80] sm:$0xff]
  %v488 = vld [vmem:[%s1 + $0xd88] sm:$0xff]
  %v489 = vld [vmem:[%s1 + $0xd90] sm:$0xff]
  %v490 = vld [vmem:[%s1 + $0xd98] sm:$0xff]
  %v491 = vld [vmem:[%s1 + $0xda0] sm:$0xff]
  %v492 = vld [vmem:[%s1 + $0xda8] sm:$0xff]
  %v493 = vld [vmem:[%s1 + $0xdb0] sm:$0xff]
  %v494 = vld [vmem:[%s1 + $0xdb8] sm:$0xff]
  %v495 = vld [vmem:[%s1 + $0xdc0] sm:$0xff]
  %v496 = vld [vmem:[%s1 + $0xdc8] sm:$0xff]
  %v497 = vld [vmem:[%s1 + $0xdd0] sm:$0xff]
  %v498 = vld [vmem:[%s1 + $0xdd8] sm:$0xff]
  %v499 = vld [vmem:[%s1 + $0xde0] sm:$0xff]
  %v500 = vld [vmem:[%s1 + $0xde8] sm:$0xff]
  %v501 = vld [vmem:[%s1 + $0xdf0] sm:$0xff]
  %v502 = vld [vmem:[%s1 + $0xdf8] sm:$0xff]
  %v503 = vld [vmem:[%s1 + $0xe00] sm:$0xff]
  %v504 = vld [vmem:[%s1 + $0xe08] sm:$0xff]
  %v505 = vld [vmem:[%s1 + $0xe10] sm:$0xff]
  %v506 = vld [vmem:[%s1 + $0xe18] sm:$0xff]
  %v507 = vld [vmem:[%s1 + $0xe20] sm:$0xff]
  %v508 = vld [vmem:[%s1 + $0xe28] sm:$0xff]
  %v509 = vld [vmem:[%s1 + $0xe30] sm:$0xff]
  %v510 = vld [vmem:[%s1 + $0xe38] sm:$0xff]
  %v511 = vld [vmem:[%s1 + $0xe40] sm:$0xff]
  %v512 = vld [vmem:[%s1 + $0xe48] sm:$0xff]
  %v513 = vld [vmem:[%s1 + $0xe50] sm:$0xff]
  %v514 = vld [vmem:[%s1 + $0xe58] sm:$0xff]
  %v515 = vld [vmem:[%s1 + $0xe60] sm:$0xff]
  %v516 = vld [vmem:[%s1 + $0xe68] sm:$0xff]
  %v517 = vld [vmem:[%s1 + $0xe70] sm:$0xff]
  %v518 = vld [vmem:[%s1 + $0xe78] sm:$0xff]
  %v519 = vld [vmem:[%s1 + $0xe80] sm:$0xff]
  %v520 = vld [vmem:[%s1 + $0xe88] sm:$0xff]
  %v521 = vld [vmem:[%s1 + $0xe90] sm:$0xff]
  %v522 = vld [vmem:[%s1 + $0xe98] sm:$0xff]
  %v523 = vld [vmem:[%s1 + $0xea0] sm:$0xff]
  %v524 = vld [vmem:[%s1 + $0xea8] sm:$0xff]
  %v525 = vld [vmem:[%s1 + $0xeb0] sm:$0xff]
  %v526 = vld [vmem:[%s1 + $0xeb8] sm:$0xff]
  %v527 = vld [vmem:[%s1 + $0xec0] sm:$0xff]
  %v528 = vld [vmem:[%s1 + $0xec8] sm:$0xff]
  %v529 = vld [vmem:[%s1 + $0xed0] sm:$0xff]
  %v530 = vld [vmem:[%s1 + $0xed8] sm:$0xff]
  %v531 = vld [vmem:[%s1 + $0xee0] sm:$0xff]
  %v532 = vld [vmem:[%s1 + $0xee8] sm:$0xff]
  %v533 = vld [vmem:[%s1 + $0xef0] sm:$0xff]
  %v534 = vld [vmem:[%s1 + $0xef8] sm:$0xff]
  %v535 = vld [vmem:[%s1 + $0xf00] sm:$0xff]
  %v536 = vld [vmem:[%s1 + $0xf08] sm:$0xff]
  %v537 = vld [vmem:[%s1 + $0xf10] sm:$0xff]
  %v538 = vld [vmem:[%s1 + $0xf18] sm:$0xff]
  %v539 = vld [vmem:[%s1 + $0xf20] sm:$0xff]
  %v540 = vld [vmem:[%s1 + $0xf28] sm:$0xff]
  %v541 = vld [vmem:[%s1 + $0xf30] sm:$0xff]
  %v542 = vld [vmem:[%s1 + $0xf38] sm:$0xff]
  %v543 = vld [vmem:[%s1 + $0xf40] sm:$0xff]
  %v544 = vld [vmem:[%s1 + $0xf48] sm:$0xff]
  %v545 = vld [vmem:[%s1 + $0xf50] sm:$0xff]
  %v546 = vld [vmem:[%s1 + $0xf58] sm:$0xff]
  %v547 = vld [vmem:[%s1 + $0xf60] sm:$0xff]
  %v548 = vld [vmem:[%s1 + $0xf68] sm:$0xff]
  %v549 = vld [vmem:[%s1 + $0xf70] sm:$0xff]
  %v550 = vld [vmem:[%s1 + $0xf78] sm:$0xff]
  %v551 = vld [vmem:[%s1 + $0xf80] sm:$0xff]
  %v552 = vld [vmem:[%s1 + $0xf88] sm:$0xff]
  %v553 = vld [vmem:[%s1 + $0xf90] sm:$0xff]
  %v554 = vld [vmem:[%s1 + $0xf98] sm:$0xff]
  %v555 = vld [vmem:[%s1 + $0xfa0] sm:$0xff]
  %v556 = vld [vmem:[%s1 + $0xfa8] sm:$0xff]
  %v557 = vld [vmem:[%s1 + $0xfb0] sm:$0xff]
  %v558 = vld [vmem:[%s1 + $0xfb8] sm:$0xff]
  %v559 = vld [vmem:[%s1 + $0xfc0] sm:$0xff]
  %v560 = vld [vmem:[%s1 + $0xfc8] sm:$0xff]
  %v561 = vld [vmem:[%s1 + $0xfd0] sm:$0xff]
  %v562 = vld [vmem:[%s1 + $0xfd8] sm:$0xff]
  %v563 = vld [vmem:[%s1 + $0xfe0] sm:$0xff]
  %v564 = vld [vmem:[%s1 + $0xfe8] sm:$0xff]
  %v565 = vld [vmem:[%s1 + $0xff0] sm:$0xff]
  %v566 = vld [vmem:[%s1 + $0xff8] sm:$0xff]
  %v567 = vld [vmem:[%s1 + $0x1000] sm:$0xff]
  %v568 = vld [vmem:[%s1 + $0x1008] sm:$0xff]
  %v569 = vld [vmem:[%s1 + $0x1010] sm:$0xff]
  %v570 = vld [vmem:[%s1 + $0x1018] sm:$0xff]
  %v571 = vld [vmem:[%s1 + $0x1020] sm:$0xff]
  %v572 = vld [vmem:[%s1 + $0x1028] sm:$0xff]
  %v573 = vld [vmem:[%s1 + $0x1030] sm:$0xff]
  %v574 = vld [vmem:[%s1 + $0x1038] sm:$0xff]
  %v575 = vld [vmem:[%s1 + $0x1040] sm:$0xff]
  %v576 = vld [vmem:[%s1 + $0x1048] sm:$0xff]
  %v577 = vld [vmem:[%s1 + $0x1050] sm:$0xff]
  %v578 = vld [vmem:[%s1 + $0x1058] sm:$0xff]
  %v579 = vld [vmem:[%s1 + $0x1060] sm:$0xff]
  %v580 = vld [vmem:[%s1 + $0x1068] sm:$0xff]
  %v581 = vld [vmem:[%s1 + $0x1070] sm:$0xff]
  %v582 = vld [vmem:[%s1 + $0x1078] sm:$0xff]
  %v583 = vld [vmem:[%s1 + $0x1080] sm:$0xff]
  %v584 = vld [vmem:[%s1 + $0x1088] sm:$0xff]
  %v585 = vld [vmem:[%s1 + $0x1090] sm:$0xff]
  %v586 = vld [vmem:[%s1 + $0x1098] sm:$0xff]
  %v587 = vld [vmem:[%s1 + $0x10a0] sm:$0xff]
  %v588 = vld [vmem:[%s1 + $0x10a8] sm:$0xff]
  %v589 = vld [vmem:[%s1 + $0x10b0] sm:$0xff]
  %v590 = vld [vmem:[%s1 + $0x10b8] sm:$0xff]
  %v591 = vld [vmem:[%s1 + $0x10c0] sm:$0xff]
  %v592 = vld [vmem:[%s1 + $0x10c8] sm:$0xff]
  %v593 = vld [vmem:[%s1 + $0x10d0] sm:$0xff]
  %v594 = vld [vmem:[%s1 + $0x10d8] sm:$0xff]
  %v595 = vld [vmem:[%s1 + $0x10e0] sm:$0xff]
  %v596 = vld [vmem:[%s1 + $0x10e8] sm:$0xff]
  %v597 = vld [vmem:[%s1 + $0x10f0] sm:$0xff]
  %v598 = vld [vmem:[%s1 + $0x10f8] sm:$0xff]
  %v599 = vld [vmem:[%s1 + $0x1100] sm:$0xff]
  %v600 = vld [vmem:[%s1 + $0x1108] sm:$0xff]
  %v601 = vld [vmem:[%s1 + $0x1110] sm:$0xff]
  %v602 = vld [vmem:[%s1 + $0x1118] sm:$0xff]
  %v603 = vld [vmem:[%s1 + $0x1120] sm:$0xff]
  %v604 = vld [vmem:[%s1 + $0x1128] sm:$0xff]
  %v605 = vld [vmem:[%s1 + $0x1130] sm:$0xff]
  %v606 = vld [vmem:[%s1 + $0x1138] sm:$0xff]
  %v607 = vld [vmem:[%s1 + $0x1140] sm:$0xff]
  %v608 = vld [vmem:[%s1 + $0x1148] sm:$0xff]
  %v609 = vld [vmem:[%s1 + $0x1150] sm:$0xff]
  %v610 = vld [vmem:[%s1 + $0x1158] sm:$0xff]
  %v611 = vld [vmem:[%s1 + $0x1160] sm:$0xff]
  %v612 = vld [vmem:[%s1 + $0x1168] sm:$0xff]
  %v613 = vld [vmem:[%s1 + $0x1170] sm:$0xff]
  %v614 = vld [vmem:[%s1 + $0x1178] sm:$0xff]
  %v615 = vld [vmem:[%s1 + $0x1180] sm:$0xff]
  %v616 = vld [vmem:[%s1 + $0x1188] sm:$0xff]
  %v617 = vld [vmem:[%s1 + $0x1190] sm:$0xff]
  %v618 = vld [vmem:[%s1 + $0x1198] sm:$0xff]
  %v619 = vld [vmem:[%s1 + $0x11a0] sm:$0xff]
  %v620 = vld [vmem:[%s1 + $0x11a8] sm:$0xff]
  %v621 = vld [vmem:[%s1 + $0x11b0] sm:$0xff]
  %v622 = vld [vmem:[%s1 + $0x11b8] sm:$0xff]
  %v623 = vld [vmem:[%s1 + $0x11c0] sm:$0xff]
  %v624 = vld [vmem:[%s1 + $0x11c8] sm:$0xff]
  %v625 = vld [vmem:[%s1 + $0x11d0] sm:$0xff]
  %v626 = vld [vmem:[%s1 + $0x11d8] sm:$0xff]
  %v627 = vld [vmem:[%s1 + $0x11e0] sm:$0xff]
  %v628 = vld [vmem:[%s1 + $0x11e8] sm:$0xff]
  %v629 = vld [vmem:[%s1 + $0x11f0] sm:$0xff]
  %v630 = vld [vmem:[%s1 + $0x11f8] sm:$0xff]
  %v631 = vld [vmem:[%s1 + $0x1200] sm:$0xff]
  %v632 = vld [vmem:[%s1 + $0x1208] sm:$0xff]
  %v633 = vld [vmem:[%s1 + $0x1210] sm:$0xff]
  %v634 = vld [vmem:[%s1 + $0x1218] sm:$0xff]
  %v635 = vld [vmem:[%s1 + $0x1220] sm:$0xff]
  %v636 = vld [vmem:[%s1 + $0x1228] sm:$0xff]
  %v637 = vld [vmem:[%s1 + $0x1230] sm:$0xff]
  %v638 = vld [vmem:[%s1 + $0x1238] sm:$0xff]
  %v639 = vld [vmem:[%s1 + $0x1240] sm:$0xff]
  %v640 = vld [vmem:[%s1 + $0x1248] sm:$0xff]
  %v641 = vld [vmem:[%s1 + $0x1250] sm:$0xff]
  %v642 = vld [vmem:[%s1 + $0x1258] sm:$0xff]
  %v643 = vld [vmem:[%s1 + $0x1260] sm:$0xff]
  %v644 = vld [vmem:[%s1 + $0x1268] sm:$0xff]
  %v645 = vld [vmem:[%s1 + $0x1270] sm:$0xff]
  %v646 = vld [vmem:[%s1 + $0x1278] sm:$0xff]
  %v647 = vld [vmem:[%s1 + $0x1280] sm:$0xff]
  %v648 = vld [vmem:[%s1 + $0x1288] sm:$0xff]
  %v649 = vld [vmem:[%s1 + $0x1290] sm:$0xff]
  %v650 = vld [vmem:[%s1 + $0x1298] sm:$0xff]
  %v651 = vld [vmem:[%s1 + $0x12a0] sm:$0xff]
  %v652 = vld [vmem:[%s1 + $0x12a8] sm:$0xff]
  %v653 = vld [vmem:[%s1 + $0x12b0] sm:$0xff]
  %v654 = vld [vmem:[%s1 + $0x12b8] sm:$0xff]
  %v655 = vld [vmem:[%s1 + $0x12c0] sm:$0xff]
  %v656 = vld [vmem:[%s1 + $0x12c8] sm:$0xff]
  %v657 = vld [vmem:[%s1 + $0x12d0] sm:$0xff]
  %v658 = vld [vmem:[%s1 + $0x12d8] sm:$0xff]
  %v659 = vld [vmem:[%s1 + $0x12e0] sm:$0xff]
  %v660 = vld [vmem:[%s1 + $0x12e8] sm:$0xff]
  %v661 = vld [vmem:[%s1 + $0x12f0] sm:$0xff]
  %v662 = vld [vmem:[%s1 + $0x12f8] sm:$0xff]
  %v663 = vld [vmem:[%s1 + $0x1300] sm:$0xff]
  %v664 = vld [vmem:[%s1 + $0x1308] sm:$0xff]
  %v665 = vld [vmem:[%s1 + $0x1310] sm:$0xff]
  %v666 = vld [vmem:[%s1 + $0x1318] sm:$0xff]
  %v667 = vld [vmem:[%s1 + $0x1320] sm:$0xff]
  %v668 = vld [vmem:[%s1 + $0x1328] sm:$0xff]
  %v669 = vld [vmem:[%s1 + $0x1330] sm:$0xff]
  %v670 = vld [vmem:[%s1 + $0x1338] sm:$0xff]
  %v671 = vld [vmem:[%s1 + $0x1340] sm:$0xff]
  %v672 = vld [vmem:[%s1 + $0x1348] sm:$0xff]
  %v673 = vld [vmem:[%s1 + $0x1350] sm:$0xff]
  %v674 = vld [vmem:[%s1 + $0x1358] sm:$0xff]
  %v675 = vld [vmem:[%s1 + $0x1360] sm:$0xff]
  %v676 = vld [vmem:[%s1 + $0x1368] sm:$0xff]
  %v677 = vld [vmem:[%s1 + $0x1370] sm:$0xff]
  %v678 = vld [vmem:[%s1 + $0x1378] sm:$0xff]
  %v679 = vld [vmem:[%s1 + $0x1380] sm:$0xff]
  %v680 = vld [vmem:[%s1 + $0x1388] sm:$0xff]
  %v681 = vld [vmem:[%s1 + $0x1390] sm:$0xff]
  %v682 = vld [vmem:[%s1 + $0x1398] sm:$0xff]
  %v683 = vld [vmem:[%s1 + $0x13a0] sm:$0xff]
  %v684 = vld [vmem:[%s1 + $0x13a8] sm:$0xff]
  %v685 = vld [vmem:[%s1 + $0x13b0] sm:$0xff]
  %v686 = vld [vmem:[%s1 + $0x13b8] sm:$0xff]
  %v687 = vld [vmem:[%s1 + $0x13c0] sm:$0xff]
  %v688 = vld [vmem:[%s1 + $0x13c8] sm:$0xff]
  %v689 = vld [vmem:[%s1 + $0x13d0] sm:$0xff]
  %v690 = vld [vmem:[%s1 + $0x13d8] sm:$0xff]
  %v691 = vld [vmem:[%s1 + $0x13e0] sm:$0xff]
  %v692 = vld [vmem:[%s1 + $0x13e8] sm:$0xff]
  %v693 = vld [vmem:[%s1 + $0x13f0] sm:$0xff]
  %v694 = vld [vmem:[%s1 + $0x13f8] sm:$0xff]
  %v695 = vld [vmem:[%s1 + $0x1400] sm:$0xff]
  %v696 = vld [vmem:[%s1 + $0x1408] sm:$0xff]
  %v697 = vld [vmem:[%s1 + $0x1410] sm:$0xff]
  %v698 = vld [vmem:[%s1 + $0x1418] sm:$0xff]
  %v699 = vld [vmem:[%s1 + $0x1420] sm:$0xff]
  %v700 = vld [vmem:[%s1 + $0x1428] sm:$0xff]
  %v701 = vld [vmem:[%s1 + $0x1430] sm:$0xff]
  %v702 = vld [vmem:[%s1 + $0x1438] sm:$0xff]
  %v703 = vld [vmem:[%s1 + $0x1440] sm:$0xff]
  %v704 = vld [vmem:[%s1 + $0x1448] sm:$0xff]
  %v705 = vld [vmem:[%s1 + $0x1450] sm:$0xff]
  %v706 = vld [vmem:[%s1 + $0x1458] sm:$0xff]
  %v707 = vld [vmem:[%s1 + $0x1460] sm:$0xff]
  %v708 = vld [vmem:[%s1 + $0x1468] sm:$0xff]
  %v709 = vld [vmem:[%s1 + $0x1470] sm:$0xff]
  %v710 = vld [vmem:[%s1 + $0x1478] sm:$0xff]
  %v711 = vld [vmem:[%s1 + $0x1480] sm:$0xff]
  %v712 = vld [vmem:[%s1 + $0x1488] sm:$0xff]
  %v713 = vld [vmem:[%s1 + $0x1490] sm:$0xff]
  %v714 = vld [vmem:[%s1 + $0x1498] sm:$0xff]
  %v715 = vld [vmem:[%s1 + $0x14a0] sm:$0xff]
  %v716 = vld [vmem:[%s1 + $0x14a8] sm:$0xff]
  %v717 = vld [vmem:[%s1 + $0x14b0] sm:$0xff]
  %v718 = vld [vmem:[%s1 + $0x14b8] sm:$0xff]
  %v719 = vld [vmem:[%s1 + $0x14c0] sm:$0xff]
  %v720 = vld [vmem:[%s1 + $0x14c8] sm:$0xff]
  %v721 = vld [vmem:[%s1 + $0x14d0] sm:$0xff]
  %v722 = vld [vmem:[%s1 + $0x14d8] sm:$0xff]
  %v723 = vld [vmem:[%s1 + $0x14e0] sm:$0xff]
  %v724 = vld [vmem:[%s1 + $0x14e8] sm:$0xff]
  %v725 = vld [vmem:[%s1 + $0x14f0] sm:$0xff]
  %v726 = vld [vmem:[%s1 + $0x14f8] sm:$0xff]
  %v727 = vld [vmem:[%s1 + $0x1500] sm:$0xff]
  %v728 = vld [vmem:[%s1 + $0x1508] sm:$0xff]
  %v729 = vld [vmem:[%s1 + $0x1510] sm:$0xff]
  %v730 = vld [vmem:[%s1 + $0x1518] sm:$0xff]
  %v731 = vld [vmem:[%s1 + $0x1520] sm:$0xff]
  %v732 = vld [vmem:[%s1 + $0x1528] sm:$0xff]
  %v733 = vld [vmem:[%s1 + $0x1530] sm:$0xff]
  %v734 = vld [vmem:[%s1 + $0x1538] sm:$0xff]
  %v735 = vld [vmem:[%s1 + $0x1540] sm:$0xff]
  %v736 = vld [vmem:[%s1 + $0x1548] sm:$0xff]
  %v737 = vld [vmem:[%s1 + $0x1550] sm:$0xff]
  %v738 = vld [vmem:[%s1 + $0x1558] sm:$0xff]
  %vm739 = vcmask 392192
  %v741 = vsel %vm739, %v57, 0
  %v744 = vsel %vm739, %v60, 0
  %v747 = vsel %vm739, %v63, 0
  %v750 = vsel %vm739, %v66, 0
  %v753 = vsel %vm739, %v69, 0
  %v756 = vsel %vm739, %v72, 0
  %v759 = vsel %vm739, %v75, 0
  %v762 = vsel %vm739, %v78, 0
  %v765 = vsel %vm739, %v81, 0
  %v768 = vsel %vm739, %v84, 0
  %v771 = vsel %vm739, %v87, 0
  %v774 = vsel %vm739, %v90, 0
  %v777 = vsel %vm739, %v93, 0
  %v780 = vsel %vm739, %v96, 0
  %v783 = vsel %vm739, %v99, 0
  %v786 = vsel %vm739, %v102, 0
  %v789 = vsel %vm739, %v105, 0
  %v792 = vsel %vm739, %v108, 0
  %v795 = vsel %vm739, %v111, 0
  %v798 = vsel %vm739, %v114, 0
  %v801 = vsel %vm739, %v117, 0
  %v804 = vsel %vm739, %v120, 0
  %v807 = vsel %vm739, %v123, 0
  %v810 = vsel %vm739, %v126, 0
  %v813 = vsel %vm739, %v129, 0
  %v816 = vsel %vm739, %v132, 0
  %v819 = vsel %vm739, %v135, 0
  %v822 = vsel %vm739, %v138, 0
  %v825 = vsel %vm739, %v141, 0
  %v828 = vsel %vm739, %v144, 0
  %v831 = vsel %vm739, %v147, 0
  %v834 = vsel %vm739, %v150, 0
  %v837 = vsel %vm739, %v153, 0
  %v840 = vsel %vm739, %v156, 0
  %v843 = vsel %vm739, %v159, 0
  %v846 = vsel %vm739, %v162, 0
  %v849 = vsel %vm739, %v165, 0
  %v852 = vsel %vm739, %v168, 0
  %v855 = vsel %vm739, %v171, 0
  %v858 = vsel %vm739, %v174, 0
  %v861 = vsel %vm739, %v177, 0
  %v864 = vsel %vm739, %v180, 0
  %v867 = vsel %vm739, %v183, 0
  %v870 = vsel %vm739, %v186, 0
  %v873 = vsel %vm739, %v189, 0
  %v876 = vsel %vm739, %v192, 0
  %v879 = vsel %vm739, %v195, 0
  %v882 = vsel %vm739, %v198, 0
  %v885 = vsel %vm739, %v201, 0
  %v888 = vsel %vm739, %v204, 0
  %v891 = vsel %vm739, %v207, 0
  %v894 = vsel %vm739, %v210, 0
  %v897 = vsel %vm739, %v213, 0
  %v900 = vsel %vm739, %v216, 0
  %v903 = vsel %vm739, %v219, 0
  %v906 = vsel %vm739, %v222, 0
  %v909 = vsel %vm739, %v225, 0
  %v912 = vsel %vm739, %v228, 0
  %v915 = vsel %vm739, %v231, 0
  %v918 = vsel %vm739, %v234, 0
  %v921 = vsel %vm739, %v237, 0
  %v924 = vsel %vm739, %v240, 0
  %v927 = vsel %vm739, %v243, 0
  %v930 = vsel %vm739, %v246, 0
  %v933 = vsel %vm739, %v249, 0
  %v936 = vsel %vm739, %v252, 0
  %v939 = vsel %vm739, %v255, 0
  %v942 = vsel %vm739, %v258, 0
  %v945 = vsel %vm739, %v261, 0
  %v948 = vsel %vm739, %v264, 0
  %v951 = vsel %vm739, %v267, 0
  %v954 = vsel %vm739, %v270, 0
  %v957 = vsel %vm739, %v273, 0
  %v960 = vsel %vm739, %v276, 0
  %v963 = vsel %vm739, %v279, 0
  %v966 = vsel %vm739, %v282, 0
  %v969 = vsel %vm739, %v285, 0
  %v972 = vsel %vm739, %v288, 0
  %v975 = vsel %vm739, %v291, 0
  %v978 = vsel %vm739, %v294, 0
  %v981 = vsel %vm739, %v297, 0
  %v984 = vsel %vm739, %v300, 0
  %v987 = vsel %vm739, %v303, 0
  %v990 = vsel %vm739, %v306, 0
  %v993 = vsel %vm739, %v309, 0
  %v996 = vsel %vm739, %v312, 0
  %v999 = vsel %vm739, %v315, 0
  %v1002 = vsel %vm739, %v318, 0
  %v1005 = vsel %vm739, %v321, 0
  %v1008 = vsel %vm739, %v324, 0
  %v1011 = vsel %vm739, %v327, 0
  %v1014 = vsel %vm739, %v330, 0
  %v1017 = vsel %vm739, %v333, 0
  %v1020 = vsel %vm739, %v336, 0
  %v1023 = vsel %vm739, %v339, 0
  %v1026 = vsel %vm739, %v342, 0
  %v1029 = vsel %vm739, %v345, 0
  %v1032 = vsel %vm739, %v348, 0
  %v1035 = vsel %vm739, %v351, 0
  %v1038 = vsel %vm739, %v354, 0
  %v1041 = vsel %vm739, %v357, 0
  %v1044 = vsel %vm739, %v360, 0
  %v1047 = vsel %vm739, %v363, 0
  %v1050 = vsel %vm739, %v366, 0
  %v1053 = vsel %vm739, %v369, 0
  %v1056 = vsel %vm739, %v372, 0
  %v1059 = vsel %vm739, %v375, 0
  %v1062 = vsel %vm739, %v378, 0
  %v1065 = vsel %vm739, %v381, 0
  %v1068 = vsel %vm739, %v384, 0
  %v1071 = vsel %vm739, %v387, 0
  %v1074 = vsel %vm739, %v390, 0
  %v1077 = vsel %vm739, %v393, 0
  %v1080 = vsel %vm739, %v396, 0
  %v1083 = vsel %vm739, %v399, 0
  %v1086 = vsel %vm739, %v402, 0
  %v1089 = vsel %vm739, %v405, 0
  %v1092 = vsel %vm739, %v408, 0
  %v1095 = vsel %vm739, %v411, 0
  %v1098 = vsel %vm739, %v414, 0
  %v1101 = vsel %vm739, %v417, 0
  %v1104 = vsel %vm739, %v420, 0
  %v1107 = vsel %vm739, %v423, 0
  %v1110 = vsel %vm739, %v426, 0
  %v1113 = vsel %vm739, %v429, 0
  %v1116 = vsel %vm739, %v432, 0
  %v1119 = vsel %vm739, %v435, 0
  %v1122 = vsel %vm739, %v438, 0
  %v1125 = vsel %vm739, %v441, 0
  %v1128 = vsel %vm739, %v444, 0
  %v1131 = vsel %vm739, %v447, 0
  %v1134 = vsel %vm739, %v450, 0
  %v1137 = vsel %vm739, %v453, 0
  %v1140 = vsel %vm739, %v456, 0
  %v1143 = vsel %vm739, %v459, 0
  %v1146 = vsel %vm739, %v462, 0
  %v1149 = vsel %vm739, %v465, 0
  %v1152 = vsel %vm739, %v468, 0
  %v1155 = vsel %vm739, %v471, 0
  %v1158 = vsel %vm739, %v474, 0
  %v1161 = vsel %vm739, %v477, 0
  %v1164 = vsel %vm739, %v480, 0
  %v1167 = vsel %vm739, %v483, 0
  %v1170 = vsel %vm739, %v486, 0
  %v1173 = vsel %vm739, %v489, 0
  %v1176 = vsel %vm739, %v492, 0
  %v1179 = vsel %vm739, %v495, 0
  %v1182 = vsel %vm739, %v498, 0
  %v1185 = vsel %vm739, %v501, 0
  %v1188 = vsel %vm739, %v504, 0
  %v1191 = vsel %vm739, %v507, 0
  %v1194 = vsel %vm739, %v510, 0
  %v1197 = vsel %vm739, %v513, 0
  %v1200 = vsel %vm739, %v516, 0
  %v1203 = vsel %vm739, %v519, 0
  %v1206 = vsel %vm739, %v522, 0
  %v1209 = vsel %vm739, %v525, 0
  %v1212 = vsel %vm739, %v528, 0
  %v1215 = vsel %vm739, %v531, 0
  %v1218 = vsel %vm739, %v534, 0
  %v1221 = vsel %vm739, %v537, 0
  %v1224 = vsel %vm739, %v540, 0
  %v1227 = vsel %vm739, %v543, 0
  %v1230 = vsel %vm739, %v546, 0
  %v1233 = vsel %vm739, %v549, 0
  %v1236 = vsel %vm739, %v552, 0
  %v1239 = vsel %vm739, %v555, 0
  %v1242 = vsel %vm739, %v558, 0
  %v1245 = vsel %vm739, %v561, 0
  %v1248 = vsel %vm739, %v564, 0
  %v1251 = vsel %vm739, %v567, 0
  %v1254 = vsel %vm739, %v570, 0
  %v1257 = vsel %vm739, %v573, 0
  %v1260 = vsel %vm739, %v576, 0
  %v1263 = vsel %vm739, %v579, 0
  %v1266 = vsel %vm739, %v582, 0
  %v1269 = vsel %vm739, %v585, 0
  %v1272 = vsel %vm739, %v588, 0
  %v1275 = vsel %vm739, %v591, 0
  %v1278 = vsel %vm739, %v594, 0
  %v1281 = vsel %vm739, %v597, 0
  %v1284 = vsel %vm739, %v600, 0
  %v1287 = vsel %vm739, %v603, 0
  %v1290 = vsel %vm739, %v606, 0
  %v1293 = vsel %vm739, %v609, 0
  %v1296 = vsel %vm739, %v612, 0
  %v1299 = vsel %vm739, %v615, 0
  %v1302 = vsel %vm739, %v618, 0
  %v1305 = vsel %vm739, %v621, 0
  %v1308 = vsel %vm739, %v624, 0
  %v1311 = vsel %vm739, %v627, 0
  %v1314 = vsel %vm739, %v630, 0
  %v1317 = vsel %vm739, %v633, 0
  %v1320 = vsel %vm739, %v636, 0
  %v1323 = vsel %vm739, %v639, 0
  %v1326 = vsel %vm739, %v642, 0
  %v1329 = vsel %vm739, %v645, 0
  %v1332 = vsel %vm739, %v648, 0
  %v1335 = vsel %vm739, %v651, 0
  %v1338 = vsel %vm739, %v654, 0
  %v1341 = vsel %vm739, %v657, 0
  %v1344 = vsel %vm739, %v660, 0
  %v1347 = vsel %vm739, %v663, 0
  %v1350 = vsel %vm739, %v666, 0
  %v1353 = vsel %vm739, %v669, 0
  %v1356 = vsel %vm739, %v672, 0
  %v1359 = vsel %vm739, %v675, 0
  %v1362 = vsel %vm739, %v678, 0
  %v1365 = vsel %vm739, %v681, 0
  %v1368 = vsel %vm739, %v684, 0
  %v1371 = vsel %vm739, %v687, 0
  %v1374 = vsel %vm739, %v690, 0
  %v1377 = vsel %vm739, %v693, 0
  %v1380 = vsel %vm739, %v696, 0
  %v1383 = vsel %vm739, %v699, 0
  %v1386 = vsel %vm739, %v702, 0
  %v1389 = vsel %vm739, %v705, 0
  %v1392 = vsel %vm739, %v708, 0
  %v1395 = vsel %vm739, %v711, 0
  %v1398 = vsel %vm739, %v714, 0
  %v1401 = vsel %vm739, %v717, 0
  %v1404 = vsel %vm739, %v720, 0
  %v1407 = vsel %vm739, %v723, 0
  %v1410 = vsel %vm739, %v726, 0
  %v1413 = vsel %vm739, %v729, 0
  %v1416 = vsel %vm739, %v732, 0
  %v1419 = vsel %vm739, %v735, 0
  %v1422 = vsel %vm739, %v738, 0
  %1424 = vmatprep.subr.mxu0 0.0
  %1425 = vmatpush1.msra.mxu0 %v17
  %1426 = vmatprep.subr.mxu0 0.0
  %1427 = vmatpush1.msra.mxu0 %v18
  %1428 = vmatprep.subr.mxu0 0.0
  %1429 = vmatpush1.msra.mxu0 %v19
  %1430 = vmatprep.subr.mxu0 0.0
  %1431 = vmatpush1.msra.mxu0 %v20
  %1432 = vmatprep.subr.mxu0 0.0
  %1433 = vmatpush1.msra.mxu0 %v21
  %1434 = vmatprep.subr.mxu0 0.0
  %1435 = vmatpush1.msra.mxu0 %v22
  %1436 = vmatprep.subr.mxu0 0.0
  %1437 = vmatpush1.msra.mxu0 %v23
  %1438 = vmatprep.subr.mxu0 0.0
  %1439 = vmatpush1.msra.mxu0 %v24
  %1440 = vmatprep.subr.mxu0 0.0
  %1441 = vmatpush1.msra.mxu0 %v25
  %1442 = vmatprep.subr.mxu0 0.0
  %1443 = vmatpush1.msra.mxu0 %v26
  %1444 = vmatprep.subr.mxu0 0.0
  %1445 = vmatpush1.msra.mxu0 %v27
  %1446 = vmatprep.subr.mxu0 0.0
  %1447 = vmatpush1.msra.mxu0 %v28
  %1448 = vmatprep.subr.mxu0 0.0
  %1449 = vmatpush1.msra.mxu0 %v29
  %1450 = vmatprep.subr.mxu0 0.0
  %1451 = vmatpush1.msra.mxu0 %v30
  %1452 = vmatprep.subr.mxu0 0.0
  %1453 = vmatpush1.msra.mxu0 %v31
  %1454 = vmatprep.subr.mxu0 0.0
  %1455 = vmatpush1.msra.mxu0 %v32
  %1456 = vmatprep.subr.mxu0 0.0
  %1457 = vmatpush1.msra.mxu0 %v33
  %1458 = vmatprep.subr.mxu0 0.0
  %1459 = vmatpush1.msra.mxu0 %v34
  %1460 = vmatprep.subr.mxu0 0.0
  %1461 = vmatpush1.msra.mxu0 %v35
  %1462 = vmatprep.subr.mxu0 0.0
  %1463 = vmatpush1.msra.mxu0 %v36
  %1464 = vmatprep.subr.mxu0 0.0
  %1465 = vmatpush1.msra.mxu0 %v37
  %1466 = vmatprep.subr.mxu0 0.0
  %1467 = vmatpush1.msra.mxu0 %v38
  %1468 = vmatprep.subr.mxu0 0.0
  %1469 = vmatpush1.msra.mxu0 %v39
  %1470 = vmatprep.subr.mxu0 0.0
  %1471 = vmatpush1.msra.mxu0 %v40
  %1472 = vmatprep.subr.mxu0 0.0
  %1473 = vmatpush1.msra.mxu0 %v41
  %1474 = vmatprep.subr.mxu0 0.0
  %1475 = vmatpush1.msra.mxu0 %v42
  %1476 = vmatprep.subr.mxu0 0.0
  %1477 = vmatpush1.msra.mxu0 %v43
  %1478 = vmatprep.subr.mxu0 0.0
  %1479 = vmatpush1.msra.mxu0 %v44
  %1480 = vmatprep.subr.mxu0 0.0
  %1481 = vmatpush1.msra.mxu0 %v45
  %1482 = vmatprep.subr.mxu0 0.0
  %1483 = vmatpush1.msra.mxu0 %v46
  %1484 = vmatprep.subr.mxu0 0.0
  %1485 = vmatpush1.msra.mxu0 %v47
  %1486 = vmatprep.subr.mxu0 0.0
  %1487 = vmatpush1.msra.mxu0 %v48
  %1488 = vmatprep.mubr.f32.mxu0 %v56
  %1489 = vmatmul.mubr.f32.gmra.mrb[0].mxu0 %v55
  %v1490 = vpop.f32.mrb[0].mxu0
  %v1491 = vadd.f32 0.0, %v1490
  %v1492 = vpop.f32.mrb[0].mxu0
  %1493 = vmatprep.mubr.f32.mxu0 %v59
  %1494 = vmatmul.mubr.f32.gmra.mrb[0].mxu0 %v58
  %v1495 = vpop.f32.mrb[0].mxu0
  %v1496 = vadd.f32 0.0, %v1495
  %v1497 = vpop.f32.mrb[0].mxu0
  %1498 = vmatprep.mubr.f32.mxu0 %v62
  %1499 = vmatmul.mubr.f32.gmra.mrb[0].mxu0 %v61
  %v1500 = vpop.f32.mrb[0].mxu0
  %v1501 = vadd.f32 0.0, %v1500
  %v1502 = vpop.f32.mrb[0].mxu0
  %1503 = vmatprep.mubr.f32.mxu0 %v65
  %1504 = vmatmul.mubr.f32.gmra.mrb[0].mxu0 %v64
  %v1505 = vpop.f32.mrb[0].mxu0
  %v1506 = vadd.f32 0.0, %v1505
  %v1507 = vpop.f32.mrb[0].mxu0
  %1508 = vmatprep.mubr.f32.mxu0 %v68
  %1509 = vmatmul.mubr.f32.gmra.mrb[0].mxu0 %v67
  %v1510 = vpop.f32.mrb[0].mxu0
  %v1511 = vadd.f32 0.0, %v1510
  %v1512 = vpop.f32.mrb[0].mxu0
  %1513 = vmatprep.mubr.f32.mxu0 %v71
  %1514 = vmatmul.mubr.f32.gmra.mrb[0].mxu0 %v70
  %v1515 = vpop.f32.mrb[0].mxu0
  %v1516 = vadd.f32 0.0, %v1515
  %v1517 = vpop.f32.mrb[0].mxu0
  %1518 = vmatprep.mubr.f32.mxu0 %v74
  %1519 = vmatmul.mubr.f32.gmra.mrb[0].mxu0 %v73
  %v1520 = vpop.f32.mrb[0].mxu0
  %v1521 = vadd.f32 0.0, %v1520
  %v1522 = vpop.f32.mrb[0].mxu0
  %1523 = vmatprep.mubr.f32.mxu0 %v77
  %1524 = vmatmul.mubr.f32.gmra.mrb[0].mxu0 %v76
  %v1525 = vpop.f32.mrb[0].mxu0
  %v1526 = vadd.f32 0.0, %v1525
  %v1527 = vpop.f32.mrb[0].mxu0
  %1528 = vmatprep.mubr.f32.mxu0 %v80
  %1529 = vmatmul.mubr.f32.gmra.mrb[0].mxu0 %v79
  %v1530 = vpop.f32.mrb[0].mxu0
  %v1531 = vadd.f32 0.0, %v1530
  %v1532 = vpop.f32.mrb[0].mxu0
  %1533 = vmatprep.mubr.f32.mxu0 %v83
  %1534 = vmatmul.mubr.f32.gmra.mrb[0].mxu0 %v82
  %v1535 = vpop.f32.mrb[0].mxu0
  %v1536 = vadd.f32 0.0, %v1535
  %v1537 = vpop.f32.mrb[0].mxu0
  %1538 = vmatprep.mubr.f32.mxu0 %v86
  %1539 = vmatmul.mubr.f32.gmra.mrb[0].mxu0 %v85
  %v1540 = vpop.f32.mrb[0].mxu0
  %v1541 = vadd.f32 0.0, %v1540
  %v1542 = vpop.f32.mrb[0].mxu0
  %1543 = vmatprep.mubr.f32.mxu0 %v89
  %1544 = vmatmul.mubr.f32.gmra.mrb[0].mxu0 %v88
  %v1545 = vpop.f32.mrb[0].mxu0
  %v1546 = vadd.f32 0.0, %v1545
  %v1547 = vpop.f32.mrb[0].mxu0
  %1548 = vmatprep.mubr.f32.mxu0 %v92
  %1549 = vmatmul.mubr.f32.gmra.mrb[0].mxu0 %v91
  %v1550 = vpop.f32.mrb[0].mxu0
  %v1551 = vadd.f32 0.0, %v1550
  %v1552 = vpop.f32.mrb[0].mxu0
  %1553 = vmatprep.mubr.f32.mxu0 %v95
  %1554 = vmatmul.mubr.f32.gmra.mrb[0].mxu0 %v94
  %v1555 = vpop.f32.mrb[0].mxu0
  %v1556 = vadd.f32 0.0, %v1555
  %v1557 = vpop.f32.mrb[0].mxu0
  %1558 = vmatprep.mubr.f32.mxu0 %v98
  %1559 = vmatmul.mubr.f32.gmra.mrb[0].mxu0 %v97
  %v1560 = vpop.f32.mrb[0].mxu0
  %v1561 = vadd.f32 0.0, %v1560
  %v1562 = vpop.f32.mrb[0].mxu0
  %1563 = vmatprep.mubr.f32.mxu0 %v101
  %1564 = vmatmul.mubr.f32.gmra.mrb[0].mxu0 %v100
  %v1565 = vpop.f32.mrb[0].mxu0
  %v1566 = vadd.f32 0.0, %v1565
  %v1567 = vpop.f32.mrb[0].mxu0
  %1568 = vmatprep.mubr.f32.mxu0 %v104
  %1569 = vmatmul.mubr.f32.gmra.mrb[0].mxu0 %v103
  %v1570 = vpop.f32.mrb[0].mxu0
  %v1571 = vadd.f32 0.0, %v1570
  %v1572 = vpop.f32.mrb[0].mxu0
  %1573 = vmatprep.mubr.f32.mxu0 %v107
  %1574 = vmatmul.mubr.f32.gmra.mrb[0].mxu0 %v106
  %v1575 = vpop.f32.mrb[0].mxu0
  %v1576 = vadd.f32 0.0, %v1575
  %v1577 = vpop.f32.mrb[0].mxu0
  %1578 = vmatprep.mubr.f32.mxu0 %v110
  %1579 = vmatmul.mubr.f32.gmra.mrb[0].mxu0 %v109
  %v1580 = vpop.f32.mrb[0].mxu0
  %v1581 = vadd.f32 0.0, %v1580
  %v1582 = vpop.f32.mrb[0].mxu0
  %1583 = vmatprep.mubr.f32.mxu0 %v113
  %1584 = vmatmul.mubr.f32.gmra.mrb[0].mxu0 %v112
  %v1585 = vpop.f32.mrb[0].mxu0
  %v1586 = vadd.f32 0.0, %v1585
  %v1587 = vpop.f32.mrb[0].mxu0
  %1588 = vmatprep.mubr.f32.mxu0 %v116
  %1589 = vmatmul.mubr.f32.gmra.mrb[0].mxu0 %v115
  %v1590 = vpop.f32.mrb[0].mxu0
  %v1591 = vadd.f32 0.0, %v1590
  %v1592 = vpop.f32.mrb[0].mxu0
  %1593 = vmatprep.mubr.f32.mxu0 %v119
  %1594 = vmatmul.mubr.f32.gmra.mrb[0].mxu0 %v118
  %v1595 = vpop.f32.mrb[0].mxu0
  %v1596 = vadd.f32 0.0, %v1595
  %v1597 = vpop.f32.mrb[0].mxu0
  %1598 = vmatprep.mubr.f32.mxu0 %v122
  %1599 = vmatmul.mubr.f32.gmra.mrb[0].mxu0 %v121
  %v1600 = vpop.f32.mrb[0].mxu0
  %v1601 = vadd.f32 0.0, %v1600
  %v1602 = vpop.f32.mrb[0].mxu0
  %1603 = vmatprep.mubr.f32.mxu0 %v125
  %1604 = vmatmul.mubr.f32.gmra.mrb[0].mxu0 %v124
  %v1605 = vpop.f32.mrb[0].mxu0
  %v1606 = vadd.f32 0.0, %v1605
  %v1607 = vpop.f32.mrb[0].mxu0
  %1608 = vmatprep.mubr.f32.mxu0 %v128
  %1609 = vmatmul.mubr.f32.gmra.mrb[0].mxu0 %v127
  %v1610 = vpop.f32.mrb[0].mxu0
  %v1611 = vadd.f32 0.0, %v1610
  %v1612 = vpop.f32.mrb[0].mxu0
  %1613 = vmatprep.mubr.f32.mxu0 %v131
  %1614 = vmatmul.mubr.f32.gmra.mrb[0].mxu0 %v130
  %v1615 = vpop.f32.mrb[0].mxu0
  %v1616 = vadd.f32 0.0, %v1615
  %v1617 = vpop.f32.mrb[0].mxu0
  %1618 = vmatprep.mubr.f32.mxu0 %v134
  %1619 = vmatmul.mubr.f32.gmra.mrb[0].mxu0 %v133
  %v1620 = vpop.f32.mrb[0].mxu0
  %v1621 = vadd.f32 0.0, %v1620
  %v1622 = vpop.f32.mrb[0].mxu0
  %1623 = vmatprep.mubr.f32.mxu0 %v137
  %1624 = vmatmul.mubr.f32.gmra.mrb[0].mxu0 %v136
  %v1625 = vpop.f32.mrb[0].mxu0
  %v1626 = vadd.f32 0.0, %v1625
  %v1627 = vpop.f32.mrb[0].mxu0
  %1628 = vmatprep.mubr.f32.mxu0 %v140
  %1629 = vmatmul.mubr.f32.gmra.mrb[0].mxu0 %v139
  %v1630 = vpop.f32.mrb[0].mxu0
  %v1631 = vadd.f32 0.0, %v1630
  %v1632 = vpop.f32.mrb[0].mxu0
  %1633 = vmatprep.mubr.f32.mxu0 %v143
  %1634 = vmatmul.mubr.f32.gmra.mrb[0].mxu0 %v142
  %v1635 = vpop.f32.mrb[0].mxu0
  %v1636 = vadd.f32 0.0, %v1635
  %v1637 = vpop.f32.mrb[0].mxu0
  %1638 = vmatprep.mubr.f32.mxu0 %v146
  %1639 = vmatmul.mubr.f32.gmra.mrb[0].mxu0 %v145
  %v1640 = vpop.f32.mrb[0].mxu0
  %v1641 = vadd.f32 0.0, %v1640
  %v1642 = vpop.f32.mrb[0].mxu0
  %1643 = vmatprep.mubr.f32.mxu0 %v149
  %1644 = vmatmul.mubr.f32.gmra.mrb[0].mxu0 %v148
  %v1645 = vpop.f32.mrb[0].mxu0
  %v1646 = vadd.f32 0.0, %v1645
  %v1647 = vpop.f32.mrb[0].mxu0
  %1648 = vmatprep.mubr.f32.mxu0 %v152
  %1649 = vmatmul.mubr.f32.gmra.mrb[0].mxu0 %v151
  %v1650 = vpop.f32.mrb[0].mxu0
  %v1651 = vadd.f32 0.0, %v1650
  %v1652 = vpop.f32.mrb[0].mxu0
  %1653 = vmatprep.mubr.f32.mxu0 %v155
  %1654 = vmatmul.mubr.f32.gmra.mrb[0].mxu0 %v154
  %v1655 = vpop.f32.mrb[0].mxu0
  %v1656 = vadd.f32 0.0, %v1655
  %v1657 = vpop.f32.mrb[0].mxu0
  %1658 = vmatprep.mubr.f32.mxu0 %v158
  %1659 = vmatmul.mubr.f32.gmra.mrb[0].mxu0 %v157
  %v1660 = vpop.f32.mrb[0].mxu0
  %v1661 = vadd.f32 0.0, %v1660
  %v1662 = vpop.f32.mrb[0].mxu0
  %1663 = vmatprep.mubr.f32.mxu0 %v161
  %1664 = vmatmul.mubr.f32.gmra.mrb[0].mxu0 %v160
  %v1665 = vpop.f32.mrb[0].mxu0
  %v1666 = vadd.f32 0.0, %v1665
  %v1667 = vpop.f32.mrb[0].mxu0
  %1668 = vmatprep.mubr.f32.mxu0 %v164
  %1669 = vmatmul.mubr.f32.gmra.mrb[0].mxu0 %v163
  %v1670 = vpop.f32.mrb[0].mxu0
  %v1671 = vadd.f32 0.0, %v1670
  %v1672 = vpop.f32.mrb[0].mxu0
  %1673 = vmatprep.mubr.f32.mxu0 %v167
  %1674 = vmatmul.mubr.f32.gmra.mrb[0].mxu0 %v166
  %v1675 = vpop.f32.mrb[0].mxu0
  %v1676 = vadd.f32 0.0, %v1675
  %v1677 = vpop.f32.mrb[0].mxu0
  %1678 = vmatprep.mubr.f32.mxu0 %v170
  %1679 = vmatmul.mubr.f32.gmra.mrb[0].mxu0 %v169
  %v1680 = vpop.f32.mrb[0].mxu0
  %v1681 = vadd.f32 0.0, %v1680
  %v1682 = vpop.f32.mrb[0].mxu0
  %1683 = vmatprep.mubr.f32.mxu0 %v173
  %1684 = vmatmul.mubr.f32.gmra.mrb[0].mxu0 %v172
  %v1685 = vpop.f32.mrb[0].mxu0
  %v1686 = vadd.f32 0.0, %v1685
  %v1687 = vpop.f32.mrb[0].mxu0
  %1688 = vmatprep.mubr.f32.mxu0 %v176
  %1689 = vmatmul.mubr.f32.gmra.mrb[0].mxu0 %v175
  %v1690 = vpop.f32.mrb[0].mxu0
  %v1691 = vadd.f32 0.0, %v1690
  %v1692 = vpop.f32.mrb[0].mxu0
  %1693 = vmatprep.mubr.f32.mxu0 %v179
  %1694 = vmatmul.mubr.f32.gmra.mrb[0].mxu0 %v178
  %v1695 = vpop.f32.mrb[0].mxu0
  %v1696 = vadd.f32 0.0, %v1695
  %v1697 = vpop.f32.mrb[0].mxu0
  %1698 = vmatprep.mubr.f32.mxu0 %v182
  %1699 = vmatmul.mubr.f32.gmra.mrb[0].mxu0 %v181
  %v1700 = vpop.f32.mrb[0].mxu0
  %v1701 = vadd.f32 0.0, %v1700
  %v1702 = vpop.f32.mrb[0].mxu0
  %1703 = vmatprep.mubr.f32.mxu0 %v185
  %1704 = vmatmul.mubr.f32.gmra.mrb[0].mxu0 %v184
  %v1705 = vpop.f32.mrb[0].mxu0
  %v1706 = vadd.f32 0.0, %v1705
  %v1707 = vpop.f32.mrb[0].mxu0
  %1708 = vmatprep.mubr.f32.mxu0 %v188
  %1709 = vmatmul.mubr.f32.gmra.mrb[0].mxu0 %v187
  %v1710 = vpop.f32.mrb[0].mxu0
  %v1711 = vadd.f32 0.0, %v1710
  %v1712 = vpop.f32.mrb[0].mxu0
  %1713 = vmatprep.mubr.f32.mxu0 %v191
  %1714 = vmatmul.mubr.f32.gmra.mrb[0].mxu0 %v190
  %v1715 = vpop.f32.mrb[0].mxu0
  %v1716 = vadd.f32 0.0, %v1715
  %v1717 = vpop.f32.mrb[0].mxu0
  %1718 = vmatprep.mubr.f32.mxu0 %v194
  %1719 = vmatmul.mubr.f32.gmra.mrb[0].mxu0 %v193
  %v1720 = vpop.f32.mrb[0].mxu0
  %v1721 = vadd.f32 0.0, %v1720
  %v1722 = vpop.f32.mrb[0].mxu0
  %1723 = vmatprep.mubr.f32.mxu0 %v197
  %1724 = vmatmul.mubr.f32.gmra.mrb[0].mxu0 %v196
  %v1725 = vpop.f32.mrb[0].mxu0
  %v1726 = vadd.f32 0.0, %v1725
  %v1727 = vpop.f32.mrb[0].mxu0
  %1728 = vmatprep.mubr.f32.mxu0 %v200
  %1729 = vmatmul.mubr.f32.gmra.mrb[0].mxu0 %v199
  %v1730 = vpop.f32.mrb[0].mxu0
  %v1731 = vadd.f32 0.0, %v1730
  %v1732 = vpop.f32.mrb[0].mxu0
  %1733 = vmatprep.mubr.f32.mxu0 %v203
  %1734 = vmatmul.mubr.f32.gmra.mrb[0].mxu0 %v202
  %v1735 = vpop.f32.mrb[0].mxu0
  %v1736 = vadd.f32 0.0, %v1735
  %v1737 = vpop.f32.mrb[0].mxu0
  %1738 = vmatprep.mubr.f32.mxu0 %v206
  %1739 = vmatmul.mubr.f32.gmra.mrb[0].mxu0 %v205
  %v1740 = vpop.f32.mrb[0].mxu0
  %v1741 = vadd.f32 0.0, %v1740
  %v1742 = vpop.f32.mrb[0].mxu0
  %1743 = vmatprep.mubr.f32.mxu0 %v209
  %1744 = vmatmul.mubr.f32.gmra.mrb[0].mxu0 %v208
  %v1745 = vpop.f32.mrb[0].mxu0
  %v1746 = vadd.f32 0.0, %v1745
  %v1747 = vpop.f32.mrb[0].mxu0
  %1748 = vmatprep.mubr.f32.mxu0 %v212
  %1749 = vmatmul.mubr.f32.gmra.mrb[0].mxu0 %v211
  %v1750 = vpop.f32.mrb[0].mxu0
  %v1751 = vadd.f32 0.0, %v1750
  %v1752 = vpop.f32.mrb[0].mxu0
  %1753 = vmatprep.mubr.f32.mxu0 %v215
  %1754 = vmatmul.mubr.f32.gmra.mrb[0].mxu0 %v214
  %v1755 = vpop.f32.mrb[0].mxu0
  %v1756 = vadd.f32 0.0, %v1755
  %v1757 = vpop.f32.mrb[0].mxu0
  %1758 = vmatprep.mubr.f32.mxu0 %v218
  %1759 = vmatmul.mubr.f32.gmra.mrb[0].mxu0 %v217
  %v1760 = vpop.f32.mrb[0].mxu0
  %v1761 = vadd.f32 0.0, %v1760
  %v1762 = vpop.f32.mrb[0].mxu0
  %1763 = vmatprep.mubr.f32.mxu0 %v221
  %1764 = vmatmul.mubr.f32.gmra.mrb[0].mxu0 %v220
  %v1765 = vpop.f32.mrb[0].mxu0
  %v1766 = vadd.f32 0.0, %v1765
  %v1767 = vpop.f32.mrb[0].mxu0
  %1768 = vmatprep.mubr.f32.mxu0 %v224
  %1769 = vmatmul.mubr.f32.gmra.mrb[0].mxu0 %v223
  %v1770 = vpop.f32.mrb[0].mxu0
  %v1771 = vadd.f32 0.0, %v1770
  %v1772 = vpop.f32.mrb[0].mxu0
  %1773 = vmatprep.mubr.f32.mxu0 %v227
  %1774 = vmatmul.mubr.f32.gmra.mrb[0].mxu0 %v226
  %v1775 = vpop.f32.mrb[0].mxu0
  %v1776 = vadd.f32 0.0, %v1775
  %v1777 = vpop.f32.mrb[0].mxu0
  %1778 = vmatprep.mubr.f32.mxu0 %v230
  %1779 = vmatmul.mubr.f32.gmra.mrb[0].mxu0 %v229
  %v1780 = vpop.f32.mrb[0].mxu0
  %v1781 = vadd.f32 0.0, %v1780
  %v1782 = vpop.f32.mrb[0].mxu0
  %1783 = vmatprep.mubr.f32.mxu0 %v233
  %1784 = vmatmul.mubr.f32.gmra.mrb[0].mxu0 %v232
  %v1785 = vpop.f32.mrb[0].mxu0
  %v1786 = vadd.f32 0.0, %v1785
  %v1787 = vpop.f32.mrb[0].mxu0
  %1788 = vmatprep.mubr.f32.mxu0 %v236
  %1789 = vmatmul.mubr.f32.gmra.mrb[0].mxu0 %v235
  %v1790 = vpop.f32.mrb[0].mxu0
  %v1791 = vadd.f32 0.0, %v1790
  %v1792 = vpop.f32.mrb[0].mxu0
  %1793 = vmatprep.mubr.f32.mxu0 %v239
  %1794 = vmatmul.mubr.f32.gmra.mrb[0].mxu0 %v238
  %v1795 = vpop.f32.mrb[0].mxu0
  %v1796 = vadd.f32 0.0, %v1795
  %v1797 = vpop.f32.mrb[0].mxu0
  %1798 = vmatprep.mubr.f32.mxu0 %v242
  %1799 = vmatmul.mubr.f32.gmra.mrb[0].mxu0 %v241
  %v1800 = vpop.f32.mrb[0].mxu0
  %v1801 = vadd.f32 0.0, %v1800
  %v1802 = vpop.f32.mrb[0].mxu0
  %1803 = vmatprep.mubr.f32.mxu0 %v245
  %1804 = vmatmul.mubr.f32.gmra.mrb[0].mxu0 %v244
  %v1805 = vpop.f32.mrb[0].mxu0
  %v1806 = vadd.f32 0.0, %v1805
  %v1807 = vpop.f32.mrb[0].mxu0
  %1808 = vmatprep.mubr.f32.mxu0 %v248
  %1809 = vmatmul.mubr.f32.gmra.mrb[0].mxu0 %v247
  %v1810 = vpop.f32.mrb[0].mxu0
  %v1811 = vadd.f32 0.0, %v1810
  %v1812 = vpop.f32.mrb[0].mxu0
  %1813 = vmatprep.mubr.f32.mxu0 %v251
  %1814 = vmatmul.mubr.f32.gmra.mrb[0].mxu0 %v250
  %v1815 = vpop.f32.mrb[0].mxu0
  %v1816 = vadd.f32 0.0, %v1815
  %v1817 = vpop.f32.mrb[0].mxu0
  %1818 = vmatprep.mubr.f32.mxu0 %v254
  %1819 = vmatmul.mubr.f32.gmra.mrb[0].mxu0 %v253
  %v1820 = vpop.f32.mrb[0].mxu0
  %v1821 = vadd.f32 0.0, %v1820
  %v1822 = vpop.f32.mrb[0].mxu0
  %1823 = vmatprep.mubr.f32.mxu0 %v257
  %1824 = vmatmul.mubr.f32.gmra.mrb[0].mxu0 %v256
  %v1825 = vpop.f32.mrb[0].mxu0
  %v1826 = vadd.f32 0.0, %v1825
  %v1827 = vpop.f32.mrb[0].mxu0
  %1828 = vmatprep.mubr.f32.mxu0 %v260
  %1829 = vmatmul.mubr.f32.gmra.mrb[0].mxu0 %v259
  %v1830 = vpop.f32.mrb[0].mxu0
  %v1831 = vadd.f32 0.0, %v1830
  %v1832 = vpop.f32.mrb[0].mxu0
  %1833 = vmatprep.mubr.f32.mxu0 %v263
  %1834 = vmatmul.mubr.f32.gmra.mrb[0].mxu0 %v262
  %v1835 = vpop.f32.mrb[0].mxu0
  %v1836 = vadd.f32 0.0, %v1835
  %v1837 = vpop.f32.mrb[0].mxu0
  %1838 = vmatprep.mubr.f32.mxu0 %v266
  %1839 = vmatmul.mubr.f32.gmra.mrb[0].mxu0 %v265
  %v1840 = vpop.f32.mrb[0].mxu0
  %v1841 = vadd.f32 0.0, %v1840
  %v1842 = vpop.f32.mrb[0].mxu0
  %1843 = vmatprep.mubr.f32.mxu0 %v269
  %1844 = vmatmul.mubr.f32.gmra.mrb[0].mxu0 %v268
  %v1845 = vpop.f32.mrb[0].mxu0
  %v1846 = vadd.f32 0.0, %v1845
  %v1847 = vpop.f32.mrb[0].mxu0
  %1848 = vmatprep.mubr.f32.mxu0 %v272
  %1849 = vmatmul.mubr.f32.gmra.mrb[0].mxu0 %v271
  %v1850 = vpop.f32.mrb[0].mxu0
  %v1851 = vadd.f32 0.0, %v1850
  %v1852 = vpop.f32.mrb[0].mxu0
  %1853 = vmatprep.mubr.f32.mxu0 %v275
  %1854 = vmatmul.mubr.f32.gmra.mrb[0].mxu0 %v274
  %v1855 = vpop.f32.mrb[0].mxu0
  %v1856 = vadd.f32 0.0, %v1855
  %v1857 = vpop.f32.mrb[0].mxu0
  %1858 = vmatprep.mubr.f32.mxu0 %v278
  %1859 = vmatmul.mubr.f32.gmra.mrb[0].mxu0 %v277
  %v1860 = vpop.f32.mrb[0].mxu0
  %v1861 = vadd.f32 0.0, %v1860
  %v1862 = vpop.f32.mrb[0].mxu0
  %1863 = vmatprep.mubr.f32.mxu0 %v281
  %1864 = vmatmul.mubr.f32.gmra.mrb[0].mxu0 %v280
  %v1865 = vpop.f32.mrb[0].mxu0
  %v1866 = vadd.f32 0.0, %v1865
  %v1867 = vpop.f32.mrb[0].mxu0
  %1868 = vmatprep.mubr.f32.mxu0 %v284
  %1869 = vmatmul.mubr.f32.gmra.mrb[0].mxu0 %v283
  %v1870 = vpop.f32.mrb[0].mxu0
  %v1871 = vadd.f32 0.0, %v1870
  %v1872 = vpop.f32.mrb[0].mxu0
  %1873 = vmatprep.mubr.f32.mxu0 %v287
  %1874 = vmatmul.mubr.f32.gmra.mrb[0].mxu0 %v286
  %v1875 = vpop.f32.mrb[0].mxu0
  %v1876 = vadd.f32 0.0, %v1875
  %v1877 = vpop.f32.mrb[0].mxu0
  %1878 = vmatprep.mubr.f32.mxu0 %v290
  %1879 = vmatmul.mubr.f32.gmra.mrb[0].mxu0 %v289
  %v1880 = vpop.f32.mrb[0].mxu0
  %v1881 = vadd.f32 0.0, %v1880
  %v1882 = vpop.f32.mrb[0].mxu0
  %1883 = vmatprep.mubr.f32.mxu0 %v293
  %1884 = vmatmul.mubr.f32.gmra.mrb[0].mxu0 %v292
  %v1885 = vpop.f32.mrb[0].mxu0
  %v1886 = vadd.f32 0.0, %v1885
  %v1887 = vpop.f32.mrb[0].mxu0
  %1888 = vmatprep.mubr.f32.mxu0 %v296
  %1889 = vmatmul.mubr.f32.gmra.mrb[0].mxu0 %v295
  %v1890 = vpop.f32.mrb[0].mxu0
  %v1891 = vadd.f32 0.0, %v1890
  %v1892 = vpop.f32.mrb[0].mxu0
  %1893 = vmatprep.mubr.f32.mxu0 %v299
  %1894 = vmatmul.mubr.f32.gmra.mrb[0].mxu0 %v298
  %v1895 = vpop.f32.mrb[0].mxu0
  %v1896 = vadd.f32 0.0, %v1895
  %v1897 = vpop.f32.mrb[0].mxu0
  %1898 = vmatprep.mubr.f32.mxu0 %v302
  %1899 = vmatmul.mubr.f32.gmra.mrb[0].mxu0 %v301
  %v1900 = vpop.f32.mrb[0].mxu0
  %v1901 = vadd.f32 0.0, %v1900
  %v1902 = vpop.f32.mrb[0].mxu0
  %1903 = vmatprep.mubr.f32.mxu0 %v305
  %1904 = vmatmul.mubr.f32.gmra.mrb[0].mxu0 %v304
  %v1905 = vpop.f32.mrb[0].mxu0
  %v1906 = vadd.f32 0.0, %v1905
  %v1907 = vpop.f32.mrb[0].mxu0
  %1908 = vmatprep.mubr.f32.mxu0 %v308
  %1909 = vmatmul.mubr.f32.gmra.mrb[0].mxu0 %v307
  %v1910 = vpop.f32.mrb[0].mxu0
  %v1911 = vadd.f32 0.0, %v1910
  %v1912 = vpop.f32.mrb[0].mxu0
  %1913 = vmatprep.mubr.f32.mxu0 %v311
  %1914 = vmatmul.mubr.f32.gmra.mrb[0].mxu0 %v310
  %v1915 = vpop.f32.mrb[0].mxu0
  %v1916 = vadd.f32 0.0, %v1915
  %v1917 = vpop.f32.mrb[0].mxu0
  %1918 = vmatprep.mubr.f32.mxu0 %v314
  %1919 = vmatmul.mubr.f32.gmra.mrb[0].mxu0 %v313
  %v1920 = vpop.f32.mrb[0].mxu0
  %v1921 = vadd.f32 0.0, %v1920
  %v1922 = vpop.f32.mrb[0].mxu0
  %1923 = vmatprep.mubr.f32.mxu0 %v317
  %1924 = vmatmul.mubr.f32.gmra.mrb[0].mxu0 %v316
  %v1925 = vpop.f32.mrb[0].mxu0
  %v1926 = vadd.f32 0.0, %v1925
  %v1927 = vpop.f32.mrb[0].mxu0
  %1928 = vmatprep.mubr.f32.mxu0 %v320
  %1929 = vmatmul.mubr.f32.gmra.mrb[0].mxu0 %v319
  %v1930 = vpop.f32.mrb[0].mxu0
  %v1931 = vadd.f32 0.0, %v1930
  %v1932 = vpop.f32.mrb[0].mxu0
  %1933 = vmatprep.mubr.f32.mxu0 %v323
  %1934 = vmatmul.mubr.f32.gmra.mrb[0].mxu0 %v322
  %v1935 = vpop.f32.mrb[0].mxu0
  %v1936 = vadd.f32 0.0, %v1935
  %v1937 = vpop.f32.mrb[0].mxu0
  %1938 = vmatprep.mubr.f32.mxu0 %v326
  %1939 = vmatmul.mubr.f32.gmra.mrb[0].mxu0 %v325
  %v1940 = vpop.f32.mrb[0].mxu0
  %v1941 = vadd.f32 0.0, %v1940
  %v1942 = vpop.f32.mrb[0].mxu0
  %1943 = vmatprep.mubr.f32.mxu0 %v329
  %1944 = vmatmul.mubr.f32.gmra.mrb[0].mxu0 %v328
  %v1945 = vpop.f32.mrb[0].mxu0
  %v1946 = vadd.f32 0.0, %v1945
  %v1947 = vpop.f32.mrb[0].mxu0
  %1948 = vmatprep.mubr.f32.mxu0 %v332
  %1949 = vmatmul.mubr.f32.gmra.mrb[0].mxu0 %v331
  %v1950 = vpop.f32.mrb[0].mxu0
  %v1951 = vadd.f32 0.0, %v1950
  %v1952 = vpop.f32.mrb[0].mxu0
  %1953 = vmatprep.mubr.f32.mxu0 %v335
  %1954 = vmatmul.mubr.f32.gmra.mrb[0].mxu0 %v334
  %v1955 = vpop.f32.mrb[0].mxu0
  %v1956 = vadd.f32 0.0, %v1955
  %v1957 = vpop.f32.mrb[0].mxu0
  %1958 = vmatprep.mubr.f32.mxu0 %v338
  %1959 = vmatmul.mubr.f32.gmra.mrb[0].mxu0 %v337
  %v1960 = vpop.f32.mrb[0].mxu0
  %v1961 = vadd.f32 0.0, %v1960
  %v1962 = vpop.f32.mrb[0].mxu0
  %1963 = vmatprep.mubr.f32.mxu0 %v341
  %1964 = vmatmul.mubr.f32.gmra.mrb[0].mxu0 %v340
  %v1965 = vpop.f32.mrb[0].mxu0
  %v1966 = vadd.f32 0.0, %v1965
  %v1967 = vpop.f32.mrb[0].mxu0
  %1968 = vmatprep.mubr.f32.mxu0 %v344
  %1969 = vmatmul.mubr.f32.gmra.mrb[0].mxu0 %v343
  %v1970 = vpop.f32.mrb[0].mxu0
  %v1971 = vadd.f32 0.0, %v1970
  %v1972 = vpop.f32.mrb[0].mxu0
  %1973 = vmatprep.mubr.f32.mxu0 %v347
  %1974 = vmatmul.mubr.f32.gmra.mrb[0].mxu0 %v346
  %v1975 = vpop.f32.mrb[0].mxu0
  %v1976 = vadd.f32 0.0, %v1975
  %v1977 = vpop.f32.mrb[0].mxu0
  %1978 = vmatprep.mubr.f32.mxu0 %v350
  %1979 = vmatmul.mubr.f32.gmra.mrb[0].mxu0 %v349
  %v1980 = vpop.f32.mrb[0].mxu0
  %v1981 = vadd.f32 0.0, %v1980
  %v1982 = vpop.f32.mrb[0].mxu0
  %1983 = vmatprep.mubr.f32.mxu0 %v353
  %1984 = vmatmul.mubr.f32.gmra.mrb[0].mxu0 %v352
  %v1985 = vpop.f32.mrb[0].mxu0
  %v1986 = vadd.f32 0.0, %v1985
  %v1987 = vpop.f32.mrb[0].mxu0
  %1988 = vmatprep.mubr.f32.mxu0 %v356
  %1989 = vmatmul.mubr.f32.gmra.mrb[0].mxu0 %v355
  %v1990 = vpop.f32.mrb[0].mxu0
  %v1991 = vadd.f32 0.0, %v1990
  %v1992 = vpop.f32.mrb[0].mxu0
  %1993 = vmatprep.mubr.f32.mxu0 %v359
  %1994 = vmatmul.mubr.f32.gmra.mrb[0].mxu0 %v358
  %v1995 = vpop.f32.mrb[0].mxu0
  %v1996 = vadd.f32 0.0, %v1995
  %v1997 = vpop.f32.mrb[0].mxu0
  %1998 = vmatprep.mubr.f32.mxu0 %v362
  %1999 = vmatmul.mubr.f32.gmra.mrb[0].mxu0 %v361
  %v2000 = vpop.f32.mrb[0].mxu0
  %v2001 = vadd.f32 0.0, %v2000
  %v2002 = vpop.f32.mrb[0].mxu0
  %2003 = vmatprep.mubr.f32.mxu0 %v365
  %2004 = vmatmul.mubr.f32.gmra.mrb[0].mxu0 %v364
  %v2005 = vpop.f32.mrb[0].mxu0
  %v2006 = vadd.f32 0.0, %v2005
  %v2007 = vpop.f32.mrb[0].mxu0
  %2008 = vmatprep.mubr.f32.mxu0 %v368
  %2009 = vmatmul.mubr.f32.gmra.mrb[0].mxu0 %v367
  %v2010 = vpop.f32.mrb[0].mxu0
  %v2011 = vadd.f32 0.0, %v2010
  %v2012 = vpop.f32.mrb[0].mxu0
  %2013 = vmatprep.mubr.f32.mxu0 %v371
  %2014 = vmatmul.mubr.f32.gmra.mrb[0].mxu0 %v370
  %v2015 = vpop.f32.mrb[0].mxu0
  %v2016 = vadd.f32 0.0, %v2015
  %v2017 = vpop.f32.mrb[0].mxu0
  %2018 = vmatprep.mubr.f32.mxu0 %v374
  %2019 = vmatmul.mubr.f32.gmra.mrb[0].mxu0 %v373
  %v2020 = vpop.f32.mrb[0].mxu0
  %v2021 = vadd.f32 0.0, %v2020
  %v2022 = vpop.f32.mrb[0].mxu0
  %2023 = vmatprep.mubr.f32.mxu0 %v377
  %2024 = vmatmul.mubr.f32.gmra.mrb[0].mxu0 %v376
  %v2025 = vpop.f32.mrb[0].mxu0
  %v2026 = vadd.f32 0.0, %v2025
  %v2027 = vpop.f32.mrb[0].mxu0
  %2028 = vmatprep.mubr.f32.mxu0 %v380
  %2029 = vmatmul.mubr.f32.gmra.mrb[0].mxu0 %v379
  %v2030 = vpop.f32.mrb[0].mxu0
  %v2031 = vadd.f32 0.0, %v2030
  %v2032 = vpop.f32.mrb[0].mxu0
  %2033 = vmatprep.mubr.f32.mxu0 %v383
  %2034 = vmatmul.mubr.f32.gmra.mrb[0].mxu0 %v382
  %v2035 = vpop.f32.mrb[0].mxu0
  %v2036 = vadd.f32 0.0, %v2035
  %v2037 = vpop.f32.mrb[0].mxu0
  %2038 = vmatprep.mubr.f32.mxu0 %v386
  %2039 = vmatmul.mubr.f32.gmra.mrb[0].mxu0 %v385
  %v2040 = vpop.f32.mrb[0].mxu0
  %v2041 = vadd.f32 0.0, %v2040
  %v2042 = vpop.f32.mrb[0].mxu0
  %2043 = vmatprep.mubr.f32.mxu0 %v389
  %2044 = vmatmul.mubr.f32.gmra.mrb[0].mxu0 %v388
  %v2045 = vpop.f32.mrb[0].mxu0
  %v2046 = vadd.f32 0.0, %v2045
  %v2047 = vpop.f32.mrb[0].mxu0
  %2048 = vmatprep.mubr.f32.mxu0 %v392
  %2049 = vmatmul.mubr.f32.gmra.mrb[0].mxu0 %v391
  %v2050 = vpop.f32.mrb[0].mxu0
  %v2051 = vadd.f32 0.0, %v2050
  %v2052 = vpop.f32.mrb[0].mxu0
  %2053 = vmatprep.mubr.f32.mxu0 %v395
  %2054 = vmatmul.mubr.f32.gmra.mrb[0].mxu0 %v394
  %v2055 = vpop.f32.mrb[0].mxu0
  %v2056 = vadd.f32 0.0, %v2055
  %v2057 = vpop.f32.mrb[0].mxu0
  %2058 = vmatprep.mubr.f32.mxu0 %v398
  %2059 = vmatmul.mubr.f32.gmra.mrb[0].mxu0 %v397
  %v2060 = vpop.f32.mrb[0].mxu0
  %v2061 = vadd.f32 0.0, %v2060
  %v2062 = vpop.f32.mrb[0].mxu0
  %2063 = vmatprep.mubr.f32.mxu0 %v401
  %2064 = vmatmul.mubr.f32.gmra.mrb[0].mxu0 %v400
  %v2065 = vpop.f32.mrb[0].mxu0
  %v2066 = vadd.f32 0.0, %v2065
  %v2067 = vpop.f32.mrb[0].mxu0
  %2068 = vmatprep.mubr.f32.mxu0 %v404
  %2069 = vmatmul.mubr.f32.gmra.mrb[0].mxu0 %v403
  %v2070 = vpop.f32.mrb[0].mxu0
  %v2071 = vadd.f32 0.0, %v2070
  %v2072 = vpop.f32.mrb[0].mxu0
  %2073 = vmatprep.mubr.f32.mxu0 %v407
  %2074 = vmatmul.mubr.f32.gmra.mrb[0].mxu0 %v406
  %v2075 = vpop.f32.mrb[0].mxu0
  %v2076 = vadd.f32 0.0, %v2075
  %v2077 = vpop.f32.mrb[0].mxu0
  %2078 = vmatprep.mubr.f32.mxu0 %v410
  %2079 = vmatmul.mubr.f32.gmra.mrb[0].mxu0 %v409
  %v2080 = vpop.f32.mrb[0].mxu0
  %v2081 = vadd.f32 0.0, %v2080
  %v2082 = vpop.f32.mrb[0].mxu0
  %2083 = vmatprep.mubr.f32.mxu0 %v413
  %2084 = vmatmul.mubr.f32.gmra.mrb[0].mxu0 %v412
  %v2085 = vpop.f32.mrb[0].mxu0
  %v2086 = vadd.f32 0.0, %v2085
  %v2087 = vpop.f32.mrb[0].mxu0
  %2088 = vmatprep.mubr.f32.mxu0 %v416
  %2089 = vmatmul.mubr.f32.gmra.mrb[0].mxu0 %v415
  %v2090 = vpop.f32.mrb[0].mxu0
  %v2091 = vadd.f32 0.0, %v2090
  %v2092 = vpop.f32.mrb[0].mxu0
  %2093 = vmatprep.mubr.f32.mxu0 %v419
  %2094 = vmatmul.mubr.f32.gmra.mrb[0].mxu0 %v418
  %v2095 = vpop.f32.mrb[0].mxu0
  %v2096 = vadd.f32 0.0, %v2095
  %v2097 = vpop.f32.mrb[0].mxu0
  %2098 = vmatprep.mubr.f32.mxu0 %v422
  %2099 = vmatmul.mubr.f32.gmra.mrb[0].mxu0 %v421
  %v2100 = vpop.f32.mrb[0].mxu0
  %v2101 = vadd.f32 0.0, %v2100
  %v2102 = vpop.f32.mrb[0].mxu0
  %2103 = vmatprep.mubr.f32.mxu0 %v425
  %2104 = vmatmul.mubr.f32.gmra.mrb[0].mxu0 %v424
  %v2105 = vpop.f32.mrb[0].mxu0
  %v2106 = vadd.f32 0.0, %v2105
  %v2107 = vpop.f32.mrb[0].mxu0
  %2108 = vmatprep.mubr.f32.mxu0 %v428
  %2109 = vmatmul.mubr.f32.gmra.mrb[0].mxu0 %v427
  %v2110 = vpop.f32.mrb[0].mxu0
  %v2111 = vadd.f32 0.0, %v2110
  %v2112 = vpop.f32.mrb[0].mxu0
  %2113 = vmatprep.mubr.f32.mxu0 %v431
  %2114 = vmatmul.mubr.f32.gmra.mrb[0].mxu0 %v430
  %v2115 = vpop.f32.mrb[0].mxu0
  %v2116 = vadd.f32 0.0, %v2115
  %v2117 = vpop.f32.mrb[0].mxu0
  %2118 = vmatprep.mubr.f32.mxu0 %v434
  %2119 = vmatmul.mubr.f32.gmra.mrb[0].mxu0 %v433
  %v2120 = vpop.f32.mrb[0].mxu0
  %v2121 = vadd.f32 0.0, %v2120
  %v2122 = vpop.f32.mrb[0].mxu0
  %2123 = vmatprep.mubr.f32.mxu0 %v437
  %2124 = vmatmul.mubr.f32.gmra.mrb[0].mxu0 %v436
  %v2125 = vpop.f32.mrb[0].mxu0
  %v2126 = vadd.f32 0.0, %v2125
  %v2127 = vpop.f32.mrb[0].mxu0
  %2128 = vmatprep.mubr.f32.mxu0 %v440
  %2129 = vmatmul.mubr.f32.gmra.mrb[0].mxu0 %v439
  %v2130 = vpop.f32.mrb[0].mxu0
  %v2131 = vadd.f32 0.0, %v2130
  %v2132 = vpop.f32.mrb[0].mxu0
  %2133 = vmatprep.mubr.f32.mxu0 %v443
  %2134 = vmatmul.mubr.f32.gmra.mrb[0].mxu0 %v442
  %v2135 = vpop.f32.mrb[0].mxu0
  %v2136 = vadd.f32 0.0, %v2135
  %v2137 = vpop.f32.mrb[0].mxu0
  %2138 = vmatprep.mubr.f32.mxu0 %v446
  %2139 = vmatmul.mubr.f32.gmra.mrb[0].mxu0 %v445
  %v2140 = vpop.f32.mrb[0].mxu0
  %v2141 = vadd.f32 0.0, %v2140
  %v2142 = vpop.f32.mrb[0].mxu0
  %2143 = vmatprep.mubr.f32.mxu0 %v449
  %2144 = vmatmul.mubr.f32.gmra.mrb[0].mxu0 %v448
  %v2145 = vpop.f32.mrb[0].mxu0
  %v2146 = vadd.f32 0.0, %v2145
  %v2147 = vpop.f32.mrb[0].mxu0
  %2148 = vmatprep.mubr.f32.mxu0 %v452
  %2149 = vmatmul.mubr.f32.gmra.mrb[0].mxu0 %v451
  %v2150 = vpop.f32.mrb[0].mxu0
  %v2151 = vadd.f32 0.0, %v2150
  %v2152 = vpop.f32.mrb[0].mxu0
  %2153 = vmatprep.mubr.f32.mxu0 %v455
  %2154 = vmatmul.mubr.f32.gmra.mrb[0].mxu0 %v454
  %v2155 = vpop.f32.mrb[0].mxu0
  %v2156 = vadd.f32 0.0, %v2155
  %v2157 = vpop.f32.mrb[0].mxu0
  %2158 = vmatprep.mubr.f32.mxu0 %v458
  %2159 = vmatmul.mubr.f32.gmra.mrb[0].mxu0 %v457
  %v2160 = vpop.f32.mrb[0].mxu0
  %v2161 = vadd.f32 0.0, %v2160
  %v2162 = vpop.f32.mrb[0].mxu0
  %2163 = vmatprep.mubr.f32.mxu0 %v461
  %2164 = vmatmul.mubr.f32.gmra.mrb[0].mxu0 %v460
  %v2165 = vpop.f32.mrb[0].mxu0
  %v2166 = vadd.f32 0.0, %v2165
  %v2167 = vpop.f32.mrb[0].mxu0
  %2168 = vmatprep.mubr.f32.mxu0 %v464
  %2169 = vmatmul.mubr.f32.gmra.mrb[0].mxu0 %v463
  %v2170 = vpop.f32.mrb[0].mxu0
  %v2171 = vadd.f32 0.0, %v2170
  %v2172 = vpop.f32.mrb[0].mxu0
  %2173 = vmatprep.mubr.f32.mxu0 %v467
  %2174 = vmatmul.mubr.f32.gmra.mrb[0].mxu0 %v466
  %v2175 = vpop.f32.mrb[0].mxu0
  %v2176 = vadd.f32 0.0, %v2175
  %v2177 = vpop.f32.mrb[0].mxu0
  %2178 = vmatprep.mubr.f32.mxu0 %v470
  %2179 = vmatmul.mubr.f32.gmra.mrb[0].mxu0 %v469
  %v2180 = vpop.f32.mrb[0].mxu0
  %v2181 = vadd.f32 0.0, %v2180
  %v2182 = vpop.f32.mrb[0].mxu0
  %2183 = vmatprep.mubr.f32.mxu0 %v473
  %2184 = vmatmul.mubr.f32.gmra.mrb[0].mxu0 %v472
  %v2185 = vpop.f32.mrb[0].mxu0
  %v2186 = vadd.f32 0.0, %v2185
  %v2187 = vpop.f32.mrb[0].mxu0
  %2188 = vmatprep.mubr.f32.mxu0 %v476
  %2189 = vmatmul.mubr.f32.gmra.mrb[0].mxu0 %v475
  %v2190 = vpop.f32.mrb[0].mxu0
  %v2191 = vadd.f32 0.0, %v2190
  %v2192 = vpop.f32.mrb[0].mxu0
  %2193 = vmatprep.mubr.f32.mxu0 %v479
  %2194 = vmatmul.mubr.f32.gmra.mrb[0].mxu0 %v478
  %v2195 = vpop.f32.mrb[0].mxu0
  %v2196 = vadd.f32 0.0, %v2195
  %v2197 = vpop.f32.mrb[0].mxu0
  %2198 = vmatprep.mubr.f32.mxu0 %v482
  %2199 = vmatmul.mubr.f32.gmra.mrb[0].mxu0 %v481
  %v2200 = vpop.f32.mrb[0].mxu0
  %v2201 = vadd.f32 0.0, %v2200
  %v2202 = vpop.f32.mrb[0].mxu0
  %2203 = vmatprep.mubr.f32.mxu0 %v485
  %2204 = vmatmul.mubr.f32.gmra.mrb[0].mxu0 %v484
  %v2205 = vpop.f32.mrb[0].mxu0
  %v2206 = vadd.f32 0.0, %v2205
  %v2207 = vpop.f32.mrb[0].mxu0
  %2208 = vmatprep.mubr.f32.mxu0 %v488
  %2209 = vmatmul.mubr.f32.gmra.mrb[0].mxu0 %v487
  %v2210 = vpop.f32.mrb[0].mxu0
  %v2211 = vadd.f32 0.0, %v2210
  %v2212 = vpop.f32.mrb[0].mxu0
  %2213 = vmatprep.mubr.f32.mxu0 %v491
  %2214 = vmatmul.mubr.f32.gmra.mrb[0].mxu0 %v490
  %v2215 = vpop.f32.mrb[0].mxu0
  %v2216 = vadd.f32 0.0, %v2215
  %v2217 = vpop.f32.mrb[0].mxu0
  %2218 = vmatprep.mubr.f32.mxu0 %v494
  %2219 = vmatmul.mubr.f32.gmra.mrb[0].mxu0 %v493
  %v2220 = vpop.f32.mrb[0].mxu0
  %v2221 = vadd.f32 0.0, %v2220
  %v2222 = vpop.f32.mrb[0].mxu0
  %2223 = vmatprep.mubr.f32.mxu0 %v497
  %2224 = vmatmul.mubr.f32.gmra.mrb[0].mxu0 %v496
  %v2225 = vpop.f32.mrb[0].mxu0
  %v2226 = vadd.f32 0.0, %v2225
  %v2227 = vpop.f32.mrb[0].mxu0
  %2228 = vmatprep.mubr.f32.mxu0 %v500
  %2229 = vmatmul.mubr.f32.gmra.mrb[0].mxu0 %v499
  %v2230 = vpop.f32.mrb[0].mxu0
  %v2231 = vadd.f32 0.0, %v2230
  %v2232 = vpop.f32.mrb[0].mxu0
  %2233 = vmatprep.mubr.f32.mxu0 %v503
  %2234 = vmatmul.mubr.f32.gmra.mrb[0].mxu0 %v502
  %v2235 = vpop.f32.mrb[0].mxu0
  %v2236 = vadd.f32 0.0, %v2235
  %v2237 = vpop.f32.mrb[0].mxu0
  %2238 = vmatprep.mubr.f32.mxu0 %v506
  %2239 = vmatmul.mubr.f32.gmra.mrb[0].mxu0 %v505
  %v2240 = vpop.f32.mrb[0].mxu0
  %v2241 = vadd.f32 0.0, %v2240
  %v2242 = vpop.f32.mrb[0].mxu0
  %2243 = vmatprep.mubr.f32.mxu0 %v509
  %2244 = vmatmul.mubr.f32.gmra.mrb[0].mxu0 %v508
  %v2245 = vpop.f32.mrb[0].mxu0
  %v2246 = vadd.f32 0.0, %v2245
  %v2247 = vpop.f32.mrb[0].mxu0
  %2248 = vmatprep.mubr.f32.mxu0 %v512
  %2249 = vmatmul.mubr.f32.gmra.mrb[0].mxu0 %v511
  %v2250 = vpop.f32.mrb[0].mxu0
  %v2251 = vadd.f32 0.0, %v2250
  %v2252 = vpop.f32.mrb[0].mxu0
  %2253 = vmatprep.mubr.f32.mxu0 %v515
  %2254 = vmatmul.mubr.f32.gmra.mrb[0].mxu0 %v514
  %v2255 = vpop.f32.mrb[0].mxu0
  %v2256 = vadd.f32 0.0, %v2255
  %v2257 = vpop.f32.mrb[0].mxu0
  %2258 = vmatprep.mubr.f32.mxu0 %v518
  %2259 = vmatmul.mubr.f32.gmra.mrb[0].mxu0 %v517
  %v2260 = vpop.f32.mrb[0].mxu0
  %v2261 = vadd.f32 0.0, %v2260
  %v2262 = vpop.f32.mrb[0].mxu0
  %2263 = vmatprep.mubr.f32.mxu0 %v521
  %2264 = vmatmul.mubr.f32.gmra.mrb[0].mxu0 %v520
  %v2265 = vpop.f32.mrb[0].mxu0
  %v2266 = vadd.f32 0.0, %v2265
  %v2267 = vpop.f32.mrb[0].mxu0
  %2268 = vmatprep.mubr.f32.mxu0 %v524
  %2269 = vmatmul.mubr.f32.gmra.mrb[0].mxu0 %v523
  %v2270 = vpop.f32.mrb[0].mxu0
  %v2271 = vadd.f32 0.0, %v2270
  %v2272 = vpop.f32.mrb[0].mxu0
  %2273 = vmatprep.mubr.f32.mxu0 %v527
  %2274 = vmatmul.mubr.f32.gmra.mrb[0].mxu0 %v526
  %v2275 = vpop.f32.mrb[0].mxu0
  %v2276 = vadd.f32 0.0, %v2275
  %v2277 = vpop.f32.mrb[0].mxu0
  %2278 = vmatprep.mubr.f32.mxu0 %v530
  %2279 = vmatmul.mubr.f32.gmra.mrb[0].mxu0 %v529
  %v2280 = vpop.f32.mrb[0].mxu0
  %v2281 = vadd.f32 0.0, %v2280
  %v2282 = vpop.f32.mrb[0].mxu0
  %2283 = vmatprep.mubr.f32.mxu0 %v533
  %2284 = vmatmul.mubr.f32.gmra.mrb[0].mxu0 %v532
  %v2285 = vpop.f32.mrb[0].mxu0
  %v2286 = vadd.f32 0.0, %v2285
  %v2287 = vpop.f32.mrb[0].mxu0
  %2288 = vmatprep.mubr.f32.mxu0 %v536
  %2289 = vmatmul.mubr.f32.gmra.mrb[0].mxu0 %v535
  %v2290 = vpop.f32.mrb[0].mxu0
  %v2291 = vadd.f32 0.0, %v2290
  %v2292 = vpop.f32.mrb[0].mxu0
  %2293 = vmatprep.mubr.f32.mxu0 %v539
  %2294 = vmatmul.mubr.f32.gmra.mrb[0].mxu0 %v538
  %v2295 = vpop.f32.mrb[0].mxu0
  %v2296 = vadd.f32 0.0, %v2295
  %v2297 = vpop.f32.mrb[0].mxu0
  %2298 = vmatprep.mubr.f32.mxu0 %v542
  %2299 = vmatmul.mubr.f32.gmra.mrb[0].mxu0 %v541
  %v2300 = vpop.f32.mrb[0].mxu0
  %v2301 = vadd.f32 0.0, %v2300
  %v2302 = vpop.f32.mrb[0].mxu0
  %2303 = vmatprep.mubr.f32.mxu0 %v545
  %2304 = vmatmul.mubr.f32.gmra.mrb[0].mxu0 %v544
  %v2305 = vpop.f32.mrb[0].mxu0
  %v2306 = vadd.f32 0.0, %v2305
  %v2307 = vpop.f32.mrb[0].mxu0
  %2308 = vmatprep.mubr.f32.mxu0 %v548
  %2309 = vmatmul.mubr.f32.gmra.mrb[0].mxu0 %v547
  %v2310 = vpop.f32.mrb[0].mxu0
  %v2311 = vadd.f32 0.0, %v2310
  %v2312 = vpop.f32.mrb[0].mxu0
  %2313 = vmatprep.mubr.f32.mxu0 %v551
  %2314 = vmatmul.mubr.f32.gmra.mrb[0].mxu0 %v550
  %v2315 = vpop.f32.mrb[0].mxu0
  %v2316 = vadd.f32 0.0, %v2315
  %v2317 = vpop.f32.mrb[0].mxu0
  %2318 = vmatprep.mubr.f32.mxu0 %v554
  %2319 = vmatmul.mubr.f32.gmra.mrb[0].mxu0 %v553
  %v2320 = vpop.f32.mrb[0].mxu0
  %v2321 = vadd.f32 0.0, %v2320
  %v2322 = vpop.f32.mrb[0].mxu0
  %2323 = vmatprep.mubr.f32.mxu0 %v557
  %2324 = vmatmul.mubr.f32.gmra.mrb[0].mxu0 %v556
  %v2325 = vpop.f32.mrb[0].mxu0
  %v2326 = vadd.f32 0.0, %v2325
  %v2327 = vpop.f32.mrb[0].mxu0
  %2328 = vmatprep.mubr.f32.mxu0 %v560
  %2329 = vmatmul.mubr.f32.gmra.mrb[0].mxu0 %v559
  %v2330 = vpop.f32.mrb[0].mxu0
  %v2331 = vadd.f32 0.0, %v2330
  %v2332 = vpop.f32.mrb[0].mxu0
  %2333 = vmatprep.mubr.f32.mxu0 %v563
  %2334 = vmatmul.mubr.f32.gmra.mrb[0].mxu0 %v562
  %v2335 = vpop.f32.mrb[0].mxu0
  %v2336 = vadd.f32 0.0, %v2335
  %v2337 = vpop.f32.mrb[0].mxu0
  %2338 = vmatprep.mubr.f32.mxu0 %v566
  %2339 = vmatmul.mubr.f32.gmra.mrb[0].mxu0 %v565
  %v2340 = vpop.f32.mrb[0].mxu0
  %v2341 = vadd.f32 0.0, %v2340
  %v2342 = vpop.f32.mrb[0].mxu0
  %2343 = vmatprep.mubr.f32.mxu0 %v569
  %2344 = vmatmul.mubr.f32.gmra.mrb[0].mxu0 %v568
  %v2345 = vpop.f32.mrb[0].mxu0
  %v2346 = vadd.f32 0.0, %v2345
  %v2347 = vpop.f32.mrb[0].mxu0
  %2348 = vmatprep.mubr.f32.mxu0 %v572
  %2349 = vmatmul.mubr.f32.gmra.mrb[0].mxu0 %v571
  %v2350 = vpop.f32.mrb[0].mxu0
  %v2351 = vadd.f32 0.0, %v2350
  %v2352 = vpop.f32.mrb[0].mxu0
  %2353 = vmatprep.mubr.f32.mxu0 %v575
  %2354 = vmatmul.mubr.f32.gmra.mrb[0].mxu0 %v574
  %v2355 = vpop.f32.mrb[0].mxu0
  %v2356 = vadd.f32 0.0, %v2355
  %v2357 = vpop.f32.mrb[0].mxu0
  %2358 = vmatprep.mubr.f32.mxu0 %v578
  %2359 = vmatmul.mubr.f32.gmra.mrb[0].mxu0 %v577
  %v2360 = vpop.f32.mrb[0].mxu0
  %v2361 = vadd.f32 0.0, %v2360
  %v2362 = vpop.f32.mrb[0].mxu0
  %2363 = vmatprep.mubr.f32.mxu0 %v581
  %2364 = vmatmul.mubr.f32.gmra.mrb[0].mxu0 %v580
  %v2365 = vpop.f32.mrb[0].mxu0
  %v2366 = vadd.f32 0.0, %v2365
  %v2367 = vpop.f32.mrb[0].mxu0
  %2368 = vmatprep.mubr.f32.mxu0 %v584
  %2369 = vmatmul.mubr.f32.gmra.mrb[0].mxu0 %v583
  %v2370 = vpop.f32.mrb[0].mxu0
  %v2371 = vadd.f32 0.0, %v2370
  %v2372 = vpop.f32.mrb[0].mxu0
  %2373 = vmatprep.mubr.f32.mxu0 %v587
  %2374 = vmatmul.mubr.f32.gmra.mrb[0].mxu0 %v586
  %v2375 = vpop.f32.mrb[0].mxu0
  %v2376 = vadd.f32 0.0, %v2375
  %v2377 = vpop.f32.mrb[0].mxu0
  %2378 = vmatprep.mubr.f32.mxu0 %v590
  %2379 = vmatmul.mubr.f32.gmra.mrb[0].mxu0 %v589
  %v2380 = vpop.f32.mrb[0].mxu0
  %v2381 = vadd.f32 0.0, %v2380
  %v2382 = vpop.f32.mrb[0].mxu0
  %2383 = vmatprep.mubr.f32.mxu0 %v593
  %2384 = vmatmul.mubr.f32.gmra.mrb[0].mxu0 %v592
  %v2385 = vpop.f32.mrb[0].mxu0
  %v2386 = vadd.f32 0.0, %v2385
  %v2387 = vpop.f32.mrb[0].mxu0
  %2388 = vmatprep.mubr.f32.mxu0 %v596
  %2389 = vmatmul.mubr.f32.gmra.mrb[0].mxu0 %v595
  %v2390 = vpop.f32.mrb[0].mxu0
  %v2391 = vadd.f32 0.0, %v2390
  %v2392 = vpop.f32.mrb[0].mxu0
  %2393 = vmatprep.mubr.f32.mxu0 %v599
  %2394 = vmatmul.mubr.f32.gmra.mrb[0].mxu0 %v598
  %v2395 = vpop.f32.mrb[0].mxu0
  %v2396 = vadd.f32 0.0, %v2395
  %v2397 = vpop.f32.mrb[0].mxu0
  %2398 = vmatprep.mubr.f32.mxu0 %v602
  %2399 = vmatmul.mubr.f32.gmra.mrb[0].mxu0 %v601
  %v2400 = vpop.f32.mrb[0].mxu0
  %v2401 = vadd.f32 0.0, %v2400
  %v2402 = vpop.f32.mrb[0].mxu0
  %2403 = vmatprep.mubr.f32.mxu0 %v605
  %2404 = vmatmul.mubr.f32.gmra.mrb[0].mxu0 %v604
  %v2405 = vpop.f32.mrb[0].mxu0
  %v2406 = vadd.f32 0.0, %v2405
  %v2407 = vpop.f32.mrb[0].mxu0
  %2408 = vmatprep.mubr.f32.mxu0 %v608
  %2409 = vmatmul.mubr.f32.gmra.mrb[0].mxu0 %v607
  %v2410 = vpop.f32.mrb[0].mxu0
  %v2411 = vadd.f32 0.0, %v2410
  %v2412 = vpop.f32.mrb[0].mxu0
  %2413 = vmatprep.mubr.f32.mxu0 %v611
  %2414 = vmatmul.mubr.f32.gmra.mrb[0].mxu0 %v610
  %v2415 = vpop.f32.mrb[0].mxu0
  %v2416 = vadd.f32 0.0, %v2415
  %v2417 = vpop.f32.mrb[0].mxu0
  %2418 = vmatprep.mubr.f32.mxu0 %v614
  %2419 = vmatmul.mubr.f32.gmra.mrb[0].mxu0 %v613
  %v2420 = vpop.f32.mrb[0].mxu0
  %v2421 = vadd.f32 0.0, %v2420
  %v2422 = vpop.f32.mrb[0].mxu0
  %2423 = vmatprep.mubr.f32.mxu0 %v617
  %2424 = vmatmul.mubr.f32.gmra.mrb[0].mxu0 %v616
  %v2425 = vpop.f32.mrb[0].mxu0
  %v2426 = vadd.f32 0.0, %v2425
  %v2427 = vpop.f32.mrb[0].mxu0
  %2428 = vmatprep.mubr.f32.mxu0 %v620
  %2429 = vmatmul.mubr.f32.gmra.mrb[0].mxu0 %v619
  %v2430 = vpop.f32.mrb[0].mxu0
  %v2431 = vadd.f32 0.0, %v2430
  %v2432 = vpop.f32.mrb[0].mxu0
  %2433 = vmatprep.mubr.f32.mxu0 %v623
  %2434 = vmatmul.mubr.f32.gmra.mrb[0].mxu0 %v622
  %v2435 = vpop.f32.mrb[0].mxu0
  %v2436 = vadd.f32 0.0, %v2435
  %v2437 = vpop.f32.mrb[0].mxu0
  %2438 = vmatprep.mubr.f32.mxu0 %v626
  %2439 = vmatmul.mubr.f32.gmra.mrb[0].mxu0 %v625
  %v2440 = vpop.f32.mrb[0].mxu0
  %v2441 = vadd.f32 0.0, %v2440
  %v2442 = vpop.f32.mrb[0].mxu0
  %2443 = vmatprep.mubr.f32.mxu0 %v629
  %2444 = vmatmul.mubr.f32.gmra.mrb[0].mxu0 %v628
  %v2445 = vpop.f32.mrb[0].mxu0
  %v2446 = vadd.f32 0.0, %v2445
  %v2447 = vpop.f32.mrb[0].mxu0
  %2448 = vmatprep.mubr.f32.mxu0 %v632
  %2449 = vmatmul.mubr.f32.gmra.mrb[0].mxu0 %v631
  %v2450 = vpop.f32.mrb[0].mxu0
  %v2451 = vadd.f32 0.0, %v2450
  %v2452 = vpop.f32.mrb[0].mxu0
  %2453 = vmatprep.mubr.f32.mxu0 %v635
  %2454 = vmatmul.mubr.f32.gmra.mrb[0].mxu0 %v634
  %v2455 = vpop.f32.mrb[0].mxu0
  %v2456 = vadd.f32 0.0, %v2455
  %v2457 = vpop.f32.mrb[0].mxu0
  %2458 = vmatprep.mubr.f32.mxu0 %v638
  %2459 = vmatmul.mubr.f32.gmra.mrb[0].mxu0 %v637
  %v2460 = vpop.f32.mrb[0].mxu0
  %v2461 = vadd.f32 0.0, %v2460
  %v2462 = vpop.f32.mrb[0].mxu0
  %2463 = vmatprep.mubr.f32.mxu0 %v641
  %2464 = vmatmul.mubr.f32.gmra.mrb[0].mxu0 %v640
  %v2465 = vpop.f32.mrb[0].mxu0
  %v2466 = vadd.f32 0.0, %v2465
  %v2467 = vpop.f32.mrb[0].mxu0
  %2468 = vmatprep.mubr.f32.mxu0 %v644
  %2469 = vmatmul.mubr.f32.gmra.mrb[0].mxu0 %v643
  %v2470 = vpop.f32.mrb[0].mxu0
  %v2471 = vadd.f32 0.0, %v2470
  %v2472 = vpop.f32.mrb[0].mxu0
  %2473 = vmatprep.mubr.f32.mxu0 %v647
  %2474 = vmatmul.mubr.f32.gmra.mrb[0].mxu0 %v646
  %v2475 = vpop.f32.mrb[0].mxu0
  %v2476 = vadd.f32 0.0, %v2475
  %v2477 = vpop.f32.mrb[0].mxu0
  %2478 = vmatprep.mubr.f32.mxu0 %v650
  %2479 = vmatmul.mubr.f32.gmra.mrb[0].mxu0 %v649
  %v2480 = vpop.f32.mrb[0].mxu0
  %v2481 = vadd.f32 0.0, %v2480
  %v2482 = vpop.f32.mrb[0].mxu0
  %2483 = vmatprep.mubr.f32.mxu0 %v653
  %2484 = vmatmul.mubr.f32.gmra.mrb[0].mxu0 %v652
  %v2485 = vpop.f32.mrb[0].mxu0
  %v2486 = vadd.f32 0.0, %v2485
  %v2487 = vpop.f32.mrb[0].mxu0
  %2488 = vmatprep.mubr.f32.mxu0 %v656
  %2489 = vmatmul.mubr.f32.gmra.mrb[0].mxu0 %v655
  %v2490 = vpop.f32.mrb[0].mxu0
  %v2491 = vadd.f32 0.0, %v2490
  %v2492 = vpop.f32.mrb[0].mxu0
  %2493 = vmatprep.mubr.f32.mxu0 %v659
  %2494 = vmatmul.mubr.f32.gmra.mrb[0].mxu0 %v658
  %v2495 = vpop.f32.mrb[0].mxu0
  %v2496 = vadd.f32 0.0, %v2495
  %v2497 = vpop.f32.mrb[0].mxu0
  %2498 = vmatprep.mubr.f32.mxu0 %v662
  %2499 = vmatmul.mubr.f32.gmra.mrb[0].mxu0 %v661
  %v2500 = vpop.f32.mrb[0].mxu0
  %v2501 = vadd.f32 0.0, %v2500
  %v2502 = vpop.f32.mrb[0].mxu0
  %2503 = vmatprep.mubr.f32.mxu0 %v665
  %2504 = vmatmul.mubr.f32.gmra.mrb[0].mxu0 %v664
  %v2505 = vpop.f32.mrb[0].mxu0
  %v2506 = vadd.f32 0.0, %v2505
  %v2507 = vpop.f32.mrb[0].mxu0
  %2508 = vmatprep.mubr.f32.mxu0 %v668
  %2509 = vmatmul.mubr.f32.gmra.mrb[0].mxu0 %v667
  %v2510 = vpop.f32.mrb[0].mxu0
  %v2511 = vadd.f32 0.0, %v2510
  %v2512 = vpop.f32.mrb[0].mxu0
  %2513 = vmatprep.mubr.f32.mxu0 %v671
  %2514 = vmatmul.mubr.f32.gmra.mrb[0].mxu0 %v670
  %v2515 = vpop.f32.mrb[0].mxu0
  %v2516 = vadd.f32 0.0, %v2515
  %v2517 = vpop.f32.mrb[0].mxu0
  %2518 = vmatprep.mubr.f32.mxu0 %v674
  %2519 = vmatmul.mubr.f32.gmra.mrb[0].mxu0 %v673
  %v2520 = vpop.f32.mrb[0].mxu0
  %v2521 = vadd.f32 0.0, %v2520
  %v2522 = vpop.f32.mrb[0].mxu0
  %2523 = vmatprep.mubr.f32.mxu0 %v677
  %2524 = vmatmul.mubr.f32.gmra.mrb[0].mxu0 %v676
  %v2525 = vpop.f32.mrb[0].mxu0
  %v2526 = vadd.f32 0.0, %v2525
  %v2527 = vpop.f32.mrb[0].mxu0
  %2528 = vmatprep.mubr.f32.mxu0 %v680
  %2529 = vmatmul.mubr.f32.gmra.mrb[0].mxu0 %v679
  %v2530 = vpop.f32.mrb[0].mxu0
  %v2531 = vadd.f32 0.0, %v2530
  %v2532 = vpop.f32.mrb[0].mxu0
  %2533 = vmatprep.mubr.f32.mxu0 %v683
  %2534 = vmatmul.mubr.f32.gmra.mrb[0].mxu0 %v682
  %v2535 = vpop.f32.mrb[0].mxu0
  %v2536 = vadd.f32 0.0, %v2535
  %v2537 = vpop.f32.mrb[0].mxu0
  %2538 = vmatprep.mubr.f32.mxu0 %v686
  %2539 = vmatmul.mubr.f32.gmra.mrb[0].mxu0 %v685
  %v2540 = vpop.f32.mrb[0].mxu0
  %v2541 = vadd.f32 0.0, %v2540
  %v2542 = vpop.f32.mrb[0].mxu0
  %2543 = vmatprep.mubr.f32.mxu0 %v689
  %2544 = vmatmul.mubr.f32.gmra.mrb[0].mxu0 %v688
  %v2545 = vpop.f32.mrb[0].mxu0
  %v2546 = vadd.f32 0.0, %v2545
  %v2547 = vpop.f32.mrb[0].mxu0
  %2548 = vmatprep.mubr.f32.mxu0 %v692
  %2549 = vmatmul.mubr.f32.gmra.mrb[0].mxu0 %v691
  %v2550 = vpop.f32.mrb[0].mxu0
  %v2551 = vadd.f32 0.0, %v2550
  %v2552 = vpop.f32.mrb[0].mxu0
  %2553 = vmatprep.mubr.f32.mxu0 %v695
  %2554 = vmatmul.mubr.f32.gmra.mrb[0].mxu0 %v694
  %v2555 = vpop.f32.mrb[0].mxu0
  %v2556 = vadd.f32 0.0, %v2555
  %v2557 = vpop.f32.mrb[0].mxu0
  %2558 = vmatprep.mubr.f32.mxu0 %v698
  %2559 = vmatmul.mubr.f32.gmra.mrb[0].mxu0 %v697
  %v2560 = vpop.f32.mrb[0].mxu0
  %v2561 = vadd.f32 0.0, %v2560
  %v2562 = vpop.f32.mrb[0].mxu0
  %2563 = vmatprep.mubr.f32.mxu0 %v701
  %2564 = vmatmul.mubr.f32.gmra.mrb[0].mxu0 %v700
  %v2565 = vpop.f32.mrb[0].mxu0
  %v2566 = vadd.f32 0.0, %v2565
  %v2567 = vpop.f32.mrb[0].mxu0
  %2568 = vmatprep.mubr.f32.mxu0 %v704
  %2569 = vmatmul.mubr.f32.gmra.mrb[0].mxu0 %v703
  %v2570 = vpop.f32.mrb[0].mxu0
  %v2571 = vadd.f32 0.0, %v2570
  %v2572 = vpop.f32.mrb[0].mxu0
  %2573 = vmatprep.mubr.f32.mxu0 %v707
  %2574 = vmatmul.mubr.f32.gmra.mrb[0].mxu0 %v706
  %v2575 = vpop.f32.mrb[0].mxu0
  %v2576 = vadd.f32 0.0, %v2575
  %v2577 = vpop.f32.mrb[0].mxu0
  %2578 = vmatprep.mubr.f32.mxu0 %v710
  %2579 = vmatmul.mubr.f32.gmra.mrb[0].mxu0 %v709
  %v2580 = vpop.f32.mrb[0].mxu0
  %v2581 = vadd.f32 0.0, %v2580
  %v2582 = vpop.f32.mrb[0].mxu0
  %2583 = vmatprep.mubr.f32.mxu0 %v713
  %2584 = vmatmul.mubr.f32.gmra.mrb[0].mxu0 %v712
  %v2585 = vpop.f32.mrb[0].mxu0
  %v2586 = vadd.f32 0.0, %v2585
  %v2587 = vpop.f32.mrb[0].mxu0
  %2588 = vmatprep.mubr.f32.mxu0 %v716
  %2589 = vmatmul.mubr.f32.gmra.mrb[0].mxu0 %v715
  %v2590 = vpop.f32.mrb[0].mxu0
  %v2591 = vadd.f32 0.0, %v2590
  %v2592 = vpop.f32.mrb[0].mxu0
  %2593 = vmatprep.mubr.f32.mxu0 %v719
  %2594 = vmatmul.mubr.f32.gmra.mrb[0].mxu0 %v718
  %v2595 = vpop.f32.mrb[0].mxu0
  %v2596 = vadd.f32 0.0, %v2595
  %v2597 = vpop.f32.mrb[0].mxu0
  %2598 = vmatprep.mubr.f32.mxu0 %v722
  %2599 = vmatmul.mubr.f32.gmra.mrb[0].mxu0 %v721
  %v2600 = vpop.f32.mrb[0].mxu0
  %v2601 = vadd.f32 0.0, %v2600
  %v2602 = vpop.f32.mrb[0].mxu0
  %2603 = vmatprep.mubr.f32.mxu0 %v725
  %2604 = vmatmul.mubr.f32.gmra.mrb[0].mxu0 %v724
  %v2605 = vpop.f32.mrb[0].mxu0
  %v2606 = vadd.f32 0.0, %v2605
  %v2607 = vpop.f32.mrb[0].mxu0
  %2608 = vmatprep.mubr.f32.mxu0 %v728
  %2609 = vmatmul.mubr.f32.gmra.mrb[0].mxu0 %v727
  %v2610 = vpop.f32.mrb[0].mxu0
  %v2611 = vadd.f32 0.0, %v2610
  %v2612 = vpop.f32.mrb[0].mxu0
  %2613 = vmatprep.mubr.f32.mxu0 %v731
  %2614 = vmatmul.mubr.f32.gmra.mrb[0].mxu0 %v730
  %v2615 = vpop.f32.mrb[0].mxu0
  %v2616 = vadd.f32 0.0, %v2615
  %v2617 = vpop.f32.mrb[0].mxu0
  %2618 = vmatprep.mubr.f32.mxu0 %v734
  %2619 = vmatmul.mubr.f32.gmra.mrb[0].mxu0 %v733
  %v2620 = vpop.f32.mrb[0].mxu0
  %v2621 = vadd.f32 0.0, %v2620
  %v2622 = vpop.f32.mrb[0].mxu0
  %2623 = vmatprep.mubr.f32.mxu0 %v737
  %2624 = vmatmul.mubr.f32.gmra.mrb[0].mxu0 %v736
  %v2625 = vpop.f32.mrb[0].mxu0
  %v2626 = vadd.f32 0.0, %v2625
  %v2627 = vpop.f32.mrb[0].mxu0
  %2628 = vdwg.mxu0
  %2629 = vmatprep.subr.mxu0 0.0
  %2630 = vmatpush1.msra.mxu0 %v49
  %2631 = vmatprep.subr.mxu0 0.0
  %2632 = vmatpush1.msra.mxu0 %v50
  %2633 = vmatprep.subr.mxu0 0.0
  %2634 = vmatpush1.msra.mxu0 %v51
  %2635 = vmatprep.subr.mxu0 0.0
  %2636 = vmatpush1.msra.mxu0 %v52
  %2637 = vmatprep.subr.mxu0 0.0
  %2638 = vmatpush1.msra.mxu0 %v53
  %2639 = vmatprep.subr.mxu0 0.0
  %2640 = vmatpush1.msra.mxu0 %v54
  %2641 = vmatprep.subr.mxu0 0.0
  %2642 = vmatpush1.msra.mxu0 0.0
  %2643 = vmatprep.subr.mxu0 0.0
  %2644 = vmatpush1.msra.mxu0 0.0
  %2645 = vmatprep.subr.mxu0 0.0
  %2646 = vmatpush1.msra.mxu0 0.0
  %2647 = vmatprep.subr.mxu0 0.0
  %2648 = vmatpush1.msra.mxu0 0.0
  %2649 = vmatprep.subr.mxu0 0.0
  %2650 = vmatpush1.msra.mxu0 0.0
  %2651 = vmatprep.subr.mxu0 0.0
  %2652 = vmatpush1.msra.mxu0 0.0
  %2653 = vmatprep.subr.mxu0 0.0
  %2654 = vmatpush1.msra.mxu0 0.0
  %2655 = vmatprep.subr.mxu0 0.0
  %2656 = vmatpush1.msra.mxu0 0.0
  %2657 = vmatprep.subr.mxu0 0.0
  %2658 = vmatpush1.msra.mxu0 0.0
  %2659 = vmatprep.subr.mxu0 0.0
  %2660 = vmatpush1.msra.mxu0 0.0
  %2661 = vmatprep.subr.mxu0 0.0
  %2662 = vmatpush1.msra.mxu0 0.0
  %2663 = vmatprep.subr.mxu0 0.0
  %2664 = vmatpush1.msra.mxu0 0.0
  %2665 = vmatprep.subr.mxu0 0.0
  %2666 = vmatpush1.msra.mxu0 0.0
  %2667 = vmatprep.subr.mxu0 0.0
  %2668 = vmatpush1.msra.mxu0 0.0
  %2669 = vmatprep.subr.mxu0 0.0
  %2670 = vmatpush1.msra.mxu0 0.0
  %2671 = vmatprep.subr.mxu0 0.0
  %2672 = vmatpush1.msra.mxu0 0.0
  %2673 = vmatprep.subr.mxu0 0.0
  %2674 = vmatpush1.msra.mxu0 0.0
  %2675 = vmatprep.subr.mxu0 0.0
  %2676 = vmatpush1.msra.mxu0 0.0
  %2677 = vmatprep.subr.mxu0 0.0
  %2678 = vmatpush1.msra.mxu0 0.0
  %2679 = vmatprep.subr.mxu0 0.0
  %2680 = vmatpush1.msra.mxu0 0.0
  %2681 = vmatprep.subr.mxu0 0.0
  %2682 = vmatpush1.msra.mxu0 0.0
  %2683 = vmatprep.subr.mxu0 0.0
  %2684 = vmatpush1.msra.mxu0 0.0
  %2685 = vmatprep.subr.mxu0 0.0
  %2686 = vmatpush1.msra.mxu0 0.0
  %2687 = vmatprep.subr.mxu0 0.0
  %2688 = vmatpush1.msra.mxu0 0.0
  %2689 = vmatprep.subr.mxu0 0.0
  %2690 = vmatpush1.msra.mxu0 0.0
  %2691 = vmatprep.subr.mxu0 0.0
  %2692 = vmatpush1.msra.mxu0 0.0
  %2693 = vmatprep.mubr.f32.mxu0 0.0
  %2694 = vmatmul.mubr.f32.gmra.mrb[0].mxu0 %v741
  %v2695 = vpop.f32.mrb[0].mxu0
  %v2696 = vadd.f32 %v1491, %v2695
  %v2697 = vpop.f32.mrb[0].mxu0
  %2698 = vmatprep.mubr.f32.mxu0 0.0
  %2699 = vmatmul.mubr.f32.gmra.mrb[0].mxu0 %v744
  %v2700 = vpop.f32.mrb[0].mxu0
  %v2701 = vadd.f32 %v1496, %v2700
  %v2702 = vpop.f32.mrb[0].mxu0
  %2703 = vmatprep.mubr.f32.mxu0 0.0
  %2704 = vmatmul.mubr.f32.gmra.mrb[0].mxu0 %v747
  %v2705 = vpop.f32.mrb[0].mxu0
  %v2706 = vadd.f32 %v1501, %v2705
  %v2707 = vpop.f32.mrb[0].mxu0
  %2708 = vmatprep.mubr.f32.mxu0 0.0
  %2709 = vmatmul.mubr.f32.gmra.mrb[0].mxu0 %v750
  %v2710 = vpop.f32.mrb[0].mxu0
  %v2711 = vadd.f32 %v1506, %v2710
  %v2712 = vpop.f32.mrb[0].mxu0
  %2713 = vmatprep.mubr.f32.mxu0 0.0
  %2714 = vmatmul.mubr.f32.gmra.mrb[0].mxu0 %v753
  %v2715 = vpop.f32.mrb[0].mxu0
  %v2716 = vadd.f32 %v1511, %v2715
  %v2717 = vpop.f32.mrb[0].mxu0
  %2718 = vmatprep.mubr.f32.mxu0 0.0
  %2719 = vmatmul.mubr.f32.gmra.mrb[0].mxu0 %v756
  %v2720 = vpop.f32.mrb[0].mxu0
  %v2721 = vadd.f32 %v1516, %v2720
  %v2722 = vpop.f32.mrb[0].mxu0
  %2723 = vmatprep.mubr.f32.mxu0 0.0
  %2724 = vmatmul.mubr.f32.gmra.mrb[0].mxu0 %v759
  %v2725 = vpop.f32.mrb[0].mxu0
  %v2726 = vadd.f32 %v1521, %v2725
  %v2727 = vpop.f32.mrb[0].mxu0
  %2728 = vmatprep.mubr.f32.mxu0 0.0
  %2729 = vmatmul.mubr.f32.gmra.mrb[0].mxu0 %v762
  %v2730 = vpop.f32.mrb[0].mxu0
  %v2731 = vadd.f32 %v1526, %v2730
  %v2732 = vpop.f32.mrb[0].mxu0
  %2733 = vmatprep.mubr.f32.mxu0 0.0
  %2734 = vmatmul.mubr.f32.gmra.mrb[0].mxu0 %v765
  %v2735 = vpop.f32.mrb[0].mxu0
  %v2736 = vadd.f32 %v1531, %v2735
  %v2737 = vpop.f32.mrb[0].mxu0
  %2738 = vmatprep.mubr.f32.mxu0 0.0
  %2739 = vmatmul.mubr.f32.gmra.mrb[0].mxu0 %v768
  %v2740 = vpop.f32.mrb[0].mxu0
  %v2741 = vadd.f32 %v1536, %v2740
  %v2742 = vpop.f32.mrb[0].mxu0
  %2743 = vmatprep.mubr.f32.mxu0 0.0
  %2744 = vmatmul.mubr.f32.gmra.mrb[0].mxu0 %v771
  %v2745 = vpop.f32.mrb[0].mxu0
  %v2746 = vadd.f32 %v1541, %v2745
  %v2747 = vpop.f32.mrb[0].mxu0
  %2748 = vmatprep.mubr.f32.mxu0 0.0
  %2749 = vmatmul.mubr.f32.gmra.mrb[0].mxu0 %v774
  %v2750 = vpop.f32.mrb[0].mxu0
  %v2751 = vadd.f32 %v1546, %v2750
  %v2752 = vpop.f32.mrb[0].mxu0
  %2753 = vmatprep.mubr.f32.mxu0 0.0
  %2754 = vmatmul.mubr.f32.gmra.mrb[0].mxu0 %v777
  %v2755 = vpop.f32.mrb[0].mxu0
  %v2756 = vadd.f32 %v1551, %v2755
  %v2757 = vpop.f32.mrb[0].mxu0
  %2758 = vmatprep.mubr.f32.mxu0 0.0
  %2759 = vmatmul.mubr.f32.gmra.mrb[0].mxu0 %v780
  %v2760 = vpop.f32.mrb[0].mxu0
  %v2761 = vadd.f32 %v1556, %v2760
  %v2762 = vpop.f32.mrb[0].mxu0
  %2763 = vmatprep.mubr.f32.mxu0 0.0
  %2764 = vmatmul.mubr.f32.gmra.mrb[0].mxu0 %v783
  %v2765 = vpop.f32.mrb[0].mxu0
  %v2766 = vadd.f32 %v1561, %v2765
  %v2767 = vpop.f32.mrb[0].mxu0
  %2768 = vmatprep.mubr.f32.mxu0 0.0
  %2769 = vmatmul.mubr.f32.gmra.mrb[0].mxu0 %v786
  %v2770 = vpop.f32.mrb[0].mxu0
  %v2771 = vadd.f32 %v1566, %v2770
  %v2772 = vpop.f32.mrb[0].mxu0
  %2773 = vmatprep.mubr.f32.mxu0 0.0
  %2774 = vmatmul.mubr.f32.gmra.mrb[0].mxu0 %v789
  %v2775 = vpop.f32.mrb[0].mxu0
  %v2776 = vadd.f32 %v1571, %v2775
  %v2777 = vpop.f32.mrb[0].mxu0
  %2778 = vmatprep.mubr.f32.mxu0 0.0
  %2779 = vmatmul.mubr.f32.gmra.mrb[0].mxu0 %v792
  %v2780 = vpop.f32.mrb[0].mxu0
  %v2781 = vadd.f32 %v1576, %v2780
  %v2782 = vpop.f32.mrb[0].mxu0
  %2783 = vmatprep.mubr.f32.mxu0 0.0
  %2784 = vmatmul.mubr.f32.gmra.mrb[0].mxu0 %v795
  %v2785 = vpop.f32.mrb[0].mxu0
  %v2786 = vadd.f32 %v1581, %v2785
  %v2787 = vpop.f32.mrb[0].mxu0
  %2788 = vmatprep.mubr.f32.mxu0 0.0
  %2789 = vmatmul.mubr.f32.gmra.mrb[0].mxu0 %v798
  %v2790 = vpop.f32.mrb[0].mxu0
  %v2791 = vadd.f32 %v1586, %v2790
  %v2792 = vpop.f32.mrb[0].mxu0
  %2793 = vmatprep.mubr.f32.mxu0 0.0
  %2794 = vmatmul.mubr.f32.gmra.mrb[0].mxu0 %v801
  %v2795 = vpop.f32.mrb[0].mxu0
  %v2796 = vadd.f32 %v1591, %v2795
  %v2797 = vpop.f32.mrb[0].mxu0
  %2798 = vmatprep.mubr.f32.mxu0 0.0
  %2799 = vmatmul.mubr.f32.gmra.mrb[0].mxu0 %v804
  %v2800 = vpop.f32.mrb[0].mxu0
  %v2801 = vadd.f32 %v1596, %v2800
  %v2802 = vpop.f32.mrb[0].mxu0
  %2803 = vmatprep.mubr.f32.mxu0 0.0
  %2804 = vmatmul.mubr.f32.gmra.mrb[0].mxu0 %v807
  %v2805 = vpop.f32.mrb[0].mxu0
  %v2806 = vadd.f32 %v1601, %v2805
  %v2807 = vpop.f32.mrb[0].mxu0
  %2808 = vmatprep.mubr.f32.mxu0 0.0
  %2809 = vmatmul.mubr.f32.gmra.mrb[0].mxu0 %v810
  %v2810 = vpop.f32.mrb[0].mxu0
  %v2811 = vadd.f32 %v1606, %v2810
  %v2812 = vpop.f32.mrb[0].mxu0
  %2813 = vmatprep.mubr.f32.mxu0 0.0
  %2814 = vmatmul.mubr.f32.gmra.mrb[0].mxu0 %v813
  %v2815 = vpop.f32.mrb[0].mxu0
  %v2816 = vadd.f32 %v1611, %v2815
  %v2817 = vpop.f32.mrb[0].mxu0
  %2818 = vmatprep.mubr.f32.mxu0 0.0
  %2819 = vmatmul.mubr.f32.gmra.mrb[0].mxu0 %v816
  %v2820 = vpop.f32.mrb[0].mxu0
  %v2821 = vadd.f32 %v1616, %v2820
  %v2822 = vpop.f32.mrb[0].mxu0
  %2823 = vmatprep.mubr.f32.mxu0 0.0
  %2824 = vmatmul.mubr.f32.gmra.mrb[0].mxu0 %v819
  %v2825 = vpop.f32.mrb[0].mxu0
  %v2826 = vadd.f32 %v1621, %v2825
  %v2827 = vpop.f32.mrb[0].mxu0
  %2828 = vmatprep.mubr.f32.mxu0 0.0
  %2829 = vmatmul.mubr.f32.gmra.mrb[0].mxu0 %v822
  %v2830 = vpop.f32.mrb[0].mxu0
  %v2831 = vadd.f32 %v1626, %v2830
  %v2832 = vpop.f32.mrb[0].mxu0
  %2833 = vmatprep.mubr.f32.mxu0 0.0
  %2834 = vmatmul.mubr.f32.gmra.mrb[0].mxu0 %v825
  %v2835 = vpop.f32.mrb[0].mxu0
  %v2836 = vadd.f32 %v1631, %v2835
  %v2837 = vpop.f32.mrb[0].mxu0
  %2838 = vmatprep.mubr.f32.mxu0 0.0
  %2839 = vmatmul.mubr.f32.gmra.mrb[0].mxu0 %v828
  %v2840 = vpop.f32.mrb[0].mxu0
  %v2841 = vadd.f32 %v1636, %v2840
  %v2842 = vpop.f32.mrb[0].mxu0
  %2843 = vmatprep.mubr.f32.mxu0 0.0
  %2844 = vmatmul.mubr.f32.gmra.mrb[0].mxu0 %v831
  %v2845 = vpop.f32.mrb[0].mxu0
  %v2846 = vadd.f32 %v1641, %v2845
  %v2847 = vpop.f32.mrb[0].mxu0
  %2848 = vmatprep.mubr.f32.mxu0 0.0
  %2849 = vmatmul.mubr.f32.gmra.mrb[0].mxu0 %v834
  %v2850 = vpop.f32.mrb[0].mxu0
  %v2851 = vadd.f32 %v1646, %v2850
  %v2852 = vpop.f32.mrb[0].mxu0
  %2853 = vmatprep.mubr.f32.mxu0 0.0
  %2854 = vmatmul.mubr.f32.gmra.mrb[0].mxu0 %v837
  %v2855 = vpop.f32.mrb[0].mxu0
  %v2856 = vadd.f32 %v1651, %v2855
  %v2857 = vpop.f32.mrb[0].mxu0
  %2858 = vmatprep.mubr.f32.mxu0 0.0
  %2859 = vmatmul.mubr.f32.gmra.mrb[0].mxu0 %v840
  %v2860 = vpop.f32.mrb[0].mxu0
  %v2861 = vadd.f32 %v1656, %v2860
  %v2862 = vpop.f32.mrb[0].mxu0
  %2863 = vmatprep.mubr.f32.mxu0 0.0
  %2864 = vmatmul.mubr.f32.gmra.mrb[0].mxu0 %v843
  %v2865 = vpop.f32.mrb[0].mxu0
  %v2866 = vadd.f32 %v1661, %v2865
  %v2867 = vpop.f32.mrb[0].mxu0
  %2868 = vmatprep.mubr.f32.mxu0 0.0
  %2869 = vmatmul.mubr.f32.gmra.mrb[0].mxu0 %v846
  %v2870 = vpop.f32.mrb[0].mxu0
  %v2871 = vadd.f32 %v1666, %v2870
  %v2872 = vpop.f32.mrb[0].mxu0
  %2873 = vmatprep.mubr.f32.mxu0 0.0
  %2874 = vmatmul.mubr.f32.gmra.mrb[0].mxu0 %v849
  %v2875 = vpop.f32.mrb[0].mxu0
  %v2876 = vadd.f32 %v1671, %v2875
  %v2877 = vpop.f32.mrb[0].mxu0
  %2878 = vmatprep.mubr.f32.mxu0 0.0
  %2879 = vmatmul.mubr.f32.gmra.mrb[0].mxu0 %v852
  %v2880 = vpop.f32.mrb[0].mxu0
  %v2881 = vadd.f32 %v1676, %v2880
  %v2882 = vpop.f32.mrb[0].mxu0
  %2883 = vmatprep.mubr.f32.mxu0 0.0
  %2884 = vmatmul.mubr.f32.gmra.mrb[0].mxu0 %v855
  %v2885 = vpop.f32.mrb[0].mxu0
  %v2886 = vadd.f32 %v1681, %v2885
  %v2887 = vpop.f32.mrb[0].mxu0
  %2888 = vmatprep.mubr.f32.mxu0 0.0
  %2889 = vmatmul.mubr.f32.gmra.mrb[0].mxu0 %v858
  %v2890 = vpop.f32.mrb[0].mxu0
  %v2891 = vadd.f32 %v1686, %v2890
  %v2892 = vpop.f32.mrb[0].mxu0
  %2893 = vmatprep.mubr.f32.mxu0 0.0
  %2894 = vmatmul.mubr.f32.gmra.mrb[0].mxu0 %v861
  %v2895 = vpop.f32.mrb[0].mxu0
  %v2896 = vadd.f32 %v1691, %v2895
  %v2897 = vpop.f32.mrb[0].mxu0
  %2898 = vmatprep.mubr.f32.mxu0 0.0
  %2899 = vmatmul.mubr.f32.gmra.mrb[0].mxu0 %v864
  %v2900 = vpop.f32.mrb[0].mxu0
  %v2901 = vadd.f32 %v1696, %v2900
  %v2902 = vpop.f32.mrb[0].mxu0
  %2903 = vmatprep.mubr.f32.mxu0 0.0
  %2904 = vmatmul.mubr.f32.gmra.mrb[0].mxu0 %v867
  %v2905 = vpop.f32.mrb[0].mxu0
  %v2906 = vadd.f32 %v1701, %v2905
  %v2907 = vpop.f32.mrb[0].mxu0
  %2908 = vmatprep.mubr.f32.mxu0 0.0
  %2909 = vmatmul.mubr.f32.gmra.mrb[0].mxu0 %v870
  %v2910 = vpop.f32.mrb[0].mxu0
  %v2911 = vadd.f32 %v1706, %v2910
  %v2912 = vpop.f32.mrb[0].mxu0
  %2913 = vmatprep.mubr.f32.mxu0 0.0
  %2914 = vmatmul.mubr.f32.gmra.mrb[0].mxu0 %v873
  %v2915 = vpop.f32.mrb[0].mxu0
  %v2916 = vadd.f32 %v1711, %v2915
  %v2917 = vpop.f32.mrb[0].mxu0
  %2918 = vmatprep.mubr.f32.mxu0 0.0
  %2919 = vmatmul.mubr.f32.gmra.mrb[0].mxu0 %v876
  %v2920 = vpop.f32.mrb[0].mxu0
  %v2921 = vadd.f32 %v1716, %v2920
  %v2922 = vpop.f32.mrb[0].mxu0
  %2923 = vmatprep.mubr.f32.mxu0 0.0
  %2924 = vmatmul.mubr.f32.gmra.mrb[0].mxu0 %v879
  %v2925 = vpop.f32.mrb[0].mxu0
  %v2926 = vadd.f32 %v1721, %v2925
  %v2927 = vpop.f32.mrb[0].mxu0
  %2928 = vmatprep.mubr.f32.mxu0 0.0
  %2929 = vmatmul.mubr.f32.gmra.mrb[0].mxu0 %v882
  %v2930 = vpop.f32.mrb[0].mxu0
  %v2931 = vadd.f32 %v1726, %v2930
  %v2932 = vpop.f32.mrb[0].mxu0
  %2933 = vmatprep.mubr.f32.mxu0 0.0
  %2934 = vmatmul.mubr.f32.gmra.mrb[0].mxu0 %v885
  %v2935 = vpop.f32.mrb[0].mxu0
  %v2936 = vadd.f32 %v1731, %v2935
  %v2937 = vpop.f32.mrb[0].mxu0
  %2938 = vmatprep.mubr.f32.mxu0 0.0
  %2939 = vmatmul.mubr.f32.gmra.mrb[0].mxu0 %v888
  %v2940 = vpop.f32.mrb[0].mxu0
  %v2941 = vadd.f32 %v1736, %v2940
  %v2942 = vpop.f32.mrb[0].mxu0
  %2943 = vmatprep.mubr.f32.mxu0 0.0
  %2944 = vmatmul.mubr.f32.gmra.mrb[0].mxu0 %v891
  %v2945 = vpop.f32.mrb[0].mxu0
  %v2946 = vadd.f32 %v1741, %v2945
  %v2947 = vpop.f32.mrb[0].mxu0
  %2948 = vmatprep.mubr.f32.mxu0 0.0
  %2949 = vmatmul.mubr.f32.gmra.mrb[0].mxu0 %v894
  %v2950 = vpop.f32.mrb[0].mxu0
  %v2951 = vadd.f32 %v1746, %v2950
  %v2952 = vpop.f32.mrb[0].mxu0
  %2953 = vmatprep.mubr.f32.mxu0 0.0
  %2954 = vmatmul.mubr.f32.gmra.mrb[0].mxu0 %v897
  %v2955 = vpop.f32.mrb[0].mxu0
  %v2956 = vadd.f32 %v1751, %v2955
  %v2957 = vpop.f32.mrb[0].mxu0
  %2958 = vmatprep.mubr.f32.mxu0 0.0
  %2959 = vmatmul.mubr.f32.gmra.mrb[0].mxu0 %v900
  %v2960 = vpop.f32.mrb[0].mxu0
  %v2961 = vadd.f32 %v1756, %v2960
  %v2962 = vpop.f32.mrb[0].mxu0
  %2963 = vmatprep.mubr.f32.mxu0 0.0
  %2964 = vmatmul.mubr.f32.gmra.mrb[0].mxu0 %v903
  %v2965 = vpop.f32.mrb[0].mxu0
  %v2966 = vadd.f32 %v1761, %v2965
  %v2967 = vpop.f32.mrb[0].mxu0
  %2968 = vmatprep.mubr.f32.mxu0 0.0
  %2969 = vmatmul.mubr.f32.gmra.mrb[0].mxu0 %v906
  %v2970 = vpop.f32.mrb[0].mxu0
  %v2971 = vadd.f32 %v1766, %v2970
  %v2972 = vpop.f32.mrb[0].mxu0
  %2973 = vmatprep.mubr.f32.mxu0 0.0
  %2974 = vmatmul.mubr.f32.gmra.mrb[0].mxu0 %v909
  %v2975 = vpop.f32.mrb[0].mxu0
  %v2976 = vadd.f32 %v1771, %v2975
  %v2977 = vpop.f32.mrb[0].mxu0
  %2978 = vmatprep.mubr.f32.mxu0 0.0
  %2979 = vmatmul.mubr.f32.gmra.mrb[0].mxu0 %v912
  %v2980 = vpop.f32.mrb[0].mxu0
  %v2981 = vadd.f32 %v1776, %v2980
  %v2982 = vpop.f32.mrb[0].mxu0
  %2983 = vmatprep.mubr.f32.mxu0 0.0
  %2984 = vmatmul.mubr.f32.gmra.mrb[0].mxu0 %v915
  %v2985 = vpop.f32.mrb[0].mxu0
  %v2986 = vadd.f32 %v1781, %v2985
  %v2987 = vpop.f32.mrb[0].mxu0
  %2988 = vmatprep.mubr.f32.mxu0 0.0
  %2989 = vmatmul.mubr.f32.gmra.mrb[0].mxu0 %v918
  %v2990 = vpop.f32.mrb[0].mxu0
  %v2991 = vadd.f32 %v1786, %v2990
  %v2992 = vpop.f32.mrb[0].mxu0
  %2993 = vmatprep.mubr.f32.mxu0 0.0
  %2994 = vmatmul.mubr.f32.gmra.mrb[0].mxu0 %v921
  %v2995 = vpop.f32.mrb[0].mxu0
  %v2996 = vadd.f32 %v1791, %v2995
  %v2997 = vpop.f32.mrb[0].mxu0
  %2998 = vmatprep.mubr.f32.mxu0 0.0
  %2999 = vmatmul.mubr.f32.gmra.mrb[0].mxu0 %v924
  %v3000 = vpop.f32.mrb[0].mxu0
  %v3001 = vadd.f32 %v1796, %v3000
  %v3002 = vpop.f32.mrb[0].mxu0
  %3003 = vmatprep.mubr.f32.mxu0 0.0
  %3004 = vmatmul.mubr.f32.gmra.mrb[0].mxu0 %v927
  %v3005 = vpop.f32.mrb[0].mxu0
  %v3006 = vadd.f32 %v1801, %v3005
  %v3007 = vpop.f32.mrb[0].mxu0
  %3008 = vmatprep.mubr.f32.mxu0 0.0
  %3009 = vmatmul.mubr.f32.gmra.mrb[0].mxu0 %v930
  %v3010 = vpop.f32.mrb[0].mxu0
  %v3011 = vadd.f32 %v1806, %v3010
  %v3012 = vpop.f32.mrb[0].mxu0
  %3013 = vmatprep.mubr.f32.mxu0 0.0
  %3014 = vmatmul.mubr.f32.gmra.mrb[0].mxu0 %v933
  %v3015 = vpop.f32.mrb[0].mxu0
  %v3016 = vadd.f32 %v1811, %v3015
  %v3017 = vpop.f32.mrb[0].mxu0
  %3018 = vmatprep.mubr.f32.mxu0 0.0
  %3019 = vmatmul.mubr.f32.gmra.mrb[0].mxu0 %v936
  %v3020 = vpop.f32.mrb[0].mxu0
  %v3021 = vadd.f32 %v1816, %v3020
  %v3022 = vpop.f32.mrb[0].mxu0
  %3023 = vmatprep.mubr.f32.mxu0 0.0
  %3024 = vmatmul.mubr.f32.gmra.mrb[0].mxu0 %v939
  %v3025 = vpop.f32.mrb[0].mxu0
  %v3026 = vadd.f32 %v1821, %v3025
  %v3027 = vpop.f32.mrb[0].mxu0
  %3028 = vmatprep.mubr.f32.mxu0 0.0
  %3029 = vmatmul.mubr.f32.gmra.mrb[0].mxu0 %v942
  %v3030 = vpop.f32.mrb[0].mxu0
  %v3031 = vadd.f32 %v1826, %v3030
  %v3032 = vpop.f32.mrb[0].mxu0
  %3033 = vmatprep.mubr.f32.mxu0 0.0
  %3034 = vmatmul.mubr.f32.gmra.mrb[0].mxu0 %v945
  %v3035 = vpop.f32.mrb[0].mxu0
  %v3036 = vadd.f32 %v1831, %v3035
  %v3037 = vpop.f32.mrb[0].mxu0
  %3038 = vmatprep.mubr.f32.mxu0 0.0
  %3039 = vmatmul.mubr.f32.gmra.mrb[0].mxu0 %v948
  %v3040 = vpop.f32.mrb[0].mxu0
  %v3041 = vadd.f32 %v1836, %v3040
  %v3042 = vpop.f32.mrb[0].mxu0
  %3043 = vmatprep.mubr.f32.mxu0 0.0
  %3044 = vmatmul.mubr.f32.gmra.mrb[0].mxu0 %v951
  %v3045 = vpop.f32.mrb[0].mxu0
  %v3046 = vadd.f32 %v1841, %v3045
  %v3047 = vpop.f32.mrb[0].mxu0
  %3048 = vmatprep.mubr.f32.mxu0 0.0
  %3049 = vmatmul.mubr.f32.gmra.mrb[0].mxu0 %v954
  %v3050 = vpop.f32.mrb[0].mxu0
  %v3051 = vadd.f32 %v1846, %v3050
  %v3052 = vpop.f32.mrb[0].mxu0
  %3053 = vmatprep.mubr.f32.mxu0 0.0
  %3054 = vmatmul.mubr.f32.gmra.mrb[0].mxu0 %v957
  %v3055 = vpop.f32.mrb[0].mxu0
  %v3056 = vadd.f32 %v1851, %v3055
  %v3057 = vpop.f32.mrb[0].mxu0
  %3058 = vmatprep.mubr.f32.mxu0 0.0
  %3059 = vmatmul.mubr.f32.gmra.mrb[0].mxu0 %v960
  %v3060 = vpop.f32.mrb[0].mxu0
  %v3061 = vadd.f32 %v1856, %v3060
  %v3062 = vpop.f32.mrb[0].mxu0
  %3063 = vmatprep.mubr.f32.mxu0 0.0
  %3064 = vmatmul.mubr.f32.gmra.mrb[0].mxu0 %v963
  %v3065 = vpop.f32.mrb[0].mxu0
  %v3066 = vadd.f32 %v1861, %v3065
  %v3067 = vpop.f32.mrb[0].mxu0
  %3068 = vmatprep.mubr.f32.mxu0 0.0
  %3069 = vmatmul.mubr.f32.gmra.mrb[0].mxu0 %v966
  %v3070 = vpop.f32.mrb[0].mxu0
  %v3071 = vadd.f32 %v1866, %v3070
  %v3072 = vpop.f32.mrb[0].mxu0
  %3073 = vmatprep.mubr.f32.mxu0 0.0
  %3074 = vmatmul.mubr.f32.gmra.mrb[0].mxu0 %v969
  %v3075 = vpop.f32.mrb[0].mxu0
  %v3076 = vadd.f32 %v1871, %v3075
  %v3077 = vpop.f32.mrb[0].mxu0
  %3078 = vmatprep.mubr.f32.mxu0 0.0
  %3079 = vmatmul.mubr.f32.gmra.mrb[0].mxu0 %v972
  %v3080 = vpop.f32.mrb[0].mxu0
  %v3081 = vadd.f32 %v1876, %v3080
  %v3082 = vpop.f32.mrb[0].mxu0
  %3083 = vmatprep.mubr.f32.mxu0 0.0
  %3084 = vmatmul.mubr.f32.gmra.mrb[0].mxu0 %v975
  %v3085 = vpop.f32.mrb[0].mxu0
  %v3086 = vadd.f32 %v1881, %v3085
  %v3087 = vpop.f32.mrb[0].mxu0
  %3088 = vmatprep.mubr.f32.mxu0 0.0
  %3089 = vmatmul.mubr.f32.gmra.mrb[0].mxu0 %v978
  %v3090 = vpop.f32.mrb[0].mxu0
  %v3091 = vadd.f32 %v1886, %v3090
  %v3092 = vpop.f32.mrb[0].mxu0
  %3093 = vmatprep.mubr.f32.mxu0 0.0
  %3094 = vmatmul.mubr.f32.gmra.mrb[0].mxu0 %v981
  %v3095 = vpop.f32.mrb[0].mxu0
  %v3096 = vadd.f32 %v1891, %v3095
  %v3097 = vpop.f32.mrb[0].mxu0
  %3098 = vmatprep.mubr.f32.mxu0 0.0
  %3099 = vmatmul.mubr.f32.gmra.mrb[0].mxu0 %v984
  %v3100 = vpop.f32.mrb[0].mxu0
  %v3101 = vadd.f32 %v1896, %v3100
  %v3102 = vpop.f32.mrb[0].mxu0
  %3103 = vmatprep.mubr.f32.mxu0 0.0
  %3104 = vmatmul.mubr.f32.gmra.mrb[0].mxu0 %v987
  %v3105 = vpop.f32.mrb[0].mxu0
  %v3106 = vadd.f32 %v1901, %v3105
  %v3107 = vpop.f32.mrb[0].mxu0
  %3108 = vmatprep.mubr.f32.mxu0 0.0
  %3109 = vmatmul.mubr.f32.gmra.mrb[0].mxu0 %v990
  %v3110 = vpop.f32.mrb[0].mxu0
  %v3111 = vadd.f32 %v1906, %v3110
  %v3112 = vpop.f32.mrb[0].mxu0
  %3113 = vmatprep.mubr.f32.mxu0 0.0
  %3114 = vmatmul.mubr.f32.gmra.mrb[0].mxu0 %v993
  %v3115 = vpop.f32.mrb[0].mxu0
  %v3116 = vadd.f32 %v1911, %v3115
  %v3117 = vpop.f32.mrb[0].mxu0
  %3118 = vmatprep.mubr.f32.mxu0 0.0
  %3119 = vmatmul.mubr.f32.gmra.mrb[0].mxu0 %v996
  %v3120 = vpop.f32.mrb[0].mxu0
  %v3121 = vadd.f32 %v1916, %v3120
  %v3122 = vpop.f32.mrb[0].mxu0
  %3123 = vmatprep.mubr.f32.mxu0 0.0
  %3124 = vmatmul.mubr.f32.gmra.mrb[0].mxu0 %v999
  %v3125 = vpop.f32.mrb[0].mxu0
  %v3126 = vadd.f32 %v1921, %v3125
  %v3127 = vpop.f32.mrb[0].mxu0
  %3128 = vmatprep.mubr.f32.mxu0 0.0
  %3129 = vmatmul.mubr.f32.gmra.mrb[0].mxu0 %v1002
  %v3130 = vpop.f32.mrb[0].mxu0
  %v3131 = vadd.f32 %v1926, %v3130
  %v3132 = vpop.f32.mrb[0].mxu0
  %3133 = vmatprep.mubr.f32.mxu0 0.0
  %3134 = vmatmul.mubr.f32.gmra.mrb[0].mxu0 %v1005
  %v3135 = vpop.f32.mrb[0].mxu0
  %v3136 = vadd.f32 %v1931, %v3135
  %v3137 = vpop.f32.mrb[0].mxu0
  %3138 = vmatprep.mubr.f32.mxu0 0.0
  %3139 = vmatmul.mubr.f32.gmra.mrb[0].mxu0 %v1008
  %v3140 = vpop.f32.mrb[0].mxu0
  %v3141 = vadd.f32 %v1936, %v3140
  %v3142 = vpop.f32.mrb[0].mxu0
  %3143 = vmatprep.mubr.f32.mxu0 0.0
  %3144 = vmatmul.mubr.f32.gmra.mrb[0].mxu0 %v1011
  %v3145 = vpop.f32.mrb[0].mxu0
  %v3146 = vadd.f32 %v1941, %v3145
  %v3147 = vpop.f32.mrb[0].mxu0
  %3148 = vmatprep.mubr.f32.mxu0 0.0
  %3149 = vmatmul.mubr.f32.gmra.mrb[0].mxu0 %v1014
  %v3150 = vpop.f32.mrb[0].mxu0
  %v3151 = vadd.f32 %v1946, %v3150
  %v3152 = vpop.f32.mrb[0].mxu0
  %3153 = vmatprep.mubr.f32.mxu0 0.0
  %3154 = vmatmul.mubr.f32.gmra.mrb[0].mxu0 %v1017
  %v3155 = vpop.f32.mrb[0].mxu0
  %v3156 = vadd.f32 %v1951, %v3155
  %v3157 = vpop.f32.mrb[0].mxu0
  %3158 = vmatprep.mubr.f32.mxu0 0.0
  %3159 = vmatmul.mubr.f32.gmra.mrb[0].mxu0 %v1020
  %v3160 = vpop.f32.mrb[0].mxu0
  %v3161 = vadd.f32 %v1956, %v3160
  %v3162 = vpop.f32.mrb[0].mxu0
  %3163 = vmatprep.mubr.f32.mxu0 0.0
  %3164 = vmatmul.mubr.f32.gmra.mrb[0].mxu0 %v1023
  %v3165 = vpop.f32.mrb[0].mxu0
  %v3166 = vadd.f32 %v1961, %v3165
  %v3167 = vpop.f32.mrb[0].mxu0
  %3168 = vmatprep.mubr.f32.mxu0 0.0
  %3169 = vmatmul.mubr.f32.gmra.mrb[0].mxu0 %v1026
  %v3170 = vpop.f32.mrb[0].mxu0
  %v3171 = vadd.f32 %v1966, %v3170
  %v3172 = vpop.f32.mrb[0].mxu0
  %3173 = vmatprep.mubr.f32.mxu0 0.0
  %3174 = vmatmul.mubr.f32.gmra.mrb[0].mxu0 %v1029
  %v3175 = vpop.f32.mrb[0].mxu0
  %v3176 = vadd.f32 %v1971, %v3175
  %v3177 = vpop.f32.mrb[0].mxu0
  %3178 = vmatprep.mubr.f32.mxu0 0.0
  %3179 = vmatmul.mubr.f32.gmra.mrb[0].mxu0 %v1032
  %v3180 = vpop.f32.mrb[0].mxu0
  %v3181 = vadd.f32 %v1976, %v3180
  %v3182 = vpop.f32.mrb[0].mxu0
  %3183 = vmatprep.mubr.f32.mxu0 0.0
  %3184 = vmatmul.mubr.f32.gmra.mrb[0].mxu0 %v1035
  %v3185 = vpop.f32.mrb[0].mxu0
  %v3186 = vadd.f32 %v1981, %v3185
  %v3187 = vpop.f32.mrb[0].mxu0
  %3188 = vmatprep.mubr.f32.mxu0 0.0
  %3189 = vmatmul.mubr.f32.gmra.mrb[0].mxu0 %v1038
  %v3190 = vpop.f32.mrb[0].mxu0
  %v3191 = vadd.f32 %v1986, %v3190
  %v3192 = vpop.f32.mrb[0].mxu0
  %3193 = vmatprep.mubr.f32.mxu0 0.0
  %3194 = vmatmul.mubr.f32.gmra.mrb[0].mxu0 %v1041
  %v3195 = vpop.f32.mrb[0].mxu0
  %v3196 = vadd.f32 %v1991, %v3195
  %v3197 = vpop.f32.mrb[0].mxu0
  %3198 = vmatprep.mubr.f32.mxu0 0.0
  %3199 = vmatmul.mubr.f32.gmra.mrb[0].mxu0 %v1044
  %v3200 = vpop.f32.mrb[0].mxu0
  %v3201 = vadd.f32 %v1996, %v3200
  %v3202 = vpop.f32.mrb[0].mxu0
  %3203 = vmatprep.mubr.f32.mxu0 0.0
  %3204 = vmatmul.mubr.f32.gmra.mrb[0].mxu0 %v1047
  %v3205 = vpop.f32.mrb[0].mxu0
  %v3206 = vadd.f32 %v2001, %v3205
  %v3207 = vpop.f32.mrb[0].mxu0
  %3208 = vmatprep.mubr.f32.mxu0 0.0
  %3209 = vmatmul.mubr.f32.gmra.mrb[0].mxu0 %v1050
  %v3210 = vpop.f32.mrb[0].mxu0
  %v3211 = vadd.f32 %v2006, %v3210
  %v3212 = vpop.f32.mrb[0].mxu0
  %3213 = vmatprep.mubr.f32.mxu0 0.0
  %3214 = vmatmul.mubr.f32.gmra.mrb[0].mxu0 %v1053
  %v3215 = vpop.f32.mrb[0].mxu0
  %v3216 = vadd.f32 %v2011, %v3215
  %v3217 = vpop.f32.mrb[0].mxu0
  %3218 = vmatprep.mubr.f32.mxu0 0.0
  %3219 = vmatmul.mubr.f32.gmra.mrb[0].mxu0 %v1056
  %v3220 = vpop.f32.mrb[0].mxu0
  %v3221 = vadd.f32 %v2016, %v3220
  %v3222 = vpop.f32.mrb[0].mxu0
  %3223 = vmatprep.mubr.f32.mxu0 0.0
  %3224 = vmatmul.mubr.f32.gmra.mrb[0].mxu0 %v1059
  %v3225 = vpop.f32.mrb[0].mxu0
  %v3226 = vadd.f32 %v2021, %v3225
  %v3227 = vpop.f32.mrb[0].mxu0
  %3228 = vmatprep.mubr.f32.mxu0 0.0
  %3229 = vmatmul.mubr.f32.gmra.mrb[0].mxu0 %v1062
  %v3230 = vpop.f32.mrb[0].mxu0
  %v3231 = vadd.f32 %v2026, %v3230
  %v3232 = vpop.f32.mrb[0].mxu0
  %3233 = vmatprep.mubr.f32.mxu0 0.0
  %3234 = vmatmul.mubr.f32.gmra.mrb[0].mxu0 %v1065
  %v3235 = vpop.f32.mrb[0].mxu0
  %v3236 = vadd.f32 %v2031, %v3235
  %v3237 = vpop.f32.mrb[0].mxu0
  %3238 = vmatprep.mubr.f32.mxu0 0.0
  %3239 = vmatmul.mubr.f32.gmra.mrb[0].mxu0 %v1068
  %v3240 = vpop.f32.mrb[0].mxu0
  %v3241 = vadd.f32 %v2036, %v3240
  %v3242 = vpop.f32.mrb[0].mxu0
  %3243 = vmatprep.mubr.f32.mxu0 0.0
  %3244 = vmatmul.mubr.f32.gmra.mrb[0].mxu0 %v1071
  %v3245 = vpop.f32.mrb[0].mxu0
  %v3246 = vadd.f32 %v2041, %v3245
  %v3247 = vpop.f32.mrb[0].mxu0
  %3248 = vmatprep.mubr.f32.mxu0 0.0
  %3249 = vmatmul.mubr.f32.gmra.mrb[0].mxu0 %v1074
  %v3250 = vpop.f32.mrb[0].mxu0
  %v3251 = vadd.f32 %v2046, %v3250
  %v3252 = vpop.f32.mrb[0].mxu0
  %3253 = vmatprep.mubr.f32.mxu0 0.0
  %3254 = vmatmul.mubr.f32.gmra.mrb[0].mxu0 %v1077
  %v3255 = vpop.f32.mrb[0].mxu0
  %v3256 = vadd.f32 %v2051, %v3255
  %v3257 = vpop.f32.mrb[0].mxu0
  %3258 = vmatprep.mubr.f32.mxu0 0.0
  %3259 = vmatmul.mubr.f32.gmra.mrb[0].mxu0 %v1080
  %v3260 = vpop.f32.mrb[0].mxu0
  %v3261 = vadd.f32 %v2056, %v3260
  %v3262 = vpop.f32.mrb[0].mxu0
  %3263 = vmatprep.mubr.f32.mxu0 0.0
  %3264 = vmatmul.mubr.f32.gmra.mrb[0].mxu0 %v1083
  %v3265 = vpop.f32.mrb[0].mxu0
  %v3266 = vadd.f32 %v2061, %v3265
  %v3267 = vpop.f32.mrb[0].mxu0
  %3268 = vmatprep.mubr.f32.mxu0 0.0
  %3269 = vmatmul.mubr.f32.gmra.mrb[0].mxu0 %v1086
  %v3270 = vpop.f32.mrb[0].mxu0
  %v3271 = vadd.f32 %v2066, %v3270
  %v3272 = vpop.f32.mrb[0].mxu0
  %3273 = vmatprep.mubr.f32.mxu0 0.0
  %3274 = vmatmul.mubr.f32.gmra.mrb[0].mxu0 %v1089
  %v3275 = vpop.f32.mrb[0].mxu0
  %v3276 = vadd.f32 %v2071, %v3275
  %v3277 = vpop.f32.mrb[0].mxu0
  %3278 = vmatprep.mubr.f32.mxu0 0.0
  %3279 = vmatmul.mubr.f32.gmra.mrb[0].mxu0 %v1092
  %v3280 = vpop.f32.mrb[0].mxu0
  %v3281 = vadd.f32 %v2076, %v3280
  %v3282 = vpop.f32.mrb[0].mxu0
  %3283 = vmatprep.mubr.f32.mxu0 0.0
  %3284 = vmatmul.mubr.f32.gmra.mrb[0].mxu0 %v1095
  %v3285 = vpop.f32.mrb[0].mxu0
  %v3286 = vadd.f32 %v2081, %v3285
  %v3287 = vpop.f32.mrb[0].mxu0
  %3288 = vmatprep.mubr.f32.mxu0 0.0
  %3289 = vmatmul.mubr.f32.gmra.mrb[0].mxu0 %v1098
  %v3290 = vpop.f32.mrb[0].mxu0
  %v3291 = vadd.f32 %v2086, %v3290
  %v3292 = vpop.f32.mrb[0].mxu0
  %3293 = vmatprep.mubr.f32.mxu0 0.0
  %3294 = vmatmul.mubr.f32.gmra.mrb[0].mxu0 %v1101
  %v3295 = vpop.f32.mrb[0].mxu0
  %v3296 = vadd.f32 %v2091, %v3295
  %v3297 = vpop.f32.mrb[0].mxu0
  %3298 = vmatprep.mubr.f32.mxu0 0.0
  %3299 = vmatmul.mubr.f32.gmra.mrb[0].mxu0 %v1104
  %v3300 = vpop.f32.mrb[0].mxu0
  %v3301 = vadd.f32 %v2096, %v3300
  %v3302 = vpop.f32.mrb[0].mxu0
  %3303 = vmatprep.mubr.f32.mxu0 0.0
  %3304 = vmatmul.mubr.f32.gmra.mrb[0].mxu0 %v1107
  %v3305 = vpop.f32.mrb[0].mxu0
  %v3306 = vadd.f32 %v2101, %v3305
  %v3307 = vpop.f32.mrb[0].mxu0
  %3308 = vmatprep.mubr.f32.mxu0 0.0
  %3309 = vmatmul.mubr.f32.gmra.mrb[0].mxu0 %v1110
  %v3310 = vpop.f32.mrb[0].mxu0
  %v3311 = vadd.f32 %v2106, %v3310
  %v3312 = vpop.f32.mrb[0].mxu0
  %3313 = vmatprep.mubr.f32.mxu0 0.0
  %3314 = vmatmul.mubr.f32.gmra.mrb[0].mxu0 %v1113
  %v3315 = vpop.f32.mrb[0].mxu0
  %v3316 = vadd.f32 %v2111, %v3315
  %v3317 = vpop.f32.mrb[0].mxu0
  %3318 = vmatprep.mubr.f32.mxu0 0.0
  %3319 = vmatmul.mubr.f32.gmra.mrb[0].mxu0 %v1116
  %v3320 = vpop.f32.mrb[0].mxu0
  %v3321 = vadd.f32 %v2116, %v3320
  %v3322 = vpop.f32.mrb[0].mxu0
  %3323 = vmatprep.mubr.f32.mxu0 0.0
  %3324 = vmatmul.mubr.f32.gmra.mrb[0].mxu0 %v1119
  %v3325 = vpop.f32.mrb[0].mxu0
  %v3326 = vadd.f32 %v2121, %v3325
  %v3327 = vpop.f32.mrb[0].mxu0
  %3328 = vmatprep.mubr.f32.mxu0 0.0
  %3329 = vmatmul.mubr.f32.gmra.mrb[0].mxu0 %v1122
  %v3330 = vpop.f32.mrb[0].mxu0
  %v3331 = vadd.f32 %v2126, %v3330
  %v3332 = vpop.f32.mrb[0].mxu0
  %3333 = vmatprep.mubr.f32.mxu0 0.0
  %3334 = vmatmul.mubr.f32.gmra.mrb[0].mxu0 %v1125
  %v3335 = vpop.f32.mrb[0].mxu0
  %v3336 = vadd.f32 %v2131, %v3335
  %v3337 = vpop.f32.mrb[0].mxu0
  %3338 = vmatprep.mubr.f32.mxu0 0.0
  %3339 = vmatmul.mubr.f32.gmra.mrb[0].mxu0 %v1128
  %v3340 = vpop.f32.mrb[0].mxu0
  %v3341 = vadd.f32 %v2136, %v3340
  %v3342 = vpop.f32.mrb[0].mxu0
  %3343 = vmatprep.mubr.f32.mxu0 0.0
  %3344 = vmatmul.mubr.f32.gmra.mrb[0].mxu0 %v1131
  %v3345 = vpop.f32.mrb[0].mxu0
  %v3346 = vadd.f32 %v2141, %v3345
  %v3347 = vpop.f32.mrb[0].mxu0
  %3348 = vmatprep.mubr.f32.mxu0 0.0
  %3349 = vmatmul.mubr.f32.gmra.mrb[0].mxu0 %v1134
  %v3350 = vpop.f32.mrb[0].mxu0
  %v3351 = vadd.f32 %v2146, %v3350
  %v3352 = vpop.f32.mrb[0].mxu0
  %3353 = vmatprep.mubr.f32.mxu0 0.0
  %3354 = vmatmul.mubr.f32.gmra.mrb[0].mxu0 %v1137
  %v3355 = vpop.f32.mrb[0].mxu0
  %v3356 = vadd.f32 %v2151, %v3355
  %v3357 = vpop.f32.mrb[0].mxu0
  %3358 = vmatprep.mubr.f32.mxu0 0.0
  %3359 = vmatmul.mubr.f32.gmra.mrb[0].mxu0 %v1140
  %v3360 = vpop.f32.mrb[0].mxu0
  %v3361 = vadd.f32 %v2156, %v3360
  %v3362 = vpop.f32.mrb[0].mxu0
  %3363 = vmatprep.mubr.f32.mxu0 0.0
  %3364 = vmatmul.mubr.f32.gmra.mrb[0].mxu0 %v1143
  %v3365 = vpop.f32.mrb[0].mxu0
  %v3366 = vadd.f32 %v2161, %v3365
  %v3367 = vpop.f32.mrb[0].mxu0
  %3368 = vmatprep.mubr.f32.mxu0 0.0
  %3369 = vmatmul.mubr.f32.gmra.mrb[0].mxu0 %v1146
  %v3370 = vpop.f32.mrb[0].mxu0
  %v3371 = vadd.f32 %v2166, %v3370
  %v3372 = vpop.f32.mrb[0].mxu0
  %3373 = vmatprep.mubr.f32.mxu0 0.0
  %3374 = vmatmul.mubr.f32.gmra.mrb[0].mxu0 %v1149
  %v3375 = vpop.f32.mrb[0].mxu0
  %v3376 = vadd.f32 %v2171, %v3375
  %v3377 = vpop.f32.mrb[0].mxu0
  %3378 = vmatprep.mubr.f32.mxu0 0.0
  %3379 = vmatmul.mubr.f32.gmra.mrb[0].mxu0 %v1152
  %v3380 = vpop.f32.mrb[0].mxu0
  %v3381 = vadd.f32 %v2176, %v3380
  %v3382 = vpop.f32.mrb[0].mxu0
  %3383 = vmatprep.mubr.f32.mxu0 0.0
  %3384 = vmatmul.mubr.f32.gmra.mrb[0].mxu0 %v1155
  %v3385 = vpop.f32.mrb[0].mxu0
  %v3386 = vadd.f32 %v2181, %v3385
  %v3387 = vpop.f32.mrb[0].mxu0
  %3388 = vmatprep.mubr.f32.mxu0 0.0
  %3389 = vmatmul.mubr.f32.gmra.mrb[0].mxu0 %v1158
  %v3390 = vpop.f32.mrb[0].mxu0
  %v3391 = vadd.f32 %v2186, %v3390
  %v3392 = vpop.f32.mrb[0].mxu0
  %3393 = vmatprep.mubr.f32.mxu0 0.0
  %3394 = vmatmul.mubr.f32.gmra.mrb[0].mxu0 %v1161
  %v3395 = vpop.f32.mrb[0].mxu0
  %v3396 = vadd.f32 %v2191, %v3395
  %v3397 = vpop.f32.mrb[0].mxu0
  %3398 = vmatprep.mubr.f32.mxu0 0.0
  %3399 = vmatmul.mubr.f32.gmra.mrb[0].mxu0 %v1164
  %v3400 = vpop.f32.mrb[0].mxu0
  %v3401 = vadd.f32 %v2196, %v3400
  %v3402 = vpop.f32.mrb[0].mxu0
  %3403 = vmatprep.mubr.f32.mxu0 0.0
  %3404 = vmatmul.mubr.f32.gmra.mrb[0].mxu0 %v1167
  %v3405 = vpop.f32.mrb[0].mxu0
  %v3406 = vadd.f32 %v2201, %v3405
  %v3407 = vpop.f32.mrb[0].mxu0
  %3408 = vmatprep.mubr.f32.mxu0 0.0
  %3409 = vmatmul.mubr.f32.gmra.mrb[0].mxu0 %v1170
  %v3410 = vpop.f32.mrb[0].mxu0
  %v3411 = vadd.f32 %v2206, %v3410
  %v3412 = vpop.f32.mrb[0].mxu0
  %3413 = vmatprep.mubr.f32.mxu0 0.0
  %3414 = vmatmul.mubr.f32.gmra.mrb[0].mxu0 %v1173
  %v3415 = vpop.f32.mrb[0].mxu0
  %v3416 = vadd.f32 %v2211, %v3415
  %v3417 = vpop.f32.mrb[0].mxu0
  %3418 = vmatprep.mubr.f32.mxu0 0.0
  %3419 = vmatmul.mubr.f32.gmra.mrb[0].mxu0 %v1176
  %v3420 = vpop.f32.mrb[0].mxu0
  %v3421 = vadd.f32 %v2216, %v3420
  %v3422 = vpop.f32.mrb[0].mxu0
  %3423 = vmatprep.mubr.f32.mxu0 0.0
  %3424 = vmatmul.mubr.f32.gmra.mrb[0].mxu0 %v1179
  %v3425 = vpop.f32.mrb[0].mxu0
  %v3426 = vadd.f32 %v2221, %v3425
  %v3427 = vpop.f32.mrb[0].mxu0
  %3428 = vmatprep.mubr.f32.mxu0 0.0
  %3429 = vmatmul.mubr.f32.gmra.mrb[0].mxu0 %v1182
  %v3430 = vpop.f32.mrb[0].mxu0
  %v3431 = vadd.f32 %v2226, %v3430
  %v3432 = vpop.f32.mrb[0].mxu0
  %3433 = vmatprep.mubr.f32.mxu0 0.0
  %3434 = vmatmul.mubr.f32.gmra.mrb[0].mxu0 %v1185
  %v3435 = vpop.f32.mrb[0].mxu0
  %v3436 = vadd.f32 %v2231, %v3435
  %v3437 = vpop.f32.mrb[0].mxu0
  %3438 = vmatprep.mubr.f32.mxu0 0.0
  %3439 = vmatmul.mubr.f32.gmra.mrb[0].mxu0 %v1188
  %v3440 = vpop.f32.mrb[0].mxu0
  %v3441 = vadd.f32 %v2236, %v3440
  %v3442 = vpop.f32.mrb[0].mxu0
  %3443 = vmatprep.mubr.f32.mxu0 0.0
  %3444 = vmatmul.mubr.f32.gmra.mrb[0].mxu0 %v1191
  %v3445 = vpop.f32.mrb[0].mxu0
  %v3446 = vadd.f32 %v2241, %v3445
  %v3447 = vpop.f32.mrb[0].mxu0
  %3448 = vmatprep.mubr.f32.mxu0 0.0
  %3449 = vmatmul.mubr.f32.gmra.mrb[0].mxu0 %v1194
  %v3450 = vpop.f32.mrb[0].mxu0
  %v3451 = vadd.f32 %v2246, %v3450
  %v3452 = vpop.f32.mrb[0].mxu0
  %3453 = vmatprep.mubr.f32.mxu0 0.0
  %3454 = vmatmul.mubr.f32.gmra.mrb[0].mxu0 %v1197
  %v3455 = vpop.f32.mrb[0].mxu0
  %v3456 = vadd.f32 %v2251, %v3455
  %v3457 = vpop.f32.mrb[0].mxu0
  %3458 = vmatprep.mubr.f32.mxu0 0.0
  %3459 = vmatmul.mubr.f32.gmra.mrb[0].mxu0 %v1200
  %v3460 = vpop.f32.mrb[0].mxu0
  %v3461 = vadd.f32 %v2256, %v3460
  %v3462 = vpop.f32.mrb[0].mxu0
  %3463 = vmatprep.mubr.f32.mxu0 0.0
  %3464 = vmatmul.mubr.f32.gmra.mrb[0].mxu0 %v1203
  %v3465 = vpop.f32.mrb[0].mxu0
  %v3466 = vadd.f32 %v2261, %v3465
  %v3467 = vpop.f32.mrb[0].mxu0
  %3468 = vmatprep.mubr.f32.mxu0 0.0
  %3469 = vmatmul.mubr.f32.gmra.mrb[0].mxu0 %v1206
  %v3470 = vpop.f32.mrb[0].mxu0
  %v3471 = vadd.f32 %v2266, %v3470
  %v3472 = vpop.f32.mrb[0].mxu0
  %3473 = vmatprep.mubr.f32.mxu0 0.0
  %3474 = vmatmul.mubr.f32.gmra.mrb[0].mxu0 %v1209
  %v3475 = vpop.f32.mrb[0].mxu0
  %v3476 = vadd.f32 %v2271, %v3475
  %v3477 = vpop.f32.mrb[0].mxu0
  %3478 = vmatprep.mubr.f32.mxu0 0.0
  %3479 = vmatmul.mubr.f32.gmra.mrb[0].mxu0 %v1212
  %v3480 = vpop.f32.mrb[0].mxu0
  %v3481 = vadd.f32 %v2276, %v3480
  %v3482 = vpop.f32.mrb[0].mxu0
  %3483 = vmatprep.mubr.f32.mxu0 0.0
  %3484 = vmatmul.mubr.f32.gmra.mrb[0].mxu0 %v1215
  %v3485 = vpop.f32.mrb[0].mxu0
  %v3486 = vadd.f32 %v2281, %v3485
  %v3487 = vpop.f32.mrb[0].mxu0
  %3488 = vmatprep.mubr.f32.mxu0 0.0
  %3489 = vmatmul.mubr.f32.gmra.mrb[0].mxu0 %v1218
  %v3490 = vpop.f32.mrb[0].mxu0
  %v3491 = vadd.f32 %v2286, %v3490
  %v3492 = vpop.f32.mrb[0].mxu0
  %3493 = vmatprep.mubr.f32.mxu0 0.0
  %3494 = vmatmul.mubr.f32.gmra.mrb[0].mxu0 %v1221
  %v3495 = vpop.f32.mrb[0].mxu0
  %v3496 = vadd.f32 %v2291, %v3495
  %v3497 = vpop.f32.mrb[0].mxu0
  %3498 = vmatprep.mubr.f32.mxu0 0.0
  %3499 = vmatmul.mubr.f32.gmra.mrb[0].mxu0 %v1224
  %v3500 = vpop.f32.mrb[0].mxu0
  %v3501 = vadd.f32 %v2296, %v3500
  %v3502 = vpop.f32.mrb[0].mxu0
  %3503 = vmatprep.mubr.f32.mxu0 0.0
  %3504 = vmatmul.mubr.f32.gmra.mrb[0].mxu0 %v1227
  %v3505 = vpop.f32.mrb[0].mxu0
  %v3506 = vadd.f32 %v2301, %v3505
  %v3507 = vpop.f32.mrb[0].mxu0
  %3508 = vmatprep.mubr.f32.mxu0 0.0
  %3509 = vmatmul.mubr.f32.gmra.mrb[0].mxu0 %v1230
  %v3510 = vpop.f32.mrb[0].mxu0
  %v3511 = vadd.f32 %v2306, %v3510
  %v3512 = vpop.f32.mrb[0].mxu0
  %3513 = vmatprep.mubr.f32.mxu0 0.0
  %3514 = vmatmul.mubr.f32.gmra.mrb[0].mxu0 %v1233
  %v3515 = vpop.f32.mrb[0].mxu0
  %v3516 = vadd.f32 %v2311, %v3515
  %v3517 = vpop.f32.mrb[0].mxu0
  %3518 = vmatprep.mubr.f32.mxu0 0.0
  %3519 = vmatmul.mubr.f32.gmra.mrb[0].mxu0 %v1236
  %v3520 = vpop.f32.mrb[0].mxu0
  %v3521 = vadd.f32 %v2316, %v3520
  %v3522 = vpop.f32.mrb[0].mxu0
  %3523 = vmatprep.mubr.f32.mxu0 0.0
  %3524 = vmatmul.mubr.f32.gmra.mrb[0].mxu0 %v1239
  %v3525 = vpop.f32.mrb[0].mxu0
  %v3526 = vadd.f32 %v2321, %v3525
  %v3527 = vpop.f32.mrb[0].mxu0
  %3528 = vmatprep.mubr.f32.mxu0 0.0
  %3529 = vmatmul.mubr.f32.gmra.mrb[0].mxu0 %v1242
  %v3530 = vpop.f32.mrb[0].mxu0
  %v3531 = vadd.f32 %v2326, %v3530
  %v3532 = vpop.f32.mrb[0].mxu0
  %3533 = vmatprep.mubr.f32.mxu0 0.0
  %3534 = vmatmul.mubr.f32.gmra.mrb[0].mxu0 %v1245
  %v3535 = vpop.f32.mrb[0].mxu0
  %v3536 = vadd.f32 %v2331, %v3535
  %v3537 = vpop.f32.mrb[0].mxu0
  %3538 = vmatprep.mubr.f32.mxu0 0.0
  %3539 = vmatmul.mubr.f32.gmra.mrb[0].mxu0 %v1248
  %v3540 = vpop.f32.mrb[0].mxu0
  %v3541 = vadd.f32 %v2336, %v3540
  %v3542 = vpop.f32.mrb[0].mxu0
  %3543 = vmatprep.mubr.f32.mxu0 0.0
  %3544 = vmatmul.mubr.f32.gmra.mrb[0].mxu0 %v1251
  %v3545 = vpop.f32.mrb[0].mxu0
  %v3546 = vadd.f32 %v2341, %v3545
  %v3547 = vpop.f32.mrb[0].mxu0
  %3548 = vmatprep.mubr.f32.mxu0 0.0
  %3549 = vmatmul.mubr.f32.gmra.mrb[0].mxu0 %v1254
  %v3550 = vpop.f32.mrb[0].mxu0
  %v3551 = vadd.f32 %v2346, %v3550
  %v3552 = vpop.f32.mrb[0].mxu0
  %3553 = vmatprep.mubr.f32.mxu0 0.0
  %3554 = vmatmul.mubr.f32.gmra.mrb[0].mxu0 %v1257
  %v3555 = vpop.f32.mrb[0].mxu0
  %v3556 = vadd.f32 %v2351, %v3555
  %v3557 = vpop.f32.mrb[0].mxu0
  %3558 = vmatprep.mubr.f32.mxu0 0.0
  %3559 = vmatmul.mubr.f32.gmra.mrb[0].mxu0 %v1260
  %v3560 = vpop.f32.mrb[0].mxu0
  %v3561 = vadd.f32 %v2356, %v3560
  %v3562 = vpop.f32.mrb[0].mxu0
  %3563 = vmatprep.mubr.f32.mxu0 0.0
  %3564 = vmatmul.mubr.f32.gmra.mrb[0].mxu0 %v1263
  %v3565 = vpop.f32.mrb[0].mxu0
  %v3566 = vadd.f32 %v2361, %v3565
  %v3567 = vpop.f32.mrb[0].mxu0
  %3568 = vmatprep.mubr.f32.mxu0 0.0
  %3569 = vmatmul.mubr.f32.gmra.mrb[0].mxu0 %v1266
  %v3570 = vpop.f32.mrb[0].mxu0
  %v3571 = vadd.f32 %v2366, %v3570
  %v3572 = vpop.f32.mrb[0].mxu0
  %3573 = vmatprep.mubr.f32.mxu0 0.0
  %3574 = vmatmul.mubr.f32.gmra.mrb[0].mxu0 %v1269
  %v3575 = vpop.f32.mrb[0].mxu0
  %v3576 = vadd.f32 %v2371, %v3575
  %v3577 = vpop.f32.mrb[0].mxu0
  %3578 = vmatprep.mubr.f32.mxu0 0.0
  %3579 = vmatmul.mubr.f32.gmra.mrb[0].mxu0 %v1272
  %v3580 = vpop.f32.mrb[0].mxu0
  %v3581 = vadd.f32 %v2376, %v3580
  %v3582 = vpop.f32.mrb[0].mxu0
  %3583 = vmatprep.mubr.f32.mxu0 0.0
  %3584 = vmatmul.mubr.f32.gmra.mrb[0].mxu0 %v1275
  %v3585 = vpop.f32.mrb[0].mxu0
  %v3586 = vadd.f32 %v2381, %v3585
  %v3587 = vpop.f32.mrb[0].mxu0
  %3588 = vmatprep.mubr.f32.mxu0 0.0
  %3589 = vmatmul.mubr.f32.gmra.mrb[0].mxu0 %v1278
  %v3590 = vpop.f32.mrb[0].mxu0
  %v3591 = vadd.f32 %v2386, %v3590
  %v3592 = vpop.f32.mrb[0].mxu0
  %3593 = vmatprep.mubr.f32.mxu0 0.0
  %3594 = vmatmul.mubr.f32.gmra.mrb[0].mxu0 %v1281
  %v3595 = vpop.f32.mrb[0].mxu0
  %v3596 = vadd.f32 %v2391, %v3595
  %v3597 = vpop.f32.mrb[0].mxu0
  %3598 = vmatprep.mubr.f32.mxu0 0.0
  %3599 = vmatmul.mubr.f32.gmra.mrb[0].mxu0 %v1284
  %v3600 = vpop.f32.mrb[0].mxu0
  %v3601 = vadd.f32 %v2396, %v3600
  %v3602 = vpop.f32.mrb[0].mxu0
  %3603 = vmatprep.mubr.f32.mxu0 0.0
  %3604 = vmatmul.mubr.f32.gmra.mrb[0].mxu0 %v1287
  %v3605 = vpop.f32.mrb[0].mxu0
  %v3606 = vadd.f32 %v2401, %v3605
  %v3607 = vpop.f32.mrb[0].mxu0
  %3608 = vmatprep.mubr.f32.mxu0 0.0
  %3609 = vmatmul.mubr.f32.gmra.mrb[0].mxu0 %v1290
  %v3610 = vpop.f32.mrb[0].mxu0
  %v3611 = vadd.f32 %v2406, %v3610
  %v3612 = vpop.f32.mrb[0].mxu0
  %3613 = vmatprep.mubr.f32.mxu0 0.0
  %3614 = vmatmul.mubr.f32.gmra.mrb[0].mxu0 %v1293
  %v3615 = vpop.f32.mrb[0].mxu0
  %v3616 = vadd.f32 %v2411, %v3615
  %v3617 = vpop.f32.mrb[0].mxu0
  %3618 = vmatprep.mubr.f32.mxu0 0.0
  %3619 = vmatmul.mubr.f32.gmra.mrb[0].mxu0 %v1296
  %v3620 = vpop.f32.mrb[0].mxu0
  %v3621 = vadd.f32 %v2416, %v3620
  %v3622 = vpop.f32.mrb[0].mxu0
  %3623 = vmatprep.mubr.f32.mxu0 0.0
  %3624 = vmatmul.mubr.f32.gmra.mrb[0].mxu0 %v1299
  %v3625 = vpop.f32.mrb[0].mxu0
  %v3626 = vadd.f32 %v2421, %v3625
  %v3627 = vpop.f32.mrb[0].mxu0
  %3628 = vmatprep.mubr.f32.mxu0 0.0
  %3629 = vmatmul.mubr.f32.gmra.mrb[0].mxu0 %v1302
  %v3630 = vpop.f32.mrb[0].mxu0
  %v3631 = vadd.f32 %v2426, %v3630
  %v3632 = vpop.f32.mrb[0].mxu0
  %3633 = vmatprep.mubr.f32.mxu0 0.0
  %3634 = vmatmul.mubr.f32.gmra.mrb[0].mxu0 %v1305
  %v3635 = vpop.f32.mrb[0].mxu0
  %v3636 = vadd.f32 %v2431, %v3635
  %v3637 = vpop.f32.mrb[0].mxu0
  %3638 = vmatprep.mubr.f32.mxu0 0.0
  %3639 = vmatmul.mubr.f32.gmra.mrb[0].mxu0 %v1308
  %v3640 = vpop.f32.mrb[0].mxu0
  %v3641 = vadd.f32 %v2436, %v3640
  %v3642 = vpop.f32.mrb[0].mxu0
  %3643 = vmatprep.mubr.f32.mxu0 0.0
  %3644 = vmatmul.mubr.f32.gmra.mrb[0].mxu0 %v1311
  %v3645 = vpop.f32.mrb[0].mxu0
  %v3646 = vadd.f32 %v2441, %v3645
  %v3647 = vpop.f32.mrb[0].mxu0
  %3648 = vmatprep.mubr.f32.mxu0 0.0
  %3649 = vmatmul.mubr.f32.gmra.mrb[0].mxu0 %v1314
  %v3650 = vpop.f32.mrb[0].mxu0
  %v3651 = vadd.f32 %v2446, %v3650
  %v3652 = vpop.f32.mrb[0].mxu0
  %3653 = vmatprep.mubr.f32.mxu0 0.0
  %3654 = vmatmul.mubr.f32.gmra.mrb[0].mxu0 %v1317
  %v3655 = vpop.f32.mrb[0].mxu0
  %v3656 = vadd.f32 %v2451, %v3655
  %v3657 = vpop.f32.mrb[0].mxu0
  %3658 = vmatprep.mubr.f32.mxu0 0.0
  %3659 = vmatmul.mubr.f32.gmra.mrb[0].mxu0 %v1320
  %v3660 = vpop.f32.mrb[0].mxu0
  %v3661 = vadd.f32 %v2456, %v3660
  %v3662 = vpop.f32.mrb[0].mxu0
  %3663 = vmatprep.mubr.f32.mxu0 0.0
  %3664 = vmatmul.mubr.f32.gmra.mrb[0].mxu0 %v1323
  %v3665 = vpop.f32.mrb[0].mxu0
  %v3666 = vadd.f32 %v2461, %v3665
  %v3667 = vpop.f32.mrb[0].mxu0
  %3668 = vmatprep.mubr.f32.mxu0 0.0
  %3669 = vmatmul.mubr.f32.gmra.mrb[0].mxu0 %v1326
  %v3670 = vpop.f32.mrb[0].mxu0
  %v3671 = vadd.f32 %v2466, %v3670
  %v3672 = vpop.f32.mrb[0].mxu0
  %3673 = vmatprep.mubr.f32.mxu0 0.0
  %3674 = vmatmul.mubr.f32.gmra.mrb[0].mxu0 %v1329
  %v3675 = vpop.f32.mrb[0].mxu0
  %v3676 = vadd.f32 %v2471, %v3675
  %v3677 = vpop.f32.mrb[0].mxu0
  %3678 = vmatprep.mubr.f32.mxu0 0.0
  %3679 = vmatmul.mubr.f32.gmra.mrb[0].mxu0 %v1332
  %v3680 = vpop.f32.mrb[0].mxu0
  %v3681 = vadd.f32 %v2476, %v3680
  %v3682 = vpop.f32.mrb[0].mxu0
  %3683 = vmatprep.mubr.f32.mxu0 0.0
  %3684 = vmatmul.mubr.f32.gmra.mrb[0].mxu0 %v1335
  %v3685 = vpop.f32.mrb[0].mxu0
  %v3686 = vadd.f32 %v2481, %v3685
  %v3687 = vpop.f32.mrb[0].mxu0
  %3688 = vmatprep.mubr.f32.mxu0 0.0
  %3689 = vmatmul.mubr.f32.gmra.mrb[0].mxu0 %v1338
  %v3690 = vpop.f32.mrb[0].mxu0
  %v3691 = vadd.f32 %v2486, %v3690
  %v3692 = vpop.f32.mrb[0].mxu0
  %3693 = vmatprep.mubr.f32.mxu0 0.0
  %3694 = vmatmul.mubr.f32.gmra.mrb[0].mxu0 %v1341
  %v3695 = vpop.f32.mrb[0].mxu0
  %v3696 = vadd.f32 %v2491, %v3695
  %v3697 = vpop.f32.mrb[0].mxu0
  %3698 = vmatprep.mubr.f32.mxu0 0.0
  %3699 = vmatmul.mubr.f32.gmra.mrb[0].mxu0 %v1344
  %v3700 = vpop.f32.mrb[0].mxu0
  %v3701 = vadd.f32 %v2496, %v3700
  %v3702 = vpop.f32.mrb[0].mxu0
  %3703 = vmatprep.mubr.f32.mxu0 0.0
  %3704 = vmatmul.mubr.f32.gmra.mrb[0].mxu0 %v1347
  %v3705 = vpop.f32.mrb[0].mxu0
  %v3706 = vadd.f32 %v2501, %v3705
  %v3707 = vpop.f32.mrb[0].mxu0
  %3708 = vmatprep.mubr.f32.mxu0 0.0
  %3709 = vmatmul.mubr.f32.gmra.mrb[0].mxu0 %v1350
  %v3710 = vpop.f32.mrb[0].mxu0
  %v3711 = vadd.f32 %v2506, %v3710
  %v3712 = vpop.f32.mrb[0].mxu0
  %3713 = vmatprep.mubr.f32.mxu0 0.0
  %3714 = vmatmul.mubr.f32.gmra.mrb[0].mxu0 %v1353
  %v3715 = vpop.f32.mrb[0].mxu0
  %v3716 = vadd.f32 %v2511, %v3715
  %v3717 = vpop.f32.mrb[0].mxu0
  %3718 = vmatprep.mubr.f32.mxu0 0.0
  %3719 = vmatmul.mubr.f32.gmra.mrb[0].mxu0 %v1356
  %v3720 = vpop.f32.mrb[0].mxu0
  %v3721 = vadd.f32 %v2516, %v3720
  %v3722 = vpop.f32.mrb[0].mxu0
  %3723 = vmatprep.mubr.f32.mxu0 0.0
  %3724 = vmatmul.mubr.f32.gmra.mrb[0].mxu0 %v1359
  %v3725 = vpop.f32.mrb[0].mxu0
  %v3726 = vadd.f32 %v2521, %v3725
  %v3727 = vpop.f32.mrb[0].mxu0
  %3728 = vmatprep.mubr.f32.mxu0 0.0
  %3729 = vmatmul.mubr.f32.gmra.mrb[0].mxu0 %v1362
  %v3730 = vpop.f32.mrb[0].mxu0
  %v3731 = vadd.f32 %v2526, %v3730
  %v3732 = vpop.f32.mrb[0].mxu0
  %3733 = vmatprep.mubr.f32.mxu0 0.0
  %3734 = vmatmul.mubr.f32.gmra.mrb[0].mxu0 %v1365
  %v3735 = vpop.f32.mrb[0].mxu0
  %v3736 = vadd.f32 %v2531, %v3735
  %v3737 = vpop.f32.mrb[0].mxu0
  %3738 = vmatprep.mubr.f32.mxu0 0.0
  %3739 = vmatmul.mubr.f32.gmra.mrb[0].mxu0 %v1368
  %v3740 = vpop.f32.mrb[0].mxu0
  %v3741 = vadd.f32 %v2536, %v3740
  %v3742 = vpop.f32.mrb[0].mxu0
  %3743 = vmatprep.mubr.f32.mxu0 0.0
  %3744 = vmatmul.mubr.f32.gmra.mrb[0].mxu0 %v1371
  %v3745 = vpop.f32.mrb[0].mxu0
  %v3746 = vadd.f32 %v2541, %v3745
  %v3747 = vpop.f32.mrb[0].mxu0
  %3748 = vmatprep.mubr.f32.mxu0 0.0
  %3749 = vmatmul.mubr.f32.gmra.mrb[0].mxu0 %v1374
  %v3750 = vpop.f32.mrb[0].mxu0
  %v3751 = vadd.f32 %v2546, %v3750
  %v3752 = vpop.f32.mrb[0].mxu0
  %3753 = vmatprep.mubr.f32.mxu0 0.0
  %3754 = vmatmul.mubr.f32.gmra.mrb[0].mxu0 %v1377
  %v3755 = vpop.f32.mrb[0].mxu0
  %v3756 = vadd.f32 %v2551, %v3755
  %v3757 = vpop.f32.mrb[0].mxu0
  %3758 = vmatprep.mubr.f32.mxu0 0.0
  %3759 = vmatmul.mubr.f32.gmra.mrb[0].mxu0 %v1380
  %v3760 = vpop.f32.mrb[0].mxu0
  %v3761 = vadd.f32 %v2556, %v3760
  %v3762 = vpop.f32.mrb[0].mxu0
  %3763 = vmatprep.mubr.f32.mxu0 0.0
  %3764 = vmatmul.mubr.f32.gmra.mrb[0].mxu0 %v1383
  %v3765 = vpop.f32.mrb[0].mxu0
  %v3766 = vadd.f32 %v2561, %v3765
  %v3767 = vpop.f32.mrb[0].mxu0
  %3768 = vmatprep.mubr.f32.mxu0 0.0
  %3769 = vmatmul.mubr.f32.gmra.mrb[0].mxu0 %v1386
  %v3770 = vpop.f32.mrb[0].mxu0
  %v3771 = vadd.f32 %v2566, %v3770
  %v3772 = vpop.f32.mrb[0].mxu0
  %3773 = vmatprep.mubr.f32.mxu0 0.0
  %3774 = vmatmul.mubr.f32.gmra.mrb[0].mxu0 %v1389
  %v3775 = vpop.f32.mrb[0].mxu0
  %v3776 = vadd.f32 %v2571, %v3775
  %v3777 = vpop.f32.mrb[0].mxu0
  %3778 = vmatprep.mubr.f32.mxu0 0.0
  %3779 = vmatmul.mubr.f32.gmra.mrb[0].mxu0 %v1392
  %v3780 = vpop.f32.mrb[0].mxu0
  %v3781 = vadd.f32 %v2576, %v3780
  %v3782 = vpop.f32.mrb[0].mxu0
  %3783 = vmatprep.mubr.f32.mxu0 0.0
  %3784 = vmatmul.mubr.f32.gmra.mrb[0].mxu0 %v1395
  %v3785 = vpop.f32.mrb[0].mxu0
  %v3786 = vadd.f32 %v2581, %v3785
  %v3787 = vpop.f32.mrb[0].mxu0
  %3788 = vmatprep.mubr.f32.mxu0 0.0
  %3789 = vmatmul.mubr.f32.gmra.mrb[0].mxu0 %v1398
  %v3790 = vpop.f32.mrb[0].mxu0
  %v3791 = vadd.f32 %v2586, %v3790
  %v3792 = vpop.f32.mrb[0].mxu0
  %3793 = vmatprep.mubr.f32.mxu0 0.0
  %3794 = vmatmul.mubr.f32.gmra.mrb[0].mxu0 %v1401
  %v3795 = vpop.f32.mrb[0].mxu0
  %v3796 = vadd.f32 %v2591, %v3795
  %v3797 = vpop.f32.mrb[0].mxu0
  %3798 = vmatprep.mubr.f32.mxu0 0.0
  %3799 = vmatmul.mubr.f32.gmra.mrb[0].mxu0 %v1404
  %v3800 = vpop.f32.mrb[0].mxu0
  %v3801 = vadd.f32 %v2596, %v3800
  %v3802 = vpop.f32.mrb[0].mxu0
  %3803 = vmatprep.mubr.f32.mxu0 0.0
  %3804 = vmatmul.mubr.f32.gmra.mrb[0].mxu0 %v1407
  %v3805 = vpop.f32.mrb[0].mxu0
  %v3806 = vadd.f32 %v2601, %v3805
  %v3807 = vpop.f32.mrb[0].mxu0
  %3808 = vmatprep.mubr.f32.mxu0 0.0
  %3809 = vmatmul.mubr.f32.gmra.mrb[0].mxu0 %v1410
  %v3810 = vpop.f32.mrb[0].mxu0
  %v3811 = vadd.f32 %v2606, %v3810
  %v3812 = vpop.f32.mrb[0].mxu0
  %3813 = vmatprep.mubr.f32.mxu0 0.0
  %3814 = vmatmul.mubr.f32.gmra.mrb[0].mxu0 %v1413
  %v3815 = vpop.f32.mrb[0].mxu0
  %v3816 = vadd.f32 %v2611, %v3815
  %v3817 = vpop.f32.mrb[0].mxu0
  %3818 = vmatprep.mubr.f32.mxu0 0.0
  %3819 = vmatmul.mubr.f32.gmra.mrb[0].mxu0 %v1416
  %v3820 = vpop.f32.mrb[0].mxu0
  %v3821 = vadd.f32 %v2616, %v3820
  %v3822 = vpop.f32.mrb[0].mxu0
  %3823 = vmatprep.mubr.f32.mxu0 0.0
  %3824 = vmatmul.mubr.f32.gmra.mrb[0].mxu0 %v1419
  %v3825 = vpop.f32.mrb[0].mxu0
  %v3826 = vadd.f32 %v2621, %v3825
  %v3827 = vpop.f32.mrb[0].mxu0
  %3828 = vmatprep.mubr.f32.mxu0 0.0
  %3829 = vmatmul.mubr.f32.gmra.mrb[0].mxu0 %v1422
  %v3830 = vpop.f32.mrb[0].mxu0
  %v3831 = vadd.f32 %v2626, %v3830
  %v3832 = vpop.f32.mrb[0].mxu0
  %3833 = vdwg.mxu0
  %3834 = vadd.xlane.f32.xlu0 %v2696
  %v3835 = vpop.xlane.xlu0 %3834
  %3836 = vadd.xlane.f32.xlu0 %v2701
  %v3837 = vpop.xlane.xlu0 %3836
  %3838 = vadd.xlane.f32.xlu0 %v2706
  %v3839 = vpop.xlane.xlu0 %3838
  %3840 = vadd.xlane.f32.xlu0 %v2711
  %v3841 = vpop.xlane.xlu0 %3840
  %3842 = vadd.xlane.f32.xlu0 %v2716
  %v3843 = vpop.xlane.xlu0 %3842
  %3844 = vadd.xlane.f32.xlu0 %v2721
  %v3845 = vpop.xlane.xlu0 %3844
  %3846 = vadd.xlane.f32.xlu0 %v2726
  %v3847 = vpop.xlane.xlu0 %3846
  %3848 = vadd.xlane.f32.xlu0 %v2731
  %v3849 = vpop.xlane.xlu0 %3848
  %3850 = vadd.xlane.f32.xlu0 %v2736
  %v3851 = vpop.xlane.xlu0 %3850
  %3852 = vadd.xlane.f32.xlu0 %v2741
  %v3853 = vpop.xlane.xlu0 %3852
  %3854 = vadd.xlane.f32.xlu0 %v2746
  %v3855 = vpop.xlane.xlu0 %3854
  %3856 = vadd.xlane.f32.xlu0 %v2751
  %v3857 = vpop.xlane.xlu0 %3856
  %3858 = vadd.xlane.f32.xlu0 %v2756
  %v3859 = vpop.xlane.xlu0 %3858
  %3860 = vadd.xlane.f32.xlu0 %v2761
  %v3861 = vpop.xlane.xlu0 %3860
  %3862 = vadd.xlane.f32.xlu0 %v2766
  %v3863 = vpop.xlane.xlu0 %3862
  %3864 = vadd.xlane.f32.xlu0 %v2771
  %v3865 = vpop.xlane.xlu0 %3864
  %3866 = vadd.xlane.f32.xlu0 %v2776
  %v3867 = vpop.xlane.xlu0 %3866
  %3868 = vadd.xlane.f32.xlu0 %v2781
  %v3869 = vpop.xlane.xlu0 %3868
  %3870 = vadd.xlane.f32.xlu0 %v2786
  %v3871 = vpop.xlane.xlu0 %3870
  %3872 = vadd.xlane.f32.xlu0 %v2791
  %v3873 = vpop.xlane.xlu0 %3872
  %3874 = vadd.xlane.f32.xlu0 %v2796
  %v3875 = vpop.xlane.xlu0 %3874
  %3876 = vadd.xlane.f32.xlu0 %v2801
  %v3877 = vpop.xlane.xlu0 %3876
  %3878 = vadd.xlane.f32.xlu0 %v2806
  %v3879 = vpop.xlane.xlu0 %3878
  %3880 = vadd.xlane.f32.xlu0 %v2811
  %v3881 = vpop.xlane.xlu0 %3880
  %3882 = vadd.xlane.f32.xlu0 %v2816
  %v3883 = vpop.xlane.xlu0 %3882
  %3884 = vadd.xlane.f32.xlu0 %v2821
  %v3885 = vpop.xlane.xlu0 %3884
  %3886 = vadd.xlane.f32.xlu0 %v2826
  %v3887 = vpop.xlane.xlu0 %3886
  %3888 = vadd.xlane.f32.xlu0 %v2831
  %v3889 = vpop.xlane.xlu0 %3888
  %3890 = vadd.xlane.f32.xlu0 %v2836
  %v3891 = vpop.xlane.xlu0 %3890
  %3892 = vadd.xlane.f32.xlu0 %v2841
  %v3893 = vpop.xlane.xlu0 %3892
  %3894 = vadd.xlane.f32.xlu0 %v2846
  %v3895 = vpop.xlane.xlu0 %3894
  %3896 = vadd.xlane.f32.xlu0 %v2851
  %v3897 = vpop.xlane.xlu0 %3896
  %3898 = vadd.xlane.f32.xlu0 %v2856
  %v3899 = vpop.xlane.xlu0 %3898
  %3900 = vadd.xlane.f32.xlu0 %v2861
  %v3901 = vpop.xlane.xlu0 %3900
  %3902 = vadd.xlane.f32.xlu0 %v2866
  %v3903 = vpop.xlane.xlu0 %3902
  %3904 = vadd.xlane.f32.xlu0 %v2871
  %v3905 = vpop.xlane.xlu0 %3904
  %3906 = vadd.xlane.f32.xlu0 %v2876
  %v3907 = vpop.xlane.xlu0 %3906
  %3908 = vadd.xlane.f32.xlu0 %v2881
  %v3909 = vpop.xlane.xlu0 %3908
  %3910 = vadd.xlane.f32.xlu0 %v2886
  %v3911 = vpop.xlane.xlu0 %3910
  %3912 = vadd.xlane.f32.xlu0 %v2891
  %v3913 = vpop.xlane.xlu0 %3912
  %3914 = vadd.xlane.f32.xlu0 %v2896
  %v3915 = vpop.xlane.xlu0 %3914
  %3916 = vadd.xlane.f32.xlu0 %v2901
  %v3917 = vpop.xlane.xlu0 %3916
  %3918 = vadd.xlane.f32.xlu0 %v2906
  %v3919 = vpop.xlane.xlu0 %3918
  %3920 = vadd.xlane.f32.xlu0 %v2911
  %v3921 = vpop.xlane.xlu0 %3920
  %3922 = vadd.xlane.f32.xlu0 %v2916
  %v3923 = vpop.xlane.xlu0 %3922
  %3924 = vadd.xlane.f32.xlu0 %v2921
  %v3925 = vpop.xlane.xlu0 %3924
  %3926 = vadd.xlane.f32.xlu0 %v2926
  %v3927 = vpop.xlane.xlu0 %3926
  %3928 = vadd.xlane.f32.xlu0 %v2931
  %v3929 = vpop.xlane.xlu0 %3928
  %3930 = vadd.xlane.f32.xlu0 %v2936
  %v3931 = vpop.xlane.xlu0 %3930
  %3932 = vadd.xlane.f32.xlu0 %v2941
  %v3933 = vpop.xlane.xlu0 %3932
  %3934 = vadd.xlane.f32.xlu0 %v2946
  %v3935 = vpop.xlane.xlu0 %3934
  %3936 = vadd.xlane.f32.xlu0 %v2951
  %v3937 = vpop.xlane.xlu0 %3936
  %3938 = vadd.xlane.f32.xlu0 %v2956
  %v3939 = vpop.xlane.xlu0 %3938
  %3940 = vadd.xlane.f32.xlu0 %v2961
  %v3941 = vpop.xlane.xlu0 %3940
  %3942 = vadd.xlane.f32.xlu0 %v2966
  %v3943 = vpop.xlane.xlu0 %3942
  %3944 = vadd.xlane.f32.xlu0 %v2971
  %v3945 = vpop.xlane.xlu0 %3944
  %3946 = vadd.xlane.f32.xlu0 %v2976
  %v3947 = vpop.xlane.xlu0 %3946
  %3948 = vadd.xlane.f32.xlu0 %v2981
  %v3949 = vpop.xlane.xlu0 %3948
  %3950 = vadd.xlane.f32.xlu0 %v2986
  %v3951 = vpop.xlane.xlu0 %3950
  %3952 = vadd.xlane.f32.xlu0 %v2991
  %v3953 = vpop.xlane.xlu0 %3952
  %3954 = vadd.xlane.f32.xlu0 %v2996
  %v3955 = vpop.xlane.xlu0 %3954
  %3956 = vadd.xlane.f32.xlu0 %v3001
  %v3957 = vpop.xlane.xlu0 %3956
  %3958 = vadd.xlane.f32.xlu0 %v3006
  %v3959 = vpop.xlane.xlu0 %3958
  %3960 = vadd.xlane.f32.xlu0 %v3011
  %v3961 = vpop.xlane.xlu0 %3960
  %3962 = vadd.xlane.f32.xlu0 %v3016
  %v3963 = vpop.xlane.xlu0 %3962
  %3964 = vadd.xlane.f32.xlu0 %v3021
  %v3965 = vpop.xlane.xlu0 %3964
  %3966 = vadd.xlane.f32.xlu0 %v3026
  %v3967 = vpop.xlane.xlu0 %3966
  %3968 = vadd.xlane.f32.xlu0 %v3031
  %v3969 = vpop.xlane.xlu0 %3968
  %3970 = vadd.xlane.f32.xlu0 %v3036
  %v3971 = vpop.xlane.xlu0 %3970
  %3972 = vadd.xlane.f32.xlu0 %v3041
  %v3973 = vpop.xlane.xlu0 %3972
  %3974 = vadd.xlane.f32.xlu0 %v3046
  %v3975 = vpop.xlane.xlu0 %3974
  %3976 = vadd.xlane.f32.xlu0 %v3051
  %v3977 = vpop.xlane.xlu0 %3976
  %3978 = vadd.xlane.f32.xlu0 %v3056
  %v3979 = vpop.xlane.xlu0 %3978
  %3980 = vadd.xlane.f32.xlu0 %v3061
  %v3981 = vpop.xlane.xlu0 %3980
  %3982 = vadd.xlane.f32.xlu0 %v3066
  %v3983 = vpop.xlane.xlu0 %3982
  %3984 = vadd.xlane.f32.xlu0 %v3071
  %v3985 = vpop.xlane.xlu0 %3984
  %3986 = vadd.xlane.f32.xlu0 %v3076
  %v3987 = vpop.xlane.xlu0 %3986
  %3988 = vadd.xlane.f32.xlu0 %v3081
  %v3989 = vpop.xlane.xlu0 %3988
  %3990 = vadd.xlane.f32.xlu0 %v3086
  %v3991 = vpop.xlane.xlu0 %3990
  %3992 = vadd.xlane.f32.xlu0 %v3091
  %v3993 = vpop.xlane.xlu0 %3992
  %3994 = vadd.xlane.f32.xlu0 %v3096
  %v3995 = vpop.xlane.xlu0 %3994
  %3996 = vadd.xlane.f32.xlu0 %v3101
  %v3997 = vpop.xlane.xlu0 %3996
  %3998 = vadd.xlane.f32.xlu0 %v3106
  %v3999 = vpop.xlane.xlu0 %3998
  %4000 = vadd.xlane.f32.xlu0 %v3111
  %v4001 = vpop.xlane.xlu0 %4000
  %4002 = vadd.xlane.f32.xlu0 %v3116
  %v4003 = vpop.xlane.xlu0 %4002
  %4004 = vadd.xlane.f32.xlu0 %v3121
  %v4005 = vpop.xlane.xlu0 %4004
  %4006 = vadd.xlane.f32.xlu0 %v3126
  %v4007 = vpop.xlane.xlu0 %4006
  %4008 = vadd.xlane.f32.xlu0 %v3131
  %v4009 = vpop.xlane.xlu0 %4008
  %4010 = vadd.xlane.f32.xlu0 %v3136
  %v4011 = vpop.xlane.xlu0 %4010
  %4012 = vadd.xlane.f32.xlu0 %v3141
  %v4013 = vpop.xlane.xlu0 %4012
  %4014 = vadd.xlane.f32.xlu0 %v3146
  %v4015 = vpop.xlane.xlu0 %4014
  %4016 = vadd.xlane.f32.xlu0 %v3151
  %v4017 = vpop.xlane.xlu0 %4016
  %4018 = vadd.xlane.f32.xlu0 %v3156
  %v4019 = vpop.xlane.xlu0 %4018
  %4020 = vadd.xlane.f32.xlu0 %v3161
  %v4021 = vpop.xlane.xlu0 %4020
  %4022 = vadd.xlane.f32.xlu0 %v3166
  %v4023 = vpop.xlane.xlu0 %4022
  %4024 = vadd.xlane.f32.xlu0 %v3171
  %v4025 = vpop.xlane.xlu0 %4024
  %4026 = vadd.xlane.f32.xlu0 %v3176
  %v4027 = vpop.xlane.xlu0 %4026
  %4028 = vadd.xlane.f32.xlu0 %v3181
  %v4029 = vpop.xlane.xlu0 %4028
  %4030 = vadd.xlane.f32.xlu0 %v3186
  %v4031 = vpop.xlane.xlu0 %4030
  %4032 = vadd.xlane.f32.xlu0 %v3191
  %v4033 = vpop.xlane.xlu0 %4032
  %4034 = vadd.xlane.f32.xlu0 %v3196
  %v4035 = vpop.xlane.xlu0 %4034
  %4036 = vadd.xlane.f32.xlu0 %v3201
  %v4037 = vpop.xlane.xlu0 %4036
  %4038 = vadd.xlane.f32.xlu0 %v3206
  %v4039 = vpop.xlane.xlu0 %4038
  %4040 = vadd.xlane.f32.xlu0 %v3211
  %v4041 = vpop.xlane.xlu0 %4040
  %4042 = vadd.xlane.f32.xlu0 %v3216
  %v4043 = vpop.xlane.xlu0 %4042
  %4044 = vadd.xlane.f32.xlu0 %v3221
  %v4045 = vpop.xlane.xlu0 %4044
  %4046 = vadd.xlane.f32.xlu0 %v3226
  %v4047 = vpop.xlane.xlu0 %4046
  %4048 = vadd.xlane.f32.xlu0 %v3231
  %v4049 = vpop.xlane.xlu0 %4048
  %4050 = vadd.xlane.f32.xlu0 %v3236
  %v4051 = vpop.xlane.xlu0 %4050
  %4052 = vadd.xlane.f32.xlu0 %v3241
  %v4053 = vpop.xlane.xlu0 %4052
  %4054 = vadd.xlane.f32.xlu0 %v3246
  %v4055 = vpop.xlane.xlu0 %4054
  %4056 = vadd.xlane.f32.xlu0 %v3251
  %v4057 = vpop.xlane.xlu0 %4056
  %4058 = vadd.xlane.f32.xlu0 %v3256
  %v4059 = vpop.xlane.xlu0 %4058
  %4060 = vadd.xlane.f32.xlu0 %v3261
  %v4061 = vpop.xlane.xlu0 %4060
  %4062 = vadd.xlane.f32.xlu0 %v3266
  %v4063 = vpop.xlane.xlu0 %4062
  %4064 = vadd.xlane.f32.xlu0 %v3271
  %v4065 = vpop.xlane.xlu0 %4064
  %4066 = vadd.xlane.f32.xlu0 %v3276
  %v4067 = vpop.xlane.xlu0 %4066
  %4068 = vadd.xlane.f32.xlu0 %v3281
  %v4069 = vpop.xlane.xlu0 %4068
  %4070 = vadd.xlane.f32.xlu0 %v3286
  %v4071 = vpop.xlane.xlu0 %4070
  %4072 = vadd.xlane.f32.xlu0 %v3291
  %v4073 = vpop.xlane.xlu0 %4072
  %4074 = vadd.xlane.f32.xlu0 %v3296
  %v4075 = vpop.xlane.xlu0 %4074
  %4076 = vadd.xlane.f32.xlu0 %v3301
  %v4077 = vpop.xlane.xlu0 %4076
  %4078 = vadd.xlane.f32.xlu0 %v3306
  %v4079 = vpop.xlane.xlu0 %4078
  %4080 = vadd.xlane.f32.xlu0 %v3311
  %v4081 = vpop.xlane.xlu0 %4080
  %4082 = vadd.xlane.f32.xlu0 %v3316
  %v4083 = vpop.xlane.xlu0 %4082
  %4084 = vadd.xlane.f32.xlu0 %v3321
  %v4085 = vpop.xlane.xlu0 %4084
  %4086 = vadd.xlane.f32.xlu0 %v3326
  %v4087 = vpop.xlane.xlu0 %4086
  %4088 = vadd.xlane.f32.xlu0 %v3331
  %v4089 = vpop.xlane.xlu0 %4088
  %4090 = vadd.xlane.f32.xlu0 %v3336
  %v4091 = vpop.xlane.xlu0 %4090
  %4092 = vadd.xlane.f32.xlu0 %v3341
  %v4093 = vpop.xlane.xlu0 %4092
  %4094 = vadd.xlane.f32.xlu0 %v3346
  %v4095 = vpop.xlane.xlu0 %4094
  %4096 = vadd.xlane.f32.xlu0 %v3351
  %v4097 = vpop.xlane.xlu0 %4096
  %4098 = vadd.xlane.f32.xlu0 %v3356
  %v4099 = vpop.xlane.xlu0 %4098
  %4100 = vadd.xlane.f32.xlu0 %v3361
  %v4101 = vpop.xlane.xlu0 %4100
  %4102 = vadd.xlane.f32.xlu0 %v3366
  %v4103 = vpop.xlane.xlu0 %4102
  %4104 = vadd.xlane.f32.xlu0 %v3371
  %v4105 = vpop.xlane.xlu0 %4104
  %4106 = vadd.xlane.f32.xlu0 %v3376
  %v4107 = vpop.xlane.xlu0 %4106
  %4108 = vadd.xlane.f32.xlu0 %v3381
  %v4109 = vpop.xlane.xlu0 %4108
  %4110 = vadd.xlane.f32.xlu0 %v3386
  %v4111 = vpop.xlane.xlu0 %4110
  %4112 = vadd.xlane.f32.xlu0 %v3391
  %v4113 = vpop.xlane.xlu0 %4112
  %4114 = vadd.xlane.f32.xlu0 %v3396
  %v4115 = vpop.xlane.xlu0 %4114
  %4116 = vadd.xlane.f32.xlu0 %v3401
  %v4117 = vpop.xlane.xlu0 %4116
  %4118 = vadd.xlane.f32.xlu0 %v3406
  %v4119 = vpop.xlane.xlu0 %4118
  %4120 = vadd.xlane.f32.xlu0 %v3411
  %v4121 = vpop.xlane.xlu0 %4120
  %4122 = vadd.xlane.f32.xlu0 %v3416
  %v4123 = vpop.xlane.xlu0 %4122
  %4124 = vadd.xlane.f32.xlu0 %v3421
  %v4125 = vpop.xlane.xlu0 %4124
  %4126 = vadd.xlane.f32.xlu0 %v3426
  %v4127 = vpop.xlane.xlu0 %4126
  %4128 = vadd.xlane.f32.xlu0 %v3431
  %v4129 = vpop.xlane.xlu0 %4128
  %4130 = vadd.xlane.f32.xlu0 %v3436
  %v4131 = vpop.xlane.xlu0 %4130
  %4132 = vadd.xlane.f32.xlu0 %v3441
  %v4133 = vpop.xlane.xlu0 %4132
  %4134 = vadd.xlane.f32.xlu0 %v3446
  %v4135 = vpop.xlane.xlu0 %4134
  %4136 = vadd.xlane.f32.xlu0 %v3451
  %v4137 = vpop.xlane.xlu0 %4136
  %4138 = vadd.xlane.f32.xlu0 %v3456
  %v4139 = vpop.xlane.xlu0 %4138
  %4140 = vadd.xlane.f32.xlu0 %v3461
  %v4141 = vpop.xlane.xlu0 %4140
  %4142 = vadd.xlane.f32.xlu0 %v3466
  %v4143 = vpop.xlane.xlu0 %4142
  %4144 = vadd.xlane.f32.xlu0 %v3471
  %v4145 = vpop.xlane.xlu0 %4144
  %4146 = vadd.xlane.f32.xlu0 %v3476
  %v4147 = vpop.xlane.xlu0 %4146
  %4148 = vadd.xlane.f32.xlu0 %v3481
  %v4149 = vpop.xlane.xlu0 %4148
  %4150 = vadd.xlane.f32.xlu0 %v3486
  %v4151 = vpop.xlane.xlu0 %4150
  %4152 = vadd.xlane.f32.xlu0 %v3491
  %v4153 = vpop.xlane.xlu0 %4152
  %4154 = vadd.xlane.f32.xlu0 %v3496
  %v4155 = vpop.xlane.xlu0 %4154
  %4156 = vadd.xlane.f32.xlu0 %v3501
  %v4157 = vpop.xlane.xlu0 %4156
  %4158 = vadd.xlane.f32.xlu0 %v3506
  %v4159 = vpop.xlane.xlu0 %4158
  %4160 = vadd.xlane.f32.xlu0 %v3511
  %v4161 = vpop.xlane.xlu0 %4160
  %4162 = vadd.xlane.f32.xlu0 %v3516
  %v4163 = vpop.xlane.xlu0 %4162
  %4164 = vadd.xlane.f32.xlu0 %v3521
  %v4165 = vpop.xlane.xlu0 %4164
  %4166 = vadd.xlane.f32.xlu0 %v3526
  %v4167 = vpop.xlane.xlu0 %4166
  %4168 = vadd.xlane.f32.xlu0 %v3531
  %v4169 = vpop.xlane.xlu0 %4168
  %4170 = vadd.xlane.f32.xlu0 %v3536
  %v4171 = vpop.xlane.xlu0 %4170
  %4172 = vadd.xlane.f32.xlu0 %v3541
  %v4173 = vpop.xlane.xlu0 %4172
  %4174 = vadd.xlane.f32.xlu0 %v3546
  %v4175 = vpop.xlane.xlu0 %4174
  %4176 = vadd.xlane.f32.xlu0 %v3551
  %v4177 = vpop.xlane.xlu0 %4176
  %4178 = vadd.xlane.f32.xlu0 %v3556
  %v4179 = vpop.xlane.xlu0 %4178
  %4180 = vadd.xlane.f32.xlu0 %v3561
  %v4181 = vpop.xlane.xlu0 %4180
  %4182 = vadd.xlane.f32.xlu0 %v3566
  %v4183 = vpop.xlane.xlu0 %4182
  %4184 = vadd.xlane.f32.xlu0 %v3571
  %v4185 = vpop.xlane.xlu0 %4184
  %4186 = vadd.xlane.f32.xlu0 %v3576
  %v4187 = vpop.xlane.xlu0 %4186
  %4188 = vadd.xlane.f32.xlu0 %v3581
  %v4189 = vpop.xlane.xlu0 %4188
  %4190 = vadd.xlane.f32.xlu0 %v3586
  %v4191 = vpop.xlane.xlu0 %4190
  %4192 = vadd.xlane.f32.xlu0 %v3591
  %v4193 = vpop.xlane.xlu0 %4192
  %4194 = vadd.xlane.f32.xlu0 %v3596
  %v4195 = vpop.xlane.xlu0 %4194
  %4196 = vadd.xlane.f32.xlu0 %v3601
  %v4197 = vpop.xlane.xlu0 %4196
  %4198 = vadd.xlane.f32.xlu0 %v3606
  %v4199 = vpop.xlane.xlu0 %4198
  %4200 = vadd.xlane.f32.xlu0 %v3611
  %v4201 = vpop.xlane.xlu0 %4200
  %4202 = vadd.xlane.f32.xlu0 %v3616
  %v4203 = vpop.xlane.xlu0 %4202
  %4204 = vadd.xlane.f32.xlu0 %v3621
  %v4205 = vpop.xlane.xlu0 %4204
  %4206 = vadd.xlane.f32.xlu0 %v3626
  %v4207 = vpop.xlane.xlu0 %4206
  %4208 = vadd.xlane.f32.xlu0 %v3631
  %v4209 = vpop.xlane.xlu0 %4208
  %4210 = vadd.xlane.f32.xlu0 %v3636
  %v4211 = vpop.xlane.xlu0 %4210
  %4212 = vadd.xlane.f32.xlu0 %v3641
  %v4213 = vpop.xlane.xlu0 %4212
  %4214 = vadd.xlane.f32.xlu0 %v3646
  %v4215 = vpop.xlane.xlu0 %4214
  %4216 = vadd.xlane.f32.xlu0 %v3651
  %v4217 = vpop.xlane.xlu0 %4216
  %4218 = vadd.xlane.f32.xlu0 %v3656
  %v4219 = vpop.xlane.xlu0 %4218
  %4220 = vadd.xlane.f32.xlu0 %v3661
  %v4221 = vpop.xlane.xlu0 %4220
  %4222 = vadd.xlane.f32.xlu0 %v3666
  %v4223 = vpop.xlane.xlu0 %4222
  %4224 = vadd.xlane.f32.xlu0 %v3671
  %v4225 = vpop.xlane.xlu0 %4224
  %4226 = vadd.xlane.f32.xlu0 %v3676
  %v4227 = vpop.xlane.xlu0 %4226
  %4228 = vadd.xlane.f32.xlu0 %v3681
  %v4229 = vpop.xlane.xlu0 %4228
  %4230 = vadd.xlane.f32.xlu0 %v3686
  %v4231 = vpop.xlane.xlu0 %4230
  %4232 = vadd.xlane.f32.xlu0 %v3691
  %v4233 = vpop.xlane.xlu0 %4232
  %4234 = vadd.xlane.f32.xlu0 %v3696
  %v4235 = vpop.xlane.xlu0 %4234
  %4236 = vadd.xlane.f32.xlu0 %v3701
  %v4237 = vpop.xlane.xlu0 %4236
  %4238 = vadd.xlane.f32.xlu0 %v3706
  %v4239 = vpop.xlane.xlu0 %4238
  %4240 = vadd.xlane.f32.xlu0 %v3711
  %v4241 = vpop.xlane.xlu0 %4240
  %4242 = vadd.xlane.f32.xlu0 %v3716
  %v4243 = vpop.xlane.xlu0 %4242
  %4244 = vadd.xlane.f32.xlu0 %v3721
  %v4245 = vpop.xlane.xlu0 %4244
  %4246 = vadd.xlane.f32.xlu0 %v3726
  %v4247 = vpop.xlane.xlu0 %4246
  %4248 = vadd.xlane.f32.xlu0 %v3731
  %v4249 = vpop.xlane.xlu0 %4248
  %4250 = vadd.xlane.f32.xlu0 %v3736
  %v4251 = vpop.xlane.xlu0 %4250
  %4252 = vadd.xlane.f32.xlu0 %v3741
  %v4253 = vpop.xlane.xlu0 %4252
  %4254 = vadd.xlane.f32.xlu0 %v3746
  %v4255 = vpop.xlane.xlu0 %4254
  %4256 = vadd.xlane.f32.xlu0 %v3751
  %v4257 = vpop.xlane.xlu0 %4256
  %4258 = vadd.xlane.f32.xlu0 %v3756
  %v4259 = vpop.xlane.xlu0 %4258
  %4260 = vadd.xlane.f32.xlu0 %v3761
  %v4261 = vpop.xlane.xlu0 %4260
  %4262 = vadd.xlane.f32.xlu0 %v3766
  %v4263 = vpop.xlane.xlu0 %4262
  %4264 = vadd.xlane.f32.xlu0 %v3771
  %v4265 = vpop.xlane.xlu0 %4264
  %4266 = vadd.xlane.f32.xlu0 %v3776
  %v4267 = vpop.xlane.xlu0 %4266
  %4268 = vadd.xlane.f32.xlu0 %v3781
  %v4269 = vpop.xlane.xlu0 %4268
  %4270 = vadd.xlane.f32.xlu0 %v3786
  %v4271 = vpop.xlane.xlu0 %4270
  %4272 = vadd.xlane.f32.xlu0 %v3791
  %v4273 = vpop.xlane.xlu0 %4272
  %4274 = vadd.xlane.f32.xlu0 %v3796
  %v4275 = vpop.xlane.xlu0 %4274
  %4276 = vadd.xlane.f32.xlu0 %v3801
  %v4277 = vpop.xlane.xlu0 %4276
  %4278 = vadd.xlane.f32.xlu0 %v3806
  %v4279 = vpop.xlane.xlu0 %4278
  %4280 = vadd.xlane.f32.xlu0 %v3811
  %v4281 = vpop.xlane.xlu0 %4280
  %4282 = vadd.xlane.f32.xlu0 %v3816
  %v4283 = vpop.xlane.xlu0 %4282
  %4284 = vadd.xlane.f32.xlu0 %v3821
  %v4285 = vpop.xlane.xlu0 %4284
  %4286 = vadd.xlane.f32.xlu0 %v3826
  %v4287 = vpop.xlane.xlu0 %4286
  %4288 = vadd.xlane.f32.xlu0 %v3831
  %v4289 = vpop.xlane.xlu0 %4288
  %v4290 = vmul.f32 %v3835, 0.020408163
  %v4291 = vmul.f32 %v3837, 0.020408163
  %v4292 = vmul.f32 %v3839, 0.020408163
  %v4293 = vmul.f32 %v3841, 0.020408163
  %v4294 = vmul.f32 %v3843, 0.020408163
  %v4295 = vmul.f32 %v3845, 0.020408163
  %v4296 = vmul.f32 %v3847, 0.020408163
  %v4297 = vmul.f32 %v3849, 0.020408163
  %v4298 = vmul.f32 %v3851, 0.020408163
  %v4299 = vmul.f32 %v3853, 0.020408163
  %v4300 = vmul.f32 %v3855, 0.020408163
  %v4301 = vmul.f32 %v3857, 0.020408163
  %v4302 = vmul.f32 %v3859, 0.020408163
  %v4303 = vmul.f32 %v3861, 0.020408163
  %v4304 = vmul.f32 %v3863, 0.020408163
  %v4305 = vmul.f32 %v3865, 0.020408163
  %v4306 = vmul.f32 %v3867, 0.020408163
  %v4307 = vmul.f32 %v3869, 0.020408163
  %v4308 = vmul.f32 %v3871, 0.020408163
  %v4309 = vmul.f32 %v3873, 0.020408163
  %v4310 = vmul.f32 %v3875, 0.020408163
  %v4311 = vmul.f32 %v3877, 0.020408163
  %v4312 = vmul.f32 %v3879, 0.020408163
  %v4313 = vmul.f32 %v3881, 0.020408163
  %v4314 = vmul.f32 %v3883, 0.020408163
  %v4315 = vmul.f32 %v3885, 0.020408163
  %v4316 = vmul.f32 %v3887, 0.020408163
  %v4317 = vmul.f32 %v3889, 0.020408163
  %v4318 = vmul.f32 %v3891, 0.020408163
  %v4319 = vmul.f32 %v3893, 0.020408163
  %v4320 = vmul.f32 %v3895, 0.020408163
  %v4321 = vmul.f32 %v3897, 0.020408163
  %v4322 = vmul.f32 %v3899, 0.020408163
  %v4323 = vmul.f32 %v3901, 0.020408163
  %v4324 = vmul.f32 %v3903, 0.020408163
  %v4325 = vmul.f32 %v3905, 0.020408163
  %v4326 = vmul.f32 %v3907, 0.020408163
  %v4327 = vmul.f32 %v3909, 0.020408163
  %v4328 = vmul.f32 %v3911, 0.020408163
  %v4329 = vmul.f32 %v3913, 0.020408163
  %v4330 = vmul.f32 %v3915, 0.020408163
  %v4331 = vmul.f32 %v3917, 0.020408163
  %v4332 = vmul.f32 %v3919, 0.020408163
  %v4333 = vmul.f32 %v3921, 0.020408163
  %v4334 = vmul.f32 %v3923, 0.020408163
  %v4335 = vmul.f32 %v3925, 0.020408163
  %v4336 = vmul.f32 %v3927, 0.020408163
  %v4337 = vmul.f32 %v3929, 0.020408163
  %v4338 = vmul.f32 %v3931, 0.020408163
  %v4339 = vmul.f32 %v3933, 0.020408163
  %v4340 = vmul.f32 %v3935, 0.020408163
  %v4341 = vmul.f32 %v3937, 0.020408163
  %v4342 = vmul.f32 %v3939, 0.020408163
  %v4343 = vmul.f32 %v3941, 0.020408163
  %v4344 = vmul.f32 %v3943, 0.020408163
  %v4345 = vmul.f32 %v3945, 0.020408163
  %v4346 = vmul.f32 %v3947, 0.020408163
  %v4347 = vmul.f32 %v3949, 0.020408163
  %v4348 = vmul.f32 %v3951, 0.020408163
  %v4349 = vmul.f32 %v3953, 0.020408163
  %v4350 = vmul.f32 %v3955, 0.020408163
  %v4351 = vmul.f32 %v3957, 0.020408163
  %v4352 = vmul.f32 %v3959, 0.020408163
  %v4353 = vmul.f32 %v3961, 0.020408163
  %v4354 = vmul.f32 %v3963, 0.020408163
  %v4355 = vmul.f32 %v3965, 0.020408163
  %v4356 = vmul.f32 %v3967, 0.020408163
  %v4357 = vmul.f32 %v3969, 0.020408163
  %v4358 = vmul.f32 %v3971, 0.020408163
  %v4359 = vmul.f32 %v3973, 0.020408163
  %v4360 = vmul.f32 %v3975, 0.020408163
  %v4361 = vmul.f32 %v3977, 0.020408163
  %v4362 = vmul.f32 %v3979, 0.020408163
  %v4363 = vmul.f32 %v3981, 0.020408163
  %v4364 = vmul.f32 %v3983, 0.020408163
  %v4365 = vmul.f32 %v3985, 0.020408163
  %v4366 = vmul.f32 %v3987, 0.020408163
  %v4367 = vmul.f32 %v3989, 0.020408163
  %v4368 = vmul.f32 %v3991, 0.020408163
  %v4369 = vmul.f32 %v3993, 0.020408163
  %v4370 = vmul.f32 %v3995, 0.020408163
  %v4371 = vmul.f32 %v3997, 0.020408163
  %v4372 = vmul.f32 %v3999, 0.020408163
  %v4373 = vmul.f32 %v4001, 0.020408163
  %v4374 = vmul.f32 %v4003, 0.020408163
  %v4375 = vmul.f32 %v4005, 0.020408163
  %v4376 = vmul.f32 %v4007, 0.020408163
  %v4377 = vmul.f32 %v4009, 0.020408163
  %v4378 = vmul.f32 %v4011, 0.020408163
  %v4379 = vmul.f32 %v4013, 0.020408163
  %v4380 = vmul.f32 %v4015, 0.020408163
  %v4381 = vmul.f32 %v4017, 0.020408163
  %v4382 = vmul.f32 %v4019, 0.020408163
  %v4383 = vmul.f32 %v4021, 0.020408163
  %v4384 = vmul.f32 %v4023, 0.020408163
  %v4385 = vmul.f32 %v4025, 0.020408163
  %v4386 = vmul.f32 %v4027, 0.020408163
  %v4387 = vmul.f32 %v4029, 0.020408163
  %v4388 = vmul.f32 %v4031, 0.020408163
  %v4389 = vmul.f32 %v4033, 0.020408163
  %v4390 = vmul.f32 %v4035, 0.020408163
  %v4391 = vmul.f32 %v4037, 0.020408163
  %v4392 = vmul.f32 %v4039, 0.020408163
  %v4393 = vmul.f32 %v4041, 0.020408163
  %v4394 = vmul.f32 %v4043, 0.020408163
  %v4395 = vmul.f32 %v4045, 0.020408163
  %v4396 = vmul.f32 %v4047, 0.020408163
  %v4397 = vmul.f32 %v4049, 0.020408163
  %v4398 = vmul.f32 %v4051, 0.020408163
  %v4399 = vmul.f32 %v4053, 0.020408163
  %v4400 = vmul.f32 %v4055, 0.020408163
  %v4401 = vmul.f32 %v4057, 0.020408163
  %v4402 = vmul.f32 %v4059, 0.020408163
  %v4403 = vmul.f32 %v4061, 0.020408163
  %v4404 = vmul.f32 %v4063, 0.020408163
  %v4405 = vmul.f32 %v4065, 0.020408163
  %v4406 = vmul.f32 %v4067, 0.020408163
  %v4407 = vmul.f32 %v4069, 0.020408163
  %v4408 = vmul.f32 %v4071, 0.020408163
  %v4409 = vmul.f32 %v4073, 0.020408163
  %v4410 = vmul.f32 %v4075, 0.020408163
  %v4411 = vmul.f32 %v4077, 0.020408163
  %v4412 = vmul.f32 %v4079, 0.020408163
  %v4413 = vmul.f32 %v4081, 0.020408163
  %v4414 = vmul.f32 %v4083, 0.020408163
  %v4415 = vmul.f32 %v4085, 0.020408163
  %v4416 = vmul.f32 %v4087, 0.020408163
  %v4417 = vmul.f32 %v4089, 0.020408163
  %v4418 = vmul.f32 %v4091, 0.020408163
  %v4419 = vmul.f32 %v4093, 0.020408163
  %v4420 = vmul.f32 %v4095, 0.020408163
  %v4421 = vmul.f32 %v4097, 0.020408163
  %v4422 = vmul.f32 %v4099, 0.020408163
  %v4423 = vmul.f32 %v4101, 0.020408163
  %v4424 = vmul.f32 %v4103, 0.020408163
  %v4425 = vmul.f32 %v4105, 0.020408163
  %v4426 = vmul.f32 %v4107, 0.020408163
  %v4427 = vmul.f32 %v4109, 0.020408163
  %v4428 = vmul.f32 %v4111, 0.020408163
  %v4429 = vmul.f32 %v4113, 0.020408163
  %v4430 = vmul.f32 %v4115, 0.020408163
  %v4431 = vmul.f32 %v4117, 0.020408163
  %v4432 = vmul.f32 %v4119, 0.020408163
  %v4433 = vmul.f32 %v4121, 0.020408163
  %v4434 = vmul.f32 %v4123, 0.020408163
  %v4435 = vmul.f32 %v4125, 0.020408163
  %v4436 = vmul.f32 %v4127, 0.020408163
  %v4437 = vmul.f32 %v4129, 0.020408163
  %v4438 = vmul.f32 %v4131, 0.020408163
  %v4439 = vmul.f32 %v4133, 0.020408163
  %v4440 = vmul.f32 %v4135, 0.020408163
  %v4441 = vmul.f32 %v4137, 0.020408163
  %v4442 = vmul.f32 %v4139, 0.020408163
  %v4443 = vmul.f32 %v4141, 0.020408163
  %v4444 = vmul.f32 %v4143, 0.020408163
  %v4445 = vmul.f32 %v4145, 0.020408163
  %v4446 = vmul.f32 %v4147, 0.020408163
  %v4447 = vmul.f32 %v4149, 0.020408163
  %v4448 = vmul.f32 %v4151, 0.020408163
  %v4449 = vmul.f32 %v4153, 0.020408163
  %v4450 = vmul.f32 %v4155, 0.020408163
  %v4451 = vmul.f32 %v4157, 0.020408163
  %v4452 = vmul.f32 %v4159, 0.020408163
  %v4453 = vmul.f32 %v4161, 0.020408163
  %v4454 = vmul.f32 %v4163, 0.020408163
  %v4455 = vmul.f32 %v4165, 0.020408163
  %v4456 = vmul.f32 %v4167, 0.020408163
  %v4457 = vmul.f32 %v4169, 0.020408163
  %v4458 = vmul.f32 %v4171, 0.020408163
  %v4459 = vmul.f32 %v4173, 0.020408163
  %v4460 = vmul.f32 %v4175, 0.020408163
  %v4461 = vmul.f32 %v4177, 0.020408163
  %v4462 = vmul.f32 %v4179, 0.020408163
  %v4463 = vmul.f32 %v4181, 0.020408163
  %v4464 = vmul.f32 %v4183, 0.020408163
  %v4465 = vmul.f32 %v4185, 0.020408163
  %v4466 = vmul.f32 %v4187, 0.020408163
  %v4467 = vmul.f32 %v4189, 0.020408163
  %v4468 = vmul.f32 %v4191, 0.020408163
  %v4469 = vmul.f32 %v4193, 0.020408163
  %v4470 = vmul.f32 %v4195, 0.020408163
  %v4471 = vmul.f32 %v4197, 0.020408163
  %v4472 = vmul.f32 %v4199, 0.020408163
  %v4473 = vmul.f32 %v4201, 0.020408163
  %v4474 = vmul.f32 %v4203, 0.020408163
  %v4475 = vmul.f32 %v4205, 0.020408163
  %v4476 = vmul.f32 %v4207, 0.020408163
  %v4477 = vmul.f32 %v4209, 0.020408163
  %v4478 = vmul.f32 %v4211, 0.020408163
  %v4479 = vmul.f32 %v4213, 0.020408163
  %v4480 = vmul.f32 %v4215, 0.020408163
  %v4481 = vmul.f32 %v4217, 0.020408163
  %v4482 = vmul.f32 %v4219, 0.020408163
  %v4483 = vmul.f32 %v4221, 0.020408163
  %v4484 = vmul.f32 %v4223, 0.020408163
  %v4485 = vmul.f32 %v4225, 0.020408163
  %v4486 = vmul.f32 %v4227, 0.020408163
  %v4487 = vmul.f32 %v4229, 0.020408163
  %v4488 = vmul.f32 %v4231, 0.020408163
  %v4489 = vmul.f32 %v4233, 0.020408163
  %v4490 = vmul.f32 %v4235, 0.020408163
  %v4491 = vmul.f32 %v4237, 0.020408163
  %v4492 = vmul.f32 %v4239, 0.020408163
  %v4493 = vmul.f32 %v4241, 0.020408163
  %v4494 = vmul.f32 %v4243, 0.020408163
  %v4495 = vmul.f32 %v4245, 0.020408163
  %v4496 = vmul.f32 %v4247, 0.020408163
  %v4497 = vmul.f32 %v4249, 0.020408163
  %v4498 = vmul.f32 %v4251, 0.020408163
  %v4499 = vmul.f32 %v4253, 0.020408163
  %v4500 = vmul.f32 %v4255, 0.020408163
  %v4501 = vmul.f32 %v4257, 0.020408163
  %v4502 = vmul.f32 %v4259, 0.020408163
  %v4503 = vmul.f32 %v4261, 0.020408163
  %v4504 = vmul.f32 %v4263, 0.020408163
  %v4505 = vmul.f32 %v4265, 0.020408163
  %v4506 = vmul.f32 %v4267, 0.020408163
  %v4507 = vmul.f32 %v4269, 0.020408163
  %v4508 = vmul.f32 %v4271, 0.020408163
  %v4509 = vmul.f32 %v4273, 0.020408163
  %v4510 = vmul.f32 %v4275, 0.020408163
  %v4511 = vmul.f32 %v4277, 0.020408163
  %v4512 = vmul.f32 %v4279, 0.020408163
  %v4513 = vmul.f32 %v4281, 0.020408163
  %v4514 = vmul.f32 %v4283, 0.020408163
  %v4515 = vmul.f32 %v4285, 0.020408163
  %v4516 = vmul.f32 %v4287, 0.020408163
  %v4517 = vmul.f32 %v4289, 0.020408163
  %v4518 = vmul.f32 %v2696, %v2696
  %v4519 = vmul.f32 %v2701, %v2701
  %v4520 = vmul.f32 %v2706, %v2706
  %v4521 = vmul.f32 %v2711, %v2711
  %v4522 = vmul.f32 %v2716, %v2716
  %v4523 = vmul.f32 %v2721, %v2721
  %v4524 = vmul.f32 %v2726, %v2726
  %v4525 = vmul.f32 %v2731, %v2731
  %v4526 = vmul.f32 %v2736, %v2736
  %v4527 = vmul.f32 %v2741, %v2741
  %v4528 = vmul.f32 %v2746, %v2746
  %v4529 = vmul.f32 %v2751, %v2751
  %v4530 = vmul.f32 %v2756, %v2756
  %v4531 = vmul.f32 %v2761, %v2761
  %v4532 = vmul.f32 %v2766, %v2766
  %v4533 = vmul.f32 %v2771, %v2771
  %v4534 = vmul.f32 %v2776, %v2776
  %v4535 = vmul.f32 %v2781, %v2781
  %v4536 = vmul.f32 %v2786, %v2786
  %v4537 = vmul.f32 %v2791, %v2791
  %v4538 = vmul.f32 %v2796, %v2796
  %v4539 = vmul.f32 %v2801, %v2801
  %v4540 = vmul.f32 %v2806, %v2806
  %v4541 = vmul.f32 %v2811, %v2811
  %v4542 = vmul.f32 %v2816, %v2816
  %v4543 = vmul.f32 %v2821, %v2821
  %v4544 = vmul.f32 %v2826, %v2826
  %v4545 = vmul.f32 %v2831, %v2831
  %v4546 = vmul.f32 %v2836, %v2836
  %v4547 = vmul.f32 %v2841, %v2841
  %v4548 = vmul.f32 %v2846, %v2846
  %v4549 = vmul.f32 %v2851, %v2851
  %v4550 = vmul.f32 %v2856, %v2856
  %v4551 = vmul.f32 %v2861, %v2861
  %v4552 = vmul.f32 %v2866, %v2866
  %v4553 = vmul.f32 %v2871, %v2871
  %v4554 = vmul.f32 %v2876, %v2876
  %v4555 = vmul.f32 %v2881, %v2881
  %v4556 = vmul.f32 %v2886, %v2886
  %v4557 = vmul.f32 %v2891, %v2891
  %v4558 = vmul.f32 %v2896, %v2896
  %v4559 = vmul.f32 %v2901, %v2901
  %v4560 = vmul.f32 %v2906, %v2906
  %v4561 = vmul.f32 %v2911, %v2911
  %v4562 = vmul.f32 %v2916, %v2916
  %v4563 = vmul.f32 %v2921, %v2921
  %v4564 = vmul.f32 %v2926, %v2926
  %v4565 = vmul.f32 %v2931, %v2931
  %v4566 = vmul.f32 %v2936, %v2936
  %v4567 = vmul.f32 %v2941, %v2941
  %v4568 = vmul.f32 %v2946, %v2946
  %v4569 = vmul.f32 %v2951, %v2951
  %v4570 = vmul.f32 %v2956, %v2956
  %v4571 = vmul.f32 %v2961, %v2961
  %v4572 = vmul.f32 %v2966, %v2966
  %v4573 = vmul.f32 %v2971, %v2971
  %v4574 = vmul.f32 %v2976, %v2976
  %v4575 = vmul.f32 %v2981, %v2981
  %v4576 = vmul.f32 %v2986, %v2986
  %v4577 = vmul.f32 %v2991, %v2991
  %v4578 = vmul.f32 %v2996, %v2996
  %v4579 = vmul.f32 %v3001, %v3001
  %v4580 = vmul.f32 %v3006, %v3006
  %v4581 = vmul.f32 %v3011, %v3011
  %v4582 = vmul.f32 %v3016, %v3016
  %v4583 = vmul.f32 %v3021, %v3021
  %v4584 = vmul.f32 %v3026, %v3026
  %v4585 = vmul.f32 %v3031, %v3031
  %v4586 = vmul.f32 %v3036, %v3036
  %v4587 = vmul.f32 %v3041, %v3041
  %v4588 = vmul.f32 %v3046, %v3046
  %v4589 = vmul.f32 %v3051, %v3051
  %v4590 = vmul.f32 %v3056, %v3056
  %v4591 = vmul.f32 %v3061, %v3061
  %v4592 = vmul.f32 %v3066, %v3066
  %v4593 = vmul.f32 %v3071, %v3071
  %v4594 = vmul.f32 %v3076, %v3076
  %v4595 = vmul.f32 %v3081, %v3081
  %v4596 = vmul.f32 %v3086, %v3086
  %v4597 = vmul.f32 %v3091, %v3091
  %v4598 = vmul.f32 %v3096, %v3096
  %v4599 = vmul.f32 %v3101, %v3101
  %v4600 = vmul.f32 %v3106, %v3106
  %v4601 = vmul.f32 %v3111, %v3111
  %v4602 = vmul.f32 %v3116, %v3116
  %v4603 = vmul.f32 %v3121, %v3121
  %v4604 = vmul.f32 %v3126, %v3126
  %v4605 = vmul.f32 %v3131, %v3131
  %v4606 = vmul.f32 %v3136, %v3136
  %v4607 = vmul.f32 %v3141, %v3141
  %v4608 = vmul.f32 %v3146, %v3146
  %v4609 = vmul.f32 %v3151, %v3151
  %v4610 = vmul.f32 %v3156, %v3156
  %v4611 = vmul.f32 %v3161, %v3161
  %v4612 = vmul.f32 %v3166, %v3166
  %v4613 = vmul.f32 %v3171, %v3171
  %v4614 = vmul.f32 %v3176, %v3176
  %v4615 = vmul.f32 %v3181, %v3181
  %v4616 = vmul.f32 %v3186, %v3186
  %v4617 = vmul.f32 %v3191, %v3191
  %v4618 = vmul.f32 %v3196, %v3196
  %v4619 = vmul.f32 %v3201, %v3201
  %v4620 = vmul.f32 %v3206, %v3206
  %v4621 = vmul.f32 %v3211, %v3211
  %v4622 = vmul.f32 %v3216, %v3216
  %v4623 = vmul.f32 %v3221, %v3221
  %v4624 = vmul.f32 %v3226, %v3226
  %v4625 = vmul.f32 %v3231, %v3231
  %v4626 = vmul.f32 %v3236, %v3236
  %v4627 = vmul.f32 %v3241, %v3241
  %v4628 = vmul.f32 %v3246, %v3246
  %v4629 = vmul.f32 %v3251, %v3251
  %v4630 = vmul.f32 %v3256, %v3256
  %v4631 = vmul.f32 %v3261, %v3261
  %v4632 = vmul.f32 %v3266, %v3266
  %v4633 = vmul.f32 %v3271, %v3271
  %v4634 = vmul.f32 %v3276, %v3276
  %v4635 = vmul.f32 %v3281, %v3281
  %v4636 = vmul.f32 %v3286, %v3286
  %v4637 = vmul.f32 %v3291, %v3291
  %v4638 = vmul.f32 %v3296, %v3296
  %v4639 = vmul.f32 %v3301, %v3301
  %v4640 = vmul.f32 %v3306, %v3306
  %v4641 = vmul.f32 %v3311, %v3311
  %v4642 = vmul.f32 %v3316, %v3316
  %v4643 = vmul.f32 %v3321, %v3321
  %v4644 = vmul.f32 %v3326, %v3326
  %v4645 = vmul.f32 %v3331, %v3331
  %v4646 = vmul.f32 %v3336, %v3336
  %v4647 = vmul.f32 %v3341, %v3341
  %v4648 = vmul.f32 %v3346, %v3346
  %v4649 = vmul.f32 %v3351, %v3351
  %v4650 = vmul.f32 %v3356, %v3356
  %v4651 = vmul.f32 %v3361, %v3361
  %v4652 = vmul.f32 %v3366, %v3366
  %v4653 = vmul.f32 %v3371, %v3371
  %v4654 = vmul.f32 %v3376, %v3376
  %v4655 = vmul.f32 %v3381, %v3381
  %v4656 = vmul.f32 %v3386, %v3386
  %v4657 = vmul.f32 %v3391, %v3391
  %v4658 = vmul.f32 %v3396, %v3396
  %v4659 = vmul.f32 %v3401, %v3401
  %v4660 = vmul.f32 %v3406, %v3406
  %v4661 = vmul.f32 %v3411, %v3411
  %v4662 = vmul.f32 %v3416, %v3416
  %v4663 = vmul.f32 %v3421, %v3421
  %v4664 = vmul.f32 %v3426, %v3426
  %v4665 = vmul.f32 %v3431, %v3431
  %v4666 = vmul.f32 %v3436, %v3436
  %v4667 = vmul.f32 %v3441, %v3441
  %v4668 = vmul.f32 %v3446, %v3446
  %v4669 = vmul.f32 %v3451, %v3451
  %v4670 = vmul.f32 %v3456, %v3456
  %v4671 = vmul.f32 %v3461, %v3461
  %v4672 = vmul.f32 %v3466, %v3466
  %v4673 = vmul.f32 %v3471, %v3471
  %v4674 = vmul.f32 %v3476, %v3476
  %v4675 = vmul.f32 %v3481, %v3481
  %v4676 = vmul.f32 %v3486, %v3486
  %v4677 = vmul.f32 %v3491, %v3491
  %v4678 = vmul.f32 %v3496, %v3496
  %v4679 = vmul.f32 %v3501, %v3501
  %v4680 = vmul.f32 %v3506, %v3506
  %v4681 = vmul.f32 %v3511, %v3511
  %v4682 = vmul.f32 %v3516, %v3516
  %v4683 = vmul.f32 %v3521, %v3521
  %v4684 = vmul.f32 %v3526, %v3526
  %v4685 = vmul.f32 %v3531, %v3531
  %v4686 = vmul.f32 %v3536, %v3536
  %v4687 = vmul.f32 %v3541, %v3541
  %v4688 = vmul.f32 %v3546, %v3546
  %v4689 = vmul.f32 %v3551, %v3551
  %v4690 = vmul.f32 %v3556, %v3556
  %v4691 = vmul.f32 %v3561, %v3561
  %v4692 = vmul.f32 %v3566, %v3566
  %v4693 = vmul.f32 %v3571, %v3571
  %v4694 = vmul.f32 %v3576, %v3576
  %v4695 = vmul.f32 %v3581, %v3581
  %v4696 = vmul.f32 %v3586, %v3586
  %v4697 = vmul.f32 %v3591, %v3591
  %v4698 = vmul.f32 %v3596, %v3596
  %v4699 = vmul.f32 %v3601, %v3601
  %v4700 = vmul.f32 %v3606, %v3606
  %v4701 = vmul.f32 %v3611, %v3611
  %v4702 = vmul.f32 %v3616, %v3616
  %v4703 = vmul.f32 %v3621, %v3621
  %v4704 = vmul.f32 %v3626, %v3626
  %v4705 = vmul.f32 %v3631, %v3631
  %v4706 = vmul.f32 %v3636, %v3636
  %v4707 = vmul.f32 %v3641, %v3641
  %v4708 = vmul.f32 %v3646, %v3646
  %v4709 = vmul.f32 %v3651, %v3651
  %v4710 = vmul.f32 %v3656, %v3656
  %v4711 = vmul.f32 %v3661, %v3661
  %v4712 = vmul.f32 %v3666, %v3666
  %v4713 = vmul.f32 %v3671, %v3671
  %v4714 = vmul.f32 %v3676, %v3676
  %v4715 = vmul.f32 %v3681, %v3681
  %v4716 = vmul.f32 %v3686, %v3686
  %v4717 = vmul.f32 %v3691, %v3691
  %v4718 = vmul.f32 %v3696, %v3696
  %v4719 = vmul.f32 %v3701, %v3701
  %v4720 = vmul.f32 %v3706, %v3706
  %v4721 = vmul.f32 %v3711, %v3711
  %v4722 = vmul.f32 %v3716, %v3716
  %v4723 = vmul.f32 %v3721, %v3721
  %v4724 = vmul.f32 %v3726, %v3726
  %v4725 = vmul.f32 %v3731, %v3731
  %v4726 = vmul.f32 %v3736, %v3736
  %v4727 = vmul.f32 %v3741, %v3741
  %v4728 = vmul.f32 %v3746, %v3746
  %v4729 = vmul.f32 %v3751, %v3751
  %v4730 = vmul.f32 %v3756, %v3756
  %v4731 = vmul.f32 %v3761, %v3761
  %v4732 = vmul.f32 %v3766, %v3766
  %v4733 = vmul.f32 %v3771, %v3771
  %v4734 = vmul.f32 %v3776, %v3776
  %v4735 = vmul.f32 %v3781, %v3781
  %v4736 = vmul.f32 %v3786, %v3786
  %v4737 = vmul.f32 %v3791, %v3791
  %v4738 = vmul.f32 %v3796, %v3796
  %v4739 = vmul.f32 %v3801, %v3801
  %v4740 = vmul.f32 %v3806, %v3806
  %v4741 = vmul.f32 %v3811, %v3811
  %v4742 = vmul.f32 %v3816, %v3816
  %v4743 = vmul.f32 %v3821, %v3821
  %v4744 = vmul.f32 %v3826, %v3826
  %v4745 = vmul.f32 %v3831, %v3831
  %4746 = vadd.xlane.f32.xlu0 %v4518
  %v4747 = vpop.xlane.xlu0 %4746
  %4748 = vadd.xlane.f32.xlu0 %v4519
  %v4749 = vpop.xlane.xlu0 %4748
  %4750 = vadd.xlane.f32.xlu0 %v4520
  %v4751 = vpop.xlane.xlu0 %4750
  %4752 = vadd.xlane.f32.xlu0 %v4521
  %v4753 = vpop.xlane.xlu0 %4752
  %4754 = vadd.xlane.f32.xlu0 %v4522
  %v4755 = vpop.xlane.xlu0 %4754
  %4756 = vadd.xlane.f32.xlu0 %v4523
  %v4757 = vpop.xlane.xlu0 %4756
  %4758 = vadd.xlane.f32.xlu0 %v4524
  %v4759 = vpop.xlane.xlu0 %4758
  %4760 = vadd.xlane.f32.xlu0 %v4525
  %v4761 = vpop.xlane.xlu0 %4760
  %4762 = vadd.xlane.f32.xlu0 %v4526
  %v4763 = vpop.xlane.xlu0 %4762
  %4764 = vadd.xlane.f32.xlu0 %v4527
  %v4765 = vpop.xlane.xlu0 %4764
  %4766 = vadd.xlane.f32.xlu0 %v4528
  %v4767 = vpop.xlane.xlu0 %4766
  %4768 = vadd.xlane.f32.xlu0 %v4529
  %v4769 = vpop.xlane.xlu0 %4768
  %4770 = vadd.xlane.f32.xlu0 %v4530
  %v4771 = vpop.xlane.xlu0 %4770
  %4772 = vadd.xlane.f32.xlu0 %v4531
  %v4773 = vpop.xlane.xlu0 %4772
  %4774 = vadd.xlane.f32.xlu0 %v4532
  %v4775 = vpop.xlane.xlu0 %4774
  %4776 = vadd.xlane.f32.xlu0 %v4533
  %v4777 = vpop.xlane.xlu0 %4776
  %4778 = vadd.xlane.f32.xlu0 %v4534
  %v4779 = vpop.xlane.xlu0 %4778
  %4780 = vadd.xlane.f32.xlu0 %v4535
  %v4781 = vpop.xlane.xlu0 %4780
  %4782 = vadd.xlane.f32.xlu0 %v4536
  %v4783 = vpop.xlane.xlu0 %4782
  %4784 = vadd.xlane.f32.xlu0 %v4537
  %v4785 = vpop.xlane.xlu0 %4784
  %4786 = vadd.xlane.f32.xlu0 %v4538
  %v4787 = vpop.xlane.xlu0 %4786
  %4788 = vadd.xlane.f32.xlu0 %v4539
  %v4789 = vpop.xlane.xlu0 %4788
  %4790 = vadd.xlane.f32.xlu0 %v4540
  %v4791 = vpop.xlane.xlu0 %4790
  %4792 = vadd.xlane.f32.xlu0 %v4541
  %v4793 = vpop.xlane.xlu0 %4792
  %4794 = vadd.xlane.f32.xlu0 %v4542
  %v4795 = vpop.xlane.xlu0 %4794
  %4796 = vadd.xlane.f32.xlu0 %v4543
  %v4797 = vpop.xlane.xlu0 %4796
  %4798 = vadd.xlane.f32.xlu0 %v4544
  %v4799 = vpop.xlane.xlu0 %4798
  %4800 = vadd.xlane.f32.xlu0 %v4545
  %v4801 = vpop.xlane.xlu0 %4800
  %4802 = vadd.xlane.f32.xlu0 %v4546
  %v4803 = vpop.xlane.xlu0 %4802
  %4804 = vadd.xlane.f32.xlu0 %v4547
  %v4805 = vpop.xlane.xlu0 %4804
  %4806 = vadd.xlane.f32.xlu0 %v4548
  %v4807 = vpop.xlane.xlu0 %4806
  %4808 = vadd.xlane.f32.xlu0 %v4549
  %v4809 = vpop.xlane.xlu0 %4808
  %4810 = vadd.xlane.f32.xlu0 %v4550
  %v4811 = vpop.xlane.xlu0 %4810
  %4812 = vadd.xlane.f32.xlu0 %v4551
  %v4813 = vpop.xlane.xlu0 %4812
  %4814 = vadd.xlane.f32.xlu0 %v4552
  %v4815 = vpop.xlane.xlu0 %4814
  %4816 = vadd.xlane.f32.xlu0 %v4553
  %v4817 = vpop.xlane.xlu0 %4816
  %4818 = vadd.xlane.f32.xlu0 %v4554
  %v4819 = vpop.xlane.xlu0 %4818
  %4820 = vadd.xlane.f32.xlu0 %v4555
  %v4821 = vpop.xlane.xlu0 %4820
  %4822 = vadd.xlane.f32.xlu0 %v4556
  %v4823 = vpop.xlane.xlu0 %4822
  %4824 = vadd.xlane.f32.xlu0 %v4557
  %v4825 = vpop.xlane.xlu0 %4824
  %4826 = vadd.xlane.f32.xlu0 %v4558
  %v4827 = vpop.xlane.xlu0 %4826
  %4828 = vadd.xlane.f32.xlu0 %v4559
  %v4829 = vpop.xlane.xlu0 %4828
  %4830 = vadd.xlane.f32.xlu0 %v4560
  %v4831 = vpop.xlane.xlu0 %4830
  %4832 = vadd.xlane.f32.xlu0 %v4561
  %v4833 = vpop.xlane.xlu0 %4832
  %4834 = vadd.xlane.f32.xlu0 %v4562
  %v4835 = vpop.xlane.xlu0 %4834
  %4836 = vadd.xlane.f32.xlu0 %v4563
  %v4837 = vpop.xlane.xlu0 %4836
  %4838 = vadd.xlane.f32.xlu0 %v4564
  %v4839 = vpop.xlane.xlu0 %4838
  %4840 = vadd.xlane.f32.xlu0 %v4565
  %v4841 = vpop.xlane.xlu0 %4840
  %4842 = vadd.xlane.f32.xlu0 %v4566
  %v4843 = vpop.xlane.xlu0 %4842
  %4844 = vadd.xlane.f32.xlu0 %v4567
  %v4845 = vpop.xlane.xlu0 %4844
  %4846 = vadd.xlane.f32.xlu0 %v4568
  %v4847 = vpop.xlane.xlu0 %4846
  %4848 = vadd.xlane.f32.xlu0 %v4569
  %v4849 = vpop.xlane.xlu0 %4848
  %4850 = vadd.xlane.f32.xlu0 %v4570
  %v4851 = vpop.xlane.xlu0 %4850
  %4852 = vadd.xlane.f32.xlu0 %v4571
  %v4853 = vpop.xlane.xlu0 %4852
  %4854 = vadd.xlane.f32.xlu0 %v4572
  %v4855 = vpop.xlane.xlu0 %4854
  %4856 = vadd.xlane.f32.xlu0 %v4573
  %v4857 = vpop.xlane.xlu0 %4856
  %4858 = vadd.xlane.f32.xlu0 %v4574
  %v4859 = vpop.xlane.xlu0 %4858
  %4860 = vadd.xlane.f32.xlu0 %v4575
  %v4861 = vpop.xlane.xlu0 %4860
  %4862 = vadd.xlane.f32.xlu0 %v4576
  %v4863 = vpop.xlane.xlu0 %4862
  %4864 = vadd.xlane.f32.xlu0 %v4577
  %v4865 = vpop.xlane.xlu0 %4864
  %4866 = vadd.xlane.f32.xlu0 %v4578
  %v4867 = vpop.xlane.xlu0 %4866
  %4868 = vadd.xlane.f32.xlu0 %v4579
  %v4869 = vpop.xlane.xlu0 %4868
  %4870 = vadd.xlane.f32.xlu0 %v4580
  %v4871 = vpop.xlane.xlu0 %4870
  %4872 = vadd.xlane.f32.xlu0 %v4581
  %v4873 = vpop.xlane.xlu0 %4872
  %4874 = vadd.xlane.f32.xlu0 %v4582
  %v4875 = vpop.xlane.xlu0 %4874
  %4876 = vadd.xlane.f32.xlu0 %v4583
  %v4877 = vpop.xlane.xlu0 %4876
  %4878 = vadd.xlane.f32.xlu0 %v4584
  %v4879 = vpop.xlane.xlu0 %4878
  %4880 = vadd.xlane.f32.xlu0 %v4585
  %v4881 = vpop.xlane.xlu0 %4880
  %4882 = vadd.xlane.f32.xlu0 %v4586
  %v4883 = vpop.xlane.xlu0 %4882
  %4884 = vadd.xlane.f32.xlu0 %v4587
  %v4885 = vpop.xlane.xlu0 %4884
  %4886 = vadd.xlane.f32.xlu0 %v4588
  %v4887 = vpop.xlane.xlu0 %4886
  %4888 = vadd.xlane.f32.xlu0 %v4589
  %v4889 = vpop.xlane.xlu0 %4888
  %4890 = vadd.xlane.f32.xlu0 %v4590
  %v4891 = vpop.xlane.xlu0 %4890
  %4892 = vadd.xlane.f32.xlu0 %v4591
  %v4893 = vpop.xlane.xlu0 %4892
  %4894 = vadd.xlane.f32.xlu0 %v4592
  %v4895 = vpop.xlane.xlu0 %4894
  %4896 = vadd.xlane.f32.xlu0 %v4593
  %v4897 = vpop.xlane.xlu0 %4896
  %4898 = vadd.xlane.f32.xlu0 %v4594
  %v4899 = vpop.xlane.xlu0 %4898
  %4900 = vadd.xlane.f32.xlu0 %v4595
  %v4901 = vpop.xlane.xlu0 %4900
  %4902 = vadd.xlane.f32.xlu0 %v4596
  %v4903 = vpop.xlane.xlu0 %4902
  %4904 = vadd.xlane.f32.xlu0 %v4597
  %v4905 = vpop.xlane.xlu0 %4904
  %4906 = vadd.xlane.f32.xlu0 %v4598
  %v4907 = vpop.xlane.xlu0 %4906
  %4908 = vadd.xlane.f32.xlu0 %v4599
  %v4909 = vpop.xlane.xlu0 %4908
  %4910 = vadd.xlane.f32.xlu0 %v4600
  %v4911 = vpop.xlane.xlu0 %4910
  %4912 = vadd.xlane.f32.xlu0 %v4601
  %v4913 = vpop.xlane.xlu0 %4912
  %4914 = vadd.xlane.f32.xlu0 %v4602
  %v4915 = vpop.xlane.xlu0 %4914
  %4916 = vadd.xlane.f32.xlu0 %v4603
  %v4917 = vpop.xlane.xlu0 %4916
  %4918 = vadd.xlane.f32.xlu0 %v4604
  %v4919 = vpop.xlane.xlu0 %4918
  %4920 = vadd.xlane.f32.xlu0 %v4605
  %v4921 = vpop.xlane.xlu0 %4920
  %4922 = vadd.xlane.f32.xlu0 %v4606
  %v4923 = vpop.xlane.xlu0 %4922
  %4924 = vadd.xlane.f32.xlu0 %v4607
  %v4925 = vpop.xlane.xlu0 %4924
  %4926 = vadd.xlane.f32.xlu0 %v4608
  %v4927 = vpop.xlane.xlu0 %4926
  %4928 = vadd.xlane.f32.xlu0 %v4609
  %v4929 = vpop.xlane.xlu0 %4928
  %4930 = vadd.xlane.f32.xlu0 %v4610
  %v4931 = vpop.xlane.xlu0 %4930
  %4932 = vadd.xlane.f32.xlu0 %v4611
  %v4933 = vpop.xlane.xlu0 %4932
  %4934 = vadd.xlane.f32.xlu0 %v4612
  %v4935 = vpop.xlane.xlu0 %4934
  %4936 = vadd.xlane.f32.xlu0 %v4613
  %v4937 = vpop.xlane.xlu0 %4936
  %4938 = vadd.xlane.f32.xlu0 %v4614
  %v4939 = vpop.xlane.xlu0 %4938
  %4940 = vadd.xlane.f32.xlu0 %v4615
  %v4941 = vpop.xlane.xlu0 %4940
  %4942 = vadd.xlane.f32.xlu0 %v4616
  %v4943 = vpop.xlane.xlu0 %4942
  %4944 = vadd.xlane.f32.xlu0 %v4617
  %v4945 = vpop.xlane.xlu0 %4944
  %4946 = vadd.xlane.f32.xlu0 %v4618
  %v4947 = vpop.xlane.xlu0 %4946
  %4948 = vadd.xlane.f32.xlu0 %v4619
  %v4949 = vpop.xlane.xlu0 %4948
  %4950 = vadd.xlane.f32.xlu0 %v4620
  %v4951 = vpop.xlane.xlu0 %4950
  %4952 = vadd.xlane.f32.xlu0 %v4621
  %v4953 = vpop.xlane.xlu0 %4952
  %4954 = vadd.xlane.f32.xlu0 %v4622
  %v4955 = vpop.xlane.xlu0 %4954
  %4956 = vadd.xlane.f32.xlu0 %v4623
  %v4957 = vpop.xlane.xlu0 %4956
  %4958 = vadd.xlane.f32.xlu0 %v4624
  %v4959 = vpop.xlane.xlu0 %4958
  %4960 = vadd.xlane.f32.xlu0 %v4625
  %v4961 = vpop.xlane.xlu0 %4960
  %4962 = vadd.xlane.f32.xlu0 %v4626
  %v4963 = vpop.xlane.xlu0 %4962
  %4964 = vadd.xlane.f32.xlu0 %v4627
  %v4965 = vpop.xlane.xlu0 %4964
  %4966 = vadd.xlane.f32.xlu0 %v4628
  %v4967 = vpop.xlane.xlu0 %4966
  %4968 = vadd.xlane.f32.xlu0 %v4629
  %v4969 = vpop.xlane.xlu0 %4968
  %4970 = vadd.xlane.f32.xlu0 %v4630
  %v4971 = vpop.xlane.xlu0 %4970
  %4972 = vadd.xlane.f32.xlu0 %v4631
  %v4973 = vpop.xlane.xlu0 %4972
  %4974 = vadd.xlane.f32.xlu0 %v4632
  %v4975 = vpop.xlane.xlu0 %4974
  %4976 = vadd.xlane.f32.xlu0 %v4633
  %v4977 = vpop.xlane.xlu0 %4976
  %4978 = vadd.xlane.f32.xlu0 %v4634
  %v4979 = vpop.xlane.xlu0 %4978
  %4980 = vadd.xlane.f32.xlu0 %v4635
  %v4981 = vpop.xlane.xlu0 %4980
  %4982 = vadd.xlane.f32.xlu0 %v4636
  %v4983 = vpop.xlane.xlu0 %4982
  %4984 = vadd.xlane.f32.xlu0 %v4637
  %v4985 = vpop.xlane.xlu0 %4984
  %4986 = vadd.xlane.f32.xlu0 %v4638
  %v4987 = vpop.xlane.xlu0 %4986
  %4988 = vadd.xlane.f32.xlu0 %v4639
  %v4989 = vpop.xlane.xlu0 %4988
  %4990 = vadd.xlane.f32.xlu0 %v4640
  %v4991 = vpop.xlane.xlu0 %4990
  %4992 = vadd.xlane.f32.xlu0 %v4641
  %v4993 = vpop.xlane.xlu0 %4992
  %4994 = vadd.xlane.f32.xlu0 %v4642
  %v4995 = vpop.xlane.xlu0 %4994
  %4996 = vadd.xlane.f32.xlu0 %v4643
  %v4997 = vpop.xlane.xlu0 %4996
  %4998 = vadd.xlane.f32.xlu0 %v4644
  %v4999 = vpop.xlane.xlu0 %4998
  %5000 = vadd.xlane.f32.xlu0 %v4645
  %v5001 = vpop.xlane.xlu0 %5000
  %5002 = vadd.xlane.f32.xlu0 %v4646
  %v5003 = vpop.xlane.xlu0 %5002
  %5004 = vadd.xlane.f32.xlu0 %v4647
  %v5005 = vpop.xlane.xlu0 %5004
  %5006 = vadd.xlane.f32.xlu0 %v4648
  %v5007 = vpop.xlane.xlu0 %5006
  %5008 = vadd.xlane.f32.xlu0 %v4649
  %v5009 = vpop.xlane.xlu0 %5008
  %5010 = vadd.xlane.f32.xlu0 %v4650
  %v5011 = vpop.xlane.xlu0 %5010
  %5012 = vadd.xlane.f32.xlu0 %v4651
  %v5013 = vpop.xlane.xlu0 %5012
  %5014 = vadd.xlane.f32.xlu0 %v4652
  %v5015 = vpop.xlane.xlu0 %5014
  %5016 = vadd.xlane.f32.xlu0 %v4653
  %v5017 = vpop.xlane.xlu0 %5016
  %5018 = vadd.xlane.f32.xlu0 %v4654
  %v5019 = vpop.xlane.xlu0 %5018
  %5020 = vadd.xlane.f32.xlu0 %v4655
  %v5021 = vpop.xlane.xlu0 %5020
  %5022 = vadd.xlane.f32.xlu0 %v4656
  %v5023 = vpop.xlane.xlu0 %5022
  %5024 = vadd.xlane.f32.xlu0 %v4657
  %v5025 = vpop.xlane.xlu0 %5024
  %5026 = vadd.xlane.f32.xlu0 %v4658
  %v5027 = vpop.xlane.xlu0 %5026
  %5028 = vadd.xlane.f32.xlu0 %v4659
  %v5029 = vpop.xlane.xlu0 %5028
  %5030 = vadd.xlane.f32.xlu0 %v4660
  %v5031 = vpop.xlane.xlu0 %5030
  %5032 = vadd.xlane.f32.xlu0 %v4661
  %v5033 = vpop.xlane.xlu0 %5032
  %5034 = vadd.xlane.f32.xlu0 %v4662
  %v5035 = vpop.xlane.xlu0 %5034
  %5036 = vadd.xlane.f32.xlu0 %v4663
  %v5037 = vpop.xlane.xlu0 %5036
  %5038 = vadd.xlane.f32.xlu0 %v4664
  %v5039 = vpop.xlane.xlu0 %5038
  %5040 = vadd.xlane.f32.xlu0 %v4665
  %v5041 = vpop.xlane.xlu0 %5040
  %5042 = vadd.xlane.f32.xlu0 %v4666
  %v5043 = vpop.xlane.xlu0 %5042
  %5044 = vadd.xlane.f32.xlu0 %v4667
  %v5045 = vpop.xlane.xlu0 %5044
  %5046 = vadd.xlane.f32.xlu0 %v4668
  %v5047 = vpop.xlane.xlu0 %5046
  %5048 = vadd.xlane.f32.xlu0 %v4669
  %v5049 = vpop.xlane.xlu0 %5048
  %5050 = vadd.xlane.f32.xlu0 %v4670
  %v5051 = vpop.xlane.xlu0 %5050
  %5052 = vadd.xlane.f32.xlu0 %v4671
  %v5053 = vpop.xlane.xlu0 %5052
  %5054 = vadd.xlane.f32.xlu0 %v4672
  %v5055 = vpop.xlane.xlu0 %5054
  %5056 = vadd.xlane.f32.xlu0 %v4673
  %v5057 = vpop.xlane.xlu0 %5056
  %5058 = vadd.xlane.f32.xlu0 %v4674
  %v5059 = vpop.xlane.xlu0 %5058
  %5060 = vadd.xlane.f32.xlu0 %v4675
  %v5061 = vpop.xlane.xlu0 %5060
  %5062 = vadd.xlane.f32.xlu0 %v4676
  %v5063 = vpop.xlane.xlu0 %5062
  %5064 = vadd.xlane.f32.xlu0 %v4677
  %v5065 = vpop.xlane.xlu0 %5064
  %5066 = vadd.xlane.f32.xlu0 %v4678
  %v5067 = vpop.xlane.xlu0 %5066
  %5068 = vadd.xlane.f32.xlu0 %v4679
  %v5069 = vpop.xlane.xlu0 %5068
  %5070 = vadd.xlane.f32.xlu0 %v4680
  %v5071 = vpop.xlane.xlu0 %5070
  %5072 = vadd.xlane.f32.xlu0 %v4681
  %v5073 = vpop.xlane.xlu0 %5072
  %5074 = vadd.xlane.f32.xlu0 %v4682
  %v5075 = vpop.xlane.xlu0 %5074
  %5076 = vadd.xlane.f32.xlu0 %v4683
  %v5077 = vpop.xlane.xlu0 %5076
  %5078 = vadd.xlane.f32.xlu0 %v4684
  %v5079 = vpop.xlane.xlu0 %5078
  %5080 = vadd.xlane.f32.xlu0 %v4685
  %v5081 = vpop.xlane.xlu0 %5080
  %5082 = vadd.xlane.f32.xlu0 %v4686
  %v5083 = vpop.xlane.xlu0 %5082
  %5084 = vadd.xlane.f32.xlu0 %v4687
  %v5085 = vpop.xlane.xlu0 %5084
  %5086 = vadd.xlane.f32.xlu0 %v4688
  %v5087 = vpop.xlane.xlu0 %5086
  %5088 = vadd.xlane.f32.xlu0 %v4689
  %v5089 = vpop.xlane.xlu0 %5088
  %5090 = vadd.xlane.f32.xlu0 %v4690
  %v5091 = vpop.xlane.xlu0 %5090
  %5092 = vadd.xlane.f32.xlu0 %v4691
  %v5093 = vpop.xlane.xlu0 %5092
  %5094 = vadd.xlane.f32.xlu0 %v4692
  %v5095 = vpop.xlane.xlu0 %5094
  %5096 = vadd.xlane.f32.xlu0 %v4693
  %v5097 = vpop.xlane.xlu0 %5096
  %5098 = vadd.xlane.f32.xlu0 %v4694
  %v5099 = vpop.xlane.xlu0 %5098
  %5100 = vadd.xlane.f32.xlu0 %v4695
  %v5101 = vpop.xlane.xlu0 %5100
  %5102 = vadd.xlane.f32.xlu0 %v4696
  %v5103 = vpop.xlane.xlu0 %5102
  %5104 = vadd.xlane.f32.xlu0 %v4697
  %v5105 = vpop.xlane.xlu0 %5104
  %5106 = vadd.xlane.f32.xlu0 %v4698
  %v5107 = vpop.xlane.xlu0 %5106
  %5108 = vadd.xlane.f32.xlu0 %v4699
  %v5109 = vpop.xlane.xlu0 %5108
  %5110 = vadd.xlane.f32.xlu0 %v4700
  %v5111 = vpop.xlane.xlu0 %5110
  %5112 = vadd.xlane.f32.xlu0 %v4701
  %v5113 = vpop.xlane.xlu0 %5112
  %5114 = vadd.xlane.f32.xlu0 %v4702
  %v5115 = vpop.xlane.xlu0 %5114
  %5116 = vadd.xlane.f32.xlu0 %v4703
  %v5117 = vpop.xlane.xlu0 %5116
  %5118 = vadd.xlane.f32.xlu0 %v4704
  %v5119 = vpop.xlane.xlu0 %5118
  %5120 = vadd.xlane.f32.xlu0 %v4705
  %v5121 = vpop.xlane.xlu0 %5120
  %5122 = vadd.xlane.f32.xlu0 %v4706
  %v5123 = vpop.xlane.xlu0 %5122
  %5124 = vadd.xlane.f32.xlu0 %v4707
  %v5125 = vpop.xlane.xlu0 %5124
  %5126 = vadd.xlane.f32.xlu0 %v4708
  %v5127 = vpop.xlane.xlu0 %5126
  %5128 = vadd.xlane.f32.xlu0 %v4709
  %v5129 = vpop.xlane.xlu0 %5128
  %5130 = vadd.xlane.f32.xlu0 %v4710
  %v5131 = vpop.xlane.xlu0 %5130
  %5132 = vadd.xlane.f32.xlu0 %v4711
  %v5133 = vpop.xlane.xlu0 %5132
  %5134 = vadd.xlane.f32.xlu0 %v4712
  %v5135 = vpop.xlane.xlu0 %5134
  %5136 = vadd.xlane.f32.xlu0 %v4713
  %v5137 = vpop.xlane.xlu0 %5136
  %5138 = vadd.xlane.f32.xlu0 %v4714
  %v5139 = vpop.xlane.xlu0 %5138
  %5140 = vadd.xlane.f32.xlu0 %v4715
  %v5141 = vpop.xlane.xlu0 %5140
  %5142 = vadd.xlane.f32.xlu0 %v4716
  %v5143 = vpop.xlane.xlu0 %5142
  %5144 = vadd.xlane.f32.xlu0 %v4717
  %v5145 = vpop.xlane.xlu0 %5144
  %5146 = vadd.xlane.f32.xlu0 %v4718
  %v5147 = vpop.xlane.xlu0 %5146
  %5148 = vadd.xlane.f32.xlu0 %v4719
  %v5149 = vpop.xlane.xlu0 %5148
  %5150 = vadd.xlane.f32.xlu0 %v4720
  %v5151 = vpop.xlane.xlu0 %5150
  %5152 = vadd.xlane.f32.xlu0 %v4721
  %v5153 = vpop.xlane.xlu0 %5152
  %5154 = vadd.xlane.f32.xlu0 %v4722
  %v5155 = vpop.xlane.xlu0 %5154
  %5156 = vadd.xlane.f32.xlu0 %v4723
  %v5157 = vpop.xlane.xlu0 %5156
  %5158 = vadd.xlane.f32.xlu0 %v4724
  %v5159 = vpop.xlane.xlu0 %5158
  %5160 = vadd.xlane.f32.xlu0 %v4725
  %v5161 = vpop.xlane.xlu0 %5160
  %5162 = vadd.xlane.f32.xlu0 %v4726
  %v5163 = vpop.xlane.xlu0 %5162
  %5164 = vadd.xlane.f32.xlu0 %v4727
  %v5165 = vpop.xlane.xlu0 %5164
  %5166 = vadd.xlane.f32.xlu0 %v4728
  %v5167 = vpop.xlane.xlu0 %5166
  %5168 = vadd.xlane.f32.xlu0 %v4729
  %v5169 = vpop.xlane.xlu0 %5168
  %5170 = vadd.xlane.f32.xlu0 %v4730
  %v5171 = vpop.xlane.xlu0 %5170
  %5172 = vadd.xlane.f32.xlu0 %v4731
  %v5173 = vpop.xlane.xlu0 %5172
  %5174 = vadd.xlane.f32.xlu0 %v4732
  %v5175 = vpop.xlane.xlu0 %5174
  %5176 = vadd.xlane.f32.xlu0 %v4733
  %v5177 = vpop.xlane.xlu0 %5176
  %5178 = vadd.xlane.f32.xlu0 %v4734
  %v5179 = vpop.xlane.xlu0 %5178
  %5180 = vadd.xlane.f32.xlu0 %v4735
  %v5181 = vpop.xlane.xlu0 %5180
  %5182 = vadd.xlane.f32.xlu0 %v4736
  %v5183 = vpop.xlane.xlu0 %5182
  %5184 = vadd.xlane.f32.xlu0 %v4737
  %v5185 = vpop.xlane.xlu0 %5184
  %5186 = vadd.xlane.f32.xlu0 %v4738
  %v5187 = vpop.xlane.xlu0 %5186
  %5188 = vadd.xlane.f32.xlu0 %v4739
  %v5189 = vpop.xlane.xlu0 %5188
  %5190 = vadd.xlane.f32.xlu0 %v4740
  %v5191 = vpop.xlane.xlu0 %5190
  %5192 = vadd.xlane.f32.xlu0 %v4741
  %v5193 = vpop.xlane.xlu0 %5192
  %5194 = vadd.xlane.f32.xlu0 %v4742
  %v5195 = vpop.xlane.xlu0 %5194
  %5196 = vadd.xlane.f32.xlu0 %v4743
  %v5197 = vpop.xlane.xlu0 %5196
  %5198 = vadd.xlane.f32.xlu0 %v4744
  %v5199 = vpop.xlane.xlu0 %5198
  %5200 = vadd.xlane.f32.xlu0 %v4745
  %v5201 = vpop.xlane.xlu0 %5200
  %v5202 = vmul.f32 %v4747, 0.020408163
  %v5203 = vmul.f32 %v4749, 0.020408163
  %v5204 = vmul.f32 %v4751, 0.020408163
  %v5205 = vmul.f32 %v4753, 0.020408163
  %v5206 = vmul.f32 %v4755, 0.020408163
  %v5207 = vmul.f32 %v4757, 0.020408163
  %v5208 = vmul.f32 %v4759, 0.020408163
  %v5209 = vmul.f32 %v4761, 0.020408163
  %v5210 = vmul.f32 %v4763, 0.020408163
  %v5211 = vmul.f32 %v4765, 0.020408163
  %v5212 = vmul.f32 %v4767, 0.020408163
  %v5213 = vmul.f32 %v4769, 0.020408163
  %v5214 = vmul.f32 %v4771, 0.020408163
  %v5215 = vmul.f32 %v4773, 0.020408163
  %v5216 = vmul.f32 %v4775, 0.020408163
  %v5217 = vmul.f32 %v4777, 0.020408163
  %v5218 = vmul.f32 %v4779, 0.020408163
  %v5219 = vmul.f32 %v4781, 0.020408163
  %v5220 = vmul.f32 %v4783, 0.020408163
  %v5221 = vmul.f32 %v4785, 0.020408163
  %v5222 = vmul.f32 %v4787, 0.020408163
  %v5223 = vmul.f32 %v4789, 0.020408163
  %v5224 = vmul.f32 %v4791, 0.020408163
  %v5225 = vmul.f32 %v4793, 0.020408163
  %v5226 = vmul.f32 %v4795, 0.020408163
  %v5227 = vmul.f32 %v4797, 0.020408163
  %v5228 = vmul.f32 %v4799, 0.020408163
  %v5229 = vmul.f32 %v4801, 0.020408163
  %v5230 = vmul.f32 %v4803, 0.020408163
  %v5231 = vmul.f32 %v4805, 0.020408163
  %v5232 = vmul.f32 %v4807, 0.020408163
  %v5233 = vmul.f32 %v4809, 0.020408163
  %v5234 = vmul.f32 %v4811, 0.020408163
  %v5235 = vmul.f32 %v4813, 0.020408163
  %v5236 = vmul.f32 %v4815, 0.020408163
  %v5237 = vmul.f32 %v4817, 0.020408163
  %v5238 = vmul.f32 %v4819, 0.020408163
  %v5239 = vmul.f32 %v4821, 0.020408163
  %v5240 = vmul.f32 %v4823, 0.020408163
  %v5241 = vmul.f32 %v4825, 0.020408163
  %v5242 = vmul.f32 %v4827, 0.020408163
  %v5243 = vmul.f32 %v4829, 0.020408163
  %v5244 = vmul.f32 %v4831, 0.020408163
  %v5245 = vmul.f32 %v4833, 0.020408163
  %v5246 = vmul.f32 %v4835, 0.020408163
  %v5247 = vmul.f32 %v4837, 0.020408163
  %v5248 = vmul.f32 %v4839, 0.020408163
  %v5249 = vmul.f32 %v4841, 0.020408163
  %v5250 = vmul.f32 %v4843, 0.020408163
  %v5251 = vmul.f32 %v4845, 0.020408163
  %v5252 = vmul.f32 %v4847, 0.020408163
  %v5253 = vmul.f32 %v4849, 0.020408163
  %v5254 = vmul.f32 %v4851, 0.020408163
  %v5255 = vmul.f32 %v4853, 0.020408163
  %v5256 = vmul.f32 %v4855, 0.020408163
  %v5257 = vmul.f32 %v4857, 0.020408163
  %v5258 = vmul.f32 %v4859, 0.020408163
  %v5259 = vmul.f32 %v4861, 0.020408163
  %v5260 = vmul.f32 %v4863, 0.020408163
  %v5261 = vmul.f32 %v4865, 0.020408163
  %v5262 = vmul.f32 %v4867, 0.020408163
  %v5263 = vmul.f32 %v4869, 0.020408163
  %v5264 = vmul.f32 %v4871, 0.020408163
  %v5265 = vmul.f32 %v4873, 0.020408163
  %v5266 = vmul.f32 %v4875, 0.020408163
  %v5267 = vmul.f32 %v4877, 0.020408163
  %v5268 = vmul.f32 %v4879, 0.020408163
  %v5269 = vmul.f32 %v4881, 0.020408163
  %v5270 = vmul.f32 %v4883, 0.020408163
  %v5271 = vmul.f32 %v4885, 0.020408163
  %v5272 = vmul.f32 %v4887, 0.020408163
  %v5273 = vmul.f32 %v4889, 0.020408163
  %v5274 = vmul.f32 %v4891, 0.020408163
  %v5275 = vmul.f32 %v4893, 0.020408163
  %v5276 = vmul.f32 %v4895, 0.020408163
  %v5277 = vmul.f32 %v4897, 0.020408163
  %v5278 = vmul.f32 %v4899, 0.020408163
  %v5279 = vmul.f32 %v4901, 0.020408163
  %v5280 = vmul.f32 %v4903, 0.020408163
  %v5281 = vmul.f32 %v4905, 0.020408163
  %v5282 = vmul.f32 %v4907, 0.020408163
  %v5283 = vmul.f32 %v4909, 0.020408163
  %v5284 = vmul.f32 %v4911, 0.020408163
  %v5285 = vmul.f32 %v4913, 0.020408163
  %v5286 = vmul.f32 %v4915, 0.020408163
  %v5287 = vmul.f32 %v4917, 0.020408163
  %v5288 = vmul.f32 %v4919, 0.020408163
  %v5289 = vmul.f32 %v4921, 0.020408163
  %v5290 = vmul.f32 %v4923, 0.020408163
  %v5291 = vmul.f32 %v4925, 0.020408163
  %v5292 = vmul.f32 %v4927, 0.020408163
  %v5293 = vmul.f32 %v4929, 0.020408163
  %v5294 = vmul.f32 %v4931, 0.020408163
  %v5295 = vmul.f32 %v4933, 0.020408163
  %v5296 = vmul.f32 %v4935, 0.020408163
  %v5297 = vmul.f32 %v4937, 0.020408163
  %v5298 = vmul.f32 %v4939, 0.020408163
  %v5299 = vmul.f32 %v4941, 0.020408163
  %v5300 = vmul.f32 %v4943, 0.020408163
  %v5301 = vmul.f32 %v4945, 0.020408163
  %v5302 = vmul.f32 %v4947, 0.020408163
  %v5303 = vmul.f32 %v4949, 0.020408163
  %v5304 = vmul.f32 %v4951, 0.020408163
  %v5305 = vmul.f32 %v4953, 0.020408163
  %v5306 = vmul.f32 %v4955, 0.020408163
  %v5307 = vmul.f32 %v4957, 0.020408163
  %v5308 = vmul.f32 %v4959, 0.020408163
  %v5309 = vmul.f32 %v4961, 0.020408163
  %v5310 = vmul.f32 %v4963, 0.020408163
  %v5311 = vmul.f32 %v4965, 0.020408163
  %v5312 = vmul.f32 %v4967, 0.020408163
  %v5313 = vmul.f32 %v4969, 0.020408163
  %v5314 = vmul.f32 %v4971, 0.020408163
  %v5315 = vmul.f32 %v4973, 0.020408163
  %v5316 = vmul.f32 %v4975, 0.020408163
  %v5317 = vmul.f32 %v4977, 0.020408163
  %v5318 = vmul.f32 %v4979, 0.020408163
  %v5319 = vmul.f32 %v4981, 0.020408163
  %v5320 = vmul.f32 %v4983, 0.020408163
  %v5321 = vmul.f32 %v4985, 0.020408163
  %v5322 = vmul.f32 %v4987, 0.020408163
  %v5323 = vmul.f32 %v4989, 0.020408163
  %v5324 = vmul.f32 %v4991, 0.020408163
  %v5325 = vmul.f32 %v4993, 0.020408163
  %v5326 = vmul.f32 %v4995, 0.020408163
  %v5327 = vmul.f32 %v4997, 0.020408163
  %v5328 = vmul.f32 %v4999, 0.020408163
  %v5329 = vmul.f32 %v5001, 0.020408163
  %v5330 = vmul.f32 %v5003, 0.020408163
  %v5331 = vmul.f32 %v5005, 0.020408163
  %v5332 = vmul.f32 %v5007, 0.020408163
  %v5333 = vmul.f32 %v5009, 0.020408163
  %v5334 = vmul.f32 %v5011, 0.020408163
  %v5335 = vmul.f32 %v5013, 0.020408163
  %v5336 = vmul.f32 %v5015, 0.020408163
  %v5337 = vmul.f32 %v5017, 0.020408163
  %v5338 = vmul.f32 %v5019, 0.020408163
  %v5339 = vmul.f32 %v5021, 0.020408163
  %v5340 = vmul.f32 %v5023, 0.020408163
  %v5341 = vmul.f32 %v5025, 0.020408163
  %v5342 = vmul.f32 %v5027, 0.020408163
  %v5343 = vmul.f32 %v5029, 0.020408163
  %v5344 = vmul.f32 %v5031, 0.020408163
  %v5345 = vmul.f32 %v5033, 0.020408163
  %v5346 = vmul.f32 %v5035, 0.020408163
  %v5347 = vmul.f32 %v5037, 0.020408163
  %v5348 = vmul.f32 %v5039, 0.020408163
  %v5349 = vmul.f32 %v5041, 0.020408163
  %v5350 = vmul.f32 %v5043, 0.020408163
  %v5351 = vmul.f32 %v5045, 0.020408163
  %v5352 = vmul.f32 %v5047, 0.020408163
  %v5353 = vmul.f32 %v5049, 0.020408163
  %v5354 = vmul.f32 %v5051, 0.020408163
  %v5355 = vmul.f32 %v5053, 0.020408163
  %v5356 = vmul.f32 %v5055, 0.020408163
  %v5357 = vmul.f32 %v5057, 0.020408163
  %v5358 = vmul.f32 %v5059, 0.020408163
  %v5359 = vmul.f32 %v5061, 0.020408163
  %v5360 = vmul.f32 %v5063, 0.020408163
  %v5361 = vmul.f32 %v5065, 0.020408163
  %v5362 = vmul.f32 %v5067, 0.020408163
  %v5363 = vmul.f32 %v5069, 0.020408163
  %v5364 = vmul.f32 %v5071, 0.020408163
  %v5365 = vmul.f32 %v5073, 0.020408163
  %v5366 = vmul.f32 %v5075, 0.020408163
  %v5367 = vmul.f32 %v5077, 0.020408163
  %v5368 = vmul.f32 %v5079, 0.020408163
  %v5369 = vmul.f32 %v5081, 0.020408163
  %v5370 = vmul.f32 %v5083, 0.020408163
  %v5371 = vmul.f32 %v5085, 0.020408163
  %v5372 = vmul.f32 %v5087, 0.020408163
  %v5373 = vmul.f32 %v5089, 0.020408163
  %v5374 = vmul.f32 %v5091, 0.020408163
  %v5375 = vmul.f32 %v5093, 0.020408163
  %v5376 = vmul.f32 %v5095, 0.020408163
  %v5377 = vmul.f32 %v5097, 0.020408163
  %v5378 = vmul.f32 %v5099, 0.020408163
  %v5379 = vmul.f32 %v5101, 0.020408163
  %v5380 = vmul.f32 %v5103, 0.020408163
  %v5381 = vmul.f32 %v5105, 0.020408163
  %v5382 = vmul.f32 %v5107, 0.020408163
  %v5383 = vmul.f32 %v5109, 0.020408163
  %v5384 = vmul.f32 %v5111, 0.020408163
  %v5385 = vmul.f32 %v5113, 0.020408163
  %v5386 = vmul.f32 %v5115, 0.020408163
  %v5387 = vmul.f32 %v5117, 0.020408163
  %v5388 = vmul.f32 %v5119, 0.020408163
  %v5389 = vmul.f32 %v5121, 0.020408163
  %v5390 = vmul.f32 %v5123, 0.020408163
  %v5391 = vmul.f32 %v5125, 0.020408163
  %v5392 = vmul.f32 %v5127, 0.020408163
  %v5393 = vmul.f32 %v5129, 0.020408163
  %v5394 = vmul.f32 %v5131, 0.020408163
  %v5395 = vmul.f32 %v5133, 0.020408163
  %v5396 = vmul.f32 %v5135, 0.020408163
  %v5397 = vmul.f32 %v5137, 0.020408163
  %v5398 = vmul.f32 %v5139, 0.020408163
  %v5399 = vmul.f32 %v5141, 0.020408163
  %v5400 = vmul.f32 %v5143, 0.020408163
  %v5401 = vmul.f32 %v5145, 0.020408163
  %v5402 = vmul.f32 %v5147, 0.020408163
  %v5403 = vmul.f32 %v5149, 0.020408163
  %v5404 = vmul.f32 %v5151, 0.020408163
  %v5405 = vmul.f32 %v5153, 0.020408163
  %v5406 = vmul.f32 %v5155, 0.020408163
  %v5407 = vmul.f32 %v5157, 0.020408163
  %v5408 = vmul.f32 %v5159, 0.020408163
  %v5409 = vmul.f32 %v5161, 0.020408163
  %v5410 = vmul.f32 %v5163, 0.020408163
  %v5411 = vmul.f32 %v5165, 0.020408163
  %v5412 = vmul.f32 %v5167, 0.020408163
  %v5413 = vmul.f32 %v5169, 0.020408163
  %v5414 = vmul.f32 %v5171, 0.020408163
  %v5415 = vmul.f32 %v5173, 0.020408163
  %v5416 = vmul.f32 %v5175, 0.020408163
  %v5417 = vmul.f32 %v5177, 0.020408163
  %v5418 = vmul.f32 %v5179, 0.020408163
  %v5419 = vmul.f32 %v5181, 0.020408163
  %v5420 = vmul.f32 %v5183, 0.020408163
  %v5421 = vmul.f32 %v5185, 0.020408163
  %v5422 = vmul.f32 %v5187, 0.020408163
  %v5423 = vmul.f32 %v5189, 0.020408163
  %v5424 = vmul.f32 %v5191, 0.020408163
  %v5425 = vmul.f32 %v5193, 0.020408163
  %v5426 = vmul.f32 %v5195, 0.020408163
  %v5427 = vmul.f32 %v5197, 0.020408163
  %v5428 = vmul.f32 %v5199, 0.020408163
  %v5429 = vmul.f32 %v5201, 0.020408163
  %v5430 = vmul.f32 %v4290, %v4290
  %v5431 = vmul.f32 %v4291, %v4291
  %v5432 = vmul.f32 %v4292, %v4292
  %v5433 = vmul.f32 %v4293, %v4293
  %v5434 = vmul.f32 %v4294, %v4294
  %v5435 = vmul.f32 %v4295, %v4295
  %v5436 = vmul.f32 %v4296, %v4296
  %v5437 = vmul.f32 %v4297, %v4297
  %v5438 = vmul.f32 %v4298, %v4298
  %v5439 = vmul.f32 %v4299, %v4299
  %v5440 = vmul.f32 %v4300, %v4300
  %v5441 = vmul.f32 %v4301, %v4301
  %v5442 = vmul.f32 %v4302, %v4302
  %v5443 = vmul.f32 %v4303, %v4303
  %v5444 = vmul.f32 %v4304, %v4304
  %v5445 = vmul.f32 %v4305, %v4305
  %v5446 = vmul.f32 %v4306, %v4306
  %v5447 = vmul.f32 %v4307, %v4307
  %v5448 = vmul.f32 %v4308, %v4308
  %v5449 = vmul.f32 %v4309, %v4309
  %v5450 = vmul.f32 %v4310, %v4310
  %v5451 = vmul.f32 %v4311, %v4311
  %v5452 = vmul.f32 %v4312, %v4312
  %v5453 = vmul.f32 %v4313, %v4313
  %v5454 = vmul.f32 %v4314, %v4314
  %v5455 = vmul.f32 %v4315, %v4315
  %v5456 = vmul.f32 %v4316, %v4316
  %v5457 = vmul.f32 %v4317, %v4317
  %v5458 = vmul.f32 %v4318, %v4318
  %v5459 = vmul.f32 %v4319, %v4319
  %v5460 = vmul.f32 %v4320, %v4320
  %v5461 = vmul.f32 %v4321, %v4321
  %v5462 = vmul.f32 %v4322, %v4322
  %v5463 = vmul.f32 %v4323, %v4323
  %v5464 = vmul.f32 %v4324, %v4324
  %v5465 = vmul.f32 %v4325, %v4325
  %v5466 = vmul.f32 %v4326, %v4326
  %v5467 = vmul.f32 %v4327, %v4327
  %v5468 = vmul.f32 %v4328, %v4328
  %v5469 = vmul.f32 %v4329, %v4329
  %v5470 = vmul.f32 %v4330, %v4330
  %v5471 = vmul.f32 %v4331, %v4331
  %v5472 = vmul.f32 %v4332, %v4332
  %v5473 = vmul.f32 %v4333, %v4333
  %v5474 = vmul.f32 %v4334, %v4334
  %v5475 = vmul.f32 %v4335, %v4335
  %v5476 = vmul.f32 %v4336, %v4336
  %v5477 = vmul.f32 %v4337, %v4337
  %v5478 = vmul.f32 %v4338, %v4338
  %v5479 = vmul.f32 %v4339, %v4339
  %v5480 = vmul.f32 %v4340, %v4340
  %v5481 = vmul.f32 %v4341, %v4341
  %v5482 = vmul.f32 %v4342, %v4342
  %v5483 = vmul.f32 %v4343, %v4343
  %v5484 = vmul.f32 %v4344, %v4344
  %v5485 = vmul.f32 %v4345, %v4345
  %v5486 = vmul.f32 %v4346, %v4346
  %v5487 = vmul.f32 %v4347, %v4347
  %v5488 = vmul.f32 %v4348, %v4348
  %v5489 = vmul.f32 %v4349, %v4349
  %v5490 = vmul.f32 %v4350, %v4350
  %v5491 = vmul.f32 %v4351, %v4351
  %v5492 = vmul.f32 %v4352, %v4352
  %v5493 = vmul.f32 %v4353, %v4353
  %v5494 = vmul.f32 %v4354, %v4354
  %v5495 = vmul.f32 %v4355, %v4355
  %v5496 = vmul.f32 %v4356, %v4356
  %v5497 = vmul.f32 %v4357, %v4357
  %v5498 = vmul.f32 %v4358, %v4358
  %v5499 = vmul.f32 %v4359, %v4359
  %v5500 = vmul.f32 %v4360, %v4360
  %v5501 = vmul.f32 %v4361, %v4361
  %v5502 = vmul.f32 %v4362, %v4362
  %v5503 = vmul.f32 %v4363, %v4363
  %v5504 = vmul.f32 %v4364, %v4364
  %v5505 = vmul.f32 %v4365, %v4365
  %v5506 = vmul.f32 %v4366, %v4366
  %v5507 = vmul.f32 %v4367, %v4367
  %v5508 = vmul.f32 %v4368, %v4368
  %v5509 = vmul.f32 %v4369, %v4369
  %v5510 = vmul.f32 %v4370, %v4370
  %v5511 = vmul.f32 %v4371, %v4371
  %v5512 = vmul.f32 %v4372, %v4372
  %v5513 = vmul.f32 %v4373, %v4373
  %v5514 = vmul.f32 %v4374, %v4374
  %v5515 = vmul.f32 %v4375, %v4375
  %v5516 = vmul.f32 %v4376, %v4376
  %v5517 = vmul.f32 %v4377, %v4377
  %v5518 = vmul.f32 %v4378, %v4378
  %v5519 = vmul.f32 %v4379, %v4379
  %v5520 = vmul.f32 %v4380, %v4380
  %v5521 = vmul.f32 %v4381, %v4381
  %v5522 = vmul.f32 %v4382, %v4382
  %v5523 = vmul.f32 %v4383, %v4383
  %v5524 = vmul.f32 %v4384, %v4384
  %v5525 = vmul.f32 %v4385, %v4385
  %v5526 = vmul.f32 %v4386, %v4386
  %v5527 = vmul.f32 %v4387, %v4387
  %v5528 = vmul.f32 %v4388, %v4388
  %v5529 = vmul.f32 %v4389, %v4389
  %v5530 = vmul.f32 %v4390, %v4390
  %v5531 = vmul.f32 %v4391, %v4391
  %v5532 = vmul.f32 %v4392, %v4392
  %v5533 = vmul.f32 %v4393, %v4393
  %v5534 = vmul.f32 %v4394, %v4394
  %v5535 = vmul.f32 %v4395, %v4395
  %v5536 = vmul.f32 %v4396, %v4396
  %v5537 = vmul.f32 %v4397, %v4397
  %v5538 = vmul.f32 %v4398, %v4398
  %v5539 = vmul.f32 %v4399, %v4399
  %v5540 = vmul.f32 %v4400, %v4400
  %v5541 = vmul.f32 %v4401, %v4401
  %v5542 = vmul.f32 %v4402, %v4402
  %v5543 = vmul.f32 %v4403, %v4403
  %v5544 = vmul.f32 %v4404, %v4404
  %v5545 = vmul.f32 %v4405, %v4405
  %v5546 = vmul.f32 %v4406, %v4406
  %v5547 = vmul.f32 %v4407, %v4407
  %v5548 = vmul.f32 %v4408, %v4408
  %v5549 = vmul.f32 %v4409, %v4409
  %v5550 = vmul.f32 %v4410, %v4410
  %v5551 = vmul.f32 %v4411, %v4411
  %v5552 = vmul.f32 %v4412, %v4412
  %v5553 = vmul.f32 %v4413, %v4413
  %v5554 = vmul.f32 %v4414, %v4414
  %v5555 = vmul.f32 %v4415, %v4415
  %v5556 = vmul.f32 %v4416, %v4416
  %v5557 = vmul.f32 %v4417, %v4417
  %v5558 = vmul.f32 %v4418, %v4418
  %v5559 = vmul.f32 %v4419, %v4419
  %v5560 = vmul.f32 %v4420, %v4420
  %v5561 = vmul.f32 %v4421, %v4421
  %v5562 = vmul.f32 %v4422, %v4422
  %v5563 = vmul.f32 %v4423, %v4423
  %v5564 = vmul.f32 %v4424, %v4424
  %v5565 = vmul.f32 %v4425, %v4425
  %v5566 = vmul.f32 %v4426, %v4426
  %v5567 = vmul.f32 %v4427, %v4427
  %v5568 = vmul.f32 %v4428, %v4428
  %v5569 = vmul.f32 %v4429, %v4429
  %v5570 = vmul.f32 %v4430, %v4430
  %v5571 = vmul.f32 %v4431, %v4431
  %v5572 = vmul.f32 %v4432, %v4432
  %v5573 = vmul.f32 %v4433, %v4433
  %v5574 = vmul.f32 %v4434, %v4434
  %v5575 = vmul.f32 %v4435, %v4435
  %v5576 = vmul.f32 %v4436, %v4436
  %v5577 = vmul.f32 %v4437, %v4437
  %v5578 = vmul.f32 %v4438, %v4438
  %v5579 = vmul.f32 %v4439, %v4439
  %v5580 = vmul.f32 %v4440, %v4440
  %v5581 = vmul.f32 %v4441, %v4441
  %v5582 = vmul.f32 %v4442, %v4442
  %v5583 = vmul.f32 %v4443, %v4443
  %v5584 = vmul.f32 %v4444, %v4444
  %v5585 = vmul.f32 %v4445, %v4445
  %v5586 = vmul.f32 %v4446, %v4446
  %v5587 = vmul.f32 %v4447, %v4447
  %v5588 = vmul.f32 %v4448, %v4448
  %v5589 = vmul.f32 %v4449, %v4449
  %v5590 = vmul.f32 %v4450, %v4450
  %v5591 = vmul.f32 %v4451, %v4451
  %v5592 = vmul.f32 %v4452, %v4452
  %v5593 = vmul.f32 %v4453, %v4453
  %v5594 = vmul.f32 %v4454, %v4454
  %v5595 = vmul.f32 %v4455, %v4455
  %v5596 = vmul.f32 %v4456, %v4456
  %v5597 = vmul.f32 %v4457, %v4457
  %v5598 = vmul.f32 %v4458, %v4458
  %v5599 = vmul.f32 %v4459, %v4459
  %v5600 = vmul.f32 %v4460, %v4460
  %v5601 = vmul.f32 %v4461, %v4461
  %v5602 = vmul.f32 %v4462, %v4462
  %v5603 = vmul.f32 %v4463, %v4463
  %v5604 = vmul.f32 %v4464, %v4464
  %v5605 = vmul.f32 %v4465, %v4465
  %v5606 = vmul.f32 %v4466, %v4466
  %v5607 = vmul.f32 %v4467, %v4467
  %v5608 = vmul.f32 %v4468, %v4468
  %v5609 = vmul.f32 %v4469, %v4469
  %v5610 = vmul.f32 %v4470, %v4470
  %v5611 = vmul.f32 %v4471, %v4471
  %v5612 = vmul.f32 %v4472, %v4472
  %v5613 = vmul.f32 %v4473, %v4473
  %v5614 = vmul.f32 %v4474, %v4474
  %v5615 = vmul.f32 %v4475, %v4475
  %v5616 = vmul.f32 %v4476, %v4476
  %v5617 = vmul.f32 %v4477, %v4477
  %v5618 = vmul.f32 %v4478, %v4478
  %v5619 = vmul.f32 %v4479, %v4479
  %v5620 = vmul.f32 %v4480, %v4480
  %v5621 = vmul.f32 %v4481, %v4481
  %v5622 = vmul.f32 %v4482, %v4482
  %v5623 = vmul.f32 %v4483, %v4483
  %v5624 = vmul.f32 %v4484, %v4484
  %v5625 = vmul.f32 %v4485, %v4485
  %v5626 = vmul.f32 %v4486, %v4486
  %v5627 = vmul.f32 %v4487, %v4487
  %v5628 = vmul.f32 %v4488, %v4488
  %v5629 = vmul.f32 %v4489, %v4489
  %v5630 = vmul.f32 %v4490, %v4490
  %v5631 = vmul.f32 %v4491, %v4491
  %v5632 = vmul.f32 %v4492, %v4492
  %v5633 = vmul.f32 %v4493, %v4493
  %v5634 = vmul.f32 %v4494, %v4494
  %v5635 = vmul.f32 %v4495, %v4495
  %v5636 = vmul.f32 %v4496, %v4496
  %v5637 = vmul.f32 %v4497, %v4497
  %v5638 = vmul.f32 %v4498, %v4498
  %v5639 = vmul.f32 %v4499, %v4499
  %v5640 = vmul.f32 %v4500, %v4500
  %v5641 = vmul.f32 %v4501, %v4501
  %v5642 = vmul.f32 %v4502, %v4502
  %v5643 = vmul.f32 %v4503, %v4503
  %v5644 = vmul.f32 %v4504, %v4504
  %v5645 = vmul.f32 %v4505, %v4505
  %v5646 = vmul.f32 %v4506, %v4506
  %v5647 = vmul.f32 %v4507, %v4507
  %v5648 = vmul.f32 %v4508, %v4508
  %v5649 = vmul.f32 %v4509, %v4509
  %v5650 = vmul.f32 %v4510, %v4510
  %v5651 = vmul.f32 %v4511, %v4511
  %v5652 = vmul.f32 %v4512, %v4512
  %v5653 = vmul.f32 %v4513, %v4513
  %v5654 = vmul.f32 %v4514, %v4514
  %v5655 = vmul.f32 %v4515, %v4515
  %v5656 = vmul.f32 %v4516, %v4516
  %v5657 = vmul.f32 %v4517, %v4517
  %v5658 = vsub.f32 %v5202, %v5430
  %v5659 = vsub.f32 %v5203, %v5431
  %v5660 = vsub.f32 %v5204, %v5432
  %v5661 = vsub.f32 %v5205, %v5433
  %v5662 = vsub.f32 %v5206, %v5434
  %v5663 = vsub.f32 %v5207, %v5435
  %v5664 = vsub.f32 %v5208, %v5436
  %v5665 = vsub.f32 %v5209, %v5437
  %v5666 = vsub.f32 %v5210, %v5438
  %v5667 = vsub.f32 %v5211, %v5439
  %v5668 = vsub.f32 %v5212, %v5440
  %v5669 = vsub.f32 %v5213, %v5441
  %v5670 = vsub.f32 %v5214, %v5442
  %v5671 = vsub.f32 %v5215, %v5443
  %v5672 = vsub.f32 %v5216, %v5444
  %v5673 = vsub.f32 %v5217, %v5445
  %v5674 = vsub.f32 %v5218, %v5446
  %v5675 = vsub.f32 %v5219, %v5447
  %v5676 = vsub.f32 %v5220, %v5448
  %v5677 = vsub.f32 %v5221, %v5449
  %v5678 = vsub.f32 %v5222, %v5450
  %v5679 = vsub.f32 %v5223, %v5451
  %v5680 = vsub.f32 %v5224, %v5452
  %v5681 = vsub.f32 %v5225, %v5453
  %v5682 = vsub.f32 %v5226, %v5454
  %v5683 = vsub.f32 %v5227, %v5455
  %v5684 = vsub.f32 %v5228, %v5456
  %v5685 = vsub.f32 %v5229, %v5457
  %v5686 = vsub.f32 %v5230, %v5458
  %v5687 = vsub.f32 %v5231, %v5459
  %v5688 = vsub.f32 %v5232, %v5460
  %v5689 = vsub.f32 %v5233, %v5461
  %v5690 = vsub.f32 %v5234, %v5462
  %v5691 = vsub.f32 %v5235, %v5463
  %v5692 = vsub.f32 %v5236, %v5464
  %v5693 = vsub.f32 %v5237, %v5465
  %v5694 = vsub.f32 %v5238, %v5466
  %v5695 = vsub.f32 %v5239, %v5467
  %v5696 = vsub.f32 %v5240, %v5468
  %v5697 = vsub.f32 %v5241, %v5469
  %v5698 = vsub.f32 %v5242, %v5470
  %v5699 = vsub.f32 %v5243, %v5471
  %v5700 = vsub.f32 %v5244, %v5472
  %v5701 = vsub.f32 %v5245, %v5473
  %v5702 = vsub.f32 %v5246, %v5474
  %v5703 = vsub.f32 %v5247, %v5475
  %v5704 = vsub.f32 %v5248, %v5476
  %v5705 = vsub.f32 %v5249, %v5477
  %v5706 = vsub.f32 %v5250, %v5478
  %v5707 = vsub.f32 %v5251, %v5479
  %v5708 = vsub.f32 %v5252, %v5480
  %v5709 = vsub.f32 %v5253, %v5481
  %v5710 = vsub.f32 %v5254, %v5482
  %v5711 = vsub.f32 %v5255, %v5483
  %v5712 = vsub.f32 %v5256, %v5484
  %v5713 = vsub.f32 %v5257, %v5485
  %v5714 = vsub.f32 %v5258, %v5486
  %v5715 = vsub.f32 %v5259, %v5487
  %v5716 = vsub.f32 %v5260, %v5488
  %v5717 = vsub.f32 %v5261, %v5489
  %v5718 = vsub.f32 %v5262, %v5490
  %v5719 = vsub.f32 %v5263, %v5491
  %v5720 = vsub.f32 %v5264, %v5492
  %v5721 = vsub.f32 %v5265, %v5493
  %v5722 = vsub.f32 %v5266, %v5494
  %v5723 = vsub.f32 %v5267, %v5495
  %v5724 = vsub.f32 %v5268, %v5496
  %v5725 = vsub.f32 %v5269, %v5497
  %v5726 = vsub.f32 %v5270, %v5498
  %v5727 = vsub.f32 %v5271, %v5499
  %v5728 = vsub.f32 %v5272, %v5500
  %v5729 = vsub.f32 %v5273, %v5501
  %v5730 = vsub.f32 %v5274, %v5502
  %v5731 = vsub.f32 %v5275, %v5503
  %v5732 = vsub.f32 %v5276, %v5504
  %v5733 = vsub.f32 %v5277, %v5505
  %v5734 = vsub.f32 %v5278, %v5506
  %v5735 = vsub.f32 %v5279, %v5507
  %v5736 = vsub.f32 %v5280, %v5508
  %v5737 = vsub.f32 %v5281, %v5509
  %v5738 = vsub.f32 %v5282, %v5510
  %v5739 = vsub.f32 %v5283, %v5511
  %v5740 = vsub.f32 %v5284, %v5512
  %v5741 = vsub.f32 %v5285, %v5513
  %v5742 = vsub.f32 %v5286, %v5514
  %v5743 = vsub.f32 %v5287, %v5515
  %v5744 = vsub.f32 %v5288, %v5516
  %v5745 = vsub.f32 %v5289, %v5517
  %v5746 = vsub.f32 %v5290, %v5518
  %v5747 = vsub.f32 %v5291, %v5519
  %v5748 = vsub.f32 %v5292, %v5520
  %v5749 = vsub.f32 %v5293, %v5521
  %v5750 = vsub.f32 %v5294, %v5522
  %v5751 = vsub.f32 %v5295, %v5523
  %v5752 = vsub.f32 %v5296, %v5524
  %v5753 = vsub.f32 %v5297, %v5525
  %v5754 = vsub.f32 %v5298, %v5526
  %v5755 = vsub.f32 %v5299, %v5527
  %v5756 = vsub.f32 %v5300, %v5528
  %v5757 = vsub.f32 %v5301, %v5529
  %v5758 = vsub.f32 %v5302, %v5530
  %v5759 = vsub.f32 %v5303, %v5531
  %v5760 = vsub.f32 %v5304, %v5532
  %v5761 = vsub.f32 %v5305, %v5533
  %v5762 = vsub.f32 %v5306, %v5534
  %v5763 = vsub.f32 %v5307, %v5535
  %v5764 = vsub.f32 %v5308, %v5536
  %v5765 = vsub.f32 %v5309, %v5537
  %v5766 = vsub.f32 %v5310, %v5538
  %v5767 = vsub.f32 %v5311, %v5539
  %v5768 = vsub.f32 %v5312, %v5540
  %v5769 = vsub.f32 %v5313, %v5541
  %v5770 = vsub.f32 %v5314, %v5542
  %v5771 = vsub.f32 %v5315, %v5543
  %v5772 = vsub.f32 %v5316, %v5544
  %v5773 = vsub.f32 %v5317, %v5545
  %v5774 = vsub.f32 %v5318, %v5546
  %v5775 = vsub.f32 %v5319, %v5547
  %v5776 = vsub.f32 %v5320, %v5548
  %v5777 = vsub.f32 %v5321, %v5549
  %v5778 = vsub.f32 %v5322, %v5550
  %v5779 = vsub.f32 %v5323, %v5551
  %v5780 = vsub.f32 %v5324, %v5552
  %v5781 = vsub.f32 %v5325, %v5553
  %v5782 = vsub.f32 %v5326, %v5554
  %v5783 = vsub.f32 %v5327, %v5555
  %v5784 = vsub.f32 %v5328, %v5556
  %v5785 = vsub.f32 %v5329, %v5557
  %v5786 = vsub.f32 %v5330, %v5558
  %v5787 = vsub.f32 %v5331, %v5559
  %v5788 = vsub.f32 %v5332, %v5560
  %v5789 = vsub.f32 %v5333, %v5561
  %v5790 = vsub.f32 %v5334, %v5562
  %v5791 = vsub.f32 %v5335, %v5563
  %v5792 = vsub.f32 %v5336, %v5564
  %v5793 = vsub.f32 %v5337, %v5565
  %v5794 = vsub.f32 %v5338, %v5566
  %v5795 = vsub.f32 %v5339, %v5567
  %v5796 = vsub.f32 %v5340, %v5568
  %v5797 = vsub.f32 %v5341, %v5569
  %v5798 = vsub.f32 %v5342, %v5570
  %v5799 = vsub.f32 %v5343, %v5571
  %v5800 = vsub.f32 %v5344, %v5572
  %v5801 = vsub.f32 %v5345, %v5573
  %v5802 = vsub.f32 %v5346, %v5574
  %v5803 = vsub.f32 %v5347, %v5575
  %v5804 = vsub.f32 %v5348, %v5576
  %v5805 = vsub.f32 %v5349, %v5577
  %v5806 = vsub.f32 %v5350, %v5578
  %v5807 = vsub.f32 %v5351, %v5579
  %v5808 = vsub.f32 %v5352, %v5580
  %v5809 = vsub.f32 %v5353, %v5581
  %v5810 = vsub.f32 %v5354, %v5582
  %v5811 = vsub.f32 %v5355, %v5583
  %v5812 = vsub.f32 %v5356, %v5584
  %v5813 = vsub.f32 %v5357, %v5585
  %v5814 = vsub.f32 %v5358, %v5586
  %v5815 = vsub.f32 %v5359, %v5587
  %v5816 = vsub.f32 %v5360, %v5588
  %v5817 = vsub.f32 %v5361, %v5589
  %v5818 = vsub.f32 %v5362, %v5590
  %v5819 = vsub.f32 %v5363, %v5591
  %v5820 = vsub.f32 %v5364, %v5592
  %v5821 = vsub.f32 %v5365, %v5593
  %v5822 = vsub.f32 %v5366, %v5594
  %v5823 = vsub.f32 %v5367, %v5595
  %v5824 = vsub.f32 %v5368, %v5596
  %v5825 = vsub.f32 %v5369, %v5597
  %v5826 = vsub.f32 %v5370, %v5598
  %v5827 = vsub.f32 %v5371, %v5599
  %v5828 = vsub.f32 %v5372, %v5600
  %v5829 = vsub.f32 %v5373, %v5601
  %v5830 = vsub.f32 %v5374, %v5602
  %v5831 = vsub.f32 %v5375, %v5603
  %v5832 = vsub.f32 %v5376, %v5604
  %v5833 = vsub.f32 %v5377, %v5605
  %v5834 = vsub.f32 %v5378, %v5606
  %v5835 = vsub.f32 %v5379, %v5607
  %v5836 = vsub.f32 %v5380, %v5608
  %v5837 = vsub.f32 %v5381, %v5609
  %v5838 = vsub.f32 %v5382, %v5610
  %v5839 = vsub.f32 %v5383, %v5611
  %v5840 = vsub.f32 %v5384, %v5612
  %v5841 = vsub.f32 %v5385, %v5613
  %v5842 = vsub.f32 %v5386, %v5614
  %v5843 = vsub.f32 %v5387, %v5615
  %v5844 = vsub.f32 %v5388, %v5616
  %v5845 = vsub.f32 %v5389, %v5617
  %v5846 = vsub.f32 %v5390, %v5618
  %v5847 = vsub.f32 %v5391, %v5619
  %v5848 = vsub.f32 %v5392, %v5620
  %v5849 = vsub.f32 %v5393, %v5621
  %v5850 = vsub.f32 %v5394, %v5622
  %v5851 = vsub.f32 %v5395, %v5623
  %v5852 = vsub.f32 %v5396, %v5624
  %v5853 = vsub.f32 %v5397, %v5625
  %v5854 = vsub.f32 %v5398, %v5626
  %v5855 = vsub.f32 %v5399, %v5627
  %v5856 = vsub.f32 %v5400, %v5628
  %v5857 = vsub.f32 %v5401, %v5629
  %v5858 = vsub.f32 %v5402, %v5630
  %v5859 = vsub.f32 %v5403, %v5631
  %v5860 = vsub.f32 %v5404, %v5632
  %v5861 = vsub.f32 %v5405, %v5633
  %v5862 = vsub.f32 %v5406, %v5634
  %v5863 = vsub.f32 %v5407, %v5635
  %v5864 = vsub.f32 %v5408, %v5636
  %v5865 = vsub.f32 %v5409, %v5637
  %v5866 = vsub.f32 %v5410, %v5638
  %v5867 = vsub.f32 %v5411, %v5639
  %v5868 = vsub.f32 %v5412, %v5640
  %v5869 = vsub.f32 %v5413, %v5641
  %v5870 = vsub.f32 %v5414, %v5642
  %v5871 = vsub.f32 %v5415, %v5643
  %v5872 = vsub.f32 %v5416, %v5644
  %v5873 = vsub.f32 %v5417, %v5645
  %v5874 = vsub.f32 %v5418, %v5646
  %v5875 = vsub.f32 %v5419, %v5647
  %v5876 = vsub.f32 %v5420, %v5648
  %v5877 = vsub.f32 %v5421, %v5649
  %v5878 = vsub.f32 %v5422, %v5650
  %v5879 = vsub.f32 %v5423, %v5651
  %v5880 = vsub.f32 %v5424, %v5652
  %v5881 = vsub.f32 %v5425, %v5653
  %v5882 = vsub.f32 %v5426, %v5654
  %v5883 = vsub.f32 %v5427, %v5655
  %v5884 = vsub.f32 %v5428, %v5656
  %v5885 = vsub.f32 %v5429, %v5657
  %v5886 = vmax.f32 %v5658, 0.0
  %v5887 = vmax.f32 %v5659, 0.0
  %v5888 = vmax.f32 %v5660, 0.0
  %v5889 = vmax.f32 %v5661, 0.0
  %v5890 = vmax.f32 %v5662, 0.0
  %v5891 = vmax.f32 %v5663, 0.0
  %v5892 = vmax.f32 %v5664, 0.0
  %v5893 = vmax.f32 %v5665, 0.0
  %v5894 = vmax.f32 %v5666, 0.0
  %v5895 = vmax.f32 %v5667, 0.0
  %v5896 = vmax.f32 %v5668, 0.0
  %v5897 = vmax.f32 %v5669, 0.0
  %v5898 = vmax.f32 %v5670, 0.0
  %v5899 = vmax.f32 %v5671, 0.0
  %v5900 = vmax.f32 %v5672, 0.0
  %v5901 = vmax.f32 %v5673, 0.0
  %v5902 = vmax.f32 %v5674, 0.0
  %v5903 = vmax.f32 %v5675, 0.0
  %v5904 = vmax.f32 %v5676, 0.0
  %v5905 = vmax.f32 %v5677, 0.0
  %v5906 = vmax.f32 %v5678, 0.0
  %v5907 = vmax.f32 %v5679, 0.0
  %v5908 = vmax.f32 %v5680, 0.0
  %v5909 = vmax.f32 %v5681, 0.0
  %v5910 = vmax.f32 %v5682, 0.0
  %v5911 = vmax.f32 %v5683, 0.0
  %v5912 = vmax.f32 %v5684, 0.0
  %v5913 = vmax.f32 %v5685, 0.0
  %v5914 = vmax.f32 %v5686, 0.0
  %v5915 = vmax.f32 %v5687, 0.0
  %v5916 = vmax.f32 %v5688, 0.0
  %v5917 = vmax.f32 %v5689, 0.0
  %v5918 = vmax.f32 %v5690, 0.0
  %v5919 = vmax.f32 %v5691, 0.0
  %v5920 = vmax.f32 %v5692, 0.0
  %v5921 = vmax.f32 %v5693, 0.0
  %v5922 = vmax.f32 %v5694, 0.0
  %v5923 = vmax.f32 %v5695, 0.0
  %v5924 = vmax.f32 %v5696, 0.0
  %v5925 = vmax.f32 %v5697, 0.0
  %v5926 = vmax.f32 %v5698, 0.0
  %v5927 = vmax.f32 %v5699, 0.0
  %v5928 = vmax.f32 %v5700, 0.0
  %v5929 = vmax.f32 %v5701, 0.0
  %v5930 = vmax.f32 %v5702, 0.0
  %v5931 = vmax.f32 %v5703, 0.0
  %v5932 = vmax.f32 %v5704, 0.0
  %v5933 = vmax.f32 %v5705, 0.0
  %v5934 = vmax.f32 %v5706, 0.0
  %v5935 = vmax.f32 %v5707, 0.0
  %v5936 = vmax.f32 %v5708, 0.0
  %v5937 = vmax.f32 %v5709, 0.0
  %v5938 = vmax.f32 %v5710, 0.0
  %v5939 = vmax.f32 %v5711, 0.0
  %v5940 = vmax.f32 %v5712, 0.0
  %v5941 = vmax.f32 %v5713, 0.0
  %v5942 = vmax.f32 %v5714, 0.0
  %v5943 = vmax.f32 %v5715, 0.0
  %v5944 = vmax.f32 %v5716, 0.0
  %v5945 = vmax.f32 %v5717, 0.0
  %v5946 = vmax.f32 %v5718, 0.0
  %v5947 = vmax.f32 %v5719, 0.0
  %v5948 = vmax.f32 %v5720, 0.0
  %v5949 = vmax.f32 %v5721, 0.0
  %v5950 = vmax.f32 %v5722, 0.0
  %v5951 = vmax.f32 %v5723, 0.0
  %v5952 = vmax.f32 %v5724, 0.0
  %v5953 = vmax.f32 %v5725, 0.0
  %v5954 = vmax.f32 %v5726, 0.0
  %v5955 = vmax.f32 %v5727, 0.0
  %v5956 = vmax.f32 %v5728, 0.0
  %v5957 = vmax.f32 %v5729, 0.0
  %v5958 = vmax.f32 %v5730, 0.0
  %v5959 = vmax.f32 %v5731, 0.0
  %v5960 = vmax.f32 %v5732, 0.0
  %v5961 = vmax.f32 %v5733, 0.0
  %v5962 = vmax.f32 %v5734, 0.0
  %v5963 = vmax.f32 %v5735, 0.0
  %v5964 = vmax.f32 %v5736, 0.0
  %v5965 = vmax.f32 %v5737, 0.0
  %v5966 = vmax.f32 %v5738, 0.0
  %v5967 = vmax.f32 %v5739, 0.0
  %v5968 = vmax.f32 %v5740, 0.0
  %v5969 = vmax.f32 %v5741, 0.0
  %v5970 = vmax.f32 %v5742, 0.0
  %v5971 = vmax.f32 %v5743, 0.0
  %v5972 = vmax.f32 %v5744, 0.0
  %v5973 = vmax.f32 %v5745, 0.0
  %v5974 = vmax.f32 %v5746, 0.0
  %v5975 = vmax.f32 %v5747, 0.0
  %v5976 = vmax.f32 %v5748, 0.0
  %v5977 = vmax.f32 %v5749, 0.0
  %v5978 = vmax.f32 %v5750, 0.0
  %v5979 = vmax.f32 %v5751, 0.0
  %v5980 = vmax.f32 %v5752, 0.0
  %v5981 = vmax.f32 %v5753, 0.0
  %v5982 = vmax.f32 %v5754, 0.0
  %v5983 = vmax.f32 %v5755, 0.0
  %v5984 = vmax.f32 %v5756, 0.0
  %v5985 = vmax.f32 %v5757, 0.0
  %v5986 = vmax.f32 %v5758, 0.0
  %v5987 = vmax.f32 %v5759, 0.0
  %v5988 = vmax.f32 %v5760, 0.0
  %v5989 = vmax.f32 %v5761, 0.0
  %v5990 = vmax.f32 %v5762, 0.0
  %v5991 = vmax.f32 %v5763, 0.0
  %v5992 = vmax.f32 %v5764, 0.0
  %v5993 = vmax.f32 %v5765, 0.0
  %v5994 = vmax.f32 %v5766, 0.0
  %v5995 = vmax.f32 %v5767, 0.0
  %v5996 = vmax.f32 %v5768, 0.0
  %v5997 = vmax.f32 %v5769, 0.0
  %v5998 = vmax.f32 %v5770, 0.0
  %v5999 = vmax.f32 %v5771, 0.0
  %v6000 = vmax.f32 %v5772, 0.0
  %v6001 = vmax.f32 %v5773, 0.0
  %v6002 = vmax.f32 %v5774, 0.0
  %v6003 = vmax.f32 %v5775, 0.0
  %v6004 = vmax.f32 %v5776, 0.0
  %v6005 = vmax.f32 %v5777, 0.0
  %v6006 = vmax.f32 %v5778, 0.0
  %v6007 = vmax.f32 %v5779, 0.0
  %v6008 = vmax.f32 %v5780, 0.0
  %v6009 = vmax.f32 %v5781, 0.0
  %v6010 = vmax.f32 %v5782, 0.0
  %v6011 = vmax.f32 %v5783, 0.0
  %v6012 = vmax.f32 %v5784, 0.0
  %v6013 = vmax.f32 %v5785, 0.0
  %v6014 = vmax.f32 %v5786, 0.0
  %v6015 = vmax.f32 %v5787, 0.0
  %v6016 = vmax.f32 %v5788, 0.0
  %v6017 = vmax.f32 %v5789, 0.0
  %v6018 = vmax.f32 %v5790, 0.0
  %v6019 = vmax.f32 %v5791, 0.0
  %v6020 = vmax.f32 %v5792, 0.0
  %v6021 = vmax.f32 %v5793, 0.0
  %v6022 = vmax.f32 %v5794, 0.0
  %v6023 = vmax.f32 %v5795, 0.0
  %v6024 = vmax.f32 %v5796, 0.0
  %v6025 = vmax.f32 %v5797, 0.0
  %v6026 = vmax.f32 %v5798, 0.0
  %v6027 = vmax.f32 %v5799, 0.0
  %v6028 = vmax.f32 %v5800, 0.0
  %v6029 = vmax.f32 %v5801, 0.0
  %v6030 = vmax.f32 %v5802, 0.0
  %v6031 = vmax.f32 %v5803, 0.0
  %v6032 = vmax.f32 %v5804, 0.0
  %v6033 = vmax.f32 %v5805, 0.0
  %v6034 = vmax.f32 %v5806, 0.0
  %v6035 = vmax.f32 %v5807, 0.0
  %v6036 = vmax.f32 %v5808, 0.0
  %v6037 = vmax.f32 %v5809, 0.0
  %v6038 = vmax.f32 %v5810, 0.0
  %v6039 = vmax.f32 %v5811, 0.0
  %v6040 = vmax.f32 %v5812, 0.0
  %v6041 = vmax.f32 %v5813, 0.0
  %v6042 = vmax.f32 %v5814, 0.0
  %v6043 = vmax.f32 %v5815, 0.0
  %v6044 = vmax.f32 %v5816, 0.0
  %v6045 = vmax.f32 %v5817, 0.0
  %v6046 = vmax.f32 %v5818, 0.0
  %v6047 = vmax.f32 %v5819, 0.0
  %v6048 = vmax.f32 %v5820, 0.0
  %v6049 = vmax.f32 %v5821, 0.0
  %v6050 = vmax.f32 %v5822, 0.0
  %v6051 = vmax.f32 %v5823, 0.0
  %v6052 = vmax.f32 %v5824, 0.0
  %v6053 = vmax.f32 %v5825, 0.0
  %v6054 = vmax.f32 %v5826, 0.0
  %v6055 = vmax.f32 %v5827, 0.0
  %v6056 = vmax.f32 %v5828, 0.0
  %v6057 = vmax.f32 %v5829, 0.0
  %v6058 = vmax.f32 %v5830, 0.0
  %v6059 = vmax.f32 %v5831, 0.0
  %v6060 = vmax.f32 %v5832, 0.0
  %v6061 = vmax.f32 %v5833, 0.0
  %v6062 = vmax.f32 %v5834, 0.0
  %v6063 = vmax.f32 %v5835, 0.0
  %v6064 = vmax.f32 %v5836, 0.0
  %v6065 = vmax.f32 %v5837, 0.0
  %v6066 = vmax.f32 %v5838, 0.0
  %v6067 = vmax.f32 %v5839, 0.0
  %v6068 = vmax.f32 %v5840, 0.0
  %v6069 = vmax.f32 %v5841, 0.0
  %v6070 = vmax.f32 %v5842, 0.0
  %v6071 = vmax.f32 %v5843, 0.0
  %v6072 = vmax.f32 %v5844, 0.0
  %v6073 = vmax.f32 %v5845, 0.0
  %v6074 = vmax.f32 %v5846, 0.0
  %v6075 = vmax.f32 %v5847, 0.0
  %v6076 = vmax.f32 %v5848, 0.0
  %v6077 = vmax.f32 %v5849, 0.0
  %v6078 = vmax.f32 %v5850, 0.0
  %v6079 = vmax.f32 %v5851, 0.0
  %v6080 = vmax.f32 %v5852, 0.0
  %v6081 = vmax.f32 %v5853, 0.0
  %v6082 = vmax.f32 %v5854, 0.0
  %v6083 = vmax.f32 %v5855, 0.0
  %v6084 = vmax.f32 %v5856, 0.0
  %v6085 = vmax.f32 %v5857, 0.0
  %v6086 = vmax.f32 %v5858, 0.0
  %v6087 = vmax.f32 %v5859, 0.0
  %v6088 = vmax.f32 %v5860, 0.0
  %v6089 = vmax.f32 %v5861, 0.0
  %v6090 = vmax.f32 %v5862, 0.0
  %v6091 = vmax.f32 %v5863, 0.0
  %v6092 = vmax.f32 %v5864, 0.0
  %v6093 = vmax.f32 %v5865, 0.0
  %v6094 = vmax.f32 %v5866, 0.0
  %v6095 = vmax.f32 %v5867, 0.0
  %v6096 = vmax.f32 %v5868, 0.0
  %v6097 = vmax.f32 %v5869, 0.0
  %v6098 = vmax.f32 %v5870, 0.0
  %v6099 = vmax.f32 %v5871, 0.0
  %v6100 = vmax.f32 %v5872, 0.0
  %v6101 = vmax.f32 %v5873, 0.0
  %v6102 = vmax.f32 %v5874, 0.0
  %v6103 = vmax.f32 %v5875, 0.0
  %v6104 = vmax.f32 %v5876, 0.0
  %v6105 = vmax.f32 %v5877, 0.0
  %v6106 = vmax.f32 %v5878, 0.0
  %v6107 = vmax.f32 %v5879, 0.0
  %v6108 = vmax.f32 %v5880, 0.0
  %v6109 = vmax.f32 %v5881, 0.0
  %v6110 = vmax.f32 %v5882, 0.0
  %v6111 = vmax.f32 %v5883, 0.0
  %v6112 = vmax.f32 %v5884, 0.0
  %v6113 = vmax.f32 %v5885, 0.0
  %v6114 = vadd.f32 %v5886, 0.001
  %v6115 = vadd.f32 %v5887, 0.001
  %v6116 = vadd.f32 %v5888, 0.001
  %v6117 = vadd.f32 %v5889, 0.001
  %v6118 = vadd.f32 %v5890, 0.001
  %v6119 = vadd.f32 %v5891, 0.001
  %v6120 = vadd.f32 %v5892, 0.001
  %v6121 = vadd.f32 %v5893, 0.001
  %v6122 = vadd.f32 %v5894, 0.001
  %v6123 = vadd.f32 %v5895, 0.001
  %v6124 = vadd.f32 %v5896, 0.001
  %v6125 = vadd.f32 %v5897, 0.001
  %v6126 = vadd.f32 %v5898, 0.001
  %v6127 = vadd.f32 %v5899, 0.001
  %v6128 = vadd.f32 %v5900, 0.001
  %v6129 = vadd.f32 %v5901, 0.001
  %v6130 = vadd.f32 %v5902, 0.001
  %v6131 = vadd.f32 %v5903, 0.001
  %v6132 = vadd.f32 %v5904, 0.001
  %v6133 = vadd.f32 %v5905, 0.001
  %v6134 = vadd.f32 %v5906, 0.001
  %v6135 = vadd.f32 %v5907, 0.001
  %v6136 = vadd.f32 %v5908, 0.001
  %v6137 = vadd.f32 %v5909, 0.001
  %v6138 = vadd.f32 %v5910, 0.001
  %v6139 = vadd.f32 %v5911, 0.001
  %v6140 = vadd.f32 %v5912, 0.001
  %v6141 = vadd.f32 %v5913, 0.001
  %v6142 = vadd.f32 %v5914, 0.001
  %v6143 = vadd.f32 %v5915, 0.001
  %v6144 = vadd.f32 %v5916, 0.001
  %v6145 = vadd.f32 %v5917, 0.001
  %v6146 = vadd.f32 %v5918, 0.001
  %v6147 = vadd.f32 %v5919, 0.001
  %v6148 = vadd.f32 %v5920, 0.001
  %v6149 = vadd.f32 %v5921, 0.001
  %v6150 = vadd.f32 %v5922, 0.001
  %v6151 = vadd.f32 %v5923, 0.001
  %v6152 = vadd.f32 %v5924, 0.001
  %v6153 = vadd.f32 %v5925, 0.001
  %v6154 = vadd.f32 %v5926, 0.001
  %v6155 = vadd.f32 %v5927, 0.001
  %v6156 = vadd.f32 %v5928, 0.001
  %v6157 = vadd.f32 %v5929, 0.001
  %v6158 = vadd.f32 %v5930, 0.001
  %v6159 = vadd.f32 %v5931, 0.001
  %v6160 = vadd.f32 %v5932, 0.001
  %v6161 = vadd.f32 %v5933, 0.001
  %v6162 = vadd.f32 %v5934, 0.001
  %v6163 = vadd.f32 %v5935, 0.001
  %v6164 = vadd.f32 %v5936, 0.001
  %v6165 = vadd.f32 %v5937, 0.001
  %v6166 = vadd.f32 %v5938, 0.001
  %v6167 = vadd.f32 %v5939, 0.001
  %v6168 = vadd.f32 %v5940, 0.001
  %v6169 = vadd.f32 %v5941, 0.001
  %v6170 = vadd.f32 %v5942, 0.001
  %v6171 = vadd.f32 %v5943, 0.001
  %v6172 = vadd.f32 %v5944, 0.001
  %v6173 = vadd.f32 %v5945, 0.001
  %v6174 = vadd.f32 %v5946, 0.001
  %v6175 = vadd.f32 %v5947, 0.001
  %v6176 = vadd.f32 %v5948, 0.001
  %v6177 = vadd.f32 %v5949, 0.001
  %v6178 = vadd.f32 %v5950, 0.001
  %v6179 = vadd.f32 %v5951, 0.001
  %v6180 = vadd.f32 %v5952, 0.001
  %v6181 = vadd.f32 %v5953, 0.001
  %v6182 = vadd.f32 %v5954, 0.001
  %v6183 = vadd.f32 %v5955, 0.001
  %v6184 = vadd.f32 %v5956, 0.001
  %v6185 = vadd.f32 %v5957, 0.001
  %v6186 = vadd.f32 %v5958, 0.001
  %v6187 = vadd.f32 %v5959, 0.001
  %v6188 = vadd.f32 %v5960, 0.001
  %v6189 = vadd.f32 %v5961, 0.001
  %v6190 = vadd.f32 %v5962, 0.001
  %v6191 = vadd.f32 %v5963, 0.001
  %v6192 = vadd.f32 %v5964, 0.001
  %v6193 = vadd.f32 %v5965, 0.001
  %v6194 = vadd.f32 %v5966, 0.001
  %v6195 = vadd.f32 %v5967, 0.001
  %v6196 = vadd.f32 %v5968, 0.001
  %v6197 = vadd.f32 %v5969, 0.001
  %v6198 = vadd.f32 %v5970, 0.001
  %v6199 = vadd.f32 %v5971, 0.001
  %v6200 = vadd.f32 %v5972, 0.001
  %v6201 = vadd.f32 %v5973, 0.001
  %v6202 = vadd.f32 %v5974, 0.001
  %v6203 = vadd.f32 %v5975, 0.001
  %v6204 = vadd.f32 %v5976, 0.001
  %v6205 = vadd.f32 %v5977, 0.001
  %v6206 = vadd.f32 %v5978, 0.001
  %v6207 = vadd.f32 %v5979, 0.001
  %v6208 = vadd.f32 %v5980, 0.001
  %v6209 = vadd.f32 %v5981, 0.001
  %v6210 = vadd.f32 %v5982, 0.001
  %v6211 = vadd.f32 %v5983, 0.001
  %v6212 = vadd.f32 %v5984, 0.001
  %v6213 = vadd.f32 %v5985, 0.001
  %v6214 = vadd.f32 %v5986, 0.001
  %v6215 = vadd.f32 %v5987, 0.001
  %v6216 = vadd.f32 %v5988, 0.001
  %v6217 = vadd.f32 %v5989, 0.001
  %v6218 = vadd.f32 %v5990, 0.001
  %v6219 = vadd.f32 %v5991, 0.001
  %v6220 = vadd.f32 %v5992, 0.001
  %v6221 = vadd.f32 %v5993, 0.001
  %v6222 = vadd.f32 %v5994, 0.001
  %v6223 = vadd.f32 %v5995, 0.001
  %v6224 = vadd.f32 %v5996, 0.001
  %v6225 = vadd.f32 %v5997, 0.001
  %v6226 = vadd.f32 %v5998, 0.001
  %v6227 = vadd.f32 %v5999, 0.001
  %v6228 = vadd.f32 %v6000, 0.001
  %v6229 = vadd.f32 %v6001, 0.001
  %v6230 = vadd.f32 %v6002, 0.001
  %v6231 = vadd.f32 %v6003, 0.001
  %v6232 = vadd.f32 %v6004, 0.001
  %v6233 = vadd.f32 %v6005, 0.001
  %v6234 = vadd.f32 %v6006, 0.001
  %v6235 = vadd.f32 %v6007, 0.001
  %v6236 = vadd.f32 %v6008, 0.001
  %v6237 = vadd.f32 %v6009, 0.001
  %v6238 = vadd.f32 %v6010, 0.001
  %v6239 = vadd.f32 %v6011, 0.001
  %v6240 = vadd.f32 %v6012, 0.001
  %v6241 = vadd.f32 %v6013, 0.001
  %v6242 = vadd.f32 %v6014, 0.001
  %v6243 = vadd.f32 %v6015, 0.001
  %v6244 = vadd.f32 %v6016, 0.001
  %v6245 = vadd.f32 %v6017, 0.001
  %v6246 = vadd.f32 %v6018, 0.001
  %v6247 = vadd.f32 %v6019, 0.001
  %v6248 = vadd.f32 %v6020, 0.001
  %v6249 = vadd.f32 %v6021, 0.001
  %v6250 = vadd.f32 %v6022, 0.001
  %v6251 = vadd.f32 %v6023, 0.001
  %v6252 = vadd.f32 %v6024, 0.001
  %v6253 = vadd.f32 %v6025, 0.001
  %v6254 = vadd.f32 %v6026, 0.001
  %v6255 = vadd.f32 %v6027, 0.001
  %v6256 = vadd.f32 %v6028, 0.001
  %v6257 = vadd.f32 %v6029, 0.001
  %v6258 = vadd.f32 %v6030, 0.001
  %v6259 = vadd.f32 %v6031, 0.001
  %v6260 = vadd.f32 %v6032, 0.001
  %v6261 = vadd.f32 %v6033, 0.001
  %v6262 = vadd.f32 %v6034, 0.001
  %v6263 = vadd.f32 %v6035, 0.001
  %v6264 = vadd.f32 %v6036, 0.001
  %v6265 = vadd.f32 %v6037, 0.001
  %v6266 = vadd.f32 %v6038, 0.001
  %v6267 = vadd.f32 %v6039, 0.001
  %v6268 = vadd.f32 %v6040, 0.001
  %v6269 = vadd.f32 %v6041, 0.001
  %v6270 = vadd.f32 %v6042, 0.001
  %v6271 = vadd.f32 %v6043, 0.001
  %v6272 = vadd.f32 %v6044, 0.001
  %v6273 = vadd.f32 %v6045, 0.001
  %v6274 = vadd.f32 %v6046, 0.001
  %v6275 = vadd.f32 %v6047, 0.001
  %v6276 = vadd.f32 %v6048, 0.001
  %v6277 = vadd.f32 %v6049, 0.001
  %v6278 = vadd.f32 %v6050, 0.001
  %v6279 = vadd.f32 %v6051, 0.001
  %v6280 = vadd.f32 %v6052, 0.001
  %v6281 = vadd.f32 %v6053, 0.001
  %v6282 = vadd.f32 %v6054, 0.001
  %v6283 = vadd.f32 %v6055, 0.001
  %v6284 = vadd.f32 %v6056, 0.001
  %v6285 = vadd.f32 %v6057, 0.001
  %v6286 = vadd.f32 %v6058, 0.001
  %v6287 = vadd.f32 %v6059, 0.001
  %v6288 = vadd.f32 %v6060, 0.001
  %v6289 = vadd.f32 %v6061, 0.001
  %v6290 = vadd.f32 %v6062, 0.001
  %v6291 = vadd.f32 %v6063, 0.001
  %v6292 = vadd.f32 %v6064, 0.001
  %v6293 = vadd.f32 %v6065, 0.001
  %v6294 = vadd.f32 %v6066, 0.001
  %v6295 = vadd.f32 %v6067, 0.001
  %v6296 = vadd.f32 %v6068, 0.001
  %v6297 = vadd.f32 %v6069, 0.001
  %v6298 = vadd.f32 %v6070, 0.001
  %v6299 = vadd.f32 %v6071, 0.001
  %v6300 = vadd.f32 %v6072, 0.001
  %v6301 = vadd.f32 %v6073, 0.001
  %v6302 = vadd.f32 %v6074, 0.001
  %v6303 = vadd.f32 %v6075, 0.001
  %v6304 = vadd.f32 %v6076, 0.001
  %v6305 = vadd.f32 %v6077, 0.001
  %v6306 = vadd.f32 %v6078, 0.001
  %v6307 = vadd.f32 %v6079, 0.001
  %v6308 = vadd.f32 %v6080, 0.001
  %v6309 = vadd.f32 %v6081, 0.001
  %v6310 = vadd.f32 %v6082, 0.001
  %v6311 = vadd.f32 %v6083, 0.001
  %v6312 = vadd.f32 %v6084, 0.001
  %v6313 = vadd.f32 %v6085, 0.001
  %v6314 = vadd.f32 %v6086, 0.001
  %v6315 = vadd.f32 %v6087, 0.001
  %v6316 = vadd.f32 %v6088, 0.001
  %v6317 = vadd.f32 %v6089, 0.001
  %v6318 = vadd.f32 %v6090, 0.001
  %v6319 = vadd.f32 %v6091, 0.001
  %v6320 = vadd.f32 %v6092, 0.001
  %v6321 = vadd.f32 %v6093, 0.001
  %v6322 = vadd.f32 %v6094, 0.001
  %v6323 = vadd.f32 %v6095, 0.001
  %v6324 = vadd.f32 %v6096, 0.001
  %v6325 = vadd.f32 %v6097, 0.001
  %v6326 = vadd.f32 %v6098, 0.001
  %v6327 = vadd.f32 %v6099, 0.001
  %v6328 = vadd.f32 %v6100, 0.001
  %v6329 = vadd.f32 %v6101, 0.001
  %v6330 = vadd.f32 %v6102, 0.001
  %v6331 = vadd.f32 %v6103, 0.001
  %v6332 = vadd.f32 %v6104, 0.001
  %v6333 = vadd.f32 %v6105, 0.001
  %v6334 = vadd.f32 %v6106, 0.001
  %v6335 = vadd.f32 %v6107, 0.001
  %v6336 = vadd.f32 %v6108, 0.001
  %v6337 = vadd.f32 %v6109, 0.001
  %v6338 = vadd.f32 %v6110, 0.001
  %v6339 = vadd.f32 %v6111, 0.001
  %v6340 = vadd.f32 %v6112, 0.001
  %v6341 = vadd.f32 %v6113, 0.001
  %v6342 = vrsqrt.pop %v6114
  %v6343 = vrsqrt.pop %v6115
  %v6344 = vrsqrt.pop %v6116
  %v6345 = vrsqrt.pop %v6117
  %v6346 = vrsqrt.pop %v6118
  %v6347 = vrsqrt.pop %v6119
  %v6348 = vrsqrt.pop %v6120
  %v6349 = vrsqrt.pop %v6121
  %v6350 = vrsqrt.pop %v6122
  %v6351 = vrsqrt.pop %v6123
  %v6352 = vrsqrt.pop %v6124
  %v6353 = vrsqrt.pop %v6125
  %v6354 = vrsqrt.pop %v6126
  %v6355 = vrsqrt.pop %v6127
  %v6356 = vrsqrt.pop %v6128
  %v6357 = vrsqrt.pop %v6129
  %v6358 = vrsqrt.pop %v6130
  %v6359 = vrsqrt.pop %v6131
  %v6360 = vrsqrt.pop %v6132
  %v6361 = vrsqrt.pop %v6133
  %v6362 = vrsqrt.pop %v6134
  %v6363 = vrsqrt.pop %v6135
  %v6364 = vrsqrt.pop %v6136
  %v6365 = vrsqrt.pop %v6137
  %v6366 = vrsqrt.pop %v6138
  %v6367 = vrsqrt.pop %v6139
  %v6368 = vrsqrt.pop %v6140
  %v6369 = vrsqrt.pop %v6141
  %v6370 = vrsqrt.pop %v6142
  %v6371 = vrsqrt.pop %v6143
  %v6372 = vrsqrt.pop %v6144
  %v6373 = vrsqrt.pop %v6145
  %v6374 = vrsqrt.pop %v6146
  %v6375 = vrsqrt.pop %v6147
  %v6376 = vrsqrt.pop %v6148
  %v6377 = vrsqrt.pop %v6149
  %v6378 = vrsqrt.pop %v6150
  %v6379 = vrsqrt.pop %v6151
  %v6380 = vrsqrt.pop %v6152
  %v6381 = vrsqrt.pop %v6153
  %v6382 = vrsqrt.pop %v6154
  %v6383 = vrsqrt.pop %v6155
  %v6384 = vrsqrt.pop %v6156
  %v6385 = vrsqrt.pop %v6157
  %v6386 = vrsqrt.pop %v6158
  %v6387 = vrsqrt.pop %v6159
  %v6388 = vrsqrt.pop %v6160
  %v6389 = vrsqrt.pop %v6161
  %v6390 = vrsqrt.pop %v6162
  %v6391 = vrsqrt.pop %v6163
  %v6392 = vrsqrt.pop %v6164
  %v6393 = vrsqrt.pop %v6165
  %v6394 = vrsqrt.pop %v6166
  %v6395 = vrsqrt.pop %v6167
  %v6396 = vrsqrt.pop %v6168
  %v6397 = vrsqrt.pop %v6169
  %v6398 = vrsqrt.pop %v6170
  %v6399 = vrsqrt.pop %v6171
  %v6400 = vrsqrt.pop %v6172
  %v6401 = vrsqrt.pop %v6173
  %v6402 = vrsqrt.pop %v6174
  %v6403 = vrsqrt.pop %v6175
  %v6404 = vrsqrt.pop %v6176
  %v6405 = vrsqrt.pop %v6177
  %v6406 = vrsqrt.pop %v6178
  %v6407 = vrsqrt.pop %v6179
  %v6408 = vrsqrt.pop %v6180
  %v6409 = vrsqrt.pop %v6181
  %v6410 = vrsqrt.pop %v6182
  %v6411 = vrsqrt.pop %v6183
  %v6412 = vrsqrt.pop %v6184
  %v6413 = vrsqrt.pop %v6185
  %v6414 = vrsqrt.pop %v6186
  %v6415 = vrsqrt.pop %v6187
  %v6416 = vrsqrt.pop %v6188
  %v6417 = vrsqrt.pop %v6189
  %v6418 = vrsqrt.pop %v6190
  %v6419 = vrsqrt.pop %v6191
  %v6420 = vrsqrt.pop %v6192
  %v6421 = vrsqrt.pop %v6193
  %v6422 = vrsqrt.pop %v6194
  %v6423 = vrsqrt.pop %v6195
  %v6424 = vrsqrt.pop %v6196
  %v6425 = vrsqrt.pop %v6197
  %v6426 = vrsqrt.pop %v6198
  %v6427 = vrsqrt.pop %v6199
  %v6428 = vrsqrt.pop %v6200
  %v6429 = vrsqrt.pop %v6201
  %v6430 = vrsqrt.pop %v6202
  %v6431 = vrsqrt.pop %v6203
  %v6432 = vrsqrt.pop %v6204
  %v6433 = vrsqrt.pop %v6205
  %v6434 = vrsqrt.pop %v6206
  %v6435 = vrsqrt.pop %v6207
  %v6436 = vrsqrt.pop %v6208
  %v6437 = vrsqrt.pop %v6209
  %v6438 = vrsqrt.pop %v6210
  %v6439 = vrsqrt.pop %v6211
  %v6440 = vrsqrt.pop %v6212
  %v6441 = vrsqrt.pop %v6213
  %v6442 = vrsqrt.pop %v6214
  %v6443 = vrsqrt.pop %v6215
  %v6444 = vrsqrt.pop %v6216
  %v6445 = vrsqrt.pop %v6217
  %v6446 = vrsqrt.pop %v6218
  %v6447 = vrsqrt.pop %v6219
  %v6448 = vrsqrt.pop %v6220
  %v6449 = vrsqrt.pop %v6221
  %v6450 = vrsqrt.pop %v6222
  %v6451 = vrsqrt.pop %v6223
  %v6452 = vrsqrt.pop %v6224
  %v6453 = vrsqrt.pop %v6225
  %v6454 = vrsqrt.pop %v6226
  %v6455 = vrsqrt.pop %v6227
  %v6456 = vrsqrt.pop %v6228
  %v6457 = vrsqrt.pop %v6229
  %v6458 = vrsqrt.pop %v6230
  %v6459 = vrsqrt.pop %v6231
  %v6460 = vrsqrt.pop %v6232
  %v6461 = vrsqrt.pop %v6233
  %v6462 = vrsqrt.pop %v6234
  %v6463 = vrsqrt.pop %v6235
  %v6464 = vrsqrt.pop %v6236
  %v6465 = vrsqrt.pop %v6237
  %v6466 = vrsqrt.pop %v6238
  %v6467 = vrsqrt.pop %v6239
  %v6468 = vrsqrt.pop %v6240
  %v6469 = vrsqrt.pop %v6241
  %v6470 = vrsqrt.pop %v6242
  %v6471 = vrsqrt.pop %v6243
  %v6472 = vrsqrt.pop %v6244
  %v6473 = vrsqrt.pop %v6245
  %v6474 = vrsqrt.pop %v6246
  %v6475 = vrsqrt.pop %v6247
  %v6476 = vrsqrt.pop %v6248
  %v6477 = vrsqrt.pop %v6249
  %v6478 = vrsqrt.pop %v6250
  %v6479 = vrsqrt.pop %v6251
  %v6480 = vrsqrt.pop %v6252
  %v6481 = vrsqrt.pop %v6253
  %v6482 = vrsqrt.pop %v6254
  %v6483 = vrsqrt.pop %v6255
  %v6484 = vrsqrt.pop %v6256
  %v6485 = vrsqrt.pop %v6257
  %v6486 = vrsqrt.pop %v6258
  %v6487 = vrsqrt.pop %v6259
  %v6488 = vrsqrt.pop %v6260
  %v6489 = vrsqrt.pop %v6261
  %v6490 = vrsqrt.pop %v6262
  %v6491 = vrsqrt.pop %v6263
  %v6492 = vrsqrt.pop %v6264
  %v6493 = vrsqrt.pop %v6265
  %v6494 = vrsqrt.pop %v6266
  %v6495 = vrsqrt.pop %v6267
  %v6496 = vrsqrt.pop %v6268
  %v6497 = vrsqrt.pop %v6269
  %v6498 = vrsqrt.pop %v6270
  %v6499 = vrsqrt.pop %v6271
  %v6500 = vrsqrt.pop %v6272
  %v6501 = vrsqrt.pop %v6273
  %v6502 = vrsqrt.pop %v6274
  %v6503 = vrsqrt.pop %v6275
  %v6504 = vrsqrt.pop %v6276
  %v6505 = vrsqrt.pop %v6277
  %v6506 = vrsqrt.pop %v6278
  %v6507 = vrsqrt.pop %v6279
  %v6508 = vrsqrt.pop %v6280
  %v6509 = vrsqrt.pop %v6281
  %v6510 = vrsqrt.pop %v6282
  %v6511 = vrsqrt.pop %v6283
  %v6512 = vrsqrt.pop %v6284
  %v6513 = vrsqrt.pop %v6285
  %v6514 = vrsqrt.pop %v6286
  %v6515 = vrsqrt.pop %v6287
  %v6516 = vrsqrt.pop %v6288
  %v6517 = vrsqrt.pop %v6289
  %v6518 = vrsqrt.pop %v6290
  %v6519 = vrsqrt.pop %v6291
  %v6520 = vrsqrt.pop %v6292
  %v6521 = vrsqrt.pop %v6293
  %v6522 = vrsqrt.pop %v6294
  %v6523 = vrsqrt.pop %v6295
  %v6524 = vrsqrt.pop %v6296
  %v6525 = vrsqrt.pop %v6297
  %v6526 = vrsqrt.pop %v6298
  %v6527 = vrsqrt.pop %v6299
  %v6528 = vrsqrt.pop %v6300
  %v6529 = vrsqrt.pop %v6301
  %v6530 = vrsqrt.pop %v6302
  %v6531 = vrsqrt.pop %v6303
  %v6532 = vrsqrt.pop %v6304
  %v6533 = vrsqrt.pop %v6305
  %v6534 = vrsqrt.pop %v6306
  %v6535 = vrsqrt.pop %v6307
  %v6536 = vrsqrt.pop %v6308
  %v6537 = vrsqrt.pop %v6309
  %v6538 = vrsqrt.pop %v6310
  %v6539 = vrsqrt.pop %v6311
  %v6540 = vrsqrt.pop %v6312
  %v6541 = vrsqrt.pop %v6313
  %v6542 = vrsqrt.pop %v6314
  %v6543 = vrsqrt.pop %v6315
  %v6544 = vrsqrt.pop %v6316
  %v6545 = vrsqrt.pop %v6317
  %v6546 = vrsqrt.pop %v6318
  %v6547 = vrsqrt.pop %v6319
  %v6548 = vrsqrt.pop %v6320
  %v6549 = vrsqrt.pop %v6321
  %v6550 = vrsqrt.pop %v6322
  %v6551 = vrsqrt.pop %v6323
  %v6552 = vrsqrt.pop %v6324
  %v6553 = vrsqrt.pop %v6325
  %v6554 = vrsqrt.pop %v6326
  %v6555 = vrsqrt.pop %v6327
  %v6556 = vrsqrt.pop %v6328
  %v6557 = vrsqrt.pop %v6329
  %v6558 = vrsqrt.pop %v6330
  %v6559 = vrsqrt.pop %v6331
  %v6560 = vrsqrt.pop %v6332
  %v6561 = vrsqrt.pop %v6333
  %v6562 = vrsqrt.pop %v6334
  %v6563 = vrsqrt.pop %v6335
  %v6564 = vrsqrt.pop %v6336
  %v6565 = vrsqrt.pop %v6337
  %v6566 = vrsqrt.pop %v6338
  %v6567 = vrsqrt.pop %v6339
  %v6568 = vrsqrt.pop %v6340
  %v6569 = vrsqrt.pop %v6341
  %v6570 = vld [vmem:[%s2] sm:$0xff]
  %v6571 = vld [vmem:[%s2 + $0x8] sm:$0xff]
  %v6572 = vld [vmem:[%s2 + $0x10] sm:$0xff]
  %v6573 = vld [vmem:[%s2 + $0x18] sm:$0xff]
  %v6574 = vld [vmem:[%s2 + $0x20] sm:$0xff]
  %v6575 = vld [vmem:[%s2 + $0x28] sm:$0xff]
  %v6576 = vld [vmem:[%s2 + $0x30] sm:$0xff]
  %v6577 = vld [vmem:[%s2 + $0x38] sm:$0xff]
  %v6578 = vld [vmem:[%s2 + $0x40] sm:$0xff]
  %v6579 = vld [vmem:[%s2 + $0x48] sm:$0xff]
  %v6580 = vld [vmem:[%s2 + $0x50] sm:$0xff]
  %v6581 = vld [vmem:[%s2 + $0x58] sm:$0xff]
  %v6582 = vld [vmem:[%s2 + $0x60] sm:$0xff]
  %v6583 = vld [vmem:[%s2 + $0x68] sm:$0xff]
  %v6584 = vld [vmem:[%s2 + $0x70] sm:$0xff]
  %v6585 = vld [vmem:[%s2 + $0x78] sm:$0xff]
  %v6586 = vld [vmem:[%s2 + $0x80] sm:$0xff]
  %v6587 = vld [vmem:[%s2 + $0x88] sm:$0xff]
  %v6588 = vld [vmem:[%s2 + $0x90] sm:$0xff]
  %v6589 = vld [vmem:[%s2 + $0x98] sm:$0xff]
  %v6590 = vld [vmem:[%s2 + $0xa0] sm:$0xff]
  %v6591 = vld [vmem:[%s2 + $0xa8] sm:$0xff]
  %v6592 = vld [vmem:[%s2 + $0xb0] sm:$0xff]
  %v6593 = vld [vmem:[%s2 + $0xb8] sm:$0xff]
  %v6594 = vld [vmem:[%s2 + $0xc0] sm:$0xff]
  %v6595 = vld [vmem:[%s2 + $0xc8] sm:$0xff]
  %v6596 = vld [vmem:[%s2 + $0xd0] sm:$0xff]
  %v6597 = vld [vmem:[%s2 + $0xd8] sm:$0xff]
  %v6598 = vld [vmem:[%s2 + $0xe0] sm:$0xff]
  %v6599 = vld [vmem:[%s2 + $0xe8] sm:$0xff]
  %v6600 = vld [vmem:[%s2 + $0xf0] sm:$0xff]
  %v6601 = vld [vmem:[%s2 + $0xf8] sm:$0xff]
  %v6602 = vld [vmem:[%s2 + $0x100] sm:$0xff]
  %v6603 = vld [vmem:[%s2 + $0x108] sm:$0xff]
  %v6604 = vld [vmem:[%s2 + $0x110] sm:$0xff]
  %v6605 = vld [vmem:[%s2 + $0x118] sm:$0xff]
  %v6606 = vld [vmem:[%s2 + $0x120] sm:$0xff]
  %v6607 = vld [vmem:[%s2 + $0x128] sm:$0xff]
  %v6608 = vld [vmem:[%s2 + $0x130] sm:$0xff]
  %v6609 = vld [vmem:[%s2 + $0x138] sm:$0xff]
  %v6610 = vld [vmem:[%s2 + $0x140] sm:$0xff]
  %v6611 = vld [vmem:[%s2 + $0x148] sm:$0xff]
  %v6612 = vld [vmem:[%s2 + $0x150] sm:$0xff]
  %v6613 = vld [vmem:[%s2 + $0x158] sm:$0xff]
  %v6614 = vld [vmem:[%s2 + $0x160] sm:$0xff]
  %v6615 = vld [vmem:[%s2 + $0x168] sm:$0xff]
  %v6616 = vld [vmem:[%s2 + $0x170] sm:$0xff]
  %v6617 = vld [vmem:[%s2 + $0x178] sm:$0xff]
  %v6618 = vld [vmem:[%s2 + $0x180] sm:$0xff]
  %v6619 = vld [vmem:[%s2 + $0x188] sm:$0xff]
  %v6620 = vld [vmem:[%s2 + $0x190] sm:$0xff]
  %v6621 = vld [vmem:[%s2 + $0x198] sm:$0xff]
  %v6622 = vld [vmem:[%s2 + $0x1a0] sm:$0xff]
  %v6623 = vld [vmem:[%s2 + $0x1a8] sm:$0xff]
  %v6624 = vld [vmem:[%s2 + $0x1b0] sm:$0xff]
  %v6625 = vld [vmem:[%s2 + $0x1b8] sm:$0xff]
  %v6626 = vld [vmem:[%s2 + $0x1c0] sm:$0xff]
  %v6627 = vld [vmem:[%s2 + $0x1c8] sm:$0xff]
  %v6628 = vld [vmem:[%s2 + $0x1d0] sm:$0xff]
  %v6629 = vld [vmem:[%s2 + $0x1d8] sm:$0xff]
  %v6630 = vld [vmem:[%s2 + $0x1e0] sm:$0xff]
  %v6631 = vld [vmem:[%s2 + $0x1e8] sm:$0xff]
  %v6632 = vld [vmem:[%s2 + $0x1f0] sm:$0xff]
  %v6633 = vld [vmem:[%s2 + $0x1f8] sm:$0xff]
  %v6634 = vld [vmem:[%s2 + $0x200] sm:$0xff]
  %v6635 = vld [vmem:[%s2 + $0x208] sm:$0xff]
  %v6636 = vld [vmem:[%s2 + $0x210] sm:$0xff]
  %v6637 = vld [vmem:[%s2 + $0x218] sm:$0xff]
  %v6638 = vld [vmem:[%s2 + $0x220] sm:$0xff]
  %v6639 = vld [vmem:[%s2 + $0x228] sm:$0xff]
  %v6640 = vld [vmem:[%s2 + $0x230] sm:$0xff]
  %v6641 = vld [vmem:[%s2 + $0x238] sm:$0xff]
  %v6642 = vld [vmem:[%s2 + $0x240] sm:$0xff]
  %v6643 = vld [vmem:[%s2 + $0x248] sm:$0xff]
  %v6644 = vld [vmem:[%s2 + $0x250] sm:$0xff]
  %v6645 = vld [vmem:[%s2 + $0x258] sm:$0xff]
  %v6646 = vld [vmem:[%s2 + $0x260] sm:$0xff]
  %v6647 = vld [vmem:[%s2 + $0x268] sm:$0xff]
  %v6648 = vld [vmem:[%s2 + $0x270] sm:$0xff]
  %v6649 = vld [vmem:[%s2 + $0x278] sm:$0xff]
  %v6650 = vld [vmem:[%s2 + $0x280] sm:$0xff]
  %v6651 = vld [vmem:[%s2 + $0x288] sm:$0xff]
  %v6652 = vld [vmem:[%s2 + $0x290] sm:$0xff]
  %v6653 = vld [vmem:[%s2 + $0x298] sm:$0xff]
  %v6654 = vld [vmem:[%s2 + $0x2a0] sm:$0xff]
  %v6655 = vld [vmem:[%s2 + $0x2a8] sm:$0xff]
  %v6656 = vld [vmem:[%s2 + $0x2b0] sm:$0xff]
  %v6657 = vld [vmem:[%s2 + $0x2b8] sm:$0xff]
  %v6658 = vld [vmem:[%s2 + $0x2c0] sm:$0xff]
  %v6659 = vld [vmem:[%s2 + $0x2c8] sm:$0xff]
  %v6660 = vld [vmem:[%s2 + $0x2d0] sm:$0xff]
  %v6661 = vld [vmem:[%s2 + $0x2d8] sm:$0xff]
  %v6662 = vld [vmem:[%s2 + $0x2e0] sm:$0xff]
  %v6663 = vld [vmem:[%s2 + $0x2e8] sm:$0xff]
  %v6664 = vld [vmem:[%s2 + $0x2f0] sm:$0xff]
  %v6665 = vld [vmem:[%s2 + $0x2f8] sm:$0xff]
  %v6666 = vld [vmem:[%s2 + $0x300] sm:$0xff]
  %v6667 = vld [vmem:[%s2 + $0x308] sm:$0xff]
  %v6668 = vld [vmem:[%s2 + $0x310] sm:$0xff]
  %v6669 = vld [vmem:[%s2 + $0x318] sm:$0xff]
  %v6670 = vld [vmem:[%s2 + $0x320] sm:$0xff]
  %v6671 = vld [vmem:[%s2 + $0x328] sm:$0xff]
  %v6672 = vld [vmem:[%s2 + $0x330] sm:$0xff]
  %v6673 = vld [vmem:[%s2 + $0x338] sm:$0xff]
  %v6674 = vld [vmem:[%s2 + $0x340] sm:$0xff]
  %v6675 = vld [vmem:[%s2 + $0x348] sm:$0xff]
  %v6676 = vld [vmem:[%s2 + $0x350] sm:$0xff]
  %v6677 = vld [vmem:[%s2 + $0x358] sm:$0xff]
  %v6678 = vld [vmem:[%s2 + $0x360] sm:$0xff]
  %v6679 = vld [vmem:[%s2 + $0x368] sm:$0xff]
  %v6680 = vld [vmem:[%s2 + $0x370] sm:$0xff]
  %v6681 = vld [vmem:[%s2 + $0x378] sm:$0xff]
  %v6682 = vld [vmem:[%s2 + $0x380] sm:$0xff]
  %v6683 = vld [vmem:[%s2 + $0x388] sm:$0xff]
  %v6684 = vld [vmem:[%s2 + $0x390] sm:$0xff]
  %v6685 = vld [vmem:[%s2 + $0x398] sm:$0xff]
  %v6686 = vld [vmem:[%s2 + $0x3a0] sm:$0xff]
  %v6687 = vld [vmem:[%s2 + $0x3a8] sm:$0xff]
  %v6688 = vld [vmem:[%s2 + $0x3b0] sm:$0xff]
  %v6689 = vld [vmem:[%s2 + $0x3b8] sm:$0xff]
  %v6690 = vld [vmem:[%s2 + $0x3c0] sm:$0xff]
  %v6691 = vld [vmem:[%s2 + $0x3c8] sm:$0xff]
  %v6692 = vld [vmem:[%s2 + $0x3d0] sm:$0xff]
  %v6693 = vld [vmem:[%s2 + $0x3d8] sm:$0xff]
  %v6694 = vld [vmem:[%s2 + $0x3e0] sm:$0xff]
  %v6695 = vld [vmem:[%s2 + $0x3e8] sm:$0xff]
  %v6696 = vld [vmem:[%s2 + $0x3f0] sm:$0xff]
  %v6697 = vld [vmem:[%s2 + $0x3f8] sm:$0xff]
  %v6698 = vld [vmem:[%s2 + $0x400] sm:$0xff]
  %v6699 = vld [vmem:[%s2 + $0x408] sm:$0xff]
  %v6700 = vld [vmem:[%s2 + $0x410] sm:$0xff]
  %v6701 = vld [vmem:[%s2 + $0x418] sm:$0xff]
  %v6702 = vld [vmem:[%s2 + $0x420] sm:$0xff]
  %v6703 = vld [vmem:[%s2 + $0x428] sm:$0xff]
  %v6704 = vld [vmem:[%s2 + $0x430] sm:$0xff]
  %v6705 = vld [vmem:[%s2 + $0x438] sm:$0xff]
  %v6706 = vld [vmem:[%s2 + $0x440] sm:$0xff]
  %v6707 = vld [vmem:[%s2 + $0x448] sm:$0xff]
  %v6708 = vld [vmem:[%s2 + $0x450] sm:$0xff]
  %v6709 = vld [vmem:[%s2 + $0x458] sm:$0xff]
  %v6710 = vld [vmem:[%s2 + $0x460] sm:$0xff]
  %v6711 = vld [vmem:[%s2 + $0x468] sm:$0xff]
  %v6712 = vld [vmem:[%s2 + $0x470] sm:$0xff]
  %v6713 = vld [vmem:[%s2 + $0x478] sm:$0xff]
  %v6714 = vld [vmem:[%s2 + $0x480] sm:$0xff]
  %v6715 = vld [vmem:[%s2 + $0x488] sm:$0xff]
  %v6716 = vld [vmem:[%s2 + $0x490] sm:$0xff]
  %v6717 = vld [vmem:[%s2 + $0x498] sm:$0xff]
  %v6718 = vld [vmem:[%s2 + $0x4a0] sm:$0xff]
  %v6719 = vld [vmem:[%s2 + $0x4a8] sm:$0xff]
  %v6720 = vld [vmem:[%s2 + $0x4b0] sm:$0xff]
  %v6721 = vld [vmem:[%s2 + $0x4b8] sm:$0xff]
  %v6722 = vld [vmem:[%s2 + $0x4c0] sm:$0xff]
  %v6723 = vld [vmem:[%s2 + $0x4c8] sm:$0xff]
  %v6724 = vld [vmem:[%s2 + $0x4d0] sm:$0xff]
  %v6725 = vld [vmem:[%s2 + $0x4d8] sm:$0xff]
  %v6726 = vld [vmem:[%s2 + $0x4e0] sm:$0xff]
  %v6727 = vld [vmem:[%s2 + $0x4e8] sm:$0xff]
  %v6728 = vld [vmem:[%s2 + $0x4f0] sm:$0xff]
  %v6729 = vld [vmem:[%s2 + $0x4f8] sm:$0xff]
  %v6730 = vld [vmem:[%s2 + $0x500] sm:$0xff]
  %v6731 = vld [vmem:[%s2 + $0x508] sm:$0xff]
  %v6732 = vld [vmem:[%s2 + $0x510] sm:$0xff]
  %v6733 = vld [vmem:[%s2 + $0x518] sm:$0xff]
  %v6734 = vld [vmem:[%s2 + $0x520] sm:$0xff]
  %v6735 = vld [vmem:[%s2 + $0x528] sm:$0xff]
  %v6736 = vld [vmem:[%s2 + $0x530] sm:$0xff]
  %v6737 = vld [vmem:[%s2 + $0x538] sm:$0xff]
  %v6738 = vld [vmem:[%s2 + $0x540] sm:$0xff]
  %v6739 = vld [vmem:[%s2 + $0x548] sm:$0xff]
  %v6740 = vld [vmem:[%s2 + $0x550] sm:$0xff]
  %v6741 = vld [vmem:[%s2 + $0x558] sm:$0xff]
  %v6742 = vld [vmem:[%s2 + $0x560] sm:$0xff]
  %v6743 = vld [vmem:[%s2 + $0x568] sm:$0xff]
  %v6744 = vld [vmem:[%s2 + $0x570] sm:$0xff]
  %v6745 = vld [vmem:[%s2 + $0x578] sm:$0xff]
  %v6746 = vld [vmem:[%s2 + $0x580] sm:$0xff]
  %v6747 = vld [vmem:[%s2 + $0x588] sm:$0xff]
  %v6748 = vld [vmem:[%s2 + $0x590] sm:$0xff]
  %v6749 = vld [vmem:[%s2 + $0x598] sm:$0xff]
  %v6750 = vld [vmem:[%s2 + $0x5a0] sm:$0xff]
  %v6751 = vld [vmem:[%s2 + $0x5a8] sm:$0xff]
  %v6752 = vld [vmem:[%s2 + $0x5b0] sm:$0xff]
  %v6753 = vld [vmem:[%s2 + $0x5b8] sm:$0xff]
  %v6754 = vld [vmem:[%s2 + $0x5c0] sm:$0xff]
  %v6755 = vld [vmem:[%s2 + $0x5c8] sm:$0xff]
  %v6756 = vld [vmem:[%s2 + $0x5d0] sm:$0xff]
  %v6757 = vld [vmem:[%s2 + $0x5d8] sm:$0xff]
  %v6758 = vld [vmem:[%s2 + $0x5e0] sm:$0xff]
  %v6759 = vld [vmem:[%s2 + $0x5e8] sm:$0xff]
  %v6760 = vld [vmem:[%s2 + $0x5f0] sm:$0xff]
  %v6761 = vld [vmem:[%s2 + $0x5f8] sm:$0xff]
  %v6762 = vld [vmem:[%s2 + $0x600] sm:$0xff]
  %v6763 = vld [vmem:[%s2 + $0x608] sm:$0xff]
  %v6764 = vld [vmem:[%s2 + $0x610] sm:$0xff]
  %v6765 = vld [vmem:[%s2 + $0x618] sm:$0xff]
  %v6766 = vld [vmem:[%s2 + $0x620] sm:$0xff]
  %v6767 = vld [vmem:[%s2 + $0x628] sm:$0xff]
  %v6768 = vld [vmem:[%s2 + $0x630] sm:$0xff]
  %v6769 = vld [vmem:[%s2 + $0x638] sm:$0xff]
  %v6770 = vld [vmem:[%s2 + $0x640] sm:$0xff]
  %v6771 = vld [vmem:[%s2 + $0x648] sm:$0xff]
  %v6772 = vld [vmem:[%s2 + $0x650] sm:$0xff]
  %v6773 = vld [vmem:[%s2 + $0x658] sm:$0xff]
  %v6774 = vld [vmem:[%s2 + $0x660] sm:$0xff]
  %v6775 = vld [vmem:[%s2 + $0x668] sm:$0xff]
  %v6776 = vld [vmem:[%s2 + $0x670] sm:$0xff]
  %v6777 = vld [vmem:[%s2 + $0x678] sm:$0xff]
  %v6778 = vld [vmem:[%s2 + $0x680] sm:$0xff]
  %v6779 = vld [vmem:[%s2 + $0x688] sm:$0xff]
  %v6780 = vld [vmem:[%s2 + $0x690] sm:$0xff]
  %v6781 = vld [vmem:[%s2 + $0x698] sm:$0xff]
  %v6782 = vld [vmem:[%s2 + $0x6a0] sm:$0xff]
  %v6783 = vld [vmem:[%s2 + $0x6a8] sm:$0xff]
  %v6784 = vld [vmem:[%s2 + $0x6b0] sm:$0xff]
  %v6785 = vld [vmem:[%s2 + $0x6b8] sm:$0xff]
  %v6786 = vld [vmem:[%s2 + $0x6c0] sm:$0xff]
  %v6787 = vld [vmem:[%s2 + $0x6c8] sm:$0xff]
  %v6788 = vld [vmem:[%s2 + $0x6d0] sm:$0xff]
  %v6789 = vld [vmem:[%s2 + $0x6d8] sm:$0xff]
  %v6790 = vld [vmem:[%s2 + $0x6e0] sm:$0xff]
  %v6791 = vld [vmem:[%s2 + $0x6e8] sm:$0xff]
  %v6792 = vld [vmem:[%s2 + $0x6f0] sm:$0xff]
  %v6793 = vld [vmem:[%s2 + $0x6f8] sm:$0xff]
  %v6794 = vld [vmem:[%s2 + $0x700] sm:$0xff]
  %v6795 = vld [vmem:[%s2 + $0x708] sm:$0xff]
  %v6796 = vld [vmem:[%s2 + $0x710] sm:$0xff]
  %v6797 = vld [vmem:[%s2 + $0x718] sm:$0xff]
  %v6798 = vmul.f32 %v6570, %v6342
  %v6799 = vmul.f32 %v6571, %v6343
  %v6800 = vmul.f32 %v6572, %v6344
  %v6801 = vmul.f32 %v6573, %v6345
  %v6802 = vmul.f32 %v6574, %v6346
  %v6803 = vmul.f32 %v6575, %v6347
  %v6804 = vmul.f32 %v6576, %v6348
  %v6805 = vmul.f32 %v6577, %v6349
  %v6806 = vmul.f32 %v6578, %v6350
  %v6807 = vmul.f32 %v6579, %v6351
  %v6808 = vmul.f32 %v6580, %v6352
  %v6809 = vmul.f32 %v6581, %v6353
  %v6810 = vmul.f32 %v6582, %v6354
  %v6811 = vmul.f32 %v6583, %v6355
  %v6812 = vmul.f32 %v6584, %v6356
  %v6813 = vmul.f32 %v6585, %v6357
  %v6814 = vmul.f32 %v6586, %v6358
  %v6815 = vmul.f32 %v6587, %v6359
  %v6816 = vmul.f32 %v6588, %v6360
  %v6817 = vmul.f32 %v6589, %v6361
  %v6818 = vmul.f32 %v6590, %v6362
  %v6819 = vmul.f32 %v6591, %v6363
  %v6820 = vmul.f32 %v6592, %v6364
  %v6821 = vmul.f32 %v6593, %v6365
  %v6822 = vmul.f32 %v6594, %v6366
  %v6823 = vmul.f32 %v6595, %v6367
  %v6824 = vmul.f32 %v6596, %v6368
  %v6825 = vmul.f32 %v6597, %v6369
  %v6826 = vmul.f32 %v6598, %v6370
  %v6827 = vmul.f32 %v6599, %v6371
  %v6828 = vmul.f32 %v6600, %v6372
  %v6829 = vmul.f32 %v6601, %v6373
  %v6830 = vmul.f32 %v6602, %v6374
  %v6831 = vmul.f32 %v6603, %v6375
  %v6832 = vmul.f32 %v6604, %v6376
  %v6833 = vmul.f32 %v6605, %v6377
  %v6834 = vmul.f32 %v6606, %v6378
  %v6835 = vmul.f32 %v6607, %v6379
  %v6836 = vmul.f32 %v6608, %v6380
  %v6837 = vmul.f32 %v6609, %v6381
  %v6838 = vmul.f32 %v6610, %v6382
  %v6839 = vmul.f32 %v6611, %v6383
  %v6840 = vmul.f32 %v6612, %v6384
  %v6841 = vmul.f32 %v6613, %v6385
  %v6842 = vmul.f32 %v6614, %v6386
  %v6843 = vmul.f32 %v6615, %v6387
  %v6844 = vmul.f32 %v6616, %v6388
  %v6845 = vmul.f32 %v6617, %v6389
  %v6846 = vmul.f32 %v6618, %v6390
  %v6847 = vmul.f32 %v6619, %v6391
  %v6848 = vmul.f32 %v6620, %v6392
  %v6849 = vmul.f32 %v6621, %v6393
  %v6850 = vmul.f32 %v6622, %v6394
  %v6851 = vmul.f32 %v6623, %v6395
  %v6852 = vmul.f32 %v6624, %v6396
  %v6853 = vmul.f32 %v6625, %v6397
  %v6854 = vmul.f32 %v6626, %v6398
  %v6855 = vmul.f32 %v6627, %v6399
  %v6856 = vmul.f32 %v6628, %v6400
  %v6857 = vmul.f32 %v6629, %v6401
  %v6858 = vmul.f32 %v6630, %v6402
  %v6859 = vmul.f32 %v6631, %v6403
  %v6860 = vmul.f32 %v6632, %v6404
  %v6861 = vmul.f32 %v6633, %v6405
  %v6862 = vmul.f32 %v6634, %v6406
  %v6863 = vmul.f32 %v6635, %v6407
  %v6864 = vmul.f32 %v6636, %v6408
  %v6865 = vmul.f32 %v6637, %v6409
  %v6866 = vmul.f32 %v6638, %v6410
  %v6867 = vmul.f32 %v6639, %v6411
  %v6868 = vmul.f32 %v6640, %v6412
  %v6869 = vmul.f32 %v6641, %v6413
  %v6870 = vmul.f32 %v6642, %v6414
  %v6871 = vmul.f32 %v6643, %v6415
  %v6872 = vmul.f32 %v6644, %v6416
  %v6873 = vmul.f32 %v6645, %v6417
  %v6874 = vmul.f32 %v6646, %v6418
  %v6875 = vmul.f32 %v6647, %v6419
  %v6876 = vmul.f32 %v6648, %v6420
  %v6877 = vmul.f32 %v6649, %v6421
  %v6878 = vmul.f32 %v6650, %v6422
  %v6879 = vmul.f32 %v6651, %v6423
  %v6880 = vmul.f32 %v6652, %v6424
  %v6881 = vmul.f32 %v6653, %v6425
  %v6882 = vmul.f32 %v6654, %v6426
  %v6883 = vmul.f32 %v6655, %v6427
  %v6884 = vmul.f32 %v6656, %v6428
  %v6885 = vmul.f32 %v6657, %v6429
  %v6886 = vmul.f32 %v6658, %v6430
  %v6887 = vmul.f32 %v6659, %v6431
  %v6888 = vmul.f32 %v6660, %v6432
  %v6889 = vmul.f32 %v6661, %v6433
  %v6890 = vmul.f32 %v6662, %v6434
  %v6891 = vmul.f32 %v6663, %v6435
  %v6892 = vmul.f32 %v6664, %v6436
  %v6893 = vmul.f32 %v6665, %v6437
  %v6894 = vmul.f32 %v6666, %v6438
  %v6895 = vmul.f32 %v6667, %v6439
  %v6896 = vmul.f32 %v6668, %v6440
  %v6897 = vmul.f32 %v6669, %v6441
  %v6898 = vmul.f32 %v6670, %v6442
  %v6899 = vmul.f32 %v6671, %v6443
  %v6900 = vmul.f32 %v6672, %v6444
  %v6901 = vmul.f32 %v6673, %v6445
  %v6902 = vmul.f32 %v6674, %v6446
  %v6903 = vmul.f32 %v6675, %v6447
  %v6904 = vmul.f32 %v6676, %v6448
  %v6905 = vmul.f32 %v6677, %v6449
  %v6906 = vmul.f32 %v6678, %v6450
  %v6907 = vmul.f32 %v6679, %v6451
  %v6908 = vmul.f32 %v6680, %v6452
  %v6909 = vmul.f32 %v6681, %v6453
  %v6910 = vmul.f32 %v6682, %v6454
  %v6911 = vmul.f32 %v6683, %v6455
  %v6912 = vmul.f32 %v6684, %v6456
  %v6913 = vmul.f32 %v6685, %v6457
  %v6914 = vmul.f32 %v6686, %v6458
  %v6915 = vmul.f32 %v6687, %v6459
  %v6916 = vmul.f32 %v6688, %v6460
  %v6917 = vmul.f32 %v6689, %v6461
  %v6918 = vmul.f32 %v6690, %v6462
  %v6919 = vmul.f32 %v6691, %v6463
  %v6920 = vmul.f32 %v6692, %v6464
  %v6921 = vmul.f32 %v6693, %v6465
  %v6922 = vmul.f32 %v6694, %v6466
  %v6923 = vmul.f32 %v6695, %v6467
  %v6924 = vmul.f32 %v6696, %v6468
  %v6925 = vmul.f32 %v6697, %v6469
  %v6926 = vmul.f32 %v6698, %v6470
  %v6927 = vmul.f32 %v6699, %v6471
  %v6928 = vmul.f32 %v6700, %v6472
  %v6929 = vmul.f32 %v6701, %v6473
  %v6930 = vmul.f32 %v6702, %v6474
  %v6931 = vmul.f32 %v6703, %v6475
  %v6932 = vmul.f32 %v6704, %v6476
  %v6933 = vmul.f32 %v6705, %v6477
  %v6934 = vmul.f32 %v6706, %v6478
  %v6935 = vmul.f32 %v6707, %v6479
  %v6936 = vmul.f32 %v6708, %v6480
  %v6937 = vmul.f32 %v6709, %v6481
  %v6938 = vmul.f32 %v6710, %v6482
  %v6939 = vmul.f32 %v6711, %v6483
  %v6940 = vmul.f32 %v6712, %v6484
  %v6941 = vmul.f32 %v6713, %v6485
  %v6942 = vmul.f32 %v6714, %v6486
  %v6943 = vmul.f32 %v6715, %v6487
  %v6944 = vmul.f32 %v6716, %v6488
  %v6945 = vmul.f32 %v6717, %v6489
  %v6946 = vmul.f32 %v6718, %v6490
  %v6947 = vmul.f32 %v6719, %v6491
  %v6948 = vmul.f32 %v6720, %v6492
  %v6949 = vmul.f32 %v6721, %v6493
  %v6950 = vmul.f32 %v6722, %v6494
  %v6951 = vmul.f32 %v6723, %v6495
  %v6952 = vmul.f32 %v6724, %v6496
  %v6953 = vmul.f32 %v6725, %v6497
  %v6954 = vmul.f32 %v6726, %v6498
  %v6955 = vmul.f32 %v6727, %v6499
  %v6956 = vmul.f32 %v6728, %v6500
  %v6957 = vmul.f32 %v6729, %v6501
  %v6958 = vmul.f32 %v6730, %v6502
  %v6959 = vmul.f32 %v6731, %v6503
  %v6960 = vmul.f32 %v6732, %v6504
  %v6961 = vmul.f32 %v6733, %v6505
  %v6962 = vmul.f32 %v6734, %v6506
  %v6963 = vmul.f32 %v6735, %v6507
  %v6964 = vmul.f32 %v6736, %v6508
  %v6965 = vmul.f32 %v6737, %v6509
  %v6966 = vmul.f32 %v6738, %v6510
  %v6967 = vmul.f32 %v6739, %v6511
  %v6968 = vmul.f32 %v6740, %v6512
  %v6969 = vmul.f32 %v6741, %v6513
  %v6970 = vmul.f32 %v6742, %v6514
  %v6971 = vmul.f32 %v6743, %v6515
  %v6972 = vmul.f32 %v6744, %v6516
  %v6973 = vmul.f32 %v6745, %v6517
  %v6974 = vmul.f32 %v6746, %v6518
  %v6975 = vmul.f32 %v6747, %v6519
  %v6976 = vmul.f32 %v6748, %v6520
  %v6977 = vmul.f32 %v6749, %v6521
  %v6978 = vmul.f32 %v6750, %v6522
  %v6979 = vmul.f32 %v6751, %v6523
  %v6980 = vmul.f32 %v6752, %v6524
  %v6981 = vmul.f32 %v6753, %v6525
  %v6982 = vmul.f32 %v6754, %v6526
  %v6983 = vmul.f32 %v6755, %v6527
  %v6984 = vmul.f32 %v6756, %v6528
  %v6985 = vmul.f32 %v6757, %v6529
  %v6986 = vmul.f32 %v6758, %v6530
  %v6987 = vmul.f32 %v6759, %v6531
  %v6988 = vmul.f32 %v6760, %v6532
  %v6989 = vmul.f32 %v6761, %v6533
  %v6990 = vmul.f32 %v6762, %v6534
  %v6991 = vmul.f32 %v6763, %v6535
  %v6992 = vmul.f32 %v6764, %v6536
  %v6993 = vmul.f32 %v6765, %v6537
  %v6994 = vmul.f32 %v6766, %v6538
  %v6995 = vmul.f32 %v6767, %v6539
  %v6996 = vmul.f32 %v6768, %v6540
  %v6997 = vmul.f32 %v6769, %v6541
  %v6998 = vmul.f32 %v6770, %v6542
  %v6999 = vmul.f32 %v6771, %v6543
  %v7000 = vmul.f32 %v6772, %v6544
  %v7001 = vmul.f32 %v6773, %v6545
  %v7002 = vmul.f32 %v6774, %v6546
  %v7003 = vmul.f32 %v6775, %v6547
  %v7004 = vmul.f32 %v6776, %v6548
  %v7005 = vmul.f32 %v6777, %v6549
  %v7006 = vmul.f32 %v6778, %v6550
  %v7007 = vmul.f32 %v6779, %v6551
  %v7008 = vmul.f32 %v6780, %v6552
  %v7009 = vmul.f32 %v6781, %v6553
  %v7010 = vmul.f32 %v6782, %v6554
  %v7011 = vmul.f32 %v6783, %v6555
  %v7012 = vmul.f32 %v6784, %v6556
  %v7013 = vmul.f32 %v6785, %v6557
  %v7014 = vmul.f32 %v6786, %v6558
  %v7015 = vmul.f32 %v6787, %v6559
  %v7016 = vmul.f32 %v6788, %v6560
  %v7017 = vmul.f32 %v6789, %v6561
  %v7018 = vmul.f32 %v6790, %v6562
  %v7019 = vmul.f32 %v6791, %v6563
  %v7020 = vmul.f32 %v6792, %v6564
  %v7021 = vmul.f32 %v6793, %v6565
  %v7022 = vmul.f32 %v6794, %v6566
  %v7023 = vmul.f32 %v6795, %v6567
  %v7024 = vmul.f32 %v6796, %v6568
  %v7025 = vmul.f32 %v6797, %v6569
  %v7026 = vld [vmem:[%s3] sm:$0xff]
  %v7027 = vld [vmem:[%s3 + $0x8] sm:$0xff]
  %v7028 = vld [vmem:[%s3 + $0x10] sm:$0xff]
  %v7029 = vld [vmem:[%s3 + $0x18] sm:$0xff]
  %v7030 = vld [vmem:[%s3 + $0x20] sm:$0xff]
  %v7031 = vld [vmem:[%s3 + $0x28] sm:$0xff]
  %v7032 = vld [vmem:[%s3 + $0x30] sm:$0xff]
  %v7033 = vld [vmem:[%s3 + $0x38] sm:$0xff]
  %v7034 = vld [vmem:[%s3 + $0x40] sm:$0xff]
  %v7035 = vld [vmem:[%s3 + $0x48] sm:$0xff]
  %v7036 = vld [vmem:[%s3 + $0x50] sm:$0xff]
  %v7037 = vld [vmem:[%s3 + $0x58] sm:$0xff]
  %v7038 = vld [vmem:[%s3 + $0x60] sm:$0xff]
  %v7039 = vld [vmem:[%s3 + $0x68] sm:$0xff]
  %v7040 = vld [vmem:[%s3 + $0x70] sm:$0xff]
  %v7041 = vld [vmem:[%s3 + $0x78] sm:$0xff]
  %v7042 = vld [vmem:[%s3 + $0x80] sm:$0xff]
  %v7043 = vld [vmem:[%s3 + $0x88] sm:$0xff]
  %v7044 = vld [vmem:[%s3 + $0x90] sm:$0xff]
  %v7045 = vld [vmem:[%s3 + $0x98] sm:$0xff]
  %v7046 = vld [vmem:[%s3 + $0xa0] sm:$0xff]
  %v7047 = vld [vmem:[%s3 + $0xa8] sm:$0xff]
  %v7048 = vld [vmem:[%s3 + $0xb0] sm:$0xff]
  %v7049 = vld [vmem:[%s3 + $0xb8] sm:$0xff]
  %v7050 = vld [vmem:[%s3 + $0xc0] sm:$0xff]
  %v7051 = vld [vmem:[%s3 + $0xc8] sm:$0xff]
  %v7052 = vld [vmem:[%s3 + $0xd0] sm:$0xff]
  %v7053 = vld [vmem:[%s3 + $0xd8] sm:$0xff]
  %v7054 = vld [vmem:[%s3 + $0xe0] sm:$0xff]
  %v7055 = vld [vmem:[%s3 + $0xe8] sm:$0xff]
  %v7056 = vld [vmem:[%s3 + $0xf0] sm:$0xff]
  %v7057 = vld [vmem:[%s3 + $0xf8] sm:$0xff]
  %v7058 = vld [vmem:[%s3 + $0x100] sm:$0xff]
  %v7059 = vld [vmem:[%s3 + $0x108] sm:$0xff]
  %v7060 = vld [vmem:[%s3 + $0x110] sm:$0xff]
  %v7061 = vld [vmem:[%s3 + $0x118] sm:$0xff]
  %v7062 = vld [vmem:[%s3 + $0x120] sm:$0xff]
  %v7063 = vld [vmem:[%s3 + $0x128] sm:$0xff]
  %v7064 = vld [vmem:[%s3 + $0x130] sm:$0xff]
  %v7065 = vld [vmem:[%s3 + $0x138] sm:$0xff]
  %v7066 = vld [vmem:[%s3 + $0x140] sm:$0xff]
  %v7067 = vld [vmem:[%s3 + $0x148] sm:$0xff]
  %v7068 = vld [vmem:[%s3 + $0x150] sm:$0xff]
  %v7069 = vld [vmem:[%s3 + $0x158] sm:$0xff]
  %v7070 = vld [vmem:[%s3 + $0x160] sm:$0xff]
  %v7071 = vld [vmem:[%s3 + $0x168] sm:$0xff]
  %v7072 = vld [vmem:[%s3 + $0x170] sm:$0xff]
  %v7073 = vld [vmem:[%s3 + $0x178] sm:$0xff]
  %v7074 = vld [vmem:[%s3 + $0x180] sm:$0xff]
  %v7075 = vld [vmem:[%s3 + $0x188] sm:$0xff]
  %v7076 = vld [vmem:[%s3 + $0x190] sm:$0xff]
  %v7077 = vld [vmem:[%s3 + $0x198] sm:$0xff]
  %v7078 = vld [vmem:[%s3 + $0x1a0] sm:$0xff]
  %v7079 = vld [vmem:[%s3 + $0x1a8] sm:$0xff]
  %v7080 = vld [vmem:[%s3 + $0x1b0] sm:$0xff]
  %v7081 = vld [vmem:[%s3 + $0x1b8] sm:$0xff]
  %v7082 = vld [vmem:[%s3 + $0x1c0] sm:$0xff]
  %v7083 = vld [vmem:[%s3 + $0x1c8] sm:$0xff]
  %v7084 = vld [vmem:[%s3 + $0x1d0] sm:$0xff]
  %v7085 = vld [vmem:[%s3 + $0x1d8] sm:$0xff]
  %v7086 = vld [vmem:[%s3 + $0x1e0] sm:$0xff]
  %v7087 = vld [vmem:[%s3 + $0x1e8] sm:$0xff]
  %v7088 = vld [vmem:[%s3 + $0x1f0] sm:$0xff]
  %v7089 = vld [vmem:[%s3 + $0x1f8] sm:$0xff]
  %v7090 = vld [vmem:[%s3 + $0x200] sm:$0xff]
  %v7091 = vld [vmem:[%s3 + $0x208] sm:$0xff]
  %v7092 = vld [vmem:[%s3 + $0x210] sm:$0xff]
  %v7093 = vld [vmem:[%s3 + $0x218] sm:$0xff]
  %v7094 = vld [vmem:[%s3 + $0x220] sm:$0xff]
  %v7095 = vld [vmem:[%s3 + $0x228] sm:$0xff]
  %v7096 = vld [vmem:[%s3 + $0x230] sm:$0xff]
  %v7097 = vld [vmem:[%s3 + $0x238] sm:$0xff]
  %v7098 = vld [vmem:[%s3 + $0x240] sm:$0xff]
  %v7099 = vld [vmem:[%s3 + $0x248] sm:$0xff]
  %v7100 = vld [vmem:[%s3 + $0x250] sm:$0xff]
  %v7101 = vld [vmem:[%s3 + $0x258] sm:$0xff]
  %v7102 = vld [vmem:[%s3 + $0x260] sm:$0xff]
  %v7103 = vld [vmem:[%s3 + $0x268] sm:$0xff]
  %v7104 = vld [vmem:[%s3 + $0x270] sm:$0xff]
  %v7105 = vld [vmem:[%s3 + $0x278] sm:$0xff]
  %v7106 = vld [vmem:[%s3 + $0x280] sm:$0xff]
  %v7107 = vld [vmem:[%s3 + $0x288] sm:$0xff]
  %v7108 = vld [vmem:[%s3 + $0x290] sm:$0xff]
  %v7109 = vld [vmem:[%s3 + $0x298] sm:$0xff]
  %v7110 = vld [vmem:[%s3 + $0x2a0] sm:$0xff]
  %v7111 = vld [vmem:[%s3 + $0x2a8] sm:$0xff]
  %v7112 = vld [vmem:[%s3 + $0x2b0] sm:$0xff]
  %v7113 = vld [vmem:[%s3 + $0x2b8] sm:$0xff]
  %v7114 = vld [vmem:[%s3 + $0x2c0] sm:$0xff]
  %v7115 = vld [vmem:[%s3 + $0x2c8] sm:$0xff]
  %v7116 = vld [vmem:[%s3 + $0x2d0] sm:$0xff]
  %v7117 = vld [vmem:[%s3 + $0x2d8] sm:$0xff]
  %v7118 = vld [vmem:[%s3 + $0x2e0] sm:$0xff]
  %v7119 = vld [vmem:[%s3 + $0x2e8] sm:$0xff]
  %v7120 = vld [vmem:[%s3 + $0x2f0] sm:$0xff]
  %v7121 = vld [vmem:[%s3 + $0x2f8] sm:$0xff]
  %v7122 = vld [vmem:[%s3 + $0x300] sm:$0xff]
  %v7123 = vld [vmem:[%s3 + $0x308] sm:$0xff]
  %v7124 = vld [vmem:[%s3 + $0x310] sm:$0xff]
  %v7125 = vld [vmem:[%s3 + $0x318] sm:$0xff]
  %v7126 = vld [vmem:[%s3 + $0x320] sm:$0xff]
  %v7127 = vld [vmem:[%s3 + $0x328] sm:$0xff]
  %v7128 = vld [vmem:[%s3 + $0x330] sm:$0xff]
  %v7129 = vld [vmem:[%s3 + $0x338] sm:$0xff]
  %v7130 = vld [vmem:[%s3 + $0x340] sm:$0xff]
  %v7131 = vld [vmem:[%s3 + $0x348] sm:$0xff]
  %v7132 = vld [vmem:[%s3 + $0x350] sm:$0xff]
  %v7133 = vld [vmem:[%s3 + $0x358] sm:$0xff]
  %v7134 = vld [vmem:[%s3 + $0x360] sm:$0xff]
  %v7135 = vld [vmem:[%s3 + $0x368] sm:$0xff]
  %v7136 = vld [vmem:[%s3 + $0x370] sm:$0xff]
  %v7137 = vld [vmem:[%s3 + $0x378] sm:$0xff]
  %v7138 = vld [vmem:[%s3 + $0x380] sm:$0xff]
  %v7139 = vld [vmem:[%s3 + $0x388] sm:$0xff]
  %v7140 = vld [vmem:[%s3 + $0x390] sm:$0xff]
  %v7141 = vld [vmem:[%s3 + $0x398] sm:$0xff]
  %v7142 = vld [vmem:[%s3 + $0x3a0] sm:$0xff]
  %v7143 = vld [vmem:[%s3 + $0x3a8] sm:$0xff]
  %v7144 = vld [vmem:[%s3 + $0x3b0] sm:$0xff]
  %v7145 = vld [vmem:[%s3 + $0x3b8] sm:$0xff]
  %v7146 = vld [vmem:[%s3 + $0x3c0] sm:$0xff]
  %v7147 = vld [vmem:[%s3 + $0x3c8] sm:$0xff]
  %v7148 = vld [vmem:[%s3 + $0x3d0] sm:$0xff]
  %v7149 = vld [vmem:[%s3 + $0x3d8] sm:$0xff]
  %v7150 = vld [vmem:[%s3 + $0x3e0] sm:$0xff]
  %v7151 = vld [vmem:[%s3 + $0x3e8] sm:$0xff]
  %v7152 = vld [vmem:[%s3 + $0x3f0] sm:$0xff]
  %v7153 = vld [vmem:[%s3 + $0x3f8] sm:$0xff]
  %v7154 = vld [vmem:[%s3 + $0x400] sm:$0xff]
  %v7155 = vld [vmem:[%s3 + $0x408] sm:$0xff]
  %v7156 = vld [vmem:[%s3 + $0x410] sm:$0xff]
  %v7157 = vld [vmem:[%s3 + $0x418] sm:$0xff]
  %v7158 = vld [vmem:[%s3 + $0x420] sm:$0xff]
  %v7159 = vld [vmem:[%s3 + $0x428] sm:$0xff]
  %v7160 = vld [vmem:[%s3 + $0x430] sm:$0xff]
  %v7161 = vld [vmem:[%s3 + $0x438] sm:$0xff]
  %v7162 = vld [vmem:[%s3 + $0x440] sm:$0xff]
  %v7163 = vld [vmem:[%s3 + $0x448] sm:$0xff]
  %v7164 = vld [vmem:[%s3 + $0x450] sm:$0xff]
  %v7165 = vld [vmem:[%s3 + $0x458] sm:$0xff]
  %v7166 = vld [vmem:[%s3 + $0x460] sm:$0xff]
  %v7167 = vld [vmem:[%s3 + $0x468] sm:$0xff]
  %v7168 = vld [vmem:[%s3 + $0x470] sm:$0xff]
  %v7169 = vld [vmem:[%s3 + $0x478] sm:$0xff]
  %v7170 = vld [vmem:[%s3 + $0x480] sm:$0xff]
  %v7171 = vld [vmem:[%s3 + $0x488] sm:$0xff]
  %v7172 = vld [vmem:[%s3 + $0x490] sm:$0xff]
  %v7173 = vld [vmem:[%s3 + $0x498] sm:$0xff]
  %v7174 = vld [vmem:[%s3 + $0x4a0] sm:$0xff]
  %v7175 = vld [vmem:[%s3 + $0x4a8] sm:$0xff]
  %v7176 = vld [vmem:[%s3 + $0x4b0] sm:$0xff]
  %v7177 = vld [vmem:[%s3 + $0x4b8] sm:$0xff]
  %v7178 = vld [vmem:[%s3 + $0x4c0] sm:$0xff]
  %v7179 = vld [vmem:[%s3 + $0x4c8] sm:$0xff]
  %v7180 = vld [vmem:[%s3 + $0x4d0] sm:$0xff]
  %v7181 = vld [vmem:[%s3 + $0x4d8] sm:$0xff]
  %v7182 = vld [vmem:[%s3 + $0x4e0] sm:$0xff]
  %v7183 = vld [vmem:[%s3 + $0x4e8] sm:$0xff]
  %v7184 = vld [vmem:[%s3 + $0x4f0] sm:$0xff]
  %v7185 = vld [vmem:[%s3 + $0x4f8] sm:$0xff]
  %v7186 = vld [vmem:[%s3 + $0x500] sm:$0xff]
  %v7187 = vld [vmem:[%s3 + $0x508] sm:$0xff]
  %v7188 = vld [vmem:[%s3 + $0x510] sm:$0xff]
  %v7189 = vld [vmem:[%s3 + $0x518] sm:$0xff]
  %v7190 = vld [vmem:[%s3 + $0x520] sm:$0xff]
  %v7191 = vld [vmem:[%s3 + $0x528] sm:$0xff]
  %v7192 = vld [vmem:[%s3 + $0x530] sm:$0xff]
  %v7193 = vld [vmem:[%s3 + $0x538] sm:$0xff]
  %v7194 = vld [vmem:[%s3 + $0x540] sm:$0xff]
  %v7195 = vld [vmem:[%s3 + $0x548] sm:$0xff]
  %v7196 = vld [vmem:[%s3 + $0x550] sm:$0xff]
  %v7197 = vld [vmem:[%s3 + $0x558] sm:$0xff]
  %v7198 = vld [vmem:[%s3 + $0x560] sm:$0xff]
  %v7199 = vld [vmem:[%s3 + $0x568] sm:$0xff]
  %v7200 = vld [vmem:[%s3 + $0x570] sm:$0xff]
  %v7201 = vld [vmem:[%s3 + $0x578] sm:$0xff]
  %v7202 = vld [vmem:[%s3 + $0x580] sm:$0xff]
  %v7203 = vld [vmem:[%s3 + $0x588] sm:$0xff]
  %v7204 = vld [vmem:[%s3 + $0x590] sm:$0xff]
  %v7205 = vld [vmem:[%s3 + $0x598] sm:$0xff]
  %v7206 = vld [vmem:[%s3 + $0x5a0] sm:$0xff]
  %v7207 = vld [vmem:[%s3 + $0x5a8] sm:$0xff]
  %v7208 = vld [vmem:[%s3 + $0x5b0] sm:$0xff]
  %v7209 = vld [vmem:[%s3 + $0x5b8] sm:$0xff]
  %v7210 = vld [vmem:[%s3 + $0x5c0] sm:$0xff]
  %v7211 = vld [vmem:[%s3 + $0x5c8] sm:$0xff]
  %v7212 = vld [vmem:[%s3 + $0x5d0] sm:$0xff]
  %v7213 = vld [vmem:[%s3 + $0x5d8] sm:$0xff]
  %v7214 = vld [vmem:[%s3 + $0x5e0] sm:$0xff]
  %v7215 = vld [vmem:[%s3 + $0x5e8] sm:$0xff]
  %v7216 = vld [vmem:[%s3 + $0x5f0] sm:$0xff]
  %v7217 = vld [vmem:[%s3 + $0x5f8] sm:$0xff]
  %v7218 = vld [vmem:[%s3 + $0x600] sm:$0xff]
  %v7219 = vld [vmem:[%s3 + $0x608] sm:$0xff]
  %v7220 = vld [vmem:[%s3 + $0x610] sm:$0xff]
  %v7221 = vld [vmem:[%s3 + $0x618] sm:$0xff]
  %v7222 = vld [vmem:[%s3 + $0x620] sm:$0xff]
  %v7223 = vld [vmem:[%s3 + $0x628] sm:$0xff]
  %v7224 = vld [vmem:[%s3 + $0x630] sm:$0xff]
  %v7225 = vld [vmem:[%s3 + $0x638] sm:$0xff]
  %v7226 = vld [vmem:[%s3 + $0x640] sm:$0xff]
  %v7227 = vld [vmem:[%s3 + $0x648] sm:$0xff]
  %v7228 = vld [vmem:[%s3 + $0x650] sm:$0xff]
  %v7229 = vld [vmem:[%s3 + $0x658] sm:$0xff]
  %v7230 = vld [vmem:[%s3 + $0x660] sm:$0xff]
  %v7231 = vld [vmem:[%s3 + $0x668] sm:$0xff]
  %v7232 = vld [vmem:[%s3 + $0x670] sm:$0xff]
  %v7233 = vld [vmem:[%s3 + $0x678] sm:$0xff]
  %v7234 = vld [vmem:[%s3 + $0x680] sm:$0xff]
  %v7235 = vld [vmem:[%s3 + $0x688] sm:$0xff]
  %v7236 = vld [vmem:[%s3 + $0x690] sm:$0xff]
  %v7237 = vld [vmem:[%s3 + $0x698] sm:$0xff]
  %v7238 = vld [vmem:[%s3 + $0x6a0] sm:$0xff]
  %v7239 = vld [vmem:[%s3 + $0x6a8] sm:$0xff]
  %v7240 = vld [vmem:[%s3 + $0x6b0] sm:$0xff]
  %v7241 = vld [vmem:[%s3 + $0x6b8] sm:$0xff]
  %v7242 = vld [vmem:[%s3 + $0x6c0] sm:$0xff]
  %v7243 = vld [vmem:[%s3 + $0x6c8] sm:$0xff]
  %v7244 = vld [vmem:[%s3 + $0x6d0] sm:$0xff]
  %v7245 = vld [vmem:[%s3 + $0x6d8] sm:$0xff]
  %v7246 = vld [vmem:[%s3 + $0x6e0] sm:$0xff]
  %v7247 = vld [vmem:[%s3 + $0x6e8] sm:$0xff]
  %v7248 = vld [vmem:[%s3 + $0x6f0] sm:$0xff]
  %v7249 = vld [vmem:[%s3 + $0x6f8] sm:$0xff]
  %v7250 = vld [vmem:[%s3 + $0x700] sm:$0xff]
  %v7251 = vld [vmem:[%s3 + $0x708] sm:$0xff]
  %v7252 = vld [vmem:[%s3 + $0x710] sm:$0xff]
  %v7253 = vld [vmem:[%s3 + $0x718] sm:$0xff]
  %v7254 = vmul.f32 %v4290, %v6798
  %v7255 = vmul.f32 %v4291, %v6799
  %v7256 = vmul.f32 %v4292, %v6800
  %v7257 = vmul.f32 %v4293, %v6801
  %v7258 = vmul.f32 %v4294, %v6802
  %v7259 = vmul.f32 %v4295, %v6803
  %v7260 = vmul.f32 %v4296, %v6804
  %v7261 = vmul.f32 %v4297, %v6805
  %v7262 = vmul.f32 %v4298, %v6806
  %v7263 = vmul.f32 %v4299, %v6807
  %v7264 = vmul.f32 %v4300, %v6808
  %v7265 = vmul.f32 %v4301, %v6809
  %v7266 = vmul.f32 %v4302, %v6810
  %v7267 = vmul.f32 %v4303, %v6811
  %v7268 = vmul.f32 %v4304, %v6812
  %v7269 = vmul.f32 %v4305, %v6813
  %v7270 = vmul.f32 %v4306, %v6814
  %v7271 = vmul.f32 %v4307, %v6815
  %v7272 = vmul.f32 %v4308, %v6816
  %v7273 = vmul.f32 %v4309, %v6817
  %v7274 = vmul.f32 %v4310, %v6818
  %v7275 = vmul.f32 %v4311, %v6819
  %v7276 = vmul.f32 %v4312, %v6820
  %v7277 = vmul.f32 %v4313, %v6821
  %v7278 = vmul.f32 %v4314, %v6822
  %v7279 = vmul.f32 %v4315, %v6823
  %v7280 = vmul.f32 %v4316, %v6824
  %v7281 = vmul.f32 %v4317, %v6825
  %v7282 = vmul.f32 %v4318, %v6826
  %v7283 = vmul.f32 %v4319, %v6827
  %v7284 = vmul.f32 %v4320, %v6828
  %v7285 = vmul.f32 %v4321, %v6829
  %v7286 = vmul.f32 %v4322, %v6830
  %v7287 = vmul.f32 %v4323, %v6831
  %v7288 = vmul.f32 %v4324, %v6832
  %v7289 = vmul.f32 %v4325, %v6833
  %v7290 = vmul.f32 %v4326, %v6834
  %v7291 = vmul.f32 %v4327, %v6835
  %v7292 = vmul.f32 %v4328, %v6836
  %v7293 = vmul.f32 %v4329, %v6837
  %v7294 = vmul.f32 %v4330, %v6838
  %v7295 = vmul.f32 %v4331, %v6839
  %v7296 = vmul.f32 %v4332, %v6840
  %v7297 = vmul.f32 %v4333, %v6841
  %v7298 = vmul.f32 %v4334, %v6842
  %v7299 = vmul.f32 %v4335, %v6843
  %v7300 = vmul.f32 %v4336, %v6844
  %v7301 = vmul.f32 %v4337, %v6845
  %v7302 = vmul.f32 %v4338, %v6846
  %v7303 = vmul.f32 %v4339, %v6847
  %v7304 = vmul.f32 %v4340, %v6848
  %v7305 = vmul.f32 %v4341, %v6849
  %v7306 = vmul.f32 %v4342, %v6850
  %v7307 = vmul.f32 %v4343, %v6851
  %v7308 = vmul.f32 %v4344, %v6852
  %v7309 = vmul.f32 %v4345, %v6853
  %v7310 = vmul.f32 %v4346, %v6854
  %v7311 = vmul.f32 %v4347, %v6855
  %v7312 = vmul.f32 %v4348, %v6856
  %v7313 = vmul.f32 %v4349, %v6857
  %v7314 = vmul.f32 %v4350, %v6858
  %v7315 = vmul.f32 %v4351, %v6859
  %v7316 = vmul.f32 %v4352, %v6860
  %v7317 = vmul.f32 %v4353, %v6861
  %v7318 = vmul.f32 %v4354, %v6862
  %v7319 = vmul.f32 %v4355, %v6863
  %v7320 = vmul.f32 %v4356, %v6864
  %v7321 = vmul.f32 %v4357, %v6865
  %v7322 = vmul.f32 %v4358, %v6866
  %v7323 = vmul.f32 %v4359, %v6867
  %v7324 = vmul.f32 %v4360, %v6868
  %v7325 = vmul.f32 %v4361, %v6869
  %v7326 = vmul.f32 %v4362, %v6870
  %v7327 = vmul.f32 %v4363, %v6871
  %v7328 = vmul.f32 %v4364, %v6872
  %v7329 = vmul.f32 %v4365, %v6873
  %v7330 = vmul.f32 %v4366, %v6874
  %v7331 = vmul.f32 %v4367, %v6875
  %v7332 = vmul.f32 %v4368, %v6876
  %v7333 = vmul.f32 %v4369, %v6877
  %v7334 = vmul.f32 %v4370, %v6878
  %v7335 = vmul.f32 %v4371, %v6879
  %v7336 = vmul.f32 %v4372, %v6880
  %v7337 = vmul.f32 %v4373, %v6881
  %v7338 = vmul.f32 %v4374, %v6882
  %v7339 = vmul.f32 %v4375, %v6883
  %v7340 = vmul.f32 %v4376, %v6884
  %v7341 = vmul.f32 %v4377, %v6885
  %v7342 = vmul.f32 %v4378, %v6886
  %v7343 = vmul.f32 %v4379, %v6887
  %v7344 = vmul.f32 %v4380, %v6888
  %v7345 = vmul.f32 %v4381, %v6889
  %v7346 = vmul.f32 %v4382, %v6890
  %v7347 = vmul.f32 %v4383, %v6891
  %v7348 = vmul.f32 %v4384, %v6892
  %v7349 = vmul.f32 %v4385, %v6893
  %v7350 = vmul.f32 %v4386, %v6894
  %v7351 = vmul.f32 %v4387, %v6895
  %v7352 = vmul.f32 %v4388, %v6896
  %v7353 = vmul.f32 %v4389, %v6897
  %v7354 = vmul.f32 %v4390, %v6898
  %v7355 = vmul.f32 %v4391, %v6899
  %v7356 = vmul.f32 %v4392, %v6900
  %v7357 = vmul.f32 %v4393, %v6901
  %v7358 = vmul.f32 %v4394, %v6902
  %v7359 = vmul.f32 %v4395, %v6903
  %v7360 = vmul.f32 %v4396, %v6904
  %v7361 = vmul.f32 %v4397, %v6905
  %v7362 = vmul.f32 %v4398, %v6906
  %v7363 = vmul.f32 %v4399, %v6907
  %v7364 = vmul.f32 %v4400, %v6908
  %v7365 = vmul.f32 %v4401, %v6909
  %v7366 = vmul.f32 %v4402, %v6910
  %v7367 = vmul.f32 %v4403, %v6911
  %v7368 = vmul.f32 %v4404, %v6912
  %v7369 = vmul.f32 %v4405, %v6913
  %v7370 = vmul.f32 %v4406, %v6914
  %v7371 = vmul.f32 %v4407, %v6915
  %v7372 = vmul.f32 %v4408, %v6916
  %v7373 = vmul.f32 %v4409, %v6917
  %v7374 = vmul.f32 %v4410, %v6918
  %v7375 = vmul.f32 %v4411, %v6919
  %v7376 = vmul.f32 %v4412, %v6920
  %v7377 = vmul.f32 %v4413, %v6921
  %v7378 = vmul.f32 %v4414, %v6922
  %v7379 = vmul.f32 %v4415, %v6923
  %v7380 = vmul.f32 %v4416, %v6924
  %v7381 = vmul.f32 %v4417, %v6925
  %v7382 = vmul.f32 %v4418, %v6926
  %v7383 = vmul.f32 %v4419, %v6927
  %v7384 = vmul.f32 %v4420, %v6928
  %v7385 = vmul.f32 %v4421, %v6929
  %v7386 = vmul.f32 %v4422, %v6930
  %v7387 = vmul.f32 %v4423, %v6931
  %v7388 = vmul.f32 %v4424, %v6932
  %v7389 = vmul.f32 %v4425, %v6933
  %v7390 = vmul.f32 %v4426, %v6934
  %v7391 = vmul.f32 %v4427, %v6935
  %v7392 = vmul.f32 %v4428, %v6936
  %v7393 = vmul.f32 %v4429, %v6937
  %v7394 = vmul.f32 %v4430, %v6938
  %v7395 = vmul.f32 %v4431, %v6939
  %v7396 = vmul.f32 %v4432, %v6940
  %v7397 = vmul.f32 %v4433, %v6941
  %v7398 = vmul.f32 %v4434, %v6942
  %v7399 = vmul.f32 %v4435, %v6943
  %v7400 = vmul.f32 %v4436, %v6944
  %v7401 = vmul.f32 %v4437, %v6945
  %v7402 = vmul.f32 %v4438, %v6946
  %v7403 = vmul.f32 %v4439, %v6947
  %v7404 = vmul.f32 %v4440, %v6948
  %v7405 = vmul.f32 %v4441, %v6949
  %v7406 = vmul.f32 %v4442, %v6950
  %v7407 = vmul.f32 %v4443, %v6951
  %v7408 = vmul.f32 %v4444, %v6952
  %v7409 = vmul.f32 %v4445, %v6953
  %v7410 = vmul.f32 %v4446, %v6954
  %v7411 = vmul.f32 %v4447, %v6955
  %v7412 = vmul.f32 %v4448, %v6956
  %v7413 = vmul.f32 %v4449, %v6957
  %v7414 = vmul.f32 %v4450, %v6958
  %v7415 = vmul.f32 %v4451, %v6959
  %v7416 = vmul.f32 %v4452, %v6960
  %v7417 = vmul.f32 %v4453, %v6961
  %v7418 = vmul.f32 %v4454, %v6962
  %v7419 = vmul.f32 %v4455, %v6963
  %v7420 = vmul.f32 %v4456, %v6964
  %v7421 = vmul.f32 %v4457, %v6965
  %v7422 = vmul.f32 %v4458, %v6966
  %v7423 = vmul.f32 %v4459, %v6967
  %v7424 = vmul.f32 %v4460, %v6968
  %v7425 = vmul.f32 %v4461, %v6969
  %v7426 = vmul.f32 %v4462, %v6970
  %v7427 = vmul.f32 %v4463, %v6971
  %v7428 = vmul.f32 %v4464, %v6972
  %v7429 = vmul.f32 %v4465, %v6973
  %v7430 = vmul.f32 %v4466, %v6974
  %v7431 = vmul.f32 %v4467, %v6975
  %v7432 = vmul.f32 %v4468, %v6976
  %v7433 = vmul.f32 %v4469, %v6977
  %v7434 = vmul.f32 %v4470, %v6978
  %v7435 = vmul.f32 %v4471, %v6979
  %v7436 = vmul.f32 %v4472, %v6980
  %v7437 = vmul.f32 %v4473, %v6981
  %v7438 = vmul.f32 %v4474, %v6982
  %v7439 = vmul.f32 %v4475, %v6983
  %v7440 = vmul.f32 %v4476, %v6984
  %v7441 = vmul.f32 %v4477, %v6985
  %v7442 = vmul.f32 %v4478, %v6986
  %v7443 = vmul.f32 %v4479, %v6987
  %v7444 = vmul.f32 %v4480, %v6988
  %v7445 = vmul.f32 %v4481, %v6989
  %v7446 = vmul.f32 %v4482, %v6990
  %v7447 = vmul.f32 %v4483, %v6991
  %v7448 = vmul.f32 %v4484, %v6992
  %v7449 = vmul.f32 %v4485, %v6993
  %v7450 = vmul.f32 %v4486, %v6994
  %v7451 = vmul.f32 %v4487, %v6995
  %v7452 = vmul.f32 %v4488, %v6996
  %v7453 = vmul.f32 %v4489, %v6997
  %v7454 = vmul.f32 %v4490, %v6998
  %v7455 = vmul.f32 %v4491, %v6999
  %v7456 = vmul.f32 %v4492, %v7000
  %v7457 = vmul.f32 %v4493, %v7001
  %v7458 = vmul.f32 %v4494, %v7002
  %v7459 = vmul.f32 %v4495, %v7003
  %v7460 = vmul.f32 %v4496, %v7004
  %v7461 = vmul.f32 %v4497, %v7005
  %v7462 = vmul.f32 %v4498, %v7006
  %v7463 = vmul.f32 %v4499, %v7007
  %v7464 = vmul.f32 %v4500, %v7008
  %v7465 = vmul.f32 %v4501, %v7009
  %v7466 = vmul.f32 %v4502, %v7010
  %v7467 = vmul.f32 %v4503, %v7011
  %v7468 = vmul.f32 %v4504, %v7012
  %v7469 = vmul.f32 %v4505, %v7013
  %v7470 = vmul.f32 %v4506, %v7014
  %v7471 = vmul.f32 %v4507, %v7015
  %v7472 = vmul.f32 %v4508, %v7016
  %v7473 = vmul.f32 %v4509, %v7017
  %v7474 = vmul.f32 %v4510, %v7018
  %v7475 = vmul.f32 %v4511, %v7019
  %v7476 = vmul.f32 %v4512, %v7020
  %v7477 = vmul.f32 %v4513, %v7021
  %v7478 = vmul.f32 %v4514, %v7022
  %v7479 = vmul.f32 %v4515, %v7023
  %v7480 = vmul.f32 %v4516, %v7024
  %v7481 = vmul.f32 %v4517, %v7025
  %v7482 = vsub.f32 %v7026, %v7254
  %v7483 = vsub.f32 %v7027, %v7255
  %v7484 = vsub.f32 %v7028, %v7256
  %v7485 = vsub.f32 %v7029, %v7257
  %v7486 = vsub.f32 %v7030, %v7258
  %v7487 = vsub.f32 %v7031, %v7259
  %v7488 = vsub.f32 %v7032, %v7260
  %v7489 = vsub.f32 %v7033, %v7261
  %v7490 = vsub.f32 %v7034, %v7262
  %v7491 = vsub.f32 %v7035, %v7263
  %v7492 = vsub.f32 %v7036, %v7264
  %v7493 = vsub.f32 %v7037, %v7265
  %v7494 = vsub.f32 %v7038, %v7266
  %v7495 = vsub.f32 %v7039, %v7267
  %v7496 = vsub.f32 %v7040, %v7268
  %v7497 = vsub.f32 %v7041, %v7269
  %v7498 = vsub.f32 %v7042, %v7270
  %v7499 = vsub.f32 %v7043, %v7271
  %v7500 = vsub.f32 %v7044, %v7272
  %v7501 = vsub.f32 %v7045, %v7273
  %v7502 = vsub.f32 %v7046, %v7274
  %v7503 = vsub.f32 %v7047, %v7275
  %v7504 = vsub.f32 %v7048, %v7276
  %v7505 = vsub.f32 %v7049, %v7277
  %v7506 = vsub.f32 %v7050, %v7278
  %v7507 = vsub.f32 %v7051, %v7279
  %v7508 = vsub.f32 %v7052, %v7280
  %v7509 = vsub.f32 %v7053, %v7281
  %v7510 = vsub.f32 %v7054, %v7282
  %v7511 = vsub.f32 %v7055, %v7283
  %v7512 = vsub.f32 %v7056, %v7284
  %v7513 = vsub.f32 %v7057, %v7285
  %v7514 = vsub.f32 %v7058, %v7286
  %v7515 = vsub.f32 %v7059, %v7287
  %v7516 = vsub.f32 %v7060, %v7288
  %v7517 = vsub.f32 %v7061, %v7289
  %v7518 = vsub.f32 %v7062, %v7290
  %v7519 = vsub.f32 %v7063, %v7291
  %v7520 = vsub.f32 %v7064, %v7292
  %v7521 = vsub.f32 %v7065, %v7293
  %v7522 = vsub.f32 %v7066, %v7294
  %v7523 = vsub.f32 %v7067, %v7295
  %v7524 = vsub.f32 %v7068, %v7296
  %v7525 = vsub.f32 %v7069, %v7297
  %v7526 = vsub.f32 %v7070, %v7298
  %v7527 = vsub.f32 %v7071, %v7299
  %v7528 = vsub.f32 %v7072, %v7300
  %v7529 = vsub.f32 %v7073, %v7301
  %v7530 = vsub.f32 %v7074, %v7302
  %v7531 = vsub.f32 %v7075, %v7303
  %v7532 = vsub.f32 %v7076, %v7304
  %v7533 = vsub.f32 %v7077, %v7305
  %v7534 = vsub.f32 %v7078, %v7306
  %v7535 = vsub.f32 %v7079, %v7307
  %v7536 = vsub.f32 %v7080, %v7308
  %v7537 = vsub.f32 %v7081, %v7309
  %v7538 = vsub.f32 %v7082, %v7310
  %v7539 = vsub.f32 %v7083, %v7311
  %v7540 = vsub.f32 %v7084, %v7312
  %v7541 = vsub.f32 %v7085, %v7313
  %v7542 = vsub.f32 %v7086, %v7314
  %v7543 = vsub.f32 %v7087, %v7315
  %v7544 = vsub.f32 %v7088, %v7316
  %v7545 = vsub.f32 %v7089, %v7317
  %v7546 = vsub.f32 %v7090, %v7318
  %v7547 = vsub.f32 %v7091, %v7319
  %v7548 = vsub.f32 %v7092, %v7320
  %v7549 = vsub.f32 %v7093, %v7321
  %v7550 = vsub.f32 %v7094, %v7322
  %v7551 = vsub.f32 %v7095, %v7323
  %v7552 = vsub.f32 %v7096, %v7324
  %v7553 = vsub.f32 %v7097, %v7325
  %v7554 = vsub.f32 %v7098, %v7326
  %v7555 = vsub.f32 %v7099, %v7327
  %v7556 = vsub.f32 %v7100, %v7328
  %v7557 = vsub.f32 %v7101, %v7329
  %v7558 = vsub.f32 %v7102, %v7330
  %v7559 = vsub.f32 %v7103, %v7331
  %v7560 = vsub.f32 %v7104, %v7332
  %v7561 = vsub.f32 %v7105, %v7333
  %v7562 = vsub.f32 %v7106, %v7334
  %v7563 = vsub.f32 %v7107, %v7335
  %v7564 = vsub.f32 %v7108, %v7336
  %v7565 = vsub.f32 %v7109, %v7337
  %v7566 = vsub.f32 %v7110, %v7338
  %v7567 = vsub.f32 %v7111, %v7339
  %v7568 = vsub.f32 %v7112, %v7340
  %v7569 = vsub.f32 %v7113, %v7341
  %v7570 = vsub.f32 %v7114, %v7342
  %v7571 = vsub.f32 %v7115, %v7343
  %v7572 = vsub.f32 %v7116, %v7344
  %v7573 = vsub.f32 %v7117, %v7345
  %v7574 = vsub.f32 %v7118, %v7346
  %v7575 = vsub.f32 %v7119, %v7347
  %v7576 = vsub.f32 %v7120, %v7348
  %v7577 = vsub.f32 %v7121, %v7349
  %v7578 = vsub.f32 %v7122, %v7350
  %v7579 = vsub.f32 %v7123, %v7351
  %v7580 = vsub.f32 %v7124, %v7352
  %v7581 = vsub.f32 %v7125, %v7353
  %v7582 = vsub.f32 %v7126, %v7354
  %v7583 = vsub.f32 %v7127, %v7355
  %v7584 = vsub.f32 %v7128, %v7356
  %v7585 = vsub.f32 %v7129, %v7357
  %v7586 = vsub.f32 %v7130, %v7358
  %v7587 = vsub.f32 %v7131, %v7359
  %v7588 = vsub.f32 %v7132, %v7360
  %v7589 = vsub.f32 %v7133, %v7361
  %v7590 = vsub.f32 %v7134, %v7362
  %v7591 = vsub.f32 %v7135, %v7363
  %v7592 = vsub.f32 %v7136, %v7364
  %v7593 = vsub.f32 %v7137, %v7365
  %v7594 = vsub.f32 %v7138, %v7366
  %v7595 = vsub.f32 %v7139, %v7367
  %v7596 = vsub.f32 %v7140, %v7368
  %v7597 = vsub.f32 %v7141, %v7369
  %v7598 = vsub.f32 %v7142, %v7370
  %v7599 = vsub.f32 %v7143, %v7371
  %v7600 = vsub.f32 %v7144, %v7372
  %v7601 = vsub.f32 %v7145, %v7373
  %v7602 = vsub.f32 %v7146, %v7374
  %v7603 = vsub.f32 %v7147, %v7375
  %v7604 = vsub.f32 %v7148, %v7376
  %v7605 = vsub.f32 %v7149, %v7377
  %v7606 = vsub.f32 %v7150, %v7378
  %v7607 = vsub.f32 %v7151, %v7379
  %v7608 = vsub.f32 %v7152, %v7380
  %v7609 = vsub.f32 %v7153, %v7381
  %v7610 = vsub.f32 %v7154, %v7382
  %v7611 = vsub.f32 %v7155, %v7383
  %v7612 = vsub.f32 %v7156, %v7384
  %v7613 = vsub.f32 %v7157, %v7385
  %v7614 = vsub.f32 %v7158, %v7386
  %v7615 = vsub.f32 %v7159, %v7387
  %v7616 = vsub.f32 %v7160, %v7388
  %v7617 = vsub.f32 %v7161, %v7389
  %v7618 = vsub.f32 %v7162, %v7390
  %v7619 = vsub.f32 %v7163, %v7391
  %v7620 = vsub.f32 %v7164, %v7392
  %v7621 = vsub.f32 %v7165, %v7393
  %v7622 = vsub.f32 %v7166, %v7394
  %v7623 = vsub.f32 %v7167, %v7395
  %v7624 = vsub.f32 %v7168, %v7396
  %v7625 = vsub.f32 %v7169, %v7397
  %v7626 = vsub.f32 %v7170, %v7398
  %v7627 = vsub.f32 %v7171, %v7399
  %v7628 = vsub.f32 %v7172, %v7400
  %v7629 = vsub.f32 %v7173, %v7401
  %v7630 = vsub.f32 %v7174, %v7402
  %v7631 = vsub.f32 %v7175, %v7403
  %v7632 = vsub.f32 %v7176, %v7404
  %v7633 = vsub.f32 %v7177, %v7405
  %v7634 = vsub.f32 %v7178, %v7406
  %v7635 = vsub.f32 %v7179, %v7407
  %v7636 = vsub.f32 %v7180, %v7408
  %v7637 = vsub.f32 %v7181, %v7409
  %v7638 = vsub.f32 %v7182, %v7410
  %v7639 = vsub.f32 %v7183, %v7411
  %v7640 = vsub.f32 %v7184, %v7412
  %v7641 = vsub.f32 %v7185, %v7413
  %v7642 = vsub.f32 %v7186, %v7414
  %v7643 = vsub.f32 %v7187, %v7415
  %v7644 = vsub.f32 %v7188, %v7416
  %v7645 = vsub.f32 %v7189, %v7417
  %v7646 = vsub.f32 %v7190, %v7418
  %v7647 = vsub.f32 %v7191, %v7419
  %v7648 = vsub.f32 %v7192, %v7420
  %v7649 = vsub.f32 %v7193, %v7421
  %v7650 = vsub.f32 %v7194, %v7422
  %v7651 = vsub.f32 %v7195, %v7423
  %v7652 = vsub.f32 %v7196, %v7424
  %v7653 = vsub.f32 %v7197, %v7425
  %v7654 = vsub.f32 %v7198, %v7426
  %v7655 = vsub.f32 %v7199, %v7427
  %v7656 = vsub.f32 %v7200, %v7428
  %v7657 = vsub.f32 %v7201, %v7429
  %v7658 = vsub.f32 %v7202, %v7430
  %v7659 = vsub.f32 %v7203, %v7431
  %v7660 = vsub.f32 %v7204, %v7432
  %v7661 = vsub.f32 %v7205, %v7433
  %v7662 = vsub.f32 %v7206, %v7434
  %v7663 = vsub.f32 %v7207, %v7435
  %v7664 = vsub.f32 %v7208, %v7436
  %v7665 = vsub.f32 %v7209, %v7437
  %v7666 = vsub.f32 %v7210, %v7438
  %v7667 = vsub.f32 %v7211, %v7439
  %v7668 = vsub.f32 %v7212, %v7440
  %v7669 = vsub.f32 %v7213, %v7441
  %v7670 = vsub.f32 %v7214, %v7442
  %v7671 = vsub.f32 %v7215, %v7443
  %v7672 = vsub.f32 %v7216, %v7444
  %v7673 = vsub.f32 %v7217, %v7445
  %v7674 = vsub.f32 %v7218, %v7446
  %v7675 = vsub.f32 %v7219, %v7447
  %v7676 = vsub.f32 %v7220, %v7448
  %v7677 = vsub.f32 %v7221, %v7449
  %v7678 = vsub.f32 %v7222, %v7450
  %v7679 = vsub.f32 %v7223, %v7451
  %v7680 = vsub.f32 %v7224, %v7452
  %v7681 = vsub.f32 %v7225, %v7453
  %v7682 = vsub.f32 %v7226, %v7454
  %v7683 = vsub.f32 %v7227, %v7455
  %v7684 = vsub.f32 %v7228, %v7456
  %v7685 = vsub.f32 %v7229, %v7457
  %v7686 = vsub.f32 %v7230, %v7458
  %v7687 = vsub.f32 %v7231, %v7459
  %v7688 = vsub.f32 %v7232, %v7460
  %v7689 = vsub.f32 %v7233, %v7461
  %v7690 = vsub.f32 %v7234, %v7462
  %v7691 = vsub.f32 %v7235, %v7463
  %v7692 = vsub.f32 %v7236, %v7464
  %v7693 = vsub.f32 %v7237, %v7465
  %v7694 = vsub.f32 %v7238, %v7466
  %v7695 = vsub.f32 %v7239, %v7467
  %v7696 = vsub.f32 %v7240, %v7468
  %v7697 = vsub.f32 %v7241, %v7469
  %v7698 = vsub.f32 %v7242, %v7470
  %v7699 = vsub.f32 %v7243, %v7471
  %v7700 = vsub.f32 %v7244, %v7472
  %v7701 = vsub.f32 %v7245, %v7473
  %v7702 = vsub.f32 %v7246, %v7474
  %v7703 = vsub.f32 %v7247, %v7475
  %v7704 = vsub.f32 %v7248, %v7476
  %v7705 = vsub.f32 %v7249, %v7477
  %v7706 = vsub.f32 %v7250, %v7478
  %v7707 = vsub.f32 %v7251, %v7479
  %v7708 = vsub.f32 %v7252, %v7480
  %v7709 = vsub.f32 %v7253, %v7481
  %7711 = vset.pattern.permute.xlu0 0
  %7712 = vperm.xlu0 %7711, %v6798
  %v7713 = vpop.permute.xlu0 %7712
  %7716 = vset.pattern.permute.xlu0 0
  %7717 = vperm.xlu0 %7716, %v6799
  %v7718 = vpop.permute.xlu0 %7717
  %7721 = vset.pattern.permute.xlu0 0
  %7722 = vperm.xlu0 %7721, %v6800
  %v7723 = vpop.permute.xlu0 %7722
  %7726 = vset.pattern.permute.xlu0 0
  %7727 = vperm.xlu0 %7726, %v6801
  %v7728 = vpop.permute.xlu0 %7727
  %7731 = vset.pattern.permute.xlu0 0
  %7732 = vperm.xlu0 %7731, %v6802
  %v7733 = vpop.permute.xlu0 %7732
  %7736 = vset.pattern.permute.xlu0 0
  %7737 = vperm.xlu0 %7736, %v6803
  %v7738 = vpop.permute.xlu0 %7737
  %7741 = vset.pattern.permute.xlu0 0
  %7742 = vperm.xlu0 %7741, %v6804
  %v7743 = vpop.permute.xlu0 %7742
  %7746 = vset.pattern.permute.xlu0 0
  %7747 = vperm.xlu0 %7746, %v6805
  %v7748 = vpop.permute.xlu0 %7747
  %7751 = vset.pattern.permute.xlu0 0
  %7752 = vperm.xlu0 %7751, %v6806
  %v7753 = vpop.permute.xlu0 %7752
  %7756 = vset.pattern.permute.xlu0 0
  %7757 = vperm.xlu0 %7756, %v6807
  %v7758 = vpop.permute.xlu0 %7757
  %7761 = vset.pattern.permute.xlu0 0
  %7762 = vperm.xlu0 %7761, %v6808
  %v7763 = vpop.permute.xlu0 %7762
  %7766 = vset.pattern.permute.xlu0 0
  %7767 = vperm.xlu0 %7766, %v6809
  %v7768 = vpop.permute.xlu0 %7767
  %7771 = vset.pattern.permute.xlu0 0
  %7772 = vperm.xlu0 %7771, %v6810
  %v7773 = vpop.permute.xlu0 %7772
  %7776 = vset.pattern.permute.xlu0 0
  %7777 = vperm.xlu0 %7776, %v6811
  %v7778 = vpop.permute.xlu0 %7777
  %7781 = vset.pattern.permute.xlu0 0
  %7782 = vperm.xlu0 %7781, %v6812
  %v7783 = vpop.permute.xlu0 %7782
  %7786 = vset.pattern.permute.xlu0 0
  %7787 = vperm.xlu0 %7786, %v6813
  %v7788 = vpop.permute.xlu0 %7787
  %7791 = vset.pattern.permute.xlu0 0
  %7792 = vperm.xlu0 %7791, %v6814
  %v7793 = vpop.permute.xlu0 %7792
  %7796 = vset.pattern.permute.xlu0 0
  %7797 = vperm.xlu0 %7796, %v6815
  %v7798 = vpop.permute.xlu0 %7797
  %7801 = vset.pattern.permute.xlu0 0
  %7802 = vperm.xlu0 %7801, %v6816
  %v7803 = vpop.permute.xlu0 %7802
  %7806 = vset.pattern.permute.xlu0 0
  %7807 = vperm.xlu0 %7806, %v6817
  %v7808 = vpop.permute.xlu0 %7807
  %7811 = vset.pattern.permute.xlu0 0
  %7812 = vperm.xlu0 %7811, %v6818
  %v7813 = vpop.permute.xlu0 %7812
  %7816 = vset.pattern.permute.xlu0 0
  %7817 = vperm.xlu0 %7816, %v6819
  %v7818 = vpop.permute.xlu0 %7817
  %7821 = vset.pattern.permute.xlu0 0
  %7822 = vperm.xlu0 %7821, %v6820
  %v7823 = vpop.permute.xlu0 %7822
  %7826 = vset.pattern.permute.xlu0 0
  %7827 = vperm.xlu0 %7826, %v6821
  %v7828 = vpop.permute.xlu0 %7827
  %7831 = vset.pattern.permute.xlu0 0
  %7832 = vperm.xlu0 %7831, %v6822
  %v7833 = vpop.permute.xlu0 %7832
  %7836 = vset.pattern.permute.xlu0 0
  %7837 = vperm.xlu0 %7836, %v6823
  %v7838 = vpop.permute.xlu0 %7837
  %7841 = vset.pattern.permute.xlu0 0
  %7842 = vperm.xlu0 %7841, %v6824
  %v7843 = vpop.permute.xlu0 %7842
  %7846 = vset.pattern.permute.xlu0 0
  %7847 = vperm.xlu0 %7846, %v6825
  %v7848 = vpop.permute.xlu0 %7847
  %7851 = vset.pattern.permute.xlu0 0
  %7852 = vperm.xlu0 %7851, %v6826
  %v7853 = vpop.permute.xlu0 %7852
  %7856 = vset.pattern.permute.xlu0 0
  %7857 = vperm.xlu0 %7856, %v6827
  %v7858 = vpop.permute.xlu0 %7857
  %7861 = vset.pattern.permute.xlu0 0
  %7862 = vperm.xlu0 %7861, %v6828
  %v7863 = vpop.permute.xlu0 %7862
  %7866 = vset.pattern.permute.xlu0 0
  %7867 = vperm.xlu0 %7866, %v6829
  %v7868 = vpop.permute.xlu0 %7867
  %7871 = vset.pattern.permute.xlu0 0
  %7872 = vperm.xlu0 %7871, %v6830
  %v7873 = vpop.permute.xlu0 %7872
  %7876 = vset.pattern.permute.xlu0 0
  %7877 = vperm.xlu0 %7876, %v6831
  %v7878 = vpop.permute.xlu0 %7877
  %7881 = vset.pattern.permute.xlu0 0
  %7882 = vperm.xlu0 %7881, %v6832
  %v7883 = vpop.permute.xlu0 %7882
  %7886 = vset.pattern.permute.xlu0 0
  %7887 = vperm.xlu0 %7886, %v6833
  %v7888 = vpop.permute.xlu0 %7887
  %7891 = vset.pattern.permute.xlu0 0
  %7892 = vperm.xlu0 %7891, %v6834
  %v7893 = vpop.permute.xlu0 %7892
  %7896 = vset.pattern.permute.xlu0 0
  %7897 = vperm.xlu0 %7896, %v6835
  %v7898 = vpop.permute.xlu0 %7897
  %7901 = vset.pattern.permute.xlu0 0
  %7902 = vperm.xlu0 %7901, %v6836
  %v7903 = vpop.permute.xlu0 %7902
  %7906 = vset.pattern.permute.xlu0 0
  %7907 = vperm.xlu0 %7906, %v6837
  %v7908 = vpop.permute.xlu0 %7907
  %7911 = vset.pattern.permute.xlu0 0
  %7912 = vperm.xlu0 %7911, %v6838
  %v7913 = vpop.permute.xlu0 %7912
  %7916 = vset.pattern.permute.xlu0 0
  %7917 = vperm.xlu0 %7916, %v6839
  %v7918 = vpop.permute.xlu0 %7917
  %7921 = vset.pattern.permute.xlu0 0
  %7922 = vperm.xlu0 %7921, %v6840
  %v7923 = vpop.permute.xlu0 %7922
  %7926 = vset.pattern.permute.xlu0 0
  %7927 = vperm.xlu0 %7926, %v6841
  %v7928 = vpop.permute.xlu0 %7927
  %7931 = vset.pattern.permute.xlu0 0
  %7932 = vperm.xlu0 %7931, %v6842
  %v7933 = vpop.permute.xlu0 %7932
  %7936 = vset.pattern.permute.xlu0 0
  %7937 = vperm.xlu0 %7936, %v6843
  %v7938 = vpop.permute.xlu0 %7937
  %7941 = vset.pattern.permute.xlu0 0
  %7942 = vperm.xlu0 %7941, %v6844
  %v7943 = vpop.permute.xlu0 %7942
  %7946 = vset.pattern.permute.xlu0 0
  %7947 = vperm.xlu0 %7946, %v6845
  %v7948 = vpop.permute.xlu0 %7947
  %7951 = vset.pattern.permute.xlu0 0
  %7952 = vperm.xlu0 %7951, %v6846
  %v7953 = vpop.permute.xlu0 %7952
  %7956 = vset.pattern.permute.xlu0 0
  %7957 = vperm.xlu0 %7956, %v6847
  %v7958 = vpop.permute.xlu0 %7957
  %7961 = vset.pattern.permute.xlu0 0
  %7962 = vperm.xlu0 %7961, %v6848
  %v7963 = vpop.permute.xlu0 %7962
  %7966 = vset.pattern.permute.xlu0 0
  %7967 = vperm.xlu0 %7966, %v6849
  %v7968 = vpop.permute.xlu0 %7967
  %7971 = vset.pattern.permute.xlu0 0
  %7972 = vperm.xlu0 %7971, %v6850
  %v7973 = vpop.permute.xlu0 %7972
  %7976 = vset.pattern.permute.xlu0 0
  %7977 = vperm.xlu0 %7976, %v6851
  %v7978 = vpop.permute.xlu0 %7977
  %7981 = vset.pattern.permute.xlu0 0
  %7982 = vperm.xlu0 %7981, %v6852
  %v7983 = vpop.permute.xlu0 %7982
  %7986 = vset.pattern.permute.xlu0 0
  %7987 = vperm.xlu0 %7986, %v6853
  %v7988 = vpop.permute.xlu0 %7987
  %7991 = vset.pattern.permute.xlu0 0
  %7992 = vperm.xlu0 %7991, %v6854
  %v7993 = vpop.permute.xlu0 %7992
  %7996 = vset.pattern.permute.xlu0 0
  %7997 = vperm.xlu0 %7996, %v6855
  %v7998 = vpop.permute.xlu0 %7997
  %8001 = vset.pattern.permute.xlu0 0
  %8002 = vperm.xlu0 %8001, %v6856
  %v8003 = vpop.permute.xlu0 %8002
  %8006 = vset.pattern.permute.xlu0 0
  %8007 = vperm.xlu0 %8006, %v6857
  %v8008 = vpop.permute.xlu0 %8007
  %8011 = vset.pattern.permute.xlu0 0
  %8012 = vperm.xlu0 %8011, %v6858
  %v8013 = vpop.permute.xlu0 %8012
  %8016 = vset.pattern.permute.xlu0 0
  %8017 = vperm.xlu0 %8016, %v6859
  %v8018 = vpop.permute.xlu0 %8017
  %8021 = vset.pattern.permute.xlu0 0
  %8022 = vperm.xlu0 %8021, %v6860
  %v8023 = vpop.permute.xlu0 %8022
  %8026 = vset.pattern.permute.xlu0 0
  %8027 = vperm.xlu0 %8026, %v6861
  %v8028 = vpop.permute.xlu0 %8027
  %8031 = vset.pattern.permute.xlu0 0
  %8032 = vperm.xlu0 %8031, %v6862
  %v8033 = vpop.permute.xlu0 %8032
  %8036 = vset.pattern.permute.xlu0 0
  %8037 = vperm.xlu0 %8036, %v6863
  %v8038 = vpop.permute.xlu0 %8037
  %8041 = vset.pattern.permute.xlu0 0
  %8042 = vperm.xlu0 %8041, %v6864
  %v8043 = vpop.permute.xlu0 %8042
  %8046 = vset.pattern.permute.xlu0 0
  %8047 = vperm.xlu0 %8046, %v6865
  %v8048 = vpop.permute.xlu0 %8047
  %8051 = vset.pattern.permute.xlu0 0
  %8052 = vperm.xlu0 %8051, %v6866
  %v8053 = vpop.permute.xlu0 %8052
  %8056 = vset.pattern.permute.xlu0 0
  %8057 = vperm.xlu0 %8056, %v6867
  %v8058 = vpop.permute.xlu0 %8057
  %8061 = vset.pattern.permute.xlu0 0
  %8062 = vperm.xlu0 %8061, %v6868
  %v8063 = vpop.permute.xlu0 %8062
  %8066 = vset.pattern.permute.xlu0 0
  %8067 = vperm.xlu0 %8066, %v6869
  %v8068 = vpop.permute.xlu0 %8067
  %8071 = vset.pattern.permute.xlu0 0
  %8072 = vperm.xlu0 %8071, %v6870
  %v8073 = vpop.permute.xlu0 %8072
  %8076 = vset.pattern.permute.xlu0 0
  %8077 = vperm.xlu0 %8076, %v6871
  %v8078 = vpop.permute.xlu0 %8077
  %8081 = vset.pattern.permute.xlu0 0
  %8082 = vperm.xlu0 %8081, %v6872
  %v8083 = vpop.permute.xlu0 %8082
  %8086 = vset.pattern.permute.xlu0 0
  %8087 = vperm.xlu0 %8086, %v6873
  %v8088 = vpop.permute.xlu0 %8087
  %8091 = vset.pattern.permute.xlu0 0
  %8092 = vperm.xlu0 %8091, %v6874
  %v8093 = vpop.permute.xlu0 %8092
  %8096 = vset.pattern.permute.xlu0 0
  %8097 = vperm.xlu0 %8096, %v6875
  %v8098 = vpop.permute.xlu0 %8097
  %8101 = vset.pattern.permute.xlu0 0
  %8102 = vperm.xlu0 %8101, %v6876
  %v8103 = vpop.permute.xlu0 %8102
  %8106 = vset.pattern.permute.xlu0 0
  %8107 = vperm.xlu0 %8106, %v6877
  %v8108 = vpop.permute.xlu0 %8107
  %8111 = vset.pattern.permute.xlu0 0
  %8112 = vperm.xlu0 %8111, %v6878
  %v8113 = vpop.permute.xlu0 %8112
  %8116 = vset.pattern.permute.xlu0 0
  %8117 = vperm.xlu0 %8116, %v6879
  %v8118 = vpop.permute.xlu0 %8117
  %8121 = vset.pattern.permute.xlu0 0
  %8122 = vperm.xlu0 %8121, %v6880
  %v8123 = vpop.permute.xlu0 %8122
  %8126 = vset.pattern.permute.xlu0 0
  %8127 = vperm.xlu0 %8126, %v6881
  %v8128 = vpop.permute.xlu0 %8127
  %8131 = vset.pattern.permute.xlu0 0
  %8132 = vperm.xlu0 %8131, %v6882
  %v8133 = vpop.permute.xlu0 %8132
  %8136 = vset.pattern.permute.xlu0 0
  %8137 = vperm.xlu0 %8136, %v6883
  %v8138 = vpop.permute.xlu0 %8137
  %8141 = vset.pattern.permute.xlu0 0
  %8142 = vperm.xlu0 %8141, %v6884
  %v8143 = vpop.permute.xlu0 %8142
  %8146 = vset.pattern.permute.xlu0 0
  %8147 = vperm.xlu0 %8146, %v6885
  %v8148 = vpop.permute.xlu0 %8147
  %8151 = vset.pattern.permute.xlu0 0
  %8152 = vperm.xlu0 %8151, %v6886
  %v8153 = vpop.permute.xlu0 %8152
  %8156 = vset.pattern.permute.xlu0 0
  %8157 = vperm.xlu0 %8156, %v6887
  %v8158 = vpop.permute.xlu0 %8157
  %8161 = vset.pattern.permute.xlu0 0
  %8162 = vperm.xlu0 %8161, %v6888
  %v8163 = vpop.permute.xlu0 %8162
  %8166 = vset.pattern.permute.xlu0 0
  %8167 = vperm.xlu0 %8166, %v6889
  %v8168 = vpop.permute.xlu0 %8167
  %8171 = vset.pattern.permute.xlu0 0
  %8172 = vperm.xlu0 %8171, %v6890
  %v8173 = vpop.permute.xlu0 %8172
  %8176 = vset.pattern.permute.xlu0 0
  %8177 = vperm.xlu0 %8176, %v6891
  %v8178 = vpop.permute.xlu0 %8177
  %8181 = vset.pattern.permute.xlu0 0
  %8182 = vperm.xlu0 %8181, %v6892
  %v8183 = vpop.permute.xlu0 %8182
  %8186 = vset.pattern.permute.xlu0 0
  %8187 = vperm.xlu0 %8186, %v6893
  %v8188 = vpop.permute.xlu0 %8187
  %8191 = vset.pattern.permute.xlu0 0
  %8192 = vperm.xlu0 %8191, %v6894
  %v8193 = vpop.permute.xlu0 %8192
  %8196 = vset.pattern.permute.xlu0 0
  %8197 = vperm.xlu0 %8196, %v6895
  %v8198 = vpop.permute.xlu0 %8197
  %8201 = vset.pattern.permute.xlu0 0
  %8202 = vperm.xlu0 %8201, %v6896
  %v8203 = vpop.permute.xlu0 %8202
  %8206 = vset.pattern.permute.xlu0 0
  %8207 = vperm.xlu0 %8206, %v6897
  %v8208 = vpop.permute.xlu0 %8207
  %8211 = vset.pattern.permute.xlu0 0
  %8212 = vperm.xlu0 %8211, %v6898
  %v8213 = vpop.permute.xlu0 %8212
  %8216 = vset.pattern.permute.xlu0 0
  %8217 = vperm.xlu0 %8216, %v6899
  %v8218 = vpop.permute.xlu0 %8217
  %8221 = vset.pattern.permute.xlu0 0
  %8222 = vperm.xlu0 %8221, %v6900
  %v8223 = vpop.permute.xlu0 %8222
  %8226 = vset.pattern.permute.xlu0 0
  %8227 = vperm.xlu0 %8226, %v6901
  %v8228 = vpop.permute.xlu0 %8227
  %8231 = vset.pattern.permute.xlu0 0
  %8232 = vperm.xlu0 %8231, %v6902
  %v8233 = vpop.permute.xlu0 %8232
  %8236 = vset.pattern.permute.xlu0 0
  %8237 = vperm.xlu0 %8236, %v6903
  %v8238 = vpop.permute.xlu0 %8237
  %8241 = vset.pattern.permute.xlu0 0
  %8242 = vperm.xlu0 %8241, %v6904
  %v8243 = vpop.permute.xlu0 %8242
  %8246 = vset.pattern.permute.xlu0 0
  %8247 = vperm.xlu0 %8246, %v6905
  %v8248 = vpop.permute.xlu0 %8247
  %8251 = vset.pattern.permute.xlu0 0
  %8252 = vperm.xlu0 %8251, %v6906
  %v8253 = vpop.permute.xlu0 %8252
  %8256 = vset.pattern.permute.xlu0 0
  %8257 = vperm.xlu0 %8256, %v6907
  %v8258 = vpop.permute.xlu0 %8257
  %8261 = vset.pattern.permute.xlu0 0
  %8262 = vperm.xlu0 %8261, %v6908
  %v8263 = vpop.permute.xlu0 %8262
  %8266 = vset.pattern.permute.xlu0 0
  %8267 = vperm.xlu0 %8266, %v6909
  %v8268 = vpop.permute.xlu0 %8267
  %8271 = vset.pattern.permute.xlu0 0
  %8272 = vperm.xlu0 %8271, %v6910
  %v8273 = vpop.permute.xlu0 %8272
  %8276 = vset.pattern.permute.xlu0 0
  %8277 = vperm.xlu0 %8276, %v6911
  %v8278 = vpop.permute.xlu0 %8277
  %8281 = vset.pattern.permute.xlu0 0
  %8282 = vperm.xlu0 %8281, %v6912
  %v8283 = vpop.permute.xlu0 %8282
  %8286 = vset.pattern.permute.xlu0 0
  %8287 = vperm.xlu0 %8286, %v6913
  %v8288 = vpop.permute.xlu0 %8287
  %8291 = vset.pattern.permute.xlu0 0
  %8292 = vperm.xlu0 %8291, %v6914
  %v8293 = vpop.permute.xlu0 %8292
  %8296 = vset.pattern.permute.xlu0 0
  %8297 = vperm.xlu0 %8296, %v6915
  %v8298 = vpop.permute.xlu0 %8297
  %8301 = vset.pattern.permute.xlu0 0
  %8302 = vperm.xlu0 %8301, %v6916
  %v8303 = vpop.permute.xlu0 %8302
  %8306 = vset.pattern.permute.xlu0 0
  %8307 = vperm.xlu0 %8306, %v6917
  %v8308 = vpop.permute.xlu0 %8307
  %8311 = vset.pattern.permute.xlu0 0
  %8312 = vperm.xlu0 %8311, %v6918
  %v8313 = vpop.permute.xlu0 %8312
  %8316 = vset.pattern.permute.xlu0 0
  %8317 = vperm.xlu0 %8316, %v6919
  %v8318 = vpop.permute.xlu0 %8317
  %8321 = vset.pattern.permute.xlu0 0
  %8322 = vperm.xlu0 %8321, %v6920
  %v8323 = vpop.permute.xlu0 %8322
  %8326 = vset.pattern.permute.xlu0 0
  %8327 = vperm.xlu0 %8326, %v6921
  %v8328 = vpop.permute.xlu0 %8327
  %8331 = vset.pattern.permute.xlu0 0
  %8332 = vperm.xlu0 %8331, %v6922
  %v8333 = vpop.permute.xlu0 %8332
  %8336 = vset.pattern.permute.xlu0 0
  %8337 = vperm.xlu0 %8336, %v6923
  %v8338 = vpop.permute.xlu0 %8337
  %8341 = vset.pattern.permute.xlu0 0
  %8342 = vperm.xlu0 %8341, %v6924
  %v8343 = vpop.permute.xlu0 %8342
  %8346 = vset.pattern.permute.xlu0 0
  %8347 = vperm.xlu0 %8346, %v6925
  %v8348 = vpop.permute.xlu0 %8347
  %8351 = vset.pattern.permute.xlu0 0
  %8352 = vperm.xlu0 %8351, %v6926
  %v8353 = vpop.permute.xlu0 %8352
  %8356 = vset.pattern.permute.xlu0 0
  %8357 = vperm.xlu0 %8356, %v6927
  %v8358 = vpop.permute.xlu0 %8357
  %8361 = vset.pattern.permute.xlu0 0
  %8362 = vperm.xlu0 %8361, %v6928
  %v8363 = vpop.permute.xlu0 %8362
  %8366 = vset.pattern.permute.xlu0 0
  %8367 = vperm.xlu0 %8366, %v6929
  %v8368 = vpop.permute.xlu0 %8367
  %8371 = vset.pattern.permute.xlu0 0
  %8372 = vperm.xlu0 %8371, %v6930
  %v8373 = vpop.permute.xlu0 %8372
  %8376 = vset.pattern.permute.xlu0 0
  %8377 = vperm.xlu0 %8376, %v6931
  %v8378 = vpop.permute.xlu0 %8377
  %8381 = vset.pattern.permute.xlu0 0
  %8382 = vperm.xlu0 %8381, %v6932
  %v8383 = vpop.permute.xlu0 %8382
  %8386 = vset.pattern.permute.xlu0 0
  %8387 = vperm.xlu0 %8386, %v6933
  %v8388 = vpop.permute.xlu0 %8387
  %8391 = vset.pattern.permute.xlu0 0
  %8392 = vperm.xlu0 %8391, %v6934
  %v8393 = vpop.permute.xlu0 %8392
  %8396 = vset.pattern.permute.xlu0 0
  %8397 = vperm.xlu0 %8396, %v6935
  %v8398 = vpop.permute.xlu0 %8397
  %8401 = vset.pattern.permute.xlu0 0
  %8402 = vperm.xlu0 %8401, %v6936
  %v8403 = vpop.permute.xlu0 %8402
  %8406 = vset.pattern.permute.xlu0 0
  %8407 = vperm.xlu0 %8406, %v6937
  %v8408 = vpop.permute.xlu0 %8407
  %8411 = vset.pattern.permute.xlu0 0
  %8412 = vperm.xlu0 %8411, %v6938
  %v8413 = vpop.permute.xlu0 %8412
  %8416 = vset.pattern.permute.xlu0 0
  %8417 = vperm.xlu0 %8416, %v6939
  %v8418 = vpop.permute.xlu0 %8417
  %8421 = vset.pattern.permute.xlu0 0
  %8422 = vperm.xlu0 %8421, %v6940
  %v8423 = vpop.permute.xlu0 %8422
  %8426 = vset.pattern.permute.xlu0 0
  %8427 = vperm.xlu0 %8426, %v6941
  %v8428 = vpop.permute.xlu0 %8427
  %8431 = vset.pattern.permute.xlu0 0
  %8432 = vperm.xlu0 %8431, %v6942
  %v8433 = vpop.permute.xlu0 %8432
  %8436 = vset.pattern.permute.xlu0 0
  %8437 = vperm.xlu0 %8436, %v6943
  %v8438 = vpop.permute.xlu0 %8437
  %8441 = vset.pattern.permute.xlu0 0
  %8442 = vperm.xlu0 %8441, %v6944
  %v8443 = vpop.permute.xlu0 %8442
  %8446 = vset.pattern.permute.xlu0 0
  %8447 = vperm.xlu0 %8446, %v6945
  %v8448 = vpop.permute.xlu0 %8447
  %8451 = vset.pattern.permute.xlu0 0
  %8452 = vperm.xlu0 %8451, %v6946
  %v8453 = vpop.permute.xlu0 %8452
  %8456 = vset.pattern.permute.xlu0 0
  %8457 = vperm.xlu0 %8456, %v6947
  %v8458 = vpop.permute.xlu0 %8457
  %8461 = vset.pattern.permute.xlu0 0
  %8462 = vperm.xlu0 %8461, %v6948
  %v8463 = vpop.permute.xlu0 %8462
  %8466 = vset.pattern.permute.xlu0 0
  %8467 = vperm.xlu0 %8466, %v6949
  %v8468 = vpop.permute.xlu0 %8467
  %8471 = vset.pattern.permute.xlu0 0
  %8472 = vperm.xlu0 %8471, %v6950
  %v8473 = vpop.permute.xlu0 %8472
  %8476 = vset.pattern.permute.xlu0 0
  %8477 = vperm.xlu0 %8476, %v6951
  %v8478 = vpop.permute.xlu0 %8477
  %8481 = vset.pattern.permute.xlu0 0
  %8482 = vperm.xlu0 %8481, %v6952
  %v8483 = vpop.permute.xlu0 %8482
  %8486 = vset.pattern.permute.xlu0 0
  %8487 = vperm.xlu0 %8486, %v6953
  %v8488 = vpop.permute.xlu0 %8487
  %8491 = vset.pattern.permute.xlu0 0
  %8492 = vperm.xlu0 %8491, %v6954
  %v8493 = vpop.permute.xlu0 %8492
  %8496 = vset.pattern.permute.xlu0 0
  %8497 = vperm.xlu0 %8496, %v6955
  %v8498 = vpop.permute.xlu0 %8497
  %8501 = vset.pattern.permute.xlu0 0
  %8502 = vperm.xlu0 %8501, %v6956
  %v8503 = vpop.permute.xlu0 %8502
  %8506 = vset.pattern.permute.xlu0 0
  %8507 = vperm.xlu0 %8506, %v6957
  %v8508 = vpop.permute.xlu0 %8507
  %8511 = vset.pattern.permute.xlu0 0
  %8512 = vperm.xlu0 %8511, %v6958
  %v8513 = vpop.permute.xlu0 %8512
  %8516 = vset.pattern.permute.xlu0 0
  %8517 = vperm.xlu0 %8516, %v6959
  %v8518 = vpop.permute.xlu0 %8517
  %8521 = vset.pattern.permute.xlu0 0
  %8522 = vperm.xlu0 %8521, %v6960
  %v8523 = vpop.permute.xlu0 %8522
  %8526 = vset.pattern.permute.xlu0 0
  %8527 = vperm.xlu0 %8526, %v6961
  %v8528 = vpop.permute.xlu0 %8527
  %8531 = vset.pattern.permute.xlu0 0
  %8532 = vperm.xlu0 %8531, %v6962
  %v8533 = vpop.permute.xlu0 %8532
  %8536 = vset.pattern.permute.xlu0 0
  %8537 = vperm.xlu0 %8536, %v6963
  %v8538 = vpop.permute.xlu0 %8537
  %8541 = vset.pattern.permute.xlu0 0
  %8542 = vperm.xlu0 %8541, %v6964
  %v8543 = vpop.permute.xlu0 %8542
  %8546 = vset.pattern.permute.xlu0 0
  %8547 = vperm.xlu0 %8546, %v6965
  %v8548 = vpop.permute.xlu0 %8547
  %8551 = vset.pattern.permute.xlu0 0
  %8552 = vperm.xlu0 %8551, %v6966
  %v8553 = vpop.permute.xlu0 %8552
  %8556 = vset.pattern.permute.xlu0 0
  %8557 = vperm.xlu0 %8556, %v6967
  %v8558 = vpop.permute.xlu0 %8557
  %8561 = vset.pattern.permute.xlu0 0
  %8562 = vperm.xlu0 %8561, %v6968
  %v8563 = vpop.permute.xlu0 %8562
  %8566 = vset.pattern.permute.xlu0 0
  %8567 = vperm.xlu0 %8566, %v6969
  %v8568 = vpop.permute.xlu0 %8567
  %8571 = vset.pattern.permute.xlu0 0
  %8572 = vperm.xlu0 %8571, %v6970
  %v8573 = vpop.permute.xlu0 %8572
  %8576 = vset.pattern.permute.xlu0 0
  %8577 = vperm.xlu0 %8576, %v6971
  %v8578 = vpop.permute.xlu0 %8577
  %8581 = vset.pattern.permute.xlu0 0
  %8582 = vperm.xlu0 %8581, %v6972
  %v8583 = vpop.permute.xlu0 %8582
  %8586 = vset.pattern.permute.xlu0 0
  %8587 = vperm.xlu0 %8586, %v6973
  %v8588 = vpop.permute.xlu0 %8587
  %8591 = vset.pattern.permute.xlu0 0
  %8592 = vperm.xlu0 %8591, %v6974
  %v8593 = vpop.permute.xlu0 %8592
  %8596 = vset.pattern.permute.xlu0 0
  %8597 = vperm.xlu0 %8596, %v6975
  %v8598 = vpop.permute.xlu0 %8597
  %8601 = vset.pattern.permute.xlu0 0
  %8602 = vperm.xlu0 %8601, %v6976
  %v8603 = vpop.permute.xlu0 %8602
  %8606 = vset.pattern.permute.xlu0 0
  %8607 = vperm.xlu0 %8606, %v6977
  %v8608 = vpop.permute.xlu0 %8607
  %8611 = vset.pattern.permute.xlu0 0
  %8612 = vperm.xlu0 %8611, %v6978
  %v8613 = vpop.permute.xlu0 %8612
  %8616 = vset.pattern.permute.xlu0 0
  %8617 = vperm.xlu0 %8616, %v6979
  %v8618 = vpop.permute.xlu0 %8617
  %8621 = vset.pattern.permute.xlu0 0
  %8622 = vperm.xlu0 %8621, %v6980
  %v8623 = vpop.permute.xlu0 %8622
  %8626 = vset.pattern.permute.xlu0 0
  %8627 = vperm.xlu0 %8626, %v6981
  %v8628 = vpop.permute.xlu0 %8627
  %8631 = vset.pattern.permute.xlu0 0
  %8632 = vperm.xlu0 %8631, %v6982
  %v8633 = vpop.permute.xlu0 %8632
  %8636 = vset.pattern.permute.xlu0 0
  %8637 = vperm.xlu0 %8636, %v6983
  %v8638 = vpop.permute.xlu0 %8637
  %8641 = vset.pattern.permute.xlu0 0
  %8642 = vperm.xlu0 %8641, %v6984
  %v8643 = vpop.permute.xlu0 %8642
  %8646 = vset.pattern.permute.xlu0 0
  %8647 = vperm.xlu0 %8646, %v6985
  %v8648 = vpop.permute.xlu0 %8647
  %8651 = vset.pattern.permute.xlu0 0
  %8652 = vperm.xlu0 %8651, %v6986
  %v8653 = vpop.permute.xlu0 %8652
  %8656 = vset.pattern.permute.xlu0 0
  %8657 = vperm.xlu0 %8656, %v6987
  %v8658 = vpop.permute.xlu0 %8657
  %8661 = vset.pattern.permute.xlu0 0
  %8662 = vperm.xlu0 %8661, %v6988
  %v8663 = vpop.permute.xlu0 %8662
  %8666 = vset.pattern.permute.xlu0 0
  %8667 = vperm.xlu0 %8666, %v6989
  %v8668 = vpop.permute.xlu0 %8667
  %8671 = vset.pattern.permute.xlu0 0
  %8672 = vperm.xlu0 %8671, %v6990
  %v8673 = vpop.permute.xlu0 %8672
  %8676 = vset.pattern.permute.xlu0 0
  %8677 = vperm.xlu0 %8676, %v6991
  %v8678 = vpop.permute.xlu0 %8677
  %8681 = vset.pattern.permute.xlu0 0
  %8682 = vperm.xlu0 %8681, %v6992
  %v8683 = vpop.permute.xlu0 %8682
  %8686 = vset.pattern.permute.xlu0 0
  %8687 = vperm.xlu0 %8686, %v6993
  %v8688 = vpop.permute.xlu0 %8687
  %8691 = vset.pattern.permute.xlu0 0
  %8692 = vperm.xlu0 %8691, %v6994
  %v8693 = vpop.permute.xlu0 %8692
  %8696 = vset.pattern.permute.xlu0 0
  %8697 = vperm.xlu0 %8696, %v6995
  %v8698 = vpop.permute.xlu0 %8697
  %8701 = vset.pattern.permute.xlu0 0
  %8702 = vperm.xlu0 %8701, %v6996
  %v8703 = vpop.permute.xlu0 %8702
  %8706 = vset.pattern.permute.xlu0 0
  %8707 = vperm.xlu0 %8706, %v6997
  %v8708 = vpop.permute.xlu0 %8707
  %8711 = vset.pattern.permute.xlu0 0
  %8712 = vperm.xlu0 %8711, %v6998
  %v8713 = vpop.permute.xlu0 %8712
  %8716 = vset.pattern.permute.xlu0 0
  %8717 = vperm.xlu0 %8716, %v6999
  %v8718 = vpop.permute.xlu0 %8717
  %8721 = vset.pattern.permute.xlu0 0
  %8722 = vperm.xlu0 %8721, %v7000
  %v8723 = vpop.permute.xlu0 %8722
  %8726 = vset.pattern.permute.xlu0 0
  %8727 = vperm.xlu0 %8726, %v7001
  %v8728 = vpop.permute.xlu0 %8727
  %8731 = vset.pattern.permute.xlu0 0
  %8732 = vperm.xlu0 %8731, %v7002
  %v8733 = vpop.permute.xlu0 %8732
  %8736 = vset.pattern.permute.xlu0 0
  %8737 = vperm.xlu0 %8736, %v7003
  %v8738 = vpop.permute.xlu0 %8737
  %8741 = vset.pattern.permute.xlu0 0
  %8742 = vperm.xlu0 %8741, %v7004
  %v8743 = vpop.permute.xlu0 %8742
  %8746 = vset.pattern.permute.xlu0 0
  %8747 = vperm.xlu0 %8746, %v7005
  %v8748 = vpop.permute.xlu0 %8747
  %8751 = vset.pattern.permute.xlu0 0
  %8752 = vperm.xlu0 %8751, %v7006
  %v8753 = vpop.permute.xlu0 %8752
  %8756 = vset.pattern.permute.xlu0 0
  %8757 = vperm.xlu0 %8756, %v7007
  %v8758 = vpop.permute.xlu0 %8757
  %8761 = vset.pattern.permute.xlu0 0
  %8762 = vperm.xlu0 %8761, %v7008
  %v8763 = vpop.permute.xlu0 %8762
  %8766 = vset.pattern.permute.xlu0 0
  %8767 = vperm.xlu0 %8766, %v7009
  %v8768 = vpop.permute.xlu0 %8767
  %8771 = vset.pattern.permute.xlu0 0
  %8772 = vperm.xlu0 %8771, %v7010
  %v8773 = vpop.permute.xlu0 %8772
  %8776 = vset.pattern.permute.xlu0 0
  %8777 = vperm.xlu0 %8776, %v7011
  %v8778 = vpop.permute.xlu0 %8777
  %8781 = vset.pattern.permute.xlu0 0
  %8782 = vperm.xlu0 %8781, %v7012
  %v8783 = vpop.permute.xlu0 %8782
  %8786 = vset.pattern.permute.xlu0 0
  %8787 = vperm.xlu0 %8786, %v7013
  %v8788 = vpop.permute.xlu0 %8787
  %8791 = vset.pattern.permute.xlu0 0
  %8792 = vperm.xlu0 %8791, %v7014
  %v8793 = vpop.permute.xlu0 %8792
  %8796 = vset.pattern.permute.xlu0 0
  %8797 = vperm.xlu0 %8796, %v7015
  %v8798 = vpop.permute.xlu0 %8797
  %8801 = vset.pattern.permute.xlu0 0
  %8802 = vperm.xlu0 %8801, %v7016
  %v8803 = vpop.permute.xlu0 %8802
  %8806 = vset.pattern.permute.xlu0 0
  %8807 = vperm.xlu0 %8806, %v7017
  %v8808 = vpop.permute.xlu0 %8807
  %8811 = vset.pattern.permute.xlu0 0
  %8812 = vperm.xlu0 %8811, %v7018
  %v8813 = vpop.permute.xlu0 %8812
  %8816 = vset.pattern.permute.xlu0 0
  %8817 = vperm.xlu0 %8816, %v7019
  %v8818 = vpop.permute.xlu0 %8817
  %8821 = vset.pattern.permute.xlu0 0
  %8822 = vperm.xlu0 %8821, %v7020
  %v8823 = vpop.permute.xlu0 %8822
  %8826 = vset.pattern.permute.xlu0 0
  %8827 = vperm.xlu0 %8826, %v7021
  %v8828 = vpop.permute.xlu0 %8827
  %8831 = vset.pattern.permute.xlu0 0
  %8832 = vperm.xlu0 %8831, %v7022
  %v8833 = vpop.permute.xlu0 %8832
  %8836 = vset.pattern.permute.xlu0 0
  %8837 = vperm.xlu0 %8836, %v7023
  %v8838 = vpop.permute.xlu0 %8837
  %8841 = vset.pattern.permute.xlu0 0
  %8842 = vperm.xlu0 %8841, %v7024
  %v8843 = vpop.permute.xlu0 %8842
  %8846 = vset.pattern.permute.xlu0 0
  %8847 = vperm.xlu0 %8846, %v7025
  %v8848 = vpop.permute.xlu0 %8847
  %v8850 = vmul.f32 %v2696, %v7713
  %v8851 = vmul.f32 %v2701, %v7718
  %v8852 = vmul.f32 %v2706, %v7723
  %v8853 = vmul.f32 %v2711, %v7728
  %v8854 = vmul.f32 %v2716, %v7733
  %v8855 = vmul.f32 %v2721, %v7738
  %v8856 = vmul.f32 %v2726, %v7743
  %v8857 = vmul.f32 %v2731, %v7748
  %v8858 = vmul.f32 %v2736, %v7753
  %v8859 = vmul.f32 %v2741, %v7758
  %v8860 = vmul.f32 %v2746, %v7763
  %v8861 = vmul.f32 %v2751, %v7768
  %v8862 = vmul.f32 %v2756, %v7773
  %v8863 = vmul.f32 %v2761, %v7778
  %v8864 = vmul.f32 %v2766, %v7783
  %v8865 = vmul.f32 %v2771, %v7788
  %v8866 = vmul.f32 %v2776, %v7793
  %v8867 = vmul.f32 %v2781, %v7798
  %v8868 = vmul.f32 %v2786, %v7803
  %v8869 = vmul.f32 %v2791, %v7808
  %v8870 = vmul.f32 %v2796, %v7813
  %v8871 = vmul.f32 %v2801, %v7818
  %v8872 = vmul.f32 %v2806, %v7823
  %v8873 = vmul.f32 %v2811, %v7828
  %v8874 = vmul.f32 %v2816, %v7833
  %v8875 = vmul.f32 %v2821, %v7838
  %v8876 = vmul.f32 %v2826, %v7843
  %v8877 = vmul.f32 %v2831, %v7848
  %v8878 = vmul.f32 %v2836, %v7853
  %v8879 = vmul.f32 %v2841, %v7858
  %v8880 = vmul.f32 %v2846, %v7863
  %v8881 = vmul.f32 %v2851, %v7868
  %v8882 = vmul.f32 %v2856, %v7873
  %v8883 = vmul.f32 %v2861, %v7878
  %v8884 = vmul.f32 %v2866, %v7883
  %v8885 = vmul.f32 %v2871, %v7888
  %v8886 = vmul.f32 %v2876, %v7893
  %v8887 = vmul.f32 %v2881, %v7898
  %v8888 = vmul.f32 %v2886, %v7903
  %v8889 = vmul.f32 %v2891, %v7908
  %v8890 = vmul.f32 %v2896, %v7913
  %v8891 = vmul.f32 %v2901, %v7918
  %v8892 = vmul.f32 %v2906, %v7923
  %v8893 = vmul.f32 %v2911, %v7928
  %v8894 = vmul.f32 %v2916, %v7933
  %v8895 = vmul.f32 %v2921, %v7938
  %v8896 = vmul.f32 %v2926, %v7943
  %v8897 = vmul.f32 %v2931, %v7948
  %v8898 = vmul.f32 %v2936, %v7953
  %v8899 = vmul.f32 %v2941, %v7958
  %v8900 = vmul.f32 %v2946, %v7963
  %v8901 = vmul.f32 %v2951, %v7968
  %v8902 = vmul.f32 %v2956, %v7973
  %v8903 = vmul.f32 %v2961, %v7978
  %v8904 = vmul.f32 %v2966, %v7983
  %v8905 = vmul.f32 %v2971, %v7988
  %v8906 = vmul.f32 %v2976, %v7993
  %v8907 = vmul.f32 %v2981, %v7998
  %v8908 = vmul.f32 %v2986, %v8003
  %v8909 = vmul.f32 %v2991, %v8008
  %v8910 = vmul.f32 %v2996, %v8013
  %v8911 = vmul.f32 %v3001, %v8018
  %v8912 = vmul.f32 %v3006, %v8023
  %v8913 = vmul.f32 %v3011, %v8028
  %v8914 = vmul.f32 %v3016, %v8033
  %v8915 = vmul.f32 %v3021, %v8038
  %v8916 = vmul.f32 %v3026, %v8043
  %v8917 = vmul.f32 %v3031, %v8048
  %v8918 = vmul.f32 %v3036, %v8053
  %v8919 = vmul.f32 %v3041, %v8058
  %v8920 = vmul.f32 %v3046, %v8063
  %v8921 = vmul.f32 %v3051, %v8068
  %v8922 = vmul.f32 %v3056, %v8073
  %v8923 = vmul.f32 %v3061, %v8078
  %v8924 = vmul.f32 %v3066, %v8083
  %v8925 = vmul.f32 %v3071, %v8088
  %v8926 = vmul.f32 %v3076, %v8093
  %v8927 = vmul.f32 %v3081, %v8098
  %v8928 = vmul.f32 %v3086, %v8103
  %v8929 = vmul.f32 %v3091, %v8108
  %v8930 = vmul.f32 %v3096, %v8113
  %v8931 = vmul.f32 %v3101, %v8118
  %v8932 = vmul.f32 %v3106, %v8123
  %v8933 = vmul.f32 %v3111, %v8128
  %v8934 = vmul.f32 %v3116, %v8133
  %v8935 = vmul.f32 %v3121, %v8138
  %v8936 = vmul.f32 %v3126, %v8143
  %v8937 = vmul.f32 %v3131, %v8148
  %v8938 = vmul.f32 %v3136, %v8153
  %v8939 = vmul.f32 %v3141, %v8158
  %v8940 = vmul.f32 %v3146, %v8163
  %v8941 = vmul.f32 %v3151, %v8168
  %v8942 = vmul.f32 %v3156, %v8173
  %v8943 = vmul.f32 %v3161, %v8178
  %v8944 = vmul.f32 %v3166, %v8183
  %v8945 = vmul.f32 %v3171, %v8188
  %v8946 = vmul.f32 %v3176, %v8193
  %v8947 = vmul.f32 %v3181, %v8198
  %v8948 = vmul.f32 %v3186, %v8203
  %v8949 = vmul.f32 %v3191, %v8208
  %v8950 = vmul.f32 %v3196, %v8213
  %v8951 = vmul.f32 %v3201, %v8218
  %v8952 = vmul.f32 %v3206, %v8223
  %v8953 = vmul.f32 %v3211, %v8228
  %v8954 = vmul.f32 %v3216, %v8233
  %v8955 = vmul.f32 %v3221, %v8238
  %v8956 = vmul.f32 %v3226, %v8243
  %v8957 = vmul.f32 %v3231, %v8248
  %v8958 = vmul.f32 %v3236, %v8253
  %v8959 = vmul.f32 %v3241, %v8258
  %v8960 = vmul.f32 %v3246, %v8263
  %v8961 = vmul.f32 %v3251, %v8268
  %v8962 = vmul.f32 %v3256, %v8273
  %v8963 = vmul.f32 %v3261, %v8278
  %v8964 = vmul.f32 %v3266, %v8283
  %v8965 = vmul.f32 %v3271, %v8288
  %v8966 = vmul.f32 %v3276, %v8293
  %v8967 = vmul.f32 %v3281, %v8298
  %v8968 = vmul.f32 %v3286, %v8303
  %v8969 = vmul.f32 %v3291, %v8308
  %v8970 = vmul.f32 %v3296, %v8313
  %v8971 = vmul.f32 %v3301, %v8318
  %v8972 = vmul.f32 %v3306, %v8323
  %v8973 = vmul.f32 %v3311, %v8328
  %v8974 = vmul.f32 %v3316, %v8333
  %v8975 = vmul.f32 %v3321, %v8338
  %v8976 = vmul.f32 %v3326, %v8343
  %v8977 = vmul.f32 %v3331, %v8348
  %v8978 = vmul.f32 %v3336, %v8353
  %v8979 = vmul.f32 %v3341, %v8358
  %v8980 = vmul.f32 %v3346, %v8363
  %v8981 = vmul.f32 %v3351, %v8368
  %v8982 = vmul.f32 %v3356, %v8373
  %v8983 = vmul.f32 %v3361, %v8378
  %v8984 = vmul.f32 %v3366, %v8383
  %v8985 = vmul.f32 %v3371, %v8388
  %v8986 = vmul.f32 %v3376, %v8393
  %v8987 = vmul.f32 %v3381, %v8398
  %v8988 = vmul.f32 %v3386, %v8403
  %v8989 = vmul.f32 %v3391, %v8408
  %v8990 = vmul.f32 %v3396, %v8413
  %v8991 = vmul.f32 %v3401, %v8418
  %v8992 = vmul.f32 %v3406, %v8423
  %v8993 = vmul.f32 %v3411, %v8428
  %v8994 = vmul.f32 %v3416, %v8433
  %v8995 = vmul.f32 %v3421, %v8438
  %v8996 = vmul.f32 %v3426, %v8443
  %v8997 = vmul.f32 %v3431, %v8448
  %v8998 = vmul.f32 %v3436, %v8453
  %v8999 = vmul.f32 %v3441, %v8458
  %v9000 = vmul.f32 %v3446, %v8463
  %v9001 = vmul.f32 %v3451, %v8468
  %v9002 = vmul.f32 %v3456, %v8473
  %v9003 = vmul.f32 %v3461, %v8478
  %v9004 = vmul.f32 %v3466, %v8483
  %v9005 = vmul.f32 %v3471, %v8488
  %v9006 = vmul.f32 %v3476, %v8493
  %v9007 = vmul.f32 %v3481, %v8498
  %v9008 = vmul.f32 %v3486, %v8503
  %v9009 = vmul.f32 %v3491, %v8508
  %v9010 = vmul.f32 %v3496, %v8513
  %v9011 = vmul.f32 %v3501, %v8518
  %v9012 = vmul.f32 %v3506, %v8523
  %v9013 = vmul.f32 %v3511, %v8528
  %v9014 = vmul.f32 %v3516, %v8533
  %v9015 = vmul.f32 %v3521, %v8538
  %v9016 = vmul.f32 %v3526, %v8543
  %v9017 = vmul.f32 %v3531, %v8548
  %v9018 = vmul.f32 %v3536, %v8553
  %v9019 = vmul.f32 %v3541, %v8558
  %v9020 = vmul.f32 %v3546, %v8563
  %v9021 = vmul.f32 %v3551, %v8568
  %v9022 = vmul.f32 %v3556, %v8573
  %v9023 = vmul.f32 %v3561, %v8578
  %v9024 = vmul.f32 %v3566, %v8583
  %v9025 = vmul.f32 %v3571, %v8588
  %v9026 = vmul.f32 %v3576, %v8593
  %v9027 = vmul.f32 %v3581, %v8598
  %v9028 = vmul.f32 %v3586, %v8603
  %v9029 = vmul.f32 %v3591, %v8608
  %v9030 = vmul.f32 %v3596, %v8613
  %v9031 = vmul.f32 %v3601, %v8618
  %v9032 = vmul.f32 %v3606, %v8623
  %v9033 = vmul.f32 %v3611, %v8628
  %v9034 = vmul.f32 %v3616, %v8633
  %v9035 = vmul.f32 %v3621, %v8638
  %v9036 = vmul.f32 %v3626, %v8643
  %v9037 = vmul.f32 %v3631, %v8648
  %v9038 = vmul.f32 %v3636, %v8653
  %v9039 = vmul.f32 %v3641, %v8658
  %v9040 = vmul.f32 %v3646, %v8663
  %v9041 = vmul.f32 %v3651, %v8668
  %v9042 = vmul.f32 %v3656, %v8673
  %v9043 = vmul.f32 %v3661, %v8678
  %v9044 = vmul.f32 %v3666, %v8683
  %v9045 = vmul.f32 %v3671, %v8688
  %v9046 = vmul.f32 %v3676, %v8693
  %v9047 = vmul.f32 %v3681, %v8698
  %v9048 = vmul.f32 %v3686, %v8703
  %v9049 = vmul.f32 %v3691, %v8708
  %v9050 = vmul.f32 %v3696, %v8713
  %v9051 = vmul.f32 %v3701, %v8718
  %v9052 = vmul.f32 %v3706, %v8723
  %v9053 = vmul.f32 %v3711, %v8728
  %v9054 = vmul.f32 %v3716, %v8733
  %v9055 = vmul.f32 %v3721, %v8738
  %v9056 = vmul.f32 %v3726, %v8743
  %v9057 = vmul.f32 %v3731, %v8748
  %v9058 = vmul.f32 %v3736, %v8753
  %v9059 = vmul.f32 %v3741, %v8758
  %v9060 = vmul.f32 %v3746, %v8763
  %v9061 = vmul.f32 %v3751, %v8768
  %v9062 = vmul.f32 %v3756, %v8773
  %v9063 = vmul.f32 %v3761, %v8778
  %v9064 = vmul.f32 %v3766, %v8783
  %v9065 = vmul.f32 %v3771, %v8788
  %v9066 = vmul.f32 %v3776, %v8793
  %v9067 = vmul.f32 %v3781, %v8798
  %v9068 = vmul.f32 %v3786, %v8803
  %v9069 = vmul.f32 %v3791, %v8808
  %v9070 = vmul.f32 %v3796, %v8813
  %v9071 = vmul.f32 %v3801, %v8818
  %v9072 = vmul.f32 %v3806, %v8823
  %v9073 = vmul.f32 %v3811, %v8828
  %v9074 = vmul.f32 %v3816, %v8833
  %v9075 = vmul.f32 %v3821, %v8838
  %v9076 = vmul.f32 %v3826, %v8843
  %v9077 = vmul.f32 %v3831, %v8848
  %9079 = vset.pattern.permute.xlu0 0
  %9080 = vperm.xlu0 %9079, %v7482
  %v9081 = vpop.permute.xlu0 %9080
  %9084 = vset.pattern.permute.xlu0 0
  %9085 = vperm.xlu0 %9084, %v7483
  %v9086 = vpop.permute.xlu0 %9085
  %9089 = vset.pattern.permute.xlu0 0
  %9090 = vperm.xlu0 %9089, %v7484
  %v9091 = vpop.permute.xlu0 %9090
  %9094 = vset.pattern.permute.xlu0 0
  %9095 = vperm.xlu0 %9094, %v7485
  %v9096 = vpop.permute.xlu0 %9095
  %9099 = vset.pattern.permute.xlu0 0
  %9100 = vperm.xlu0 %9099, %v7486
  %v9101 = vpop.permute.xlu0 %9100
  %9104 = vset.pattern.permute.xlu0 0
  %9105 = vperm.xlu0 %9104, %v7487
  %v9106 = vpop.permute.xlu0 %9105
  %9109 = vset.pattern.permute.xlu0 0
  %9110 = vperm.xlu0 %9109, %v7488
  %v9111 = vpop.permute.xlu0 %9110
  %9114 = vset.pattern.permute.xlu0 0
  %9115 = vperm.xlu0 %9114, %v7489
  %v9116 = vpop.permute.xlu0 %9115
  %9119 = vset.pattern.permute.xlu0 0
  %9120 = vperm.xlu0 %9119, %v7490
  %v9121 = vpop.permute.xlu0 %9120
  %9124 = vset.pattern.permute.xlu0 0
  %9125 = vperm.xlu0 %9124, %v7491
  %v9126 = vpop.permute.xlu0 %9125
  %9129 = vset.pattern.permute.xlu0 0
  %9130 = vperm.xlu0 %9129, %v7492
  %v9131 = vpop.permute.xlu0 %9130
  %9134 = vset.pattern.permute.xlu0 0
  %9135 = vperm.xlu0 %9134, %v7493
  %v9136 = vpop.permute.xlu0 %9135
  %9139 = vset.pattern.permute.xlu0 0
  %9140 = vperm.xlu0 %9139, %v7494
  %v9141 = vpop.permute.xlu0 %9140
  %9144 = vset.pattern.permute.xlu0 0
  %9145 = vperm.xlu0 %9144, %v7495
  %v9146 = vpop.permute.xlu0 %9145
  %9149 = vset.pattern.permute.xlu0 0
  %9150 = vperm.xlu0 %9149, %v7496
  %v9151 = vpop.permute.xlu0 %9150
  %9154 = vset.pattern.permute.xlu0 0
  %9155 = vperm.xlu0 %9154, %v7497
  %v9156 = vpop.permute.xlu0 %9155
  %9159 = vset.pattern.permute.xlu0 0
  %9160 = vperm.xlu0 %9159, %v7498
  %v9161 = vpop.permute.xlu0 %9160
  %9164 = vset.pattern.permute.xlu0 0
  %9165 = vperm.xlu0 %9164, %v7499
  %v9166 = vpop.permute.xlu0 %9165
  %9169 = vset.pattern.permute.xlu0 0
  %9170 = vperm.xlu0 %9169, %v7500
  %v9171 = vpop.permute.xlu0 %9170
  %9174 = vset.pattern.permute.xlu0 0
  %9175 = vperm.xlu0 %9174, %v7501
  %v9176 = vpop.permute.xlu0 %9175
  %9179 = vset.pattern.permute.xlu0 0
  %9180 = vperm.xlu0 %9179, %v7502
  %v9181 = vpop.permute.xlu0 %9180
  %9184 = vset.pattern.permute.xlu0 0
  %9185 = vperm.xlu0 %9184, %v7503
  %v9186 = vpop.permute.xlu0 %9185
  %9189 = vset.pattern.permute.xlu0 0
  %9190 = vperm.xlu0 %9189, %v7504
  %v9191 = vpop.permute.xlu0 %9190
  %9194 = vset.pattern.permute.xlu0 0
  %9195 = vperm.xlu0 %9194, %v7505
  %v9196 = vpop.permute.xlu0 %9195
  %9199 = vset.pattern.permute.xlu0 0
  %9200 = vperm.xlu0 %9199, %v7506
  %v9201 = vpop.permute.xlu0 %9200
  %9204 = vset.pattern.permute.xlu0 0
  %9205 = vperm.xlu0 %9204, %v7507
  %v9206 = vpop.permute.xlu0 %9205
  %9209 = vset.pattern.permute.xlu0 0
  %9210 = vperm.xlu0 %9209, %v7508
  %v9211 = vpop.permute.xlu0 %9210
  %9214 = vset.pattern.permute.xlu0 0
  %9215 = vperm.xlu0 %9214, %v7509
  %v9216 = vpop.permute.xlu0 %9215
  %9219 = vset.pattern.permute.xlu0 0
  %9220 = vperm.xlu0 %9219, %v7510
  %v9221 = vpop.permute.xlu0 %9220
  %9224 = vset.pattern.permute.xlu0 0
  %9225 = vperm.xlu0 %9224, %v7511
  %v9226 = vpop.permute.xlu0 %9225
  %9229 = vset.pattern.permute.xlu0 0
  %9230 = vperm.xlu0 %9229, %v7512
  %v9231 = vpop.permute.xlu0 %9230
  %9234 = vset.pattern.permute.xlu0 0
  %9235 = vperm.xlu0 %9234, %v7513
  %v9236 = vpop.permute.xlu0 %9235
  %9239 = vset.pattern.permute.xlu0 0
  %9240 = vperm.xlu0 %9239, %v7514
  %v9241 = vpop.permute.xlu0 %9240
  %9244 = vset.pattern.permute.xlu0 0
  %9245 = vperm.xlu0 %9244, %v7515
  %v9246 = vpop.permute.xlu0 %9245
  %9249 = vset.pattern.permute.xlu0 0
  %9250 = vperm.xlu0 %9249, %v7516
  %v9251 = vpop.permute.xlu0 %9250
  %9254 = vset.pattern.permute.xlu0 0
  %9255 = vperm.xlu0 %9254, %v7517
  %v9256 = vpop.permute.xlu0 %9255
  %9259 = vset.pattern.permute.xlu0 0
  %9260 = vperm.xlu0 %9259, %v7518
  %v9261 = vpop.permute.xlu0 %9260
  %9264 = vset.pattern.permute.xlu0 0
  %9265 = vperm.xlu0 %9264, %v7519
  %v9266 = vpop.permute.xlu0 %9265
  %9269 = vset.pattern.permute.xlu0 0
  %9270 = vperm.xlu0 %9269, %v7520
  %v9271 = vpop.permute.xlu0 %9270
  %9274 = vset.pattern.permute.xlu0 0
  %9275 = vperm.xlu0 %9274, %v7521
  %v9276 = vpop.permute.xlu0 %9275
  %9279 = vset.pattern.permute.xlu0 0
  %9280 = vperm.xlu0 %9279, %v7522
  %v9281 = vpop.permute.xlu0 %9280
  %9284 = vset.pattern.permute.xlu0 0
  %9285 = vperm.xlu0 %9284, %v7523
  %v9286 = vpop.permute.xlu0 %9285
  %9289 = vset.pattern.permute.xlu0 0
  %9290 = vperm.xlu0 %9289, %v7524
  %v9291 = vpop.permute.xlu0 %9290
  %9294 = vset.pattern.permute.xlu0 0
  %9295 = vperm.xlu0 %9294, %v7525
  %v9296 = vpop.permute.xlu0 %9295
  %9299 = vset.pattern.permute.xlu0 0
  %9300 = vperm.xlu0 %9299, %v7526
  %v9301 = vpop.permute.xlu0 %9300
  %9304 = vset.pattern.permute.xlu0 0
  %9305 = vperm.xlu0 %9304, %v7527
  %v9306 = vpop.permute.xlu0 %9305
  %9309 = vset.pattern.permute.xlu0 0
  %9310 = vperm.xlu0 %9309, %v7528
  %v9311 = vpop.permute.xlu0 %9310
  %9314 = vset.pattern.permute.xlu0 0
  %9315 = vperm.xlu0 %9314, %v7529
  %v9316 = vpop.permute.xlu0 %9315
  %9319 = vset.pattern.permute.xlu0 0
  %9320 = vperm.xlu0 %9319, %v7530
  %v9321 = vpop.permute.xlu0 %9320
  %9324 = vset.pattern.permute.xlu0 0
  %9325 = vperm.xlu0 %9324, %v7531
  %v9326 = vpop.permute.xlu0 %9325
  %9329 = vset.pattern.permute.xlu0 0
  %9330 = vperm.xlu0 %9329, %v7532
  %v9331 = vpop.permute.xlu0 %9330
  %9334 = vset.pattern.permute.xlu0 0
  %9335 = vperm.xlu0 %9334, %v7533
  %v9336 = vpop.permute.xlu0 %9335
  %9339 = vset.pattern.permute.xlu0 0
  %9340 = vperm.xlu0 %9339, %v7534
  %v9341 = vpop.permute.xlu0 %9340
  %9344 = vset.pattern.permute.xlu0 0
  %9345 = vperm.xlu0 %9344, %v7535
  %v9346 = vpop.permute.xlu0 %9345
  %9349 = vset.pattern.permute.xlu0 0
  %9350 = vperm.xlu0 %9349, %v7536
  %v9351 = vpop.permute.xlu0 %9350
  %9354 = vset.pattern.permute.xlu0 0
  %9355 = vperm.xlu0 %9354, %v7537
  %v9356 = vpop.permute.xlu0 %9355
  %9359 = vset.pattern.permute.xlu0 0
  %9360 = vperm.xlu0 %9359, %v7538
  %v9361 = vpop.permute.xlu0 %9360
  %9364 = vset.pattern.permute.xlu0 0
  %9365 = vperm.xlu0 %9364, %v7539
  %v9366 = vpop.permute.xlu0 %9365
  %9369 = vset.pattern.permute.xlu0 0
  %9370 = vperm.xlu0 %9369, %v7540
  %v9371 = vpop.permute.xlu0 %9370
  %9374 = vset.pattern.permute.xlu0 0
  %9375 = vperm.xlu0 %9374, %v7541
  %v9376 = vpop.permute.xlu0 %9375
  %9379 = vset.pattern.permute.xlu0 0
  %9380 = vperm.xlu0 %9379, %v7542
  %v9381 = vpop.permute.xlu0 %9380
  %9384 = vset.pattern.permute.xlu0 0
  %9385 = vperm.xlu0 %9384, %v7543
  %v9386 = vpop.permute.xlu0 %9385
  %9389 = vset.pattern.permute.xlu0 0
  %9390 = vperm.xlu0 %9389, %v7544
  %v9391 = vpop.permute.xlu0 %9390
  %9394 = vset.pattern.permute.xlu0 0
  %9395 = vperm.xlu0 %9394, %v7545
  %v9396 = vpop.permute.xlu0 %9395
  %9399 = vset.pattern.permute.xlu0 0
  %9400 = vperm.xlu0 %9399, %v7546
  %v9401 = vpop.permute.xlu0 %9400
  %9404 = vset.pattern.permute.xlu0 0
  %9405 = vperm.xlu0 %9404, %v7547
  %v9406 = vpop.permute.xlu0 %9405
  %9409 = vset.pattern.permute.xlu0 0
  %9410 = vperm.xlu0 %9409, %v7548
  %v9411 = vpop.permute.xlu0 %9410
  %9414 = vset.pattern.permute.xlu0 0
  %9415 = vperm.xlu0 %9414, %v7549
  %v9416 = vpop.permute.xlu0 %9415
  %9419 = vset.pattern.permute.xlu0 0
  %9420 = vperm.xlu0 %9419, %v7550
  %v9421 = vpop.permute.xlu0 %9420
  %9424 = vset.pattern.permute.xlu0 0
  %9425 = vperm.xlu0 %9424, %v7551
  %v9426 = vpop.permute.xlu0 %9425
  %9429 = vset.pattern.permute.xlu0 0
  %9430 = vperm.xlu0 %9429, %v7552
  %v9431 = vpop.permute.xlu0 %9430
  %9434 = vset.pattern.permute.xlu0 0
  %9435 = vperm.xlu0 %9434, %v7553
  %v9436 = vpop.permute.xlu0 %9435
  %9439 = vset.pattern.permute.xlu0 0
  %9440 = vperm.xlu0 %9439, %v7554
  %v9441 = vpop.permute.xlu0 %9440
  %9444 = vset.pattern.permute.xlu0 0
  %9445 = vperm.xlu0 %9444, %v7555
  %v9446 = vpop.permute.xlu0 %9445
  %9449 = vset.pattern.permute.xlu0 0
  %9450 = vperm.xlu0 %9449, %v7556
  %v9451 = vpop.permute.xlu0 %9450
  %9454 = vset.pattern.permute.xlu0 0
  %9455 = vperm.xlu0 %9454, %v7557
  %v9456 = vpop.permute.xlu0 %9455
  %9459 = vset.pattern.permute.xlu0 0
  %9460 = vperm.xlu0 %9459, %v7558
  %v9461 = vpop.permute.xlu0 %9460
  %9464 = vset.pattern.permute.xlu0 0
  %9465 = vperm.xlu0 %9464, %v7559
  %v9466 = vpop.permute.xlu0 %9465
  %9469 = vset.pattern.permute.xlu0 0
  %9470 = vperm.xlu0 %9469, %v7560
  %v9471 = vpop.permute.xlu0 %9470
  %9474 = vset.pattern.permute.xlu0 0
  %9475 = vperm.xlu0 %9474, %v7561
  %v9476 = vpop.permute.xlu0 %9475
  %9479 = vset.pattern.permute.xlu0 0
  %9480 = vperm.xlu0 %9479, %v7562
  %v9481 = vpop.permute.xlu0 %9480
  %9484 = vset.pattern.permute.xlu0 0
  %9485 = vperm.xlu0 %9484, %v7563
  %v9486 = vpop.permute.xlu0 %9485
  %9489 = vset.pattern.permute.xlu0 0
  %9490 = vperm.xlu0 %9489, %v7564
  %v9491 = vpop.permute.xlu0 %9490
  %9494 = vset.pattern.permute.xlu0 0
  %9495 = vperm.xlu0 %9494, %v7565
  %v9496 = vpop.permute.xlu0 %9495
  %9499 = vset.pattern.permute.xlu0 0
  %9500 = vperm.xlu0 %9499, %v7566
  %v9501 = vpop.permute.xlu0 %9500
  %9504 = vset.pattern.permute.xlu0 0
  %9505 = vperm.xlu0 %9504, %v7567
  %v9506 = vpop.permute.xlu0 %9505
  %9509 = vset.pattern.permute.xlu0 0
  %9510 = vperm.xlu0 %9509, %v7568
  %v9511 = vpop.permute.xlu0 %9510
  %9514 = vset.pattern.permute.xlu0 0
  %9515 = vperm.xlu0 %9514, %v7569
  %v9516 = vpop.permute.xlu0 %9515
  %9519 = vset.pattern.permute.xlu0 0
  %9520 = vperm.xlu0 %9519, %v7570
  %v9521 = vpop.permute.xlu0 %9520
  %9524 = vset.pattern.permute.xlu0 0
  %9525 = vperm.xlu0 %9524, %v7571
  %v9526 = vpop.permute.xlu0 %9525
  %9529 = vset.pattern.permute.xlu0 0
  %9530 = vperm.xlu0 %9529, %v7572
  %v9531 = vpop.permute.xlu0 %9530
  %9534 = vset.pattern.permute.xlu0 0
  %9535 = vperm.xlu0 %9534, %v7573
  %v9536 = vpop.permute.xlu0 %9535
  %9539 = vset.pattern.permute.xlu0 0
  %9540 = vperm.xlu0 %9539, %v7574
  %v9541 = vpop.permute.xlu0 %9540
  %9544 = vset.pattern.permute.xlu0 0
  %9545 = vperm.xlu0 %9544, %v7575
  %v9546 = vpop.permute.xlu0 %9545
  %9549 = vset.pattern.permute.xlu0 0
  %9550 = vperm.xlu0 %9549, %v7576
  %v9551 = vpop.permute.xlu0 %9550
  %9554 = vset.pattern.permute.xlu0 0
  %9555 = vperm.xlu0 %9554, %v7577
  %v9556 = vpop.permute.xlu0 %9555
  %9559 = vset.pattern.permute.xlu0 0
  %9560 = vperm.xlu0 %9559, %v7578
  %v9561 = vpop.permute.xlu0 %9560
  %9564 = vset.pattern.permute.xlu0 0
  %9565 = vperm.xlu0 %9564, %v7579
  %v9566 = vpop.permute.xlu0 %9565
  %9569 = vset.pattern.permute.xlu0 0
  %9570 = vperm.xlu0 %9569, %v7580
  %v9571 = vpop.permute.xlu0 %9570
  %9574 = vset.pattern.permute.xlu0 0
  %9575 = vperm.xlu0 %9574, %v7581
  %v9576 = vpop.permute.xlu0 %9575
  %9579 = vset.pattern.permute.xlu0 0
  %9580 = vperm.xlu0 %9579, %v7582
  %v9581 = vpop.permute.xlu0 %9580
  %9584 = vset.pattern.permute.xlu0 0
  %9585 = vperm.xlu0 %9584, %v7583
  %v9586 = vpop.permute.xlu0 %9585
  %9589 = vset.pattern.permute.xlu0 0
  %9590 = vperm.xlu0 %9589, %v7584
  %v9591 = vpop.permute.xlu0 %9590
  %9594 = vset.pattern.permute.xlu0 0
  %9595 = vperm.xlu0 %9594, %v7585
  %v9596 = vpop.permute.xlu0 %9595
  %9599 = vset.pattern.permute.xlu0 0
  %9600 = vperm.xlu0 %9599, %v7586
  %v9601 = vpop.permute.xlu0 %9600
  %9604 = vset.pattern.permute.xlu0 0
  %9605 = vperm.xlu0 %9604, %v7587
  %v9606 = vpop.permute.xlu0 %9605
  %9609 = vset.pattern.permute.xlu0 0
  %9610 = vperm.xlu0 %9609, %v7588
  %v9611 = vpop.permute.xlu0 %9610
  %9614 = vset.pattern.permute.xlu0 0
  %9615 = vperm.xlu0 %9614, %v7589
  %v9616 = vpop.permute.xlu0 %9615
  %9619 = vset.pattern.permute.xlu0 0
  %9620 = vperm.xlu0 %9619, %v7590
  %v9621 = vpop.permute.xlu0 %9620
  %9624 = vset.pattern.permute.xlu0 0
  %9625 = vperm.xlu0 %9624, %v7591
  %v9626 = vpop.permute.xlu0 %9625
  %9629 = vset.pattern.permute.xlu0 0
  %9630 = vperm.xlu0 %9629, %v7592
  %v9631 = vpop.permute.xlu0 %9630
  %9634 = vset.pattern.permute.xlu0 0
  %9635 = vperm.xlu0 %9634, %v7593
  %v9636 = vpop.permute.xlu0 %9635
  %9639 = vset.pattern.permute.xlu0 0
  %9640 = vperm.xlu0 %9639, %v7594
  %v9641 = vpop.permute.xlu0 %9640
  %9644 = vset.pattern.permute.xlu0 0
  %9645 = vperm.xlu0 %9644, %v7595
  %v9646 = vpop.permute.xlu0 %9645
  %9649 = vset.pattern.permute.xlu0 0
  %9650 = vperm.xlu0 %9649, %v7596
  %v9651 = vpop.permute.xlu0 %9650
  %9654 = vset.pattern.permute.xlu0 0
  %9655 = vperm.xlu0 %9654, %v7597
  %v9656 = vpop.permute.xlu0 %9655
  %9659 = vset.pattern.permute.xlu0 0
  %9660 = vperm.xlu0 %9659, %v7598
  %v9661 = vpop.permute.xlu0 %9660
  %9664 = vset.pattern.permute.xlu0 0
  %9665 = vperm.xlu0 %9664, %v7599
  %v9666 = vpop.permute.xlu0 %9665
  %9669 = vset.pattern.permute.xlu0 0
  %9670 = vperm.xlu0 %9669, %v7600
  %v9671 = vpop.permute.xlu0 %9670
  %9674 = vset.pattern.permute.xlu0 0
  %9675 = vperm.xlu0 %9674, %v7601
  %v9676 = vpop.permute.xlu0 %9675
  %9679 = vset.pattern.permute.xlu0 0
  %9680 = vperm.xlu0 %9679, %v7602
  %v9681 = vpop.permute.xlu0 %9680
  %9684 = vset.pattern.permute.xlu0 0
  %9685 = vperm.xlu0 %9684, %v7603
  %v9686 = vpop.permute.xlu0 %9685
  %9689 = vset.pattern.permute.xlu0 0
  %9690 = vperm.xlu0 %9689, %v7604
  %v9691 = vpop.permute.xlu0 %9690
  %9694 = vset.pattern.permute.xlu0 0
  %9695 = vperm.xlu0 %9694, %v7605
  %v9696 = vpop.permute.xlu0 %9695
  %9699 = vset.pattern.permute.xlu0 0
  %9700 = vperm.xlu0 %9699, %v7606
  %v9701 = vpop.permute.xlu0 %9700
  %9704 = vset.pattern.permute.xlu0 0
  %9705 = vperm.xlu0 %9704, %v7607
  %v9706 = vpop.permute.xlu0 %9705
  %9709 = vset.pattern.permute.xlu0 0
  %9710 = vperm.xlu0 %9709, %v7608
  %v9711 = vpop.permute.xlu0 %9710
  %9714 = vset.pattern.permute.xlu0 0
  %9715 = vperm.xlu0 %9714, %v7609
  %v9716 = vpop.permute.xlu0 %9715
  %9719 = vset.pattern.permute.xlu0 0
  %9720 = vperm.xlu0 %9719, %v7610
  %v9721 = vpop.permute.xlu0 %9720
  %9724 = vset.pattern.permute.xlu0 0
  %9725 = vperm.xlu0 %9724, %v7611
  %v9726 = vpop.permute.xlu0 %9725
  %9729 = vset.pattern.permute.xlu0 0
  %9730 = vperm.xlu0 %9729, %v7612
  %v9731 = vpop.permute.xlu0 %9730
  %9734 = vset.pattern.permute.xlu0 0
  %9735 = vperm.xlu0 %9734, %v7613
  %v9736 = vpop.permute.xlu0 %9735
  %9739 = vset.pattern.permute.xlu0 0
  %9740 = vperm.xlu0 %9739, %v7614
  %v9741 = vpop.permute.xlu0 %9740
  %9744 = vset.pattern.permute.xlu0 0
  %9745 = vperm.xlu0 %9744, %v7615
  %v9746 = vpop.permute.xlu0 %9745
  %9749 = vset.pattern.permute.xlu0 0
  %9750 = vperm.xlu0 %9749, %v7616
  %v9751 = vpop.permute.xlu0 %9750
  %9754 = vset.pattern.permute.xlu0 0
  %9755 = vperm.xlu0 %9754, %v7617
  %v9756 = vpop.permute.xlu0 %9755
  %9759 = vset.pattern.permute.xlu0 0
  %9760 = vperm.xlu0 %9759, %v7618
  %v9761 = vpop.permute.xlu0 %9760
  %9764 = vset.pattern.permute.xlu0 0
  %9765 = vperm.xlu0 %9764, %v7619
  %v9766 = vpop.permute.xlu0 %9765
  %9769 = vset.pattern.permute.xlu0 0
  %9770 = vperm.xlu0 %9769, %v7620
  %v9771 = vpop.permute.xlu0 %9770
  %9774 = vset.pattern.permute.xlu0 0
  %9775 = vperm.xlu0 %9774, %v7621
  %v9776 = vpop.permute.xlu0 %9775
  %9779 = vset.pattern.permute.xlu0 0
  %9780 = vperm.xlu0 %9779, %v7622
  %v9781 = vpop.permute.xlu0 %9780
  %9784 = vset.pattern.permute.xlu0 0
  %9785 = vperm.xlu0 %9784, %v7623
  %v9786 = vpop.permute.xlu0 %9785
  %9789 = vset.pattern.permute.xlu0 0
  %9790 = vperm.xlu0 %9789, %v7624
  %v9791 = vpop.permute.xlu0 %9790
  %9794 = vset.pattern.permute.xlu0 0
  %9795 = vperm.xlu0 %9794, %v7625
  %v9796 = vpop.permute.xlu0 %9795
  %9799 = vset.pattern.permute.xlu0 0
  %9800 = vperm.xlu0 %9799, %v7626
  %v9801 = vpop.permute.xlu0 %9800
  %9804 = vset.pattern.permute.xlu0 0
  %9805 = vperm.xlu0 %9804, %v7627
  %v9806 = vpop.permute.xlu0 %9805
  %9809 = vset.pattern.permute.xlu0 0
  %9810 = vperm.xlu0 %9809, %v7628
  %v9811 = vpop.permute.xlu0 %9810
  %9814 = vset.pattern.permute.xlu0 0
  %9815 = vperm.xlu0 %9814, %v7629
  %v9816 = vpop.permute.xlu0 %9815
  %9819 = vset.pattern.permute.xlu0 0
  %9820 = vperm.xlu0 %9819, %v7630
  %v9821 = vpop.permute.xlu0 %9820
  %9824 = vset.pattern.permute.xlu0 0
  %9825 = vperm.xlu0 %9824, %v7631
  %v9826 = vpop.permute.xlu0 %9825
  %9829 = vset.pattern.permute.xlu0 0
  %9830 = vperm.xlu0 %9829, %v7632
  %v9831 = vpop.permute.xlu0 %9830
  %9834 = vset.pattern.permute.xlu0 0
  %9835 = vperm.xlu0 %9834, %v7633
  %v9836 = vpop.permute.xlu0 %9835
  %9839 = vset.pattern.permute.xlu0 0
  %9840 = vperm.xlu0 %9839, %v7634
  %v9841 = vpop.permute.xlu0 %9840
  %9844 = vset.pattern.permute.xlu0 0
  %9845 = vperm.xlu0 %9844, %v7635
  %v9846 = vpop.permute.xlu0 %9845
  %9849 = vset.pattern.permute.xlu0 0
  %9850 = vperm.xlu0 %9849, %v7636
  %v9851 = vpop.permute.xlu0 %9850
  %9854 = vset.pattern.permute.xlu0 0
  %9855 = vperm.xlu0 %9854, %v7637
  %v9856 = vpop.permute.xlu0 %9855
  %9859 = vset.pattern.permute.xlu0 0
  %9860 = vperm.xlu0 %9859, %v7638
  %v9861 = vpop.permute.xlu0 %9860
  %9864 = vset.pattern.permute.xlu0 0
  %9865 = vperm.xlu0 %9864, %v7639
  %v9866 = vpop.permute.xlu0 %9865
  %9869 = vset.pattern.permute.xlu0 0
  %9870 = vperm.xlu0 %9869, %v7640
  %v9871 = vpop.permute.xlu0 %9870
  %9874 = vset.pattern.permute.xlu0 0
  %9875 = vperm.xlu0 %9874, %v7641
  %v9876 = vpop.permute.xlu0 %9875
  %9879 = vset.pattern.permute.xlu0 0
  %9880 = vperm.xlu0 %9879, %v7642
  %v9881 = vpop.permute.xlu0 %9880
  %9884 = vset.pattern.permute.xlu0 0
  %9885 = vperm.xlu0 %9884, %v7643
  %v9886 = vpop.permute.xlu0 %9885
  %9889 = vset.pattern.permute.xlu0 0
  %9890 = vperm.xlu0 %9889, %v7644
  %v9891 = vpop.permute.xlu0 %9890
  %9894 = vset.pattern.permute.xlu0 0
  %9895 = vperm.xlu0 %9894, %v7645
  %v9896 = vpop.permute.xlu0 %9895
  %9899 = vset.pattern.permute.xlu0 0
  %9900 = vperm.xlu0 %9899, %v7646
  %v9901 = vpop.permute.xlu0 %9900
  %9904 = vset.pattern.permute.xlu0 0
  %9905 = vperm.xlu0 %9904, %v7647
  %v9906 = vpop.permute.xlu0 %9905
  %9909 = vset.pattern.permute.xlu0 0
  %9910 = vperm.xlu0 %9909, %v7648
  %v9911 = vpop.permute.xlu0 %9910
  %9914 = vset.pattern.permute.xlu0 0
  %9915 = vperm.xlu0 %9914, %v7649
  %v9916 = vpop.permute.xlu0 %9915
  %9919 = vset.pattern.permute.xlu0 0
  %9920 = vperm.xlu0 %9919, %v7650
  %v9921 = vpop.permute.xlu0 %9920
  %9924 = vset.pattern.permute.xlu0 0
  %9925 = vperm.xlu0 %9924, %v7651
  %v9926 = vpop.permute.xlu0 %9925
  %9929 = vset.pattern.permute.xlu0 0
  %9930 = vperm.xlu0 %9929, %v7652
  %v9931 = vpop.permute.xlu0 %9930
  %9934 = vset.pattern.permute.xlu0 0
  %9935 = vperm.xlu0 %9934, %v7653
  %v9936 = vpop.permute.xlu0 %9935
  %9939 = vset.pattern.permute.xlu0 0
  %9940 = vperm.xlu0 %9939, %v7654
  %v9941 = vpop.permute.xlu0 %9940
  %9944 = vset.pattern.permute.xlu0 0
  %9945 = vperm.xlu0 %9944, %v7655
  %v9946 = vpop.permute.xlu0 %9945
  %9949 = vset.pattern.permute.xlu0 0
  %9950 = vperm.xlu0 %9949, %v7656
  %v9951 = vpop.permute.xlu0 %9950
  %9954 = vset.pattern.permute.xlu0 0
  %9955 = vperm.xlu0 %9954, %v7657
  %v9956 = vpop.permute.xlu0 %9955
  %9959 = vset.pattern.permute.xlu0 0
  %9960 = vperm.xlu0 %9959, %v7658
  %v9961 = vpop.permute.xlu0 %9960
  %9964 = vset.pattern.permute.xlu0 0
  %9965 = vperm.xlu0 %9964, %v7659
  %v9966 = vpop.permute.xlu0 %9965
  %9969 = vset.pattern.permute.xlu0 0
  %9970 = vperm.xlu0 %9969, %v7660
  %v9971 = vpop.permute.xlu0 %9970
  %9974 = vset.pattern.permute.xlu0 0
  %9975 = vperm.xlu0 %9974, %v7661
  %v9976 = vpop.permute.xlu0 %9975
  %9979 = vset.pattern.permute.xlu0 0
  %9980 = vperm.xlu0 %9979, %v7662
  %v9981 = vpop.permute.xlu0 %9980
  %9984 = vset.pattern.permute.xlu0 0
  %9985 = vperm.xlu0 %9984, %v7663
  %v9986 = vpop.permute.xlu0 %9985
  %9989 = vset.pattern.permute.xlu0 0
  %9990 = vperm.xlu0 %9989, %v7664
  %v9991 = vpop.permute.xlu0 %9990
  %9994 = vset.pattern.permute.xlu0 0
  %9995 = vperm.xlu0 %9994, %v7665
  %v9996 = vpop.permute.xlu0 %9995
  %9999 = vset.pattern.permute.xlu0 0
  %10000 = vperm.xlu0 %9999, %v7666
  %v10001 = vpop.permute.xlu0 %10000
  %10004 = vset.pattern.permute.xlu0 0
  %10005 = vperm.xlu0 %10004, %v7667
  %v10006 = vpop.permute.xlu0 %10005
  %10009 = vset.pattern.permute.xlu0 0
  %10010 = vperm.xlu0 %10009, %v7668
  %v10011 = vpop.permute.xlu0 %10010
  %10014 = vset.pattern.permute.xlu0 0
  %10015 = vperm.xlu0 %10014, %v7669
  %v10016 = vpop.permute.xlu0 %10015
  %10019 = vset.pattern.permute.xlu0 0
  %10020 = vperm.xlu0 %10019, %v7670
  %v10021 = vpop.permute.xlu0 %10020
  %10024 = vset.pattern.permute.xlu0 0
  %10025 = vperm.xlu0 %10024, %v7671
  %v10026 = vpop.permute.xlu0 %10025
  %10029 = vset.pattern.permute.xlu0 0
  %10030 = vperm.xlu0 %10029, %v7672
  %v10031 = vpop.permute.xlu0 %10030
  %10034 = vset.pattern.permute.xlu0 0
  %10035 = vperm.xlu0 %10034, %v7673
  %v10036 = vpop.permute.xlu0 %10035
  %10039 = vset.pattern.permute.xlu0 0
  %10040 = vperm.xlu0 %10039, %v7674
  %v10041 = vpop.permute.xlu0 %10040
  %10044 = vset.pattern.permute.xlu0 0
  %10045 = vperm.xlu0 %10044, %v7675
  %v10046 = vpop.permute.xlu0 %10045
  %10049 = vset.pattern.permute.xlu0 0
  %10050 = vperm.xlu0 %10049, %v7676
  %v10051 = vpop.permute.xlu0 %10050
  %10054 = vset.pattern.permute.xlu0 0
  %10055 = vperm.xlu0 %10054, %v7677
  %v10056 = vpop.permute.xlu0 %10055
  %10059 = vset.pattern.permute.xlu0 0
  %10060 = vperm.xlu0 %10059, %v7678
  %v10061 = vpop.permute.xlu0 %10060
  %10064 = vset.pattern.permute.xlu0 0
  %10065 = vperm.xlu0 %10064, %v7679
  %v10066 = vpop.permute.xlu0 %10065
  %10069 = vset.pattern.permute.xlu0 0
  %10070 = vperm.xlu0 %10069, %v7680
  %v10071 = vpop.permute.xlu0 %10070
  %10074 = vset.pattern.permute.xlu0 0
  %10075 = vperm.xlu0 %10074, %v7681
  %v10076 = vpop.permute.xlu0 %10075
  %10079 = vset.pattern.permute.xlu0 0
  %10080 = vperm.xlu0 %10079, %v7682
  %v10081 = vpop.permute.xlu0 %10080
  %10084 = vset.pattern.permute.xlu0 0
  %10085 = vperm.xlu0 %10084, %v7683
  %v10086 = vpop.permute.xlu0 %10085
  %10089 = vset.pattern.permute.xlu0 0
  %10090 = vperm.xlu0 %10089, %v7684
  %v10091 = vpop.permute.xlu0 %10090
  %10094 = vset.pattern.permute.xlu0 0
  %10095 = vperm.xlu0 %10094, %v7685
  %v10096 = vpop.permute.xlu0 %10095
  %10099 = vset.pattern.permute.xlu0 0
  %10100 = vperm.xlu0 %10099, %v7686
  %v10101 = vpop.permute.xlu0 %10100
  %10104 = vset.pattern.permute.xlu0 0
  %10105 = vperm.xlu0 %10104, %v7687
  %v10106 = vpop.permute.xlu0 %10105
  %10109 = vset.pattern.permute.xlu0 0
  %10110 = vperm.xlu0 %10109, %v7688
  %v10111 = vpop.permute.xlu0 %10110
  %10114 = vset.pattern.permute.xlu0 0
  %10115 = vperm.xlu0 %10114, %v7689
  %v10116 = vpop.permute.xlu0 %10115
  %10119 = vset.pattern.permute.xlu0 0
  %10120 = vperm.xlu0 %10119, %v7690
  %v10121 = vpop.permute.xlu0 %10120
  %10124 = vset.pattern.permute.xlu0 0
  %10125 = vperm.xlu0 %10124, %v7691
  %v10126 = vpop.permute.xlu0 %10125
  %10129 = vset.pattern.permute.xlu0 0
  %10130 = vperm.xlu0 %10129, %v7692
  %v10131 = vpop.permute.xlu0 %10130
  %10134 = vset.pattern.permute.xlu0 0
  %10135 = vperm.xlu0 %10134, %v7693
  %v10136 = vpop.permute.xlu0 %10135
  %10139 = vset.pattern.permute.xlu0 0
  %10140 = vperm.xlu0 %10139, %v7694
  %v10141 = vpop.permute.xlu0 %10140
  %10144 = vset.pattern.permute.xlu0 0
  %10145 = vperm.xlu0 %10144, %v7695
  %v10146 = vpop.permute.xlu0 %10145
  %10149 = vset.pattern.permute.xlu0 0
  %10150 = vperm.xlu0 %10149, %v7696
  %v10151 = vpop.permute.xlu0 %10150
  %10154 = vset.pattern.permute.xlu0 0
  %10155 = vperm.xlu0 %10154, %v7697
  %v10156 = vpop.permute.xlu0 %10155
  %10159 = vset.pattern.permute.xlu0 0
  %10160 = vperm.xlu0 %10159, %v7698
  %v10161 = vpop.permute.xlu0 %10160
  %10164 = vset.pattern.permute.xlu0 0
  %10165 = vperm.xlu0 %10164, %v7699
  %v10166 = vpop.permute.xlu0 %10165
  %10169 = vset.pattern.permute.xlu0 0
  %10170 = vperm.xlu0 %10169, %v7700
  %v10171 = vpop.permute.xlu0 %10170
  %10174 = vset.pattern.permute.xlu0 0
  %10175 = vperm.xlu0 %10174, %v7701
  %v10176 = vpop.permute.xlu0 %10175
  %10179 = vset.pattern.permute.xlu0 0
  %10180 = vperm.xlu0 %10179, %v7702
  %v10181 = vpop.permute.xlu0 %10180
  %10184 = vset.pattern.permute.xlu0 0
  %10185 = vperm.xlu0 %10184, %v7703
  %v10186 = vpop.permute.xlu0 %10185
  %10189 = vset.pattern.permute.xlu0 0
  %10190 = vperm.xlu0 %10189, %v7704
  %v10191 = vpop.permute.xlu0 %10190
  %10194 = vset.pattern.permute.xlu0 0
  %10195 = vperm.xlu0 %10194, %v7705
  %v10196 = vpop.permute.xlu0 %10195
  %10199 = vset.pattern.permute.xlu0 0
  %10200 = vperm.xlu0 %10199, %v7706
  %v10201 = vpop.permute.xlu0 %10200
  %10204 = vset.pattern.permute.xlu0 0
  %10205 = vperm.xlu0 %10204, %v7707
  %v10206 = vpop.permute.xlu0 %10205
  %10209 = vset.pattern.permute.xlu0 0
  %10210 = vperm.xlu0 %10209, %v7708
  %v10211 = vpop.permute.xlu0 %10210
  %10214 = vset.pattern.permute.xlu0 0
  %10215 = vperm.xlu0 %10214, %v7709
  %v10216 = vpop.permute.xlu0 %10215
  %v10218 = vadd.f32 %v8850, %v9081
  %v10219 = vadd.f32 %v8851, %v9086
  %v10220 = vadd.f32 %v8852, %v9091
  %v10221 = vadd.f32 %v8853, %v9096
  %v10222 = vadd.f32 %v8854, %v9101
  %v10223 = vadd.f32 %v8855, %v9106
  %v10224 = vadd.f32 %v8856, %v9111
  %v10225 = vadd.f32 %v8857, %v9116
  %v10226 = vadd.f32 %v8858, %v9121
  %v10227 = vadd.f32 %v8859, %v9126
  %v10228 = vadd.f32 %v8860, %v9131
  %v10229 = vadd.f32 %v8861, %v9136
  %v10230 = vadd.f32 %v8862, %v9141
  %v10231 = vadd.f32 %v8863, %v9146
  %v10232 = vadd.f32 %v8864, %v9151
  %v10233 = vadd.f32 %v8865, %v9156
  %v10234 = vadd.f32 %v8866, %v9161
  %v10235 = vadd.f32 %v8867, %v9166
  %v10236 = vadd.f32 %v8868, %v9171
  %v10237 = vadd.f32 %v8869, %v9176
  %v10238 = vadd.f32 %v8870, %v9181
  %v10239 = vadd.f32 %v8871, %v9186
  %v10240 = vadd.f32 %v8872, %v9191
  %v10241 = vadd.f32 %v8873, %v9196
  %v10242 = vadd.f32 %v8874, %v9201
  %v10243 = vadd.f32 %v8875, %v9206
  %v10244 = vadd.f32 %v8876, %v9211
  %v10245 = vadd.f32 %v8877, %v9216
  %v10246 = vadd.f32 %v8878, %v9221
  %v10247 = vadd.f32 %v8879, %v9226
  %v10248 = vadd.f32 %v8880, %v9231
  %v10249 = vadd.f32 %v8881, %v9236
  %v10250 = vadd.f32 %v8882, %v9241
  %v10251 = vadd.f32 %v8883, %v9246
  %v10252 = vadd.f32 %v8884, %v9251
  %v10253 = vadd.f32 %v8885, %v9256
  %v10254 = vadd.f32 %v8886, %v9261
  %v10255 = vadd.f32 %v8887, %v9266
  %v10256 = vadd.f32 %v8888, %v9271
  %v10257 = vadd.f32 %v8889, %v9276
  %v10258 = vadd.f32 %v8890, %v9281
  %v10259 = vadd.f32 %v8891, %v9286
  %v10260 = vadd.f32 %v8892, %v9291
  %v10261 = vadd.f32 %v8893, %v9296
  %v10262 = vadd.f32 %v8894, %v9301
  %v10263 = vadd.f32 %v8895, %v9306
  %v10264 = vadd.f32 %v8896, %v9311
  %v10265 = vadd.f32 %v8897, %v9316
  %v10266 = vadd.f32 %v8898, %v9321
  %v10267 = vadd.f32 %v8899, %v9326
  %v10268 = vadd.f32 %v8900, %v9331
  %v10269 = vadd.f32 %v8901, %v9336
  %v10270 = vadd.f32 %v8902, %v9341
  %v10271 = vadd.f32 %v8903, %v9346
  %v10272 = vadd.f32 %v8904, %v9351
  %v10273 = vadd.f32 %v8905, %v9356
  %v10274 = vadd.f32 %v8906, %v9361
  %v10275 = vadd.f32 %v8907, %v9366
  %v10276 = vadd.f32 %v8908, %v9371
  %v10277 = vadd.f32 %v8909, %v9376
  %v10278 = vadd.f32 %v8910, %v9381
  %v10279 = vadd.f32 %v8911, %v9386
  %v10280 = vadd.f32 %v8912, %v9391
  %v10281 = vadd.f32 %v8913, %v9396
  %v10282 = vadd.f32 %v8914, %v9401
  %v10283 = vadd.f32 %v8915, %v9406
  %v10284 = vadd.f32 %v8916, %v9411
  %v10285 = vadd.f32 %v8917, %v9416
  %v10286 = vadd.f32 %v8918, %v9421
  %v10287 = vadd.f32 %v8919, %v9426
  %v10288 = vadd.f32 %v8920, %v9431
  %v10289 = vadd.f32 %v8921, %v9436
  %v10290 = vadd.f32 %v8922, %v9441
  %v10291 = vadd.f32 %v8923, %v9446
  %v10292 = vadd.f32 %v8924, %v9451
  %v10293 = vadd.f32 %v8925, %v9456
  %v10294 = vadd.f32 %v8926, %v9461
  %v10295 = vadd.f32 %v8927, %v9466
  %v10296 = vadd.f32 %v8928, %v9471
  %v10297 = vadd.f32 %v8929, %v9476
  %v10298 = vadd.f32 %v8930, %v9481
  %v10299 = vadd.f32 %v8931, %v9486
  %v10300 = vadd.f32 %v8932, %v9491
  %v10301 = vadd.f32 %v8933, %v9496
  %v10302 = vadd.f32 %v8934, %v9501
  %v10303 = vadd.f32 %v8935, %v9506
  %v10304 = vadd.f32 %v8936, %v9511
  %v10305 = vadd.f32 %v8937, %v9516
  %v10306 = vadd.f32 %v8938, %v9521
  %v10307 = vadd.f32 %v8939, %v9526
  %v10308 = vadd.f32 %v8940, %v9531
  %v10309 = vadd.f32 %v8941, %v9536
  %v10310 = vadd.f32 %v8942, %v9541
  %v10311 = vadd.f32 %v8943, %v9546
  %v10312 = vadd.f32 %v8944, %v9551
  %v10313 = vadd.f32 %v8945, %v9556
  %v10314 = vadd.f32 %v8946, %v9561
  %v10315 = vadd.f32 %v8947, %v9566
  %v10316 = vadd.f32 %v8948, %v9571
  %v10317 = vadd.f32 %v8949, %v9576
  %v10318 = vadd.f32 %v8950, %v9581
  %v10319 = vadd.f32 %v8951, %v9586
  %v10320 = vadd.f32 %v8952, %v9591
  %v10321 = vadd.f32 %v8953, %v9596
  %v10322 = vadd.f32 %v8954, %v9601
  %v10323 = vadd.f32 %v8955, %v9606
  %v10324 = vadd.f32 %v8956, %v9611
  %v10325 = vadd.f32 %v8957, %v9616
  %v10326 = vadd.f32 %v8958, %v9621
  %v10327 = vadd.f32 %v8959, %v9626
  %v10328 = vadd.f32 %v8960, %v9631
  %v10329 = vadd.f32 %v8961, %v9636
  %v10330 = vadd.f32 %v8962, %v9641
  %v10331 = vadd.f32 %v8963, %v9646
  %v10332 = vadd.f32 %v8964, %v9651
  %v10333 = vadd.f32 %v8965, %v9656
  %v10334 = vadd.f32 %v8966, %v9661
  %v10335 = vadd.f32 %v8967, %v9666
  %v10336 = vadd.f32 %v8968, %v9671
  %v10337 = vadd.f32 %v8969, %v9676
  %v10338 = vadd.f32 %v8970, %v9681
  %v10339 = vadd.f32 %v8971, %v9686
  %v10340 = vadd.f32 %v8972, %v9691
  %v10341 = vadd.f32 %v8973, %v9696
  %v10342 = vadd.f32 %v8974, %v9701
  %v10343 = vadd.f32 %v8975, %v9706
  %v10344 = vadd.f32 %v8976, %v9711
  %v10345 = vadd.f32 %v8977, %v9716
  %v10346 = vadd.f32 %v8978, %v9721
  %v10347 = vadd.f32 %v8979, %v9726
  %v10348 = vadd.f32 %v8980, %v9731
  %v10349 = vadd.f32 %v8981, %v9736
  %v10350 = vadd.f32 %v8982, %v9741
  %v10351 = vadd.f32 %v8983, %v9746
  %v10352 = vadd.f32 %v8984, %v9751
  %v10353 = vadd.f32 %v8985, %v9756
  %v10354 = vadd.f32 %v8986, %v9761
  %v10355 = vadd.f32 %v8987, %v9766
  %v10356 = vadd.f32 %v8988, %v9771
  %v10357 = vadd.f32 %v8989, %v9776
  %v10358 = vadd.f32 %v8990, %v9781
  %v10359 = vadd.f32 %v8991, %v9786
  %v10360 = vadd.f32 %v8992, %v9791
  %v10361 = vadd.f32 %v8993, %v9796
  %v10362 = vadd.f32 %v8994, %v9801
  %v10363 = vadd.f32 %v8995, %v9806
  %v10364 = vadd.f32 %v8996, %v9811
  %v10365 = vadd.f32 %v8997, %v9816
  %v10366 = vadd.f32 %v8998, %v9821
  %v10367 = vadd.f32 %v8999, %v9826
  %v10368 = vadd.f32 %v9000, %v9831
  %v10369 = vadd.f32 %v9001, %v9836
  %v10370 = vadd.f32 %v9002, %v9841
  %v10371 = vadd.f32 %v9003, %v9846
  %v10372 = vadd.f32 %v9004, %v9851
  %v10373 = vadd.f32 %v9005, %v9856
  %v10374 = vadd.f32 %v9006, %v9861
  %v10375 = vadd.f32 %v9007, %v9866
  %v10376 = vadd.f32 %v9008, %v9871
  %v10377 = vadd.f32 %v9009, %v9876
  %v10378 = vadd.f32 %v9010, %v9881
  %v10379 = vadd.f32 %v9011, %v9886
  %v10380 = vadd.f32 %v9012, %v9891
  %v10381 = vadd.f32 %v9013, %v9896
  %v10382 = vadd.f32 %v9014, %v9901
  %v10383 = vadd.f32 %v9015, %v9906
  %v10384 = vadd.f32 %v9016, %v9911
  %v10385 = vadd.f32 %v9017, %v9916
  %v10386 = vadd.f32 %v9018, %v9921
  %v10387 = vadd.f32 %v9019, %v9926
  %v10388 = vadd.f32 %v9020, %v9931
  %v10389 = vadd.f32 %v9021, %v9936
  %v10390 = vadd.f32 %v9022, %v9941
  %v10391 = vadd.f32 %v9023, %v9946
  %v10392 = vadd.f32 %v9024, %v9951
  %v10393 = vadd.f32 %v9025, %v9956
  %v10394 = vadd.f32 %v9026, %v9961
  %v10395 = vadd.f32 %v9027, %v9966
  %v10396 = vadd.f32 %v9028, %v9971
  %v10397 = vadd.f32 %v9029, %v9976
  %v10398 = vadd.f32 %v9030, %v9981
  %v10399 = vadd.f32 %v9031, %v9986
  %v10400 = vadd.f32 %v9032, %v9991
  %v10401 = vadd.f32 %v9033, %v9996
  %v10402 = vadd.f32 %v9034, %v10001
  %v10403 = vadd.f32 %v9035, %v10006
  %v10404 = vadd.f32 %v9036, %v10011
  %v10405 = vadd.f32 %v9037, %v10016
  %v10406 = vadd.f32 %v9038, %v10021
  %v10407 = vadd.f32 %v9039, %v10026
  %v10408 = vadd.f32 %v9040, %v10031
  %v10409 = vadd.f32 %v9041, %v10036
  %v10410 = vadd.f32 %v9042, %v10041
  %v10411 = vadd.f32 %v9043, %v10046
  %v10412 = vadd.f32 %v9044, %v10051
  %v10413 = vadd.f32 %v9045, %v10056
  %v10414 = vadd.f32 %v9046, %v10061
  %v10415 = vadd.f32 %v9047, %v10066
  %v10416 = vadd.f32 %v9048, %v10071
  %v10417 = vadd.f32 %v9049, %v10076
  %v10418 = vadd.f32 %v9050, %v10081
  %v10419 = vadd.f32 %v9051, %v10086
  %v10420 = vadd.f32 %v9052, %v10091
  %v10421 = vadd.f32 %v9053, %v10096
  %v10422 = vadd.f32 %v9054, %v10101
  %v10423 = vadd.f32 %v9055, %v10106
  %v10424 = vadd.f32 %v9056, %v10111
  %v10425 = vadd.f32 %v9057, %v10116
  %v10426 = vadd.f32 %v9058, %v10121
  %v10427 = vadd.f32 %v9059, %v10126
  %v10428 = vadd.f32 %v9060, %v10131
  %v10429 = vadd.f32 %v9061, %v10136
  %v10430 = vadd.f32 %v9062, %v10141
  %v10431 = vadd.f32 %v9063, %v10146
  %v10432 = vadd.f32 %v9064, %v10151
  %v10433 = vadd.f32 %v9065, %v10156
  %v10434 = vadd.f32 %v9066, %v10161
  %v10435 = vadd.f32 %v9067, %v10166
  %v10436 = vadd.f32 %v9068, %v10171
  %v10437 = vadd.f32 %v9069, %v10176
  %v10438 = vadd.f32 %v9070, %v10181
  %v10439 = vadd.f32 %v9071, %v10186
  %v10440 = vadd.f32 %v9072, %v10191
  %v10441 = vadd.f32 %v9073, %v10196
  %v10442 = vadd.f32 %v9074, %v10201
  %v10443 = vadd.f32 %v9075, %v10206
  %v10444 = vadd.f32 %v9076, %v10211
  %v10445 = vadd.f32 %v9077, %v10216
  %10446 = vst [vmem:[%s4] sm:$0xff] %v10218
  %10447 = vst [vmem:[%s4 + $0x8] sm:$0xff] %v10219
  %10448 = vst [vmem:[%s4 + $0x10] sm:$0xff] %v10220
  %10449 = vst [vmem:[%s4 + $0x18] sm:$0xff] %v10221
  %10450 = vst [vmem:[%s4 + $0x20] sm:$0xff] %v10222
  %10451 = vst [vmem:[%s4 + $0x28] sm:$0xff] %v10223
  %10452 = vst [vmem:[%s4 + $0x30] sm:$0xff] %v10224
  %10453 = vst [vmem:[%s4 + $0x38] sm:$0xff] %v10225
  %10454 = vst [vmem:[%s4 + $0x40] sm:$0xff] %v10226
  %10455 = vst [vmem:[%s4 + $0x48] sm:$0xff] %v10227
  %10456 = vst [vmem:[%s4 + $0x50] sm:$0xff] %v10228
  %10457 = vst [vmem:[%s4 + $0x58] sm:$0xff] %v10229
  %10458 = vst [vmem:[%s4 + $0x60] sm:$0xff] %v10230
  %10459 = vst [vmem:[%s4 + $0x68] sm:$0xff] %v10231
  %10460 = vst [vmem:[%s4 + $0x70] sm:$0xff] %v10232
  %10461 = vst [vmem:[%s4 + $0x78] sm:$0xff] %v10233
  %10462 = vst [vmem:[%s4 + $0x80] sm:$0xff] %v10234
  %10463 = vst [vmem:[%s4 + $0x88] sm:$0xff] %v10235
  %10464 = vst [vmem:[%s4 + $0x90] sm:$0xff] %v10236
  %10465 = vst [vmem:[%s4 + $0x98] sm:$0xff] %v10237
  %10466 = vst [vmem:[%s4 + $0xa0] sm:$0xff] %v10238
  %10467 = vst [vmem:[%s4 + $0xa8] sm:$0xff] %v10239
  %10468 = vst [vmem:[%s4 + $0xb0] sm:$0xff] %v10240
  %10469 = vst [vmem:[%s4 + $0xb8] sm:$0xff] %v10241
  %10470 = vst [vmem:[%s4 + $0xc0] sm:$0xff] %v10242
  %10471 = vst [vmem:[%s4 + $0xc8] sm:$0xff] %v10243
  %10472 = vst [vmem:[%s4 + $0xd0] sm:$0xff] %v10244
  %10473 = vst [vmem:[%s4 + $0xd8] sm:$0xff] %v10245
  %10474 = vst [vmem:[%s4 + $0xe0] sm:$0xff] %v10246
  %10475 = vst [vmem:[%s4 + $0xe8] sm:$0xff] %v10247
  %10476 = vst [vmem:[%s4 + $0xf0] sm:$0xff] %v10248
  %10477 = vst [vmem:[%s4 + $0xf8] sm:$0xff] %v10249
  %10478 = vst [vmem:[%s4 + $0x100] sm:$0xff] %v10250
  %10479 = vst [vmem:[%s4 + $0x108] sm:$0xff] %v10251
  %10480 = vst [vmem:[%s4 + $0x110] sm:$0xff] %v10252
  %10481 = vst [vmem:[%s4 + $0x118] sm:$0xff] %v10253
  %10482 = vst [vmem:[%s4 + $0x120] sm:$0xff] %v10254
  %10483 = vst [vmem:[%s4 + $0x128] sm:$0xff] %v10255
  %10484 = vst [vmem:[%s4 + $0x130] sm:$0xff] %v10256
  %10485 = vst [vmem:[%s4 + $0x138] sm:$0xff] %v10257
  %10486 = vst [vmem:[%s4 + $0x140] sm:$0xff] %v10258
  %10487 = vst [vmem:[%s4 + $0x148] sm:$0xff] %v10259
  %10488 = vst [vmem:[%s4 + $0x150] sm:$0xff] %v10260
  %10489 = vst [vmem:[%s4 + $0x158] sm:$0xff] %v10261
  %10490 = vst [vmem:[%s4 + $0x160] sm:$0xff] %v10262
  %10491 = vst [vmem:[%s4 + $0x168] sm:$0xff] %v10263
  %10492 = vst [vmem:[%s4 + $0x170] sm:$0xff] %v10264
  %10493 = vst [vmem:[%s4 + $0x178] sm:$0xff] %v10265
  %10494 = vst [vmem:[%s4 + $0x180] sm:$0xff] %v10266
  %10495 = vst [vmem:[%s4 + $0x188] sm:$0xff] %v10267
  %10496 = vst [vmem:[%s4 + $0x190] sm:$0xff] %v10268
  %10497 = vst [vmem:[%s4 + $0x198] sm:$0xff] %v10269
  %10498 = vst [vmem:[%s4 + $0x1a0] sm:$0xff] %v10270
  %10499 = vst [vmem:[%s4 + $0x1a8] sm:$0xff] %v10271
  %10500 = vst [vmem:[%s4 + $0x1b0] sm:$0xff] %v10272
  %10501 = vst [vmem:[%s4 + $0x1b8] sm:$0xff] %v10273
  %10502 = vst [vmem:[%s4 + $0x1c0] sm:$0xff] %v10274
  %10503 = vst [vmem:[%s4 + $0x1c8] sm:$0xff] %v10275
  %10504 = vst [vmem:[%s4 + $0x1d0] sm:$0xff] %v10276
  %10505 = vst [vmem:[%s4 + $0x1d8] sm:$0xff] %v10277
  %10506 = vst [vmem:[%s4 + $0x1e0] sm:$0xff] %v10278
  %10507 = vst [vmem:[%s4 + $0x1e8] sm:$0xff] %v10279
  %10508 = vst [vmem:[%s4 + $0x1f0] sm:$0xff] %v10280
  %10509 = vst [vmem:[%s4 + $0x1f8] sm:$0xff] %v10281
  %10510 = vst [vmem:[%s4 + $0x200] sm:$0xff] %v10282
  %10511 = vst [vmem:[%s4 + $0x208] sm:$0xff] %v10283
  %10512 = vst [vmem:[%s4 + $0x210] sm:$0xff] %v10284
  %10513 = vst [vmem:[%s4 + $0x218] sm:$0xff] %v10285
  %10514 = vst [vmem:[%s4 + $0x220] sm:$0xff] %v10286
  %10515 = vst [vmem:[%s4 + $0x228] sm:$0xff] %v10287
  %10516 = vst [vmem:[%s4 + $0x230] sm:$0xff] %v10288
  %10517 = vst [vmem:[%s4 + $0x238] sm:$0xff] %v10289
  %10518 = vst [vmem:[%s4 + $0x240] sm:$0xff] %v10290
  %10519 = vst [vmem:[%s4 + $0x248] sm:$0xff] %v10291
  %10520 = vst [vmem:[%s4 + $0x250] sm:$0xff] %v10292
  %10521 = vst [vmem:[%s4 + $0x258] sm:$0xff] %v10293
  %10522 = vst [vmem:[%s4 + $0x260] sm:$0xff] %v10294
  %10523 = vst [vmem:[%s4 + $0x268] sm:$0xff] %v10295
  %10524 = vst [vmem:[%s4 + $0x270] sm:$0xff] %v10296
  %10525 = vst [vmem:[%s4 + $0x278] sm:$0xff] %v10297
  %10526 = vst [vmem:[%s4 + $0x280] sm:$0xff] %v10298
  %10527 = vst [vmem:[%s4 + $0x288] sm:$0xff] %v10299
  %10528 = vst [vmem:[%s4 + $0x290] sm:$0xff] %v10300
  %10529 = vst [vmem:[%s4 + $0x298] sm:$0xff] %v10301
  %10530 = vst [vmem:[%s4 + $0x2a0] sm:$0xff] %v10302
  %10531 = vst [vmem:[%s4 + $0x2a8] sm:$0xff] %v10303
  %10532 = vst [vmem:[%s4 + $0x2b0] sm:$0xff] %v10304
  %10533 = vst [vmem:[%s4 + $0x2b8] sm:$0xff] %v10305
  %10534 = vst [vmem:[%s4 + $0x2c0] sm:$0xff] %v10306
  %10535 = vst [vmem:[%s4 + $0x2c8] sm:$0xff] %v10307
  %10536 = vst [vmem:[%s4 + $0x2d0] sm:$0xff] %v10308
  %10537 = vst [vmem:[%s4 + $0x2d8] sm:$0xff] %v10309
  %10538 = vst [vmem:[%s4 + $0x2e0] sm:$0xff] %v10310
  %10539 = vst [vmem:[%s4 + $0x2e8] sm:$0xff] %v10311
  %10540 = vst [vmem:[%s4 + $0x2f0] sm:$0xff] %v10312
  %10541 = vst [vmem:[%s4 + $0x2f8] sm:$0xff] %v10313
  %10542 = vst [vmem:[%s4 + $0x300] sm:$0xff] %v10314
  %10543 = vst [vmem:[%s4 + $0x308] sm:$0xff] %v10315
  %10544 = vst [vmem:[%s4 + $0x310] sm:$0xff] %v10316
  %10545 = vst [vmem:[%s4 + $0x318] sm:$0xff] %v10317
  %10546 = vst [vmem:[%s4 + $0x320] sm:$0xff] %v10318
  %10547 = vst [vmem:[%s4 + $0x328] sm:$0xff] %v10319
  %10548 = vst [vmem:[%s4 + $0x330] sm:$0xff] %v10320
  %10549 = vst [vmem:[%s4 + $0x338] sm:$0xff] %v10321
  %10550 = vst [vmem:[%s4 + $0x340] sm:$0xff] %v10322
  %10551 = vst [vmem:[%s4 + $0x348] sm:$0xff] %v10323
  %10552 = vst [vmem:[%s4 + $0x350] sm:$0xff] %v10324
  %10553 = vst [vmem:[%s4 + $0x358] sm:$0xff] %v10325
  %10554 = vst [vmem:[%s4 + $0x360] sm:$0xff] %v10326
  %10555 = vst [vmem:[%s4 + $0x368] sm:$0xff] %v10327
  %10556 = vst [vmem:[%s4 + $0x370] sm:$0xff] %v10328
  %10557 = vst [vmem:[%s4 + $0x378] sm:$0xff] %v10329
  %10558 = vst [vmem:[%s4 + $0x380] sm:$0xff] %v10330
  %10559 = vst [vmem:[%s4 + $0x388] sm:$0xff] %v10331
  %10560 = vst [vmem:[%s4 + $0x390] sm:$0xff] %v10332
  %10561 = vst [vmem:[%s4 + $0x398] sm:$0xff] %v10333
  %10562 = vst [vmem:[%s4 + $0x3a0] sm:$0xff] %v10334
  %10563 = vst [vmem:[%s4 + $0x3a8] sm:$0xff] %v10335
  %10564 = vst [vmem:[%s4 + $0x3b0] sm:$0xff] %v10336
  %10565 = vst [vmem:[%s4 + $0x3b8] sm:$0xff] %v10337
  %10566 = vst [vmem:[%s4 + $0x3c0] sm:$0xff] %v10338
  %10567 = vst [vmem:[%s4 + $0x3c8] sm:$0xff] %v10339
  %10568 = vst [vmem:[%s4 + $0x3d0] sm:$0xff] %v10340
  %10569 = vst [vmem:[%s4 + $0x3d8] sm:$0xff] %v10341
  %10570 = vst [vmem:[%s4 + $0x3e0] sm:$0xff] %v10342
  %10571 = vst [vmem:[%s4 + $0x3e8] sm:$0xff] %v10343
  %10572 = vst [vmem:[%s4 + $0x3f0] sm:$0xff] %v10344
  %10573 = vst [vmem:[%s4 + $0x3f8] sm:$0xff] %v10345
  %10574 = vst [vmem:[%s4 + $0x400] sm:$0xff] %v10346
  %10575 = vst [vmem:[%s4 + $0x408] sm:$0xff] %v10347
  %10576 = vst [vmem:[%s4 + $0x410] sm:$0xff] %v10348
  %10577 = vst [vmem:[%s4 + $0x418] sm:$0xff] %v10349
  %10578 = vst [vmem:[%s4 + $0x420] sm:$0xff] %v10350
  %10579 = vst [vmem:[%s4 + $0x428] sm:$0xff] %v10351
  %10580 = vst [vmem:[%s4 + $0x430] sm:$0xff] %v10352
  %10581 = vst [vmem:[%s4 + $0x438] sm:$0xff] %v10353
  %10582 = vst [vmem:[%s4 + $0x440] sm:$0xff] %v10354
  %10583 = vst [vmem:[%s4 + $0x448] sm:$0xff] %v10355
  %10584 = vst [vmem:[%s4 + $0x450] sm:$0xff] %v10356
  %10585 = vst [vmem:[%s4 + $0x458] sm:$0xff] %v10357
  %10586 = vst [vmem:[%s4 + $0x460] sm:$0xff] %v10358
  %10587 = vst [vmem:[%s4 + $0x468] sm:$0xff] %v10359
  %10588 = vst [vmem:[%s4 + $0x470] sm:$0xff] %v10360
  %10589 = vst [vmem:[%s4 + $0x478] sm:$0xff] %v10361
  %10590 = vst [vmem:[%s4 + $0x480] sm:$0xff] %v10362
  %10591 = vst [vmem:[%s4 + $0x488] sm:$0xff] %v10363
  %10592 = vst [vmem:[%s4 + $0x490] sm:$0xff] %v10364
  %10593 = vst [vmem:[%s4 + $0x498] sm:$0xff] %v10365
  %10594 = vst [vmem:[%s4 + $0x4a0] sm:$0xff] %v10366
  %10595 = vst [vmem:[%s4 + $0x4a8] sm:$0xff] %v10367
  %10596 = vst [vmem:[%s4 + $0x4b0] sm:$0xff] %v10368
  %10597 = vst [vmem:[%s4 + $0x4b8] sm:$0xff] %v10369
  %10598 = vst [vmem:[%s4 + $0x4c0] sm:$0xff] %v10370
  %10599 = vst [vmem:[%s4 + $0x4c8] sm:$0xff] %v10371
  %10600 = vst [vmem:[%s4 + $0x4d0] sm:$0xff] %v10372
  %10601 = vst [vmem:[%s4 + $0x4d8] sm:$0xff] %v10373
  %10602 = vst [vmem:[%s4 + $0x4e0] sm:$0xff] %v10374
  %10603 = vst [vmem:[%s4 + $0x4e8] sm:$0xff] %v10375
  %10604 = vst [vmem:[%s4 + $0x4f0] sm:$0xff] %v10376
  %10605 = vst [vmem:[%s4 + $0x4f8] sm:$0xff] %v10377
  %10606 = vst [vmem:[%s4 + $0x500] sm:$0xff] %v10378
  %10607 = vst [vmem:[%s4 + $0x508] sm:$0xff] %v10379
  %10608 = vst [vmem:[%s4 + $0x510] sm:$0xff] %v10380
  %10609 = vst [vmem:[%s4 + $0x518] sm:$0xff] %v10381
  %10610 = vst [vmem:[%s4 + $0x520] sm:$0xff] %v10382
  %10611 = vst [vmem:[%s4 + $0x528] sm:$0xff] %v10383
  %10612 = vst [vmem:[%s4 + $0x530] sm:$0xff] %v10384
  %10613 = vst [vmem:[%s4 + $0x538] sm:$0xff] %v10385
  %10614 = vst [vmem:[%s4 + $0x540] sm:$0xff] %v10386
  %10615 = vst [vmem:[%s4 + $0x548] sm:$0xff] %v10387
  %10616 = vst [vmem:[%s4 + $0x550] sm:$0xff] %v10388
  %10617 = vst [vmem:[%s4 + $0x558] sm:$0xff] %v10389
  %10618 = vst [vmem:[%s4 + $0x560] sm:$0xff] %v10390
  %10619 = vst [vmem:[%s4 + $0x568] sm:$0xff] %v10391
  %10620 = vst [vmem:[%s4 + $0x570] sm:$0xff] %v10392
  %10621 = vst [vmem:[%s4 + $0x578] sm:$0xff] %v10393
  %10622 = vst [vmem:[%s4 + $0x580] sm:$0xff] %v10394
  %10623 = vst [vmem:[%s4 + $0x588] sm:$0xff] %v10395
  %10624 = vst [vmem:[%s4 + $0x590] sm:$0xff] %v10396
  %10625 = vst [vmem:[%s4 + $0x598] sm:$0xff] %v10397
  %10626 = vst [vmem:[%s4 + $0x5a0] sm:$0xff] %v10398
  %10627 = vst [vmem:[%s4 + $0x5a8] sm:$0xff] %v10399
  %10628 = vst [vmem:[%s4 + $0x5b0] sm:$0xff] %v10400
  %10629 = vst [vmem:[%s4 + $0x5b8] sm:$0xff] %v10401
  %10630 = vst [vmem:[%s4 + $0x5c0] sm:$0xff] %v10402
  %10631 = vst [vmem:[%s4 + $0x5c8] sm:$0xff] %v10403
  %10632 = vst [vmem:[%s4 + $0x5d0] sm:$0xff] %v10404
  %10633 = vst [vmem:[%s4 + $0x5d8] sm:$0xff] %v10405
  %10634 = vst [vmem:[%s4 + $0x5e0] sm:$0xff] %v10406
  %10635 = vst [vmem:[%s4 + $0x5e8] sm:$0xff] %v10407
  %10636 = vst [vmem:[%s4 + $0x5f0] sm:$0xff] %v10408
  %10637 = vst [vmem:[%s4 + $0x5f8] sm:$0xff] %v10409
  %10638 = vst [vmem:[%s4 + $0x600] sm:$0xff] %v10410
  %10639 = vst [vmem:[%s4 + $0x608] sm:$0xff] %v10411
  %10640 = vst [vmem:[%s4 + $0x610] sm:$0xff] %v10412
  %10641 = vst [vmem:[%s4 + $0x618] sm:$0xff] %v10413
  %10642 = vst [vmem:[%s4 + $0x620] sm:$0xff] %v10414
  %10643 = vst [vmem:[%s4 + $0x628] sm:$0xff] %v10415
  %10644 = vst [vmem:[%s4 + $0x630] sm:$0xff] %v10416
  %10645 = vst [vmem:[%s4 + $0x638] sm:$0xff] %v10417
  %10646 = vst [vmem:[%s4 + $0x640] sm:$0xff] %v10418
  %10647 = vst [vmem:[%s4 + $0x648] sm:$0xff] %v10419
  %10648 = vst [vmem:[%s4 + $0x650] sm:$0xff] %v10420
  %10649 = vst [vmem:[%s4 + $0x658] sm:$0xff] %v10421
  %10650 = vst [vmem:[%s4 + $0x660] sm:$0xff] %v10422
  %10651 = vst [vmem:[%s4 + $0x668] sm:$0xff] %v10423
  %10652 = vst [vmem:[%s4 + $0x670] sm:$0xff] %v10424
  %10653 = vst [vmem:[%s4 + $0x678] sm:$0xff] %v10425
  %10654 = vst [vmem:[%s4 + $0x680] sm:$0xff] %v10426
  %10655 = vst [vmem:[%s4 + $0x688] sm:$0xff] %v10427
  %10656 = vst [vmem:[%s4 + $0x690] sm:$0xff] %v10428
  %10657 = vst [vmem:[%s4 + $0x698] sm:$0xff] %v10429
  %10658 = vst [vmem:[%s4 + $0x6a0] sm:$0xff] %v10430
  %10659 = vst [vmem:[%s4 + $0x6a8] sm:$0xff] %v10431
  %10660 = vst [vmem:[%s4 + $0x6b0] sm:$0xff] %v10432
  %10661 = vst [vmem:[%s4 + $0x6b8] sm:$0xff] %v10433
  %10662 = vst [vmem:[%s4 + $0x6c0] sm:$0xff] %v10434
  %10663 = vst [vmem:[%s4 + $0x6c8] sm:$0xff] %v10435
  %10664 = vst [vmem:[%s4 + $0x6d0] sm:$0xff] %v10436
  %10665 = vst [vmem:[%s4 + $0x6d8] sm:$0xff] %v10437
  %10666 = vst [vmem:[%s4 + $0x6e0] sm:$0xff] %v10438
  %10667 = vst [vmem:[%s4 + $0x6e8] sm:$0xff] %v10439
  %10668 = vst [vmem:[%s4 + $0x6f0] sm:$0xff] %v10440
  %10669 = vst [vmem:[%s4 + $0x6f8] sm:$0xff] %v10441
  %10670 = vst [vmem:[%s4 + $0x700] sm:$0xff] %v10442
  %10671 = vst [vmem:[%s4 + $0x708] sm:$0xff] %v10443
  %10672 = vst [vmem:[%s4 + $0x710] sm:$0xff] %v10444
  %10673 = vst [vmem:[%s4 + $0x718] sm:$0xff] %v10445
  // Predicated region
  $region18: #{conv1x1_batchnorm.1} parent=0 // pred_check
    _
  $region19: #{conv1x1_batchnorm.1} parent=0 // pred_check_branch
    %10675 = sbr.rel (0) target = $region21
  $region20: #{conv1x1_batchnorm.1} parent=0 // pred_region
    _
  $region21: #{conv1x1_batchnorm.1} parent=0 // pred_fallthru
    _
  // Predicated region
  $region22: #{conv1x1_batchnorm.1} parent=0 // pred_check
    _
  $region23: #{conv1x1_batchnorm.1} parent=0 // pred_check_branch
    %10677 = sbr.rel (0) target = $region25
  $region24: #{conv1x1_batchnorm.1} parent=0 // pred_region
    _
  $region25: #{conv1x1_batchnorm.1} parent=0 // pred_fallthru
    _

</llo_original>
